<compile_context>
chip_gen: v7x
topology: tpu7x:2x2x1
jax: 0.10.0
libtpu: 0.0.40
codegen_flags: <defaults>
</compile_context>

<pallas_src>
import functools
import math

import jax
import jax.numpy as jnp
from jax.experimental import pallas as pl
from jax.experimental.pallas import tpu as pltpu

EPS = 1e-6  # nn.LayerNorm(eps=1e-6)


# ----------------------------------------------------------------------------
# Fused kernel
# ----------------------------------------------------------------------------
def _layernorm(x, g2, b2):
    """x: (R, D) f32; g2/b2: (1, D). Matches torch LayerNorm (biased variance)."""
    mu = jnp.mean(x, axis=-1, keepdims=True)
    var = jnp.mean(jnp.square(x - mu), axis=-1, keepdims=True)
    return (x - mu) * jax.lax.rsqrt(var + EPS) * g2 + b2


def _vit_kernel(num_heads,
                xp_ref, pw_ref, pb_ref, pos_ref, vecs_ref,
                wqkv_ref, wo_ref, w1_ref, w2_ref,
                ng_ref, nb_ref,
                o_ref,
                x_sc):
    """Grid = (batch_block, layer). Residual stream (R, D) resident in VMEM."""
    layer = pl.program_id(1)
    bf16 = jnp.bfloat16

    R, D = x_sc.shape                 # R = Bb * S token rows
    S = pos_ref.shape[0]
    Bb = R // S
    F = w1_ref.shape[2]
    dh = D // num_heads
    scale = 1.0 / math.sqrt(dh)

    # ---- Patch embedding + positional embedding (first layer step only) ----
    @pl.when(layer == 0)
    def _():
        xp = xp_ref[...].astype(bf16)                              # (R, K)
        y = jnp.dot(xp, pw_ref[...], preferred_element_type=jnp.float32)
        y = y + pb_ref[...]
        y = y.reshape(Bb, S, D) + pos_ref[...][None]
        x_sc[...] = y.reshape(R, D)

    x = x_sc[...]                                                  # (R, D) f32

    # Packed per-layer vectors: one fused DMA per layer.
    vec = vecs_ref[0]                                              # (8, Wvec) f32
    ln1g, ln1b = vec[0:1, :D], vec[1:2, :D]
    bqkv = vec[2:3, :3 * D]
    bo = vec[3:4, :D]
    ln2g, ln2b = vec[4:5, :D], vec[5:6, :D]
    b1 = vec[6:7, :F]
    b2 = vec[7:8, :D]

    # ---- Multi-head self-attention (pre-norm) ----
    xn = _layernorm(x, ln1g, ln1b).astype(bf16)
    qkv = jnp.dot(xn, wqkv_ref[0], preferred_element_type=jnp.float32) + bqkv
    q = qkv[:, :D] * scale                                         # scale folded once
    k = qkv[:, D:2 * D]
    v = qkv[:, 2 * D:]

    wo = wo_ref[0]                                                 # (D, D) bf16
    attn_out = jnp.zeros((R, D), jnp.float32)
    # TODO(synk): at ViT-Base scale (12 heads, S~197) switch this static unroll
    # to lax.fori_loop(..., unroll=True) to bound vreg live ranges.
    for h in range(num_heads):
        sl = slice(h * dh, (h + 1) * dh)
        qh = q[:, sl].reshape(Bb, S, dh).astype(bf16)
        kh = k[:, sl].reshape(Bb, S, dh).astype(bf16)
        vh = v[:, sl].reshape(Bb, S, dh).astype(bf16)
        # Per-batch attention (no cross-batch mixing): batched einsum over Bb.
        s = jnp.einsum("bqd,bkd->bqk", qh, kh,
                       preferred_element_type=jnp.float32)          # (Bb, S, S)
        s = s - jnp.max(s, axis=-1, keepdims=True)
        p = jnp.exp(s)
        p = p * pl.reciprocal(jnp.sum(p, axis=-1, keepdims=True), approx=True)
        ctx = jnp.einsum("bqk,bkd->bqd", p.astype(bf16), vh,
                         preferred_element_type=jnp.float32)        # (Bb, S, dh)
        # Project this head directly with its W_o row slice (lane-dense output,
        # no masked 32-lane stores, no concatenate).
        attn_out = attn_out + jnp.dot(ctx.reshape(R, dh).astype(bf16), wo[sl, :],
                                      preferred_element_type=jnp.float32)
    x = x + attn_out + bo

    # ---- Position-wise feed-forward (pre-norm) ----
    xn2 = _layernorm(x, ln2g, ln2b).astype(bf16)
    h1 = jnp.dot(xn2, w1_ref[0], preferred_element_type=jnp.float32) + b1
    # TODO(synk): torch nn.GELU defaults to exact erf; tanh-approx GELU used here.
    h1 = jax.nn.gelu(h1, approximate=True).astype(bf16)
    x = x + jnp.dot(h1, w2_ref[0], preferred_element_type=jnp.float32) + b2

    x_sc[...] = x

    # ---- Final LayerNorm on the last layer step ----
    @pl.when(layer == pl.num_programs(1) - 1)
    def _():
        o_ref[...] = _layernorm(x, ng_ref[...], nb_ref[...]).astype(o_ref.dtype)


# ----------------------------------------------------------------------------
# pallas_call wrapper
# ----------------------------------------------------------------------------
def _vmem_limit_bytes(R, S, K, D, F, Wvec):
    bf_b, f_b = 2, 4
    layer_w = (D * 3 * D + D * D + D * F + F * D) * bf_b + 8 * Wvec * f_b
    const_w = K * D * bf_b + (D + S * D + 2 * D) * f_b
    io = (R * K + R * D) * f_b
    scratch = R * D * f_b
    need = 2 * layer_w + const_w + 2 * io + scratch
    # Headroom, clamped well below v7x's 64 MiB physical VMEM.
    return int(min(max(2 * need + (2 << 20), 8 << 20), 40 << 20))


def vit_forward(x_nchw, params, patch, num_heads, *, batch_block=None):
    """Full ViT forward. x_nchw: (B, C, H, W) float32 -> (B, S, D) float32."""
    B, C, H, W = x_nchw.shape
    P = patch
    gh, gw = H // P, W // P
    S = gh * gw
    K = C * P * P
    # im2col glue: strided-conv patch extraction flattened in (c, i, j) order,
    # matching Conv2d weight.reshape(D, -1); tokens flattened to (B*S, K) rows.
    xp = x_nchw.reshape(B, C, gh, P, gw, P).transpose(0, 2, 4, 1, 3, 5)
    xp = xp.reshape(B * S, K)

    D = params["patch_w"].shape[1]
    F = params["w1"].shape[2]
    L = params["wqkv"].shape[0]
    Wvec = params["vecs"].shape[2]

    if batch_block is None:
        # Fold batch into matmul rows; keep >=2 parallel grid steps (v7x has
        # 2 TensorCores) when the per-step slab still has >=128 MXU rows.
        batch_block = B
        if B % 2 == 0 and (B // 2) * S >= 128:
            batch_block = B // 2
    assert B % batch_block == 0
    Bb = batch_block
    R = Bb * S

    row = lambda r, c: pl.BlockSpec((r, c), lambda b, l: (b, 0))
    const2 = lambda r, c: pl.BlockSpec((r, c), lambda b, l: (0, 0))
    layer3 = lambda r, c: pl.BlockSpec((1, r, c), lambda b, l: (l, 0, 0))

    in_specs = [
        row(R, K),              # xp rows for this batch block
        const2(K, D),           # patch_w (bf16, fetched once)
        const2(1, D),           # patch_b
        const2(S, D),           # pos
        layer3(8, Wvec),        # packed per-layer vectors (f32)
        layer3(D, 3 * D),       # wqkv (bf16)
        layer3(D, D),           # wo (bf16)
        layer3(D, F),           # w1 (bf16)
        layer3(F, D),           # w2 (bf16)
        const2(1, D),           # norm_g
        const2(1, D),           # norm_b
    ]
    out_spec = pl.BlockSpec((R, D), lambda b, l: (b, 0))

    out = pl.pallas_call(
        functools.partial(_vit_kernel, num_heads),
        out_shape=jax.ShapeDtypeStruct((B * S, D), jnp.float32),
        grid_spec=pltpu.PrefetchScalarGridSpec(
            num_scalar_prefetch=0,
            grid=(B // Bb, L),
            in_specs=in_specs,
            out_specs=out_spec,
            scratch_shapes=[pltpu.VMEM((R, D), jnp.float32)]),   # residual stream
        compiler_params=pltpu.CompilerParams(
            dimension_semantics=("parallel", "arbitrary"),
            vmem_limit_bytes=_vmem_limit_bytes(R, S, K, D, F, Wvec)),
    )(xp, params["patch_w"], params["patch_b"], params["pos"], params["vecs"],
      params["wqkv"], params["wo"], params["w1"], params["w2"],
      params["norm_g"], params["norm_b"])
    return out.reshape(B, S, D)


# ----------------------------------------------------------------------------
# Deterministic parameter init (shapes per ViT.__init__; synthetic values).
# Matmul weights are bf16 (MXU inputs); biases / LN / pos stay f32.  Per-layer
# small vectors are packed into a single (L, 8, Wvec) array.
# ----------------------------------------------------------------------------
def init_params(key, *, C, P, D, F, heads, L, S):
    del heads
    K = C * P * P
    Wvec = ((max(3 * D, F) + 127) // 128) * 128
    ks = iter(jax.random.split(key, 3 + 8 * L))

    def xavier(k, shape):
        lim = math.sqrt(6.0 / (shape[-2] + shape[-1]))
        return jax.random.uniform(k, shape, jnp.float32, -lim, lim)

    params = {
        # Conv2d(C, D, kernel=P, stride=P) expressed as (K, D) matmul weight.
        "patch_w": (jax.random.normal(next(ks), (K, D), jnp.float32) * 0.02
                    ).astype(jnp.bfloat16),
        "patch_b": jax.random.normal(next(ks), (1, D), jnp.float32) * 1e-6,
        # PositionalEmbedding1D: (1, S, D) ~ N(0, 0.02); stored as (S, D).
        "pos": jax.random.normal(next(ks), (S, D), jnp.float32) * 0.02,
        "norm_g": jnp.ones((1, D), jnp.float32),
        "norm_b": jnp.zeros((1, D), jnp.float32),
    }
    wqkv, wo, w1, w2, vecs = [], [], [], [], []
    for _ in range(L):
        wqkv.append(xavier(next(ks), (D, 3 * D)).astype(jnp.bfloat16))
        wo.append(xavier(next(ks), (D, D)).astype(jnp.bfloat16))
        w1.append(xavier(next(ks), (D, F)).astype(jnp.bfloat16))
        w2.append(xavier(next(ks), (F, D)).astype(jnp.bfloat16))
        bqkv = jax.random.normal(next(ks), (3 * D,), jnp.float32) * 1e-6
        bo = jax.random.normal(next(ks), (D,), jnp.float32) * 1e-6
        b1 = jax.random.normal(next(ks), (F,), jnp.float32) * 1e-6
        b2 = jax.random.normal(next(ks), (D,), jnp.float32) * 1e-6
        v8 = jnp.zeros((8, Wvec), jnp.float32)
        v8 = v8.at[0, :D].set(1.0)        # ln1 gamma
        # row 1: ln1 beta = 0
        v8 = v8.at[2, :3 * D].set(bqkv)
        v8 = v8.at[3, :D].set(bo)
        v8 = v8.at[4, :D].set(1.0)        # ln2 gamma
        # row 5: ln2 beta = 0
        v8 = v8.at[6, :F].set(b1)
        v8 = v8.at[7, :D].set(b2)
        vecs.append(v8)
    params["wqkv"] = jnp.stack(wqkv)
    params["wo"] = jnp.stack(wo)
    params["w1"] = jnp.stack(w1)
    params["w2"] = jnp.stack(w2)
    params["vecs"] = jnp.stack(vecs)
    return params


# ----------------------------------------------------------------------------
# Pure-JAX reference (same math, bf16-rounded matmul inputs, f32 accumulation)
# ----------------------------------------------------------------------------
def _ln_ref(x, g, b):
    mu = jnp.mean(x, axis=-1, keepdims=True)
    var = jnp.mean(jnp.square(x - mu), axis=-1, keepdims=True)
    return (x - mu) / jnp.sqrt(var + EPS) * g + b


def _b(x):
    """Round to bf16 (matmul-input precision) but compute in f32."""
    return x.astype(jnp.bfloat16).astype(jnp.float32)


def vit_reference(x_nchw, params, patch, num_heads):
    B, C, H, W = x_nchw.shape
    P = patch
    gh, gw = H // P, W // P
    S = gh * gw
    xp = x_nchw.reshape(B, C, gh, P, gw, P).transpose(0, 2, 4, 1, 3, 5)
    xp = xp.reshape(B, S, C * P * P)

    f32 = jnp.float32
    D = params["patch_w"].shape[1]
    F = params["w1"].shape[2]
    x = _b(xp) @ params["patch_w"].astype(f32) + params["patch_b"] + params["pos"][None]
    dh = D // num_heads
    scale = 1.0 / math.sqrt(dh)
    L = params["wqkv"].shape[0]
    for l in range(L):
        vec = params["vecs"][l]
        ln1g, ln1b = vec[0, :D], vec[1, :D]
        bqkv, bo = vec[2, :3 * D], vec[3, :D]
        ln2g, ln2b = vec[4, :D], vec[5, :D]
        b1, b2 = vec[6, :F], vec[7, :D]

        xn = _ln_ref(x, ln1g, ln1b)
        qkv = _b(xn) @ params["wqkv"][l].astype(f32) + bqkv
        q, k, v = qkv[..., :D] * scale, qkv[..., D:2 * D], qkv[..., 2 * D:]
        q = q.reshape(B, S, num_heads, dh).transpose(0, 2, 1, 3)
        k = k.reshape(B, S, num_heads, dh).transpose(0, 2, 1, 3)
        v = v.reshape(B, S, num_heads, dh).transpose(0, 2, 1, 3)
        s = jnp.einsum("bhqd,bhkd->bhqk", _b(q), _b(k))
        p = jax.nn.softmax(s, axis=-1)
        a = jnp.einsum("bhqk,bhkd->bhqd", _b(p), _b(v))
        a = a.transpose(0, 2, 1, 3).reshape(B, S, D)
        x = x + _b(a) @ params["wo"][l].astype(f32) + bo
        xn2 = _ln_ref(x, ln2g, ln2b)
        h1 = jax.nn.gelu(_b(xn2) @ params["w1"][l].astype(f32) + b1,
                         approximate=True)
        x = x + _b(h1) @ params["w2"][l].astype(f32) + b2
    return _ln_ref(x, params["norm_g"], params["norm_b"])


# ----------------------------------------------------------------------------
if __name__ == "__main__":
    # Small ViT config: image 16x16, patch 4 -> 16 tokens; lane-dense dim 128,
    # ff 256, 4 heads, 2 layers.  Batch 16 so each grid step works on a
    # 128-row token slab (Bb=8) and the parallel axis has 2 steps (v7x).
    B, C, IMG, P = 16, 3, 16, 4
    D, FF, NH, L = 128, 256, 4, 2
    S = (IMG // P) ** 2

    key = jax.random.PRNGKey(0)
    kx, kp = jax.random.split(key)
    x = jax.random.normal(kx, (B, C, IMG, IMG), jnp.float32)
    params = init_params(kp, C=C, P=P, D=D, F=FF, heads=NH, L=L, S=S)

    out = vit_forward(x, params, P, NH)
    out = jax.block_until_ready(out)

    ref = vit_reference(x, params, P, NH)
    assert out.shape == (B, S, D), out.shape
    max_err = float(jnp.max(jnp.abs(out - ref)))
    assert jnp.allclose(out, ref, atol=5e-2, rtol=5e-2), f"max_err={max_err}"
    print("KERNEL_OK")
</pallas_src>

<mosaic_0001>
module attributes {stable_mosaic.version = 11 : i64} {
  func.func @_vit_kernel(%arg0: i32, %arg1: i32, %arg2: memref<128x48xf32, #tpu.memory_space<vmem>>, %arg3: memref<48x128xbf16, #tpu.memory_space<vmem>>, %arg4: memref<1x128xf32, #tpu.memory_space<vmem>>, %arg5: memref<16x128xf32, #tpu.memory_space<vmem>>, %arg6: memref<1x8x384xf32, #tpu.memory_space<vmem>>, %arg7: memref<1x128x384xbf16, #tpu.memory_space<vmem>>, %arg8: memref<1x128x128xbf16, #tpu.memory_space<vmem>>, %arg9: memref<1x128x256xbf16, #tpu.memory_space<vmem>>, %arg10: memref<1x256x128xbf16, #tpu.memory_space<vmem>>, %arg11: memref<1x128xf32, #tpu.memory_space<vmem>>, %arg12: memref<1x128xf32, #tpu.memory_space<vmem>>, %arg13: memref<128x128xf32, #tpu.memory_space<vmem>>, %arg14: memref<128x128xf32, #tpu.memory_space<vmem>>) attributes {dimension_semantics = [#tpu.dimension_semantics<parallel>, #tpu.dimension_semantics<arbitrary>], iteration_bounds = array<i64: 2, 2>, scalar_prefetch = 0 : i64, scratch_operands = 1 : i64, tpu.core_type = #tpu.core_type<tc>, window_params = [{transform_indices = @transform_0, window_bounds = array<i64: 128, 48>}, {pipeline_mode = #tpu.pipeline_mode<synchronous>, transform_indices = @transform_1, window_bounds = array<i64: 48, 128>}, {pipeline_mode = #tpu.pipeline_mode<synchronous>, transform_indices = @transform_2, window_bounds = array<i64: 1, 128>}, {pipeline_mode = #tpu.pipeline_mode<synchronous>, transform_indices = @transform_3, window_bounds = array<i64: 16, 128>}, {transform_indices = @transform_4, window_bounds = array<i64: 1, 8, 384>}, {transform_indices = @transform_5, window_bounds = array<i64: 1, 128, 384>}, {transform_indices = @transform_6, window_bounds = array<i64: 1, 128, 128>}, {transform_indices = @transform_7, window_bounds = array<i64: 1, 128, 256>}, {transform_indices = @transform_8, window_bounds = array<i64: 1, 256, 128>}, {pipeline_mode = #tpu.pipeline_mode<synchronous>, transform_indices = @transform_9, window_bounds = array<i64: 1, 128>}, {pipeline_mode = #tpu.pipeline_mode<synchronous>, transform_indices = @transform_10, window_bounds = array<i64: 1, 128>}, {transform_indices = @transform_11, window_bounds = array<i64: 128, 128>}]} {
    %c0_i32 = arith.constant 0 : i32
    %0 = arith.cmpi eq, %arg1, %c0_i32 : i32
    %1 = arith.extui %0 : i1 to i32
    %c0_i32_0 = arith.constant 0 : i32
    %2 = arith.cmpi ne, %1, %c0_i32_0 : i32
    scf.if %2 {
      %c0_58 = arith.constant 0 : index
      %c0_59 = arith.constant 0 : index
      %213 = vector.load %arg2[%c0_58, %c0_59] : memref<128x48xf32, #tpu.memory_space<vmem>>, vector<128x48xf32>
      %214 = arith.truncf %213 : vector<128x48xf32> to vector<128x48xbf16>
      %c0_60 = arith.constant 0 : index
      %c0_61 = arith.constant 0 : index
      %215 = vector.load %arg3[%c0_60, %c0_61] : memref<48x128xbf16, #tpu.memory_space<vmem>>, vector<48x128xbf16>
      %cst_62 = arith.constant dense<0.000000e+00> : vector<128x128xf32>
      %216 = tpu.matmul %214, %215, %cst_62 {dimension_numbers = #tpu.dot_dimension_numbers<[1], [0], [0], [1], [0, 0, 1, 1], [], []>} : vector<128x48xbf16>, vector<48x128xbf16>, vector<128x128xf32> -> vector<128x128xf32>
      %c0_63 = arith.constant 0 : index
      %c0_64 = arith.constant 0 : index
      %217 = vector.load %arg4[%c0_63, %c0_64] : memref<1x128xf32, #tpu.memory_space<vmem>>, vector<1x128xf32>
      %218 = vector.broadcast %217 : vector<1x128xf32> to vector<128x128xf32>
      %219 = arith.addf %216, %218 : vector<128x128xf32>
      %220 = vector.shape_cast %219 : vector<128x128xf32> to vector<8x16x128xf32>
      %c0_65 = arith.constant 0 : index
      %c0_66 = arith.constant 0 : index
      %221 = vector.load %arg5[%c0_65, %c0_66] : memref<16x128xf32, #tpu.memory_space<vmem>>, vector<16x128xf32>
      %222 = vector.shape_cast %221 : vector<16x128xf32> to vector<1x16x128xf32>
      %223 = vector.broadcast %222 : vector<1x16x128xf32> to vector<8x16x128xf32>
      %224 = arith.addf %220, %223 : vector<8x16x128xf32>
      %225 = vector.shape_cast %224 : vector<8x16x128xf32> to vector<128x128xf32>
      %c0_67 = arith.constant 0 : index
      %c0_68 = arith.constant 0 : index
      %226 = vector.load %arg14[%c0_67, %c0_68] : memref<128x128xf32, #tpu.memory_space<vmem>>, vector<128x128xf32>
      tpu.vector_store %arg14[%c0_67, %c0_68], %225 {strides = array<i32>} : memref<128x128xf32, #tpu.memory_space<vmem>>, vector<128x128xf32>,
    } else {
    }
    %c0 = arith.constant 0 : index
    %c0_1 = arith.constant 0 : index
    %3 = vector.load %arg14[%c0, %c0_1] : memref<128x128xf32, #tpu.memory_space<vmem>>, vector<128x128xf32>
    %c0_2 = arith.constant 0 : index
    %c0_3 = arith.constant 0 : index
    %c0_4 = arith.constant 0 : index
    %4 = vector.load %arg6[%c0_2, %c0_3, %c0_4] : memref<1x8x384xf32, #tpu.memory_space<vmem>>, vector<1x8x384xf32>
    %5 = vector.shape_cast %4 : vector<1x8x384xf32> to vector<8x384xf32>
    %6 = vector.extract_strided_slice %5 {offsets = [0, 0], sizes = [1, 128], strides = [1, 1]} : vector<8x384xf32> to vector<1x128xf32>
    %7 = vector.extract_strided_slice %5 {offsets = [1, 0], sizes = [1, 128], strides = [1, 1]} : vector<8x384xf32> to vector<1x128xf32>
    %8 = vector.extract_strided_slice %5 {offsets = [2, 0], sizes = [1, 384], strides = [1, 1]} : vector<8x384xf32> to vector<1x384xf32>
    %9 = vector.extract_strided_slice %5 {offsets = [3, 0], sizes = [1, 128], strides = [1, 1]} : vector<8x384xf32> to vector<1x128xf32>
    %10 = vector.extract_strided_slice %5 {offsets = [4, 0], sizes = [1, 128], strides = [1, 1]} : vector<8x384xf32> to vector<1x128xf32>
    %11 = vector.extract_strided_slice %5 {offsets = [5, 0], sizes = [1, 128], strides = [1, 1]} : vector<8x384xf32> to vector<1x128xf32>
    %12 = vector.extract_strided_slice %5 {offsets = [6, 0], sizes = [1, 256], strides = [1, 1]} : vector<8x384xf32> to vector<1x256xf32>
    %13 = vector.extract_strided_slice %5 {offsets = [7, 0], sizes = [1, 128], strides = [1, 1]} : vector<8x384xf32> to vector<1x128xf32>
    %cst = arith.constant dense<0.000000e+00> : vector<128xf32>
    %14 = vector.multi_reduction <add>, %3, %cst [1] : vector<128x128xf32> to vector<128xf32>
    %15 = vector.shape_cast %14 : vector<128xf32> to vector<128x1xf32>
    %cst_5 = arith.constant 1.280000e+02 : f32
    %16 = vector.broadcast %cst_5 : f32 to vector<128x1xf32>
    %17 = arith.divf %15, %16 : vector<128x1xf32>
    %18 = vector.broadcast %17 : vector<128x1xf32> to vector<128x128xf32>
    %19 = arith.subf %3, %18 : vector<128x128xf32>
    %20 = arith.mulf %19, %19 : vector<128x128xf32>
    %cst_6 = arith.constant dense<0.000000e+00> : vector<128xf32>
    %21 = vector.multi_reduction <add>, %20, %cst_6 [1] : vector<128x128xf32> to vector<128xf32>
    %22 = vector.shape_cast %21 : vector<128xf32> to vector<128x1xf32>
    %cst_7 = arith.constant 1.280000e+02 : f32
    %23 = vector.broadcast %cst_7 : f32 to vector<128x1xf32>
    %24 = arith.divf %22, %23 : vector<128x1xf32>
    %25 = vector.broadcast %17 : vector<128x1xf32> to vector<128x128xf32>
    %26 = arith.subf %3, %25 : vector<128x128xf32>
    %cst_8 = arith.constant 9.99999997E-7 : f32
    %27 = vector.broadcast %cst_8 : f32 to vector<128x1xf32>
    %28 = arith.addf %24, %27 : vector<128x1xf32>
    %29 = math.rsqrt %28 : vector<128x1xf32>
    %30 = vector.broadcast %29 : vector<128x1xf32> to vector<128x128xf32>
    %31 = arith.mulf %26, %30 : vector<128x128xf32>
    %32 = vector.broadcast %6 : vector<1x128xf32> to vector<128x128xf32>
    %33 = arith.mulf %31, %32 : vector<128x128xf32>
    %34 = vector.broadcast %7 : vector<1x128xf32> to vector<128x128xf32>
    %35 = arith.addf %33, %34 : vector<128x128xf32>
    %36 = arith.truncf %35 : vector<128x128xf32> to vector<128x128xbf16>
    %c0_9 = arith.constant 0 : index
    %c0_10 = arith.constant 0 : index
    %c0_11 = arith.constant 0 : index
    %37 = vector.load %arg7[%c0_9, %c0_10, %c0_11] : memref<1x128x384xbf16, #tpu.memory_space<vmem>>, vector<1x128x384xbf16>
    %38 = vector.shape_cast %37 : vector<1x128x384xbf16> to vector<128x384xbf16>
    %cst_12 = arith.constant dense<0.000000e+00> : vector<128x384xf32>
    %39 = tpu.matmul %36, %38, %cst_12 {dimension_numbers = #tpu.dot_dimension_numbers<[1], [0], [0], [1], [0, 0, 1, 1], [], []>} : vector<128x128xbf16>, vector<128x384xbf16>, vector<128x384xf32> -> vector<128x384xf32>
    %40 = vector.broadcast %8 : vector<1x384xf32> to vector<128x384xf32>
    %41 = arith.addf %39, %40 : vector<128x384xf32>
    %42 = vector.extract_strided_slice %41 {offsets = [0, 0], sizes = [128, 128], strides = [1, 1]} : vector<128x384xf32> to vector<128x128xf32>
    %cst_13 = arith.constant 0.176776692 : f32
    %43 = vector.broadcast %cst_13 : f32 to vector<128x128xf32>
    %44 = arith.mulf %42, %43 : vector<128x128xf32>
    %45 = vector.extract_strided_slice %41 {offsets = [0, 128], sizes = [128, 128], strides = [1, 1]} : vector<128x384xf32> to vector<128x128xf32>
    %46 = vector.extract_strided_slice %41 {offsets = [0, 256], sizes = [128, 128], strides = [1, 1]} : vector<128x384xf32> to vector<128x128xf32>
    %c0_14 = arith.constant 0 : index
    %c0_15 = arith.constant 0 : index
    %c0_16 = arith.constant 0 : index
    %47 = vector.load %arg8[%c0_14, %c0_15, %c0_16] : memref<1x128x128xbf16, #tpu.memory_space<vmem>>, vector<1x128x128xbf16>
    %48 = vector.shape_cast %47 : vector<1x128x128xbf16> to vector<128x128xbf16>
    %cst_17 = arith.constant 0.000000e+00 : f32
    %49 = vector.broadcast %cst_17 : f32 to vector<128x128xf32>
    %50 = vector.extract_strided_slice %44 {offsets = [0, 0], sizes = [128, 32], strides = [1, 1]} : vector<128x128xf32> to vector<128x32xf32>
    %51 = vector.shape_cast %50 : vector<128x32xf32> to vector<8x16x32xf32>
    %52 = arith.truncf %51 : vector<8x16x32xf32> to vector<8x16x32xbf16>
    %53 = vector.extract_strided_slice %45 {offsets = [0, 0], sizes = [128, 32], strides = [1, 1]} : vector<128x128xf32> to vector<128x32xf32>
    %54 = vector.shape_cast %53 : vector<128x32xf32> to vector<8x16x32xf32>
    %55 = arith.truncf %54 : vector<8x16x32xf32> to vector<8x16x32xbf16>
    %56 = vector.extract_strided_slice %46 {offsets = [0, 0], sizes = [128, 32], strides = [1, 1]} : vector<128x128xf32> to vector<128x32xf32>
    %57 = vector.shape_cast %56 : vector<128x32xf32> to vector<8x16x32xf32>
    %58 = arith.truncf %57 : vector<8x16x32xf32> to vector<8x16x32xbf16>
    "tpu.trace_start"() <{level = 10 : i32, message = "bqd,bkd->bqk"}> : () -> ()
    %cst_18 = arith.constant dense<0.000000e+00> : vector<8x16x16xf32>
    %59 = tpu.matmul %52, %55, %cst_18 {dimension_numbers = #tpu.dot_dimension_numbers<[2], [2], [1], [1], [0, 0, 0, 1, 1, 1], [0], [0]>} : vector<8x16x32xbf16>, vector<8x16x32xbf16>, vector<8x16x16xf32> -> vector<8x16x16xf32>
    "tpu.trace_stop"() : () -> ()
    %cst_19 = arith.constant dense<0xFF800000> : vector<8x16xf32>
    %60 = vector.multi_reduction <maximumf>, %59, %cst_19 [2] : vector<8x16x16xf32> to vector<8x16xf32>
    %61 = vector.shape_cast %60 : vector<8x16xf32> to vector<8x16x1xf32>
    %62 = vector.broadcast %61 : vector<8x16x1xf32> to vector<8x16x16xf32>
    %63 = arith.subf %59, %62 : vector<8x16x16xf32>
    %64 = math.exp %63 : vector<8x16x16xf32>
    %cst_20 = arith.constant dense<0.000000e+00> : vector<8x16xf32>
    %65 = vector.multi_reduction <add>, %64, %cst_20 [2] : vector<8x16x16xf32> to vector<8x16xf32>
    %66 = vector.shape_cast %65 : vector<8x16xf32> to vector<8x16x1xf32>
    %67 = tpu.reciprocal %66 {approx = true} : vector<8x16x1xf32> -> vector<8x16x1xf32>
    %68 = vector.broadcast %67 : vector<8x16x1xf32> to vector<8x16x16xf32>
    %69 = arith.mulf %64, %68 : vector<8x16x16xf32>
    %70 = arith.truncf %69 : vector<8x16x16xf32> to vector<8x16x16xbf16>
    "tpu.trace_start"() <{level = 10 : i32, message = "bqk,bkd->bqd"}> : () -> ()
    %cst_21 = arith.constant dense<0.000000e+00> : vector<8x16x32xf32>
    %71 = tpu.matmul %70, %58, %cst_21 {dimension_numbers = #tpu.dot_dimension_numbers<[2], [1], [1], [2], [0, 0, 0, 1, 1, 2], [0], [0]>} : vector<8x16x16xbf16>, vector<8x16x32xbf16>, vector<8x16x32xf32> -> vector<8x16x32xf32>
    "tpu.trace_stop"() : () -> ()
    %72 = vector.shape_cast %71 : vector<8x16x32xf32> to vector<128x32xf32>
    %73 = arith.truncf %72 : vector<128x32xf32> to vector<128x32xbf16>
    %74 = vector.extract_strided_slice %48 {offsets = [0, 0], sizes = [32, 128], strides = [1, 1]} : vector<128x128xbf16> to vector<32x128xbf16>
    %cst_22 = arith.constant dense<0.000000e+00> : vector<128x128xf32>
    %75 = tpu.matmul %73, %74, %cst_22 {dimension_numbers = #tpu.dot_dimension_numbers<[1], [0], [0], [1], [0, 0, 1, 1], [], []>} : vector<128x32xbf16>, vector<32x128xbf16>, vector<128x128xf32> -> vector<128x128xf32>
    %76 = arith.addf %49, %75 : vector<128x128xf32>
    %77 = vector.extract_strided_slice %44 {offsets = [0, 32], sizes = [128, 32], strides = [1, 1]} : vector<128x128xf32> to vector<128x32xf32>
    %78 = vector.shape_cast %77 : vector<128x32xf32> to vector<8x16x32xf32>
    %79 = arith.truncf %78 : vector<8x16x32xf32> to vector<8x16x32xbf16>
    %80 = vector.extract_strided_slice %45 {offsets = [0, 32], sizes = [128, 32], strides = [1, 1]} : vector<128x128xf32> to vector<128x32xf32>
    %81 = vector.shape_cast %80 : vector<128x32xf32> to vector<8x16x32xf32>
    %82 = arith.truncf %81 : vector<8x16x32xf32> to vector<8x16x32xbf16>
    %83 = vector.extract_strided_slice %46 {offsets = [0, 32], sizes = [128, 32], strides = [1, 1]} : vector<128x128xf32> to vector<128x32xf32>
    %84 = vector.shape_cast %83 : vector<128x32xf32> to vector<8x16x32xf32>
    %85 = arith.truncf %84 : vector<8x16x32xf32> to vector<8x16x32xbf16>
    "tpu.trace_start"() <{level = 10 : i32, message = "bqd,bkd->bqk"}> : () -> ()
    %cst_23 = arith.constant dense<0.000000e+00> : vector<8x16x16xf32>
    %86 = tpu.matmul %79, %82, %cst_23 {dimension_numbers = #tpu.dot_dimension_numbers<[2], [2], [1], [1], [0, 0, 0, 1, 1, 1], [0], [0]>} : vector<8x16x32xbf16>, vector<8x16x32xbf16>, vector<8x16x16xf32> -> vector<8x16x16xf32>
    "tpu.trace_stop"() : () -> ()
    %cst_24 = arith.constant dense<0xFF800000> : vector<8x16xf32>
    %87 = vector.multi_reduction <maximumf>, %86, %cst_24 [2] : vector<8x16x16xf32> to vector<8x16xf32>
    %88 = vector.shape_cast %87 : vector<8x16xf32> to vector<8x16x1xf32>
    %89 = vector.broadcast %88 : vector<8x16x1xf32> to vector<8x16x16xf32>
    %90 = arith.subf %86, %89 : vector<8x16x16xf32>
    %91 = math.exp %90 : vector<8x16x16xf32>
    %cst_25 = arith.constant dense<0.000000e+00> : vector<8x16xf32>
    %92 = vector.multi_reduction <add>, %91, %cst_25 [2] : vector<8x16x16xf32> to vector<8x16xf32>
    %93 = vector.shape_cast %92 : vector<8x16xf32> to vector<8x16x1xf32>
    %94 = tpu.reciprocal %93 {approx = true} : vector<8x16x1xf32> -> vector<8x16x1xf32>
    %95 = vector.broadcast %94 : vector<8x16x1xf32> to vector<8x16x16xf32>
    %96 = arith.mulf %91, %95 : vector<8x16x16xf32>
    %97 = arith.truncf %96 : vector<8x16x16xf32> to vector<8x16x16xbf16>
    "tpu.trace_start"() <{level = 10 : i32, message = "bqk,bkd->bqd"}> : () -> ()
    %cst_26 = arith.constant dense<0.000000e+00> : vector<8x16x32xf32>
    %98 = tpu.matmul %97, %85, %cst_26 {dimension_numbers = #tpu.dot_dimension_numbers<[2], [1], [1], [2], [0, 0, 0, 1, 1, 2], [0], [0]>} : vector<8x16x16xbf16>, vector<8x16x32xbf16>, vector<8x16x32xf32> -> vector<8x16x32xf32>
    "tpu.trace_stop"() : () -> ()
    %99 = vector.shape_cast %98 : vector<8x16x32xf32> to vector<128x32xf32>
    %100 = arith.truncf %99 : vector<128x32xf32> to vector<128x32xbf16>
    %101 = vector.extract_strided_slice %48 {offsets = [32, 0], sizes = [32, 128], strides = [1, 1]} : vector<128x128xbf16> to vector<32x128xbf16>
    %cst_27 = arith.constant dense<0.000000e+00> : vector<128x128xf32>
    %102 = tpu.matmul %100, %101, %cst_27 {dimension_numbers = #tpu.dot_dimension_numbers<[1], [0], [0], [1], [0, 0, 1, 1], [], []>} : vector<128x32xbf16>, vector<32x128xbf16>, vector<128x128xf32> -> vector<128x128xf32>
    %103 = arith.addf %76, %102 : vector<128x128xf32>
    %104 = vector.extract_strided_slice %44 {offsets = [0, 64], sizes = [128, 32], strides = [1, 1]} : vector<128x128xf32> to vector<128x32xf32>
    %105 = vector.shape_cast %104 : vector<128x32xf32> to vector<8x16x32xf32>
    %106 = arith.truncf %105 : vector<8x16x32xf32> to vector<8x16x32xbf16>
    %107 = vector.extract_strided_slice %45 {offsets = [0, 64], sizes = [128, 32], strides = [1, 1]} : vector<128x128xf32> to vector<128x32xf32>
    %108 = vector.shape_cast %107 : vector<128x32xf32> to vector<8x16x32xf32>
    %109 = arith.truncf %108 : vector<8x16x32xf32> to vector<8x16x32xbf16>
    %110 = vector.extract_strided_slice %46 {offsets = [0, 64], sizes = [128, 32], strides = [1, 1]} : vector<128x128xf32> to vector<128x32xf32>
    %111 = vector.shape_cast %110 : vector<128x32xf32> to vector<8x16x32xf32>
    %112 = arith.truncf %111 : vector<8x16x32xf32> to vector<8x16x32xbf16>
    "tpu.trace_start"() <{level = 10 : i32, message = "bqd,bkd->bqk"}> : () -> ()
    %cst_28 = arith.constant dense<0.000000e+00> : vector<8x16x16xf32>
    %113 = tpu.matmul %106, %109, %cst_28 {dimension_numbers = #tpu.dot_dimension_numbers<[2], [2], [1], [1], [0, 0, 0, 1, 1, 1], [0], [0]>} : vector<8x16x32xbf16>, vector<8x16x32xbf16>, vector<8x16x16xf32> -> vector<8x16x16xf32>
    "tpu.trace_stop"() : () -> ()
    %cst_29 = arith.constant dense<0xFF800000> : vector<8x16xf32>
    %114 = vector.multi_reduction <maximumf>, %113, %cst_29 [2] : vector<8x16x16xf32> to vector<8x16xf32>
    %115 = vector.shape_cast %114 : vector<8x16xf32> to vector<8x16x1xf32>
    %116 = vector.broadcast %115 : vector<8x16x1xf32> to vector<8x16x16xf32>
    %117 = arith.subf %113, %116 : vector<8x16x16xf32>
    %118 = math.exp %117 : vector<8x16x16xf32>
    %cst_30 = arith.constant dense<0.000000e+00> : vector<8x16xf32>
    %119 = vector.multi_reduction <add>, %118, %cst_30 [2] : vector<8x16x16xf32> to vector<8x16xf32>
    %120 = vector.shape_cast %119 : vector<8x16xf32> to vector<8x16x1xf32>
    %121 = tpu.reciprocal %120 {approx = true} : vector<8x16x1xf32> -> vector<8x16x1xf32>
    %122 = vector.broadcast %121 : vector<8x16x1xf32> to vector<8x16x16xf32>
    %123 = arith.mulf %118, %122 : vector<8x16x16xf32>
    %124 = arith.truncf %123 : vector<8x16x16xf32> to vector<8x16x16xbf16>
    "tpu.trace_start"() <{level = 10 : i32, message = "bqk,bkd->bqd"}> : () -> ()
    %cst_31 = arith.constant dense<0.000000e+00> : vector<8x16x32xf32>
    %125 = tpu.matmul %124, %112, %cst_31 {dimension_numbers = #tpu.dot_dimension_numbers<[2], [1], [1], [2], [0, 0, 0, 1, 1, 2], [0], [0]>} : vector<8x16x16xbf16>, vector<8x16x32xbf16>, vector<8x16x32xf32> -> vector<8x16x32xf32>
    "tpu.trace_stop"() : () -> ()
    %126 = vector.shape_cast %125 : vector<8x16x32xf32> to vector<128x32xf32>
    %127 = arith.truncf %126 : vector<128x32xf32> to vector<128x32xbf16>
    %128 = vector.extract_strided_slice %48 {offsets = [64, 0], sizes = [32, 128], strides = [1, 1]} : vector<128x128xbf16> to vector<32x128xbf16>
    %cst_32 = arith.constant dense<0.000000e+00> : vector<128x128xf32>
    %129 = tpu.matmul %127, %128, %cst_32 {dimension_numbers = #tpu.dot_dimension_numbers<[1], [0], [0], [1], [0, 0, 1, 1], [], []>} : vector<128x32xbf16>, vector<32x128xbf16>, vector<128x128xf32> -> vector<128x128xf32>
    %130 = arith.addf %103, %129 : vector<128x128xf32>
    %131 = vector.extract_strided_slice %44 {offsets = [0, 96], sizes = [128, 32], strides = [1, 1]} : vector<128x128xf32> to vector<128x32xf32>
    %132 = vector.shape_cast %131 : vector<128x32xf32> to vector<8x16x32xf32>
    %133 = arith.truncf %132 : vector<8x16x32xf32> to vector<8x16x32xbf16>
    %134 = vector.extract_strided_slice %45 {offsets = [0, 96], sizes = [128, 32], strides = [1, 1]} : vector<128x128xf32> to vector<128x32xf32>
    %135 = vector.shape_cast %134 : vector<128x32xf32> to vector<8x16x32xf32>
    %136 = arith.truncf %135 : vector<8x16x32xf32> to vector<8x16x32xbf16>
    %137 = vector.extract_strided_slice %46 {offsets = [0, 96], sizes = [128, 32], strides = [1, 1]} : vector<128x128xf32> to vector<128x32xf32>
    %138 = vector.shape_cast %137 : vector<128x32xf32> to vector<8x16x32xf32>
    %139 = arith.truncf %138 : vector<8x16x32xf32> to vector<8x16x32xbf16>
    "tpu.trace_start"() <{level = 10 : i32, message = "bqd,bkd->bqk"}> : () -> ()
    %cst_33 = arith.constant dense<0.000000e+00> : vector<8x16x16xf32>
    %140 = tpu.matmul %133, %136, %cst_33 {dimension_numbers = #tpu.dot_dimension_numbers<[2], [2], [1], [1], [0, 0, 0, 1, 1, 1], [0], [0]>} : vector<8x16x32xbf16>, vector<8x16x32xbf16>, vector<8x16x16xf32> -> vector<8x16x16xf32>
    "tpu.trace_stop"() : () -> ()
    %cst_34 = arith.constant dense<0xFF800000> : vector<8x16xf32>
    %141 = vector.multi_reduction <maximumf>, %140, %cst_34 [2] : vector<8x16x16xf32> to vector<8x16xf32>
    %142 = vector.shape_cast %141 : vector<8x16xf32> to vector<8x16x1xf32>
    %143 = vector.broadcast %142 : vector<8x16x1xf32> to vector<8x16x16xf32>
    %144 = arith.subf %140, %143 : vector<8x16x16xf32>
    %145 = math.exp %144 : vector<8x16x16xf32>
    %cst_35 = arith.constant dense<0.000000e+00> : vector<8x16xf32>
    %146 = vector.multi_reduction <add>, %145, %cst_35 [2] : vector<8x16x16xf32> to vector<8x16xf32>
    %147 = vector.shape_cast %146 : vector<8x16xf32> to vector<8x16x1xf32>
    %148 = tpu.reciprocal %147 {approx = true} : vector<8x16x1xf32> -> vector<8x16x1xf32>
    %149 = vector.broadcast %148 : vector<8x16x1xf32> to vector<8x16x16xf32>
    %150 = arith.mulf %145, %149 : vector<8x16x16xf32>
    %151 = arith.truncf %150 : vector<8x16x16xf32> to vector<8x16x16xbf16>
    "tpu.trace_start"() <{level = 10 : i32, message = "bqk,bkd->bqd"}> : () -> ()
    %cst_36 = arith.constant dense<0.000000e+00> : vector<8x16x32xf32>
    %152 = tpu.matmul %151, %139, %cst_36 {dimension_numbers = #tpu.dot_dimension_numbers<[2], [1], [1], [2], [0, 0, 0, 1, 1, 2], [0], [0]>} : vector<8x16x16xbf16>, vector<8x16x32xbf16>, vector<8x16x32xf32> -> vector<8x16x32xf32>
    "tpu.trace_stop"() : () -> ()
    %153 = vector.shape_cast %152 : vector<8x16x32xf32> to vector<128x32xf32>
    %154 = arith.truncf %153 : vector<128x32xf32> to vector<128x32xbf16>
    %155 = vector.extract_strided_slice %48 {offsets = [96, 0], sizes = [32, 128], strides = [1, 1]} : vector<128x128xbf16> to vector<32x128xbf16>
    %cst_37 = arith.constant dense<0.000000e+00> : vector<128x128xf32>
    %156 = tpu.matmul %154, %155, %cst_37 {dimension_numbers = #tpu.dot_dimension_numbers<[1], [0], [0], [1], [0, 0, 1, 1], [], []>} : vector<128x32xbf16>, vector<32x128xbf16>, vector<128x128xf32> -> vector<128x128xf32>
    %157 = arith.addf %130, %156 : vector<128x128xf32>
    %158 = arith.addf %3, %157 : vector<128x128xf32>
    %159 = vector.broadcast %9 : vector<1x128xf32> to vector<128x128xf32>
    %160 = arith.addf %158, %159 : vector<128x128xf32>
    %cst_38 = arith.constant dense<0.000000e+00> : vector<128xf32>
    %161 = vector.multi_reduction <add>, %160, %cst_38 [1] : vector<128x128xf32> to vector<128xf32>
    %162 = vector.shape_cast %161 : vector<128xf32> to vector<128x1xf32>
    %cst_39 = arith.constant 1.280000e+02 : f32
    %163 = vector.broadcast %cst_39 : f32 to vector<128x1xf32>
    %164 = arith.divf %162, %163 : vector<128x1xf32>
    %165 = vector.broadcast %164 : vector<128x1xf32> to vector<128x128xf32>
    %166 = arith.subf %160, %165 : vector<128x128xf32>
    %167 = arith.mulf %166, %166 : vector<128x128xf32>
    %cst_40 = arith.constant dense<0.000000e+00> : vector<128xf32>
    %168 = vector.multi_reduction <add>, %167, %cst_40 [1] : vector<128x128xf32> to vector<128xf32>
    %169 = vector.shape_cast %168 : vector<128xf32> to vector<128x1xf32>
    %cst_41 = arith.constant 1.280000e+02 : f32
    %170 = vector.broadcast %cst_41 : f32 to vector<128x1xf32>
    %171 = arith.divf %169, %170 : vector<128x1xf32>
    %172 = vector.broadcast %164 : vector<128x1xf32> to vector<128x128xf32>
    %173 = arith.subf %160, %172 : vector<128x128xf32>
    %cst_42 = arith.constant 9.99999997E-7 : f32
    %174 = vector.broadcast %cst_42 : f32 to vector<128x1xf32>
    %175 = arith.addf %171, %174 : vector<128x1xf32>
    %176 = math.rsqrt %175 : vector<128x1xf32>
    %177 = vector.broadcast %176 : vector<128x1xf32> to vector<128x128xf32>
    %178 = arith.mulf %173, %177 : vector<128x128xf32>
    %179 = vector.broadcast %10 : vector<1x128xf32> to vector<128x128xf32>
    %180 = arith.mulf %178, %179 : vector<128x128xf32>
    %181 = vector.broadcast %11 : vector<1x128xf32> to vector<128x128xf32>
    %182 = arith.addf %180, %181 : vector<128x128xf32>
    %183 = arith.truncf %182 : vector<128x128xf32> to vector<128x128xbf16>
    %c0_43 = arith.constant 0 : index
    %c0_44 = arith.constant 0 : index
    %c0_45 = arith.constant 0 : index
    %184 = vector.load %arg9[%c0_43, %c0_44, %c0_45] : memref<1x128x256xbf16, #tpu.memory_space<vmem>>, vector<1x128x256xbf16>
    %185 = vector.shape_cast %184 : vector<1x128x256xbf16> to vector<128x256xbf16>
    %cst_46 = arith.constant dense<0.000000e+00> : vector<128x256xf32>
    %186 = tpu.matmul %183, %185, %cst_46 {dimension_numbers = #tpu.dot_dimension_numbers<[1], [0], [0], [1], [0, 0, 1, 1], [], []>} : vector<128x128xbf16>, vector<128x256xbf16>, vector<128x256xf32> -> vector<128x256xf32>
    %187 = vector.broadcast %12 : vector<1x256xf32> to vector<128x256xf32>
    %188 = arith.addf %186, %187 : vector<128x256xf32>
    %189 = arith.mulf %188, %188 : vector<128x256xf32>
    %190 = arith.mulf %188, %189 : vector<128x256xf32>
    %cst_47 = arith.constant 4.471500e-02 : f32
    %191 = vector.broadcast %cst_47 : f32 to vector<128x256xf32>
    %192 = arith.mulf %191, %190 : vector<128x256xf32>
    %193 = arith.addf %188, %192 : vector<128x256xf32>
    %cst_48 = arith.constant 0.797884583 : f32
    %194 = vector.broadcast %cst_48 : f32 to vector<128x256xf32>
    %195 = arith.mulf %194, %193 : vector<128x256xf32>
    %196 = math.tanh %195 : vector<128x256xf32>
    %cst_49 = arith.constant 1.000000e+00 : f32
    %197 = vector.broadcast %cst_49 : f32 to vector<128x256xf32>
    %198 = arith.addf %197, %196 : vector<128x256xf32>
    %cst_50 = arith.constant 5.000000e-01 : f32
    %199 = vector.broadcast %cst_50 : f32 to vector<128x256xf32>
    %200 = arith.mulf %199, %198 : vector<128x256xf32>
    %201 = arith.mulf %188, %200 : vector<128x256xf32>
    %202 = arith.truncf %201 : vector<128x256xf32> to vector<128x256xbf16>
    %c0_51 = arith.constant 0 : index
    %c0_52 = arith.constant 0 : index
    %c0_53 = arith.constant 0 : index
    %203 = vector.load %arg10[%c0_51, %c0_52, %c0_53] : memref<1x256x128xbf16, #tpu.memory_space<vmem>>, vector<1x256x128xbf16>
    %204 = vector.shape_cast %203 : vector<1x256x128xbf16> to vector<256x128xbf16>
    %cst_54 = arith.constant dense<0.000000e+00> : vector<128x128xf32>
    %205 = tpu.matmul %202, %204, %cst_54 {dimension_numbers = #tpu.dot_dimension_numbers<[1], [0], [0], [1], [0, 0, 1, 1], [], []>} : vector<128x256xbf16>, vector<256x128xbf16>, vector<128x128xf32> -> vector<128x128xf32>
    %206 = arith.addf %160, %205 : vector<128x128xf32>
    %207 = vector.broadcast %13 : vector<1x128xf32> to vector<128x128xf32>
    %208 = arith.addf %206, %207 : vector<128x128xf32>
    %c0_55 = arith.constant 0 : index
    %c0_56 = arith.constant 0 : index
    %209 = vector.load %arg14[%c0_55, %c0_56] : memref<128x128xf32, #tpu.memory_space<vmem>>, vector<128x128xf32>
    tpu.vector_store %arg14[%c0_55, %c0_56], %208 {strides = array<i32>} : memref<128x128xf32, #tpu.memory_space<vmem>>, vector<128x128xf32>,
    %c1_i32 = arith.constant 1 : i32
    %210 = arith.cmpi eq, %arg1, %c1_i32 : i32
    %211 = arith.extui %210 : i1 to i32
    %c0_i32_57 = arith.constant 0 : i32
    %212 = arith.cmpi ne, %211, %c0_i32_57 : i32
    scf.if %212 {
      %c0_58 = arith.constant 0 : index
      %c0_59 = arith.constant 0 : index
      %213 = vector.load %arg11[%c0_58, %c0_59] : memref<1x128xf32, #tpu.memory_space<vmem>>, vector<1x128xf32>
      %c0_60 = arith.constant 0 : index
      %c0_61 = arith.constant 0 : index
      %214 = vector.load %arg12[%c0_60, %c0_61] : memref<1x128xf32, #tpu.memory_space<vmem>>, vector<1x128xf32>
      %cst_62 = arith.constant dense<0.000000e+00> : vector<128xf32>
      %215 = vector.multi_reduction <add>, %208, %cst_62 [1] : vector<128x128xf32> to vector<128xf32>
      %216 = vector.shape_cast %215 : vector<128xf32> to vector<128x1xf32>
      %cst_63 = arith.constant 1.280000e+02 : f32
      %217 = vector.broadcast %cst_63 : f32 to vector<128x1xf32>
      %218 = arith.divf %216, %217 : vector<128x1xf32>
      %219 = vector.broadcast %218 : vector<128x1xf32> to vector<128x128xf32>
      %220 = arith.subf %208, %219 : vector<128x128xf32>
      %221 = arith.mulf %220, %220 : vector<128x128xf32>
      %cst_64 = arith.constant dense<0.000000e+00> : vector<128xf32>
      %222 = vector.multi_reduction <add>, %221, %cst_64 [1] : vector<128x128xf32> to vector<128xf32>
      %223 = vector.shape_cast %222 : vector<128xf32> to vector<128x1xf32>
      %cst_65 = arith.constant 1.280000e+02 : f32
      %224 = vector.broadcast %cst_65 : f32 to vector<128x1xf32>
      %225 = arith.divf %223, %224 : vector<128x1xf32>
      %226 = vector.broadcast %218 : vector<128x1xf32> to vector<128x128xf32>
      %227 = arith.subf %208, %226 : vector<128x128xf32>
      %cst_66 = arith.constant 9.99999997E-7 : f32
      %228 = vector.broadcast %cst_66 : f32 to vector<128x1xf32>
      %229 = arith.addf %225, %228 : vector<128x1xf32>
      %230 = math.rsqrt %229 : vector<128x1xf32>
      %231 = vector.broadcast %230 : vector<128x1xf32> to vector<128x128xf32>
      %232 = arith.mulf %227, %231 : vector<128x128xf32>
      %233 = vector.broadcast %213 : vector<1x128xf32> to vector<128x128xf32>
      %234 = arith.mulf %232, %233 : vector<128x128xf32>
      %235 = vector.broadcast %214 : vector<1x128xf32> to vector<128x128xf32>
      %236 = arith.addf %234, %235 : vector<128x128xf32>
      %c0_67 = arith.constant 0 : index
      %c0_68 = arith.constant 0 : index
      %237 = vector.load %arg13[%c0_67, %c0_68] : memref<128x128xf32, #tpu.memory_space<vmem>>, vector<128x128xf32>
      tpu.vector_store %arg13[%c0_67, %c0_68], %236 {strides = array<i32>} : memref<128x128xf32, #tpu.memory_space<vmem>>, vector<128x128xf32>,
    } else {
    }
    return
  }
  func.func @transform_0(%arg0: i32, %arg1: i32) -> (i32, i32) {
    %c0_i32 = arith.constant 0 : i32
    %c0_i32_0 = arith.constant 0 : i32
    return %arg0, %c0_i32 : i32, i32
  }
  func.func @transform_1(%arg0: i32, %arg1: i32) -> (i32, i32) {
    %c0_i32 = arith.constant 0 : i32
    %c0_i32_0 = arith.constant 0 : i32
    %c0_i32_1 = arith.constant 0 : i32
    return %c0_i32, %c0_i32_0 : i32, i32
  }
  func.func @transform_2(%arg0: i32, %arg1: i32) -> (i32, i32) {
    %c0_i32 = arith.constant 0 : i32
    %c0_i32_0 = arith.constant 0 : i32
    %c0_i32_1 = arith.constant 0 : i32
    return %c0_i32, %c0_i32_0 : i32, i32
  }
  func.func @transform_3(%arg0: i32, %arg1: i32) -> (i32, i32) {
    %c0_i32 = arith.constant 0 : i32
    %c0_i32_0 = arith.constant 0 : i32
    %c0_i32_1 = arith.constant 0 : i32
    return %c0_i32, %c0_i32_0 : i32, i32
  }
  func.func @transform_4(%arg0: i32, %arg1: i32) -> (i32, i32, i32) {
    %c0_i32 = arith.constant 0 : i32
    %c0_i32_0 = arith.constant 0 : i32
    %c0_i32_1 = arith.constant 0 : i32
    return %arg1, %c0_i32, %c0_i32_0 : i32, i32, i32
  }
  func.func @transform_5(%arg0: i32, %arg1: i32) -> (i32, i32, i32) {
    %c0_i32 = arith.constant 0 : i32
    %c0_i32_0 = arith.constant 0 : i32
    %c0_i32_1 = arith.constant 0 : i32
    return %arg1, %c0_i32, %c0_i32_0 : i32, i32, i32
  }
  func.func @transform_6(%arg0: i32, %arg1: i32) -> (i32, i32, i32) {
    %c0_i32 = arith.constant 0 : i32
    %c0_i32_0 = arith.constant 0 : i32
    %c0_i32_1 = arith.constant 0 : i32
    return %arg1, %c0_i32, %c0_i32_0 : i32, i32, i32
  }
  func.func @transform_7(%arg0: i32, %arg1: i32) -> (i32, i32, i32) {
    %c0_i32 = arith.constant 0 : i32
    %c0_i32_0 = arith.constant 0 : i32
    %c0_i32_1 = arith.constant 0 : i32
    return %arg1, %c0_i32, %c0_i32_0 : i32, i32, i32
  }
  func.func @transform_8(%arg0: i32, %arg1: i32) -> (i32, i32, i32) {
    %c0_i32 = arith.constant 0 : i32
    %c0_i32_0 = arith.constant 0 : i32
    %c0_i32_1 = arith.constant 0 : i32
    return %arg1, %c0_i32, %c0_i32_0 : i32, i32, i32
  }
  func.func @transform_9(%arg0: i32, %arg1: i32) -> (i32, i32) {
    %c0_i32 = arith.constant 0 : i32
    %c0_i32_0 = arith.constant 0 : i32
    %c0_i32_1 = arith.constant 0 : i32
    return %c0_i32, %c0_i32_0 : i32, i32
  }
  func.func @transform_10(%arg0: i32, %arg1: i32) -> (i32, i32) {
    %c0_i32 = arith.constant 0 : i32
    %c0_i32_0 = arith.constant 0 : i32
    %c0_i32_1 = arith.constant 0 : i32
    return %c0_i32, %c0_i32_0 : i32, i32
  }
  func.func @transform_11(%arg0: i32, %arg1: i32) -> (i32, i32) {
    %c0_i32 = arith.constant 0 : i32
    %c0_i32_0 = arith.constant 0 : i32
    return %arg0, %c0_i32 : i32, i32
  }
}

</mosaic_0001>

<llo_original>
// kernel: tpu_custom_call.1
$region0: #{tpu_custom_call.1}
  #allocation0 [shape = 'u32[]', space=smem, size = 0x4, offset = 0x4, fixed_abs, tag = 'smem constant byte address 0x4 - core index']
  #allocation1 [shape = 'u32[144,128]{1,0:T(1,128)}', space=vmem, size = 0x12000, scoped, tag = 'internal scratch']
  #allocation2 [shape = 'f32[128,128]{1,0:T(8,128)}', space=vmem, size = 0x10000, scoped, tag = 'scratch operand']
  %s0 = inlined_call_operand.vmem [shape: f32[256,48], index: 0, kind: input, shape index: {}]
  %s1 = inlined_call_operand.vmem [shape: bf16[48,128], index: 1, kind: input, shape index: {}]
  %s2 = inlined_call_operand.vmem [shape: f32[1,128], index: 2, kind: input, shape index: {}]
  %s3 = inlined_call_operand.vmem [shape: f32[16,128], index: 3, kind: input, shape index: {}]
  %s4 = inlined_call_operand.vmem [shape: f32[2,8,384], index: 4, kind: input, shape index: {}]
  %s5 = inlined_call_operand.hbm [shape: bf16[2,128,384], index: 5, kind: input, shape index: {}]
  %s6 = inlined_call_operand.hbm [shape: bf16[2,128,128], index: 6, kind: input, shape index: {}]
  %s7 = inlined_call_operand.vmem [shape: bf16[2,128,256], index: 7, kind: input, shape index: {}]
  %s8 = inlined_call_operand.hbm [shape: bf16[2,256,128], index: 8, kind: input, shape index: {}]
  %s9 = inlined_call_operand.vmem [shape: f32[1,128], index: 9, kind: input, shape index: {}]
  %s10 = inlined_call_operand.vmem [shape: f32[1,128], index: 10, kind: input, shape index: {}]
  %s11 = inlined_call_operand.hbm [shape: f32[256,128], index: 11, kind: output, shape index: {}]
  %s12 = sld [smem:[#allocation0]]
  $region97: #{tpu_custom_call.1} parent=0
    _
  %s14 = ssub.s32 1, %s12
  %s15 = scalar_select 0, %s14, %s12
  $region1: #{tpu_custom_call.1} parent=0
    #allocation3 [shape = 'u8[196608]{0}', space=vmem, size = 0x30000, scoped, tag = 'input window, operand 5']
    #allocation4 [shape = 's32[2]{0}', space=sflag, size = 0x8, scoped, tag = 'scoped memory for tpu_custom_call.1']
    #allocation5 [shape = 's32[2]{0}', space=sflag, size = 0x8, scoped, tag = 'scoped memory for tpu_custom_call.1']
    #allocation6 [shape = 'u8[65536]{0}', space=vmem, size = 0x10000, scoped, tag = 'input window, operand 6']
    #allocation7 [shape = 's32[2]{0}', space=sflag, size = 0x8, scoped, tag = 'scoped memory for tpu_custom_call.1']
    #allocation8 [shape = 'u8[131072]{0}', space=vmem, size = 0x20000, scoped, tag = 'input window, operand 8']
    #allocation9 [shape = 'u8[131072]{0}', space=vmem, size = 0x20000, scoped, tag = 'output window, operand 0']
    %16 = vsyncpa [#allocation4], 0
    %s17 = scalar_lea.sflag [#allocation4], 1
    %18 = vsyncpa %s17, 0
    %19 = vsyncpa [#allocation7], 0
    %s20 = scalar_lea.sflag [#allocation7], 1
    %21 = vsyncpa %s20, 0
    %22 = vsyncpa [#allocation5], 0
    %s23 = scalar_lea.sflag [#allocation5], 1
    %24 = vsyncpa %s23, 0
    loop: start=0, step=1, limit=6
    $region2: #{tpu_custom_call.1} parent=1 // loop_pre_header
      _
    $region3: #{tpu_custom_call.1} parent=1 // loop_header
      %s26 = sphi 0, %s30
      %p27 = scmp.ge.s32.totalorder %s26, 6
      %s33 = sphi 0, %s45
      %s34 = sphi 0, %s41
      %s35 = sphi 0, %s33
      %s36 = sphi 0, %s34
      %s37 = sphi 0, %s35
      %s38 = sphi 0, %s36
      %s48 = sphi 0, %s50
      %s51 = sphi 0, %s48
      %s52 = sphi 0, %s51
      %s68 = sphi 0, %s52
      %s72 = sphi 0, %s72
      %s74 = sphi 0, %s72
      %s75 = sphi 0, %s74
      %s89 = sphi 0, %s75
      %s93 = sphi 0, %s93
      %s95 = sphi 0, %s93
      %s96 = sphi 0, %s95
      %s110 = sphi 0, %s96
      %s114 = sphi 0, %s114
      %s116 = sphi 0, %s114
      %s117 = sphi 0, %s116
      %s131 = sphi 0, %s117
      %s137 = sphi 0, %s139
      %s140 = sphi 0, %s137
      %s141 = sphi 0, %s140
      %s157 = sphi 0, %s141
      %s163 = sphi 0, %s165
      %s166 = sphi 0, %s163
      %s167 = sphi 0, %s166
      %s183 = sphi 0, %s167
      %s189 = sphi 0, %s191
      %s192 = sphi 0, %s189
      %s193 = sphi 0, %s192
      %s209 = sphi 0, %s193
      %s215 = sphi 0, %s217
      %s218 = sphi 0, %s215
      %s219 = sphi 0, %s218
      %s235 = sphi 0, %s219
      %s241 = sphi 0, %s243
      %s244 = sphi 0, %s241
      %s245 = sphi 0, %s244
      %s261 = sphi 0, %s245
      %s265 = sphi 0, %s265
      %s267 = sphi 0, %s265
      %s268 = sphi 0, %s267
      %s282 = sphi 0, %s268
      %s286 = sphi 0, %s286
      %s288 = sphi 0, %s286
      %s289 = sphi 0, %s288
      %s303 = sphi 0, %s289
      %s309 = sphi 0, %s311
      %s312 = sphi 0, %s309
      %s313 = sphi 0, %s312
      %s329 = sphi 0, %s313
    $region4: #{tpu_custom_call.1} parent=1 // loop_header_branch
      %29 = sbr.rel (%p27) target = $region8
    $region5: #{tpu_custom_call.1} parent=1 // loop_body
      %s31 = ssub.s32 %s26, 1
      %s32 = ssub.s32 %s26, 2
      %s39 = sadd.s32 1, %s34
      %p40 = scmp.ge.s32.totalorder %s39, 2
      %s41 = scalar_select %p40, 0, %s39
      %s42 = sadd.s32 1, %s33
      %s43 = scalar_select %p40, %s42, %s33
      %p44 = scmp.ge.s32.totalorder %s43, 2
      %s45 = scalar_select %p44, 0, %s43
      %s46 = ssub.s32 %s33, %s45
      %p47 = scmp.eq.s32.totalorder %s46, 0
      %s49 = sadd.s32 %s48, 1
      %s50 = scalar_select %p47, %s48, %s49
      %p53 = pneg %p47
      %p54 = scmp.eq.s32.totalorder %s26, 3
      %p55 = por %p53, %p54
      %p56 = scmp.ne.s32.totalorder %s48, %s51
      %p57 = scmp.eq.s32.totalorder %s26, 0
      %p58 = por %p56, %p57
      %p59 = scmp.ne.s32.totalorder %s48, %s51
      %p60 = scmp.eq.s32.totalorder %s31, 3
      %p61 = por %p59, %p60
      %p62 = scmp.ne.s32.totalorder %s51, %s52
      %p63 = scmp.eq.s32.totalorder %s31, 0
      %p64 = por %p62, %p63
      %p65 = scmp.ne.s32.totalorder %s51, %s52
      %p66 = scmp.eq.s32.totalorder %s32, 3
      %p67 = por %p65, %p66
      %p69 = scmp.ne.s32.totalorder %s52, %s68
      %p70 = scmp.eq.s32.totalorder %s32, 0
      %p71 = por %p69, %p70
      %s73 = sadd.s32 %s72, 1
      %p76 = scmp.eq.s32.totalorder %s26, 3
      %p77 = scmp.ne.s32.totalorder %s72, %s74
      %p78 = scmp.eq.s32.totalorder %s26, 0
      %p79 = por %p77, %p78
      %p80 = scmp.ne.s32.totalorder %s72, %s74
      %p81 = scmp.eq.s32.totalorder %s31, 3
      %p82 = por %p80, %p81
      %p83 = scmp.ne.s32.totalorder %s74, %s75
      %p84 = scmp.eq.s32.totalorder %s31, 0
      %p85 = por %p83, %p84
      %p86 = scmp.ne.s32.totalorder %s74, %s75
      %p87 = scmp.eq.s32.totalorder %s32, 3
      %p88 = por %p86, %p87
      %p90 = scmp.ne.s32.totalorder %s75, %s89
      %p91 = scmp.eq.s32.totalorder %s32, 0
      %p92 = por %p90, %p91
      %s94 = sadd.s32 %s93, 1
      %p97 = scmp.eq.s32.totalorder %s26, 3
      %p98 = scmp.ne.s32.totalorder %s93, %s95
      %p99 = scmp.eq.s32.totalorder %s26, 0
      %p100 = por %p98, %p99
      %p101 = scmp.ne.s32.totalorder %s93, %s95
      %p102 = scmp.eq.s32.totalorder %s31, 3
      %p103 = por %p101, %p102
      %p104 = scmp.ne.s32.totalorder %s95, %s96
      %p105 = scmp.eq.s32.totalorder %s31, 0
      %p106 = por %p104, %p105
      %p107 = scmp.ne.s32.totalorder %s95, %s96
      %p108 = scmp.eq.s32.totalorder %s32, 3
      %p109 = por %p107, %p108
      %p111 = scmp.ne.s32.totalorder %s96, %s110
      %p112 = scmp.eq.s32.totalorder %s32, 0
      %p113 = por %p111, %p112
      %s115 = sadd.s32 %s114, 1
      %p118 = scmp.eq.s32.totalorder %s26, 3
      %p119 = scmp.ne.s32.totalorder %s114, %s116
      %p120 = scmp.eq.s32.totalorder %s26, 0
      %p121 = por %p119, %p120
      %p122 = scmp.ne.s32.totalorder %s114, %s116
      %p123 = scmp.eq.s32.totalorder %s31, 3
      %p124 = por %p122, %p123
      %p125 = scmp.ne.s32.totalorder %s116, %s117
      %p126 = scmp.eq.s32.totalorder %s31, 0
      %p127 = por %p125, %p126
      %p128 = scmp.ne.s32.totalorder %s116, %s117
      %p129 = scmp.eq.s32.totalorder %s32, 3
      %p130 = por %p128, %p129
      %p132 = scmp.ne.s32.totalorder %s117, %s131
      %p133 = scmp.eq.s32.totalorder %s32, 0
      %p134 = por %p132, %p133
      %s135 = ssub.s32 %s34, %s41
      %p136 = scmp.eq.s32.totalorder %s135, 0
      %s138 = sadd.s32 %s137, 1
      %s139 = scalar_select %p136, %s137, %s138
      %p142 = pneg %p136
      %p143 = scmp.eq.s32.totalorder %s26, 3
      %p144 = por %p142, %p143
      %p145 = scmp.ne.s32.totalorder %s137, %s140
      %p146 = scmp.eq.s32.totalorder %s26, 0
      %p147 = por %p145, %p146
      %p148 = scmp.ne.s32.totalorder %s137, %s140
      %p149 = scmp.eq.s32.totalorder %s31, 3
      %p150 = por %p148, %p149
      %p151 = scmp.ne.s32.totalorder %s140, %s141
      %p152 = scmp.eq.s32.totalorder %s31, 0
      %p153 = por %p151, %p152
      %p154 = scmp.ne.s32.totalorder %s140, %s141
      %p155 = scmp.eq.s32.totalorder %s32, 3
      %p156 = por %p154, %p155
      %p158 = scmp.ne.s32.totalorder %s141, %s157
      %p159 = scmp.eq.s32.totalorder %s32, 0
      %p160 = por %p158, %p159
      %s161 = ssub.s32 %s34, %s41
      %p162 = scmp.eq.s32.totalorder %s161, 0
      %s164 = sadd.s32 %s163, 1
      %s165 = scalar_select %p162, %s163, %s164
      %p168 = pneg %p162
      %p169 = scmp.eq.s32.totalorder %s26, 3
      %p170 = por %p168, %p169
      %p171 = scmp.ne.s32.totalorder %s163, %s166
      %p172 = scmp.eq.s32.totalorder %s26, 0
      %p173 = por %p171, %p172
      %p174 = scmp.ne.s32.totalorder %s163, %s166
      %p175 = scmp.eq.s32.totalorder %s31, 3
      %p176 = por %p174, %p175
      %p177 = scmp.ne.s32.totalorder %s166, %s167
      %p178 = scmp.eq.s32.totalorder %s31, 0
      %p179 = por %p177, %p178
      %p180 = scmp.ne.s32.totalorder %s166, %s167
      %p181 = scmp.eq.s32.totalorder %s32, 3
      %p182 = por %p180, %p181
      %p184 = scmp.ne.s32.totalorder %s167, %s183
      %p185 = scmp.eq.s32.totalorder %s32, 0
      %p186 = por %p184, %p185
      %s187 = ssub.s32 %s34, %s41
      %p188 = scmp.eq.s32.totalorder %s187, 0
      %s190 = sadd.s32 %s189, 1
      %s191 = scalar_select %p188, %s189, %s190
      %p194 = pneg %p188
      %p195 = scmp.eq.s32.totalorder %s26, 3
      %p196 = por %p194, %p195
      %p197 = scmp.ne.s32.totalorder %s189, %s192
      %p198 = scmp.eq.s32.totalorder %s26, 0
      %p199 = por %p197, %p198
      %p200 = scmp.ne.s32.totalorder %s189, %s192
      %p201 = scmp.eq.s32.totalorder %s31, 3
      %p202 = por %p200, %p201
      %p203 = scmp.ne.s32.totalorder %s192, %s193
      %p204 = scmp.eq.s32.totalorder %s31, 0
      %p205 = por %p203, %p204
      %p206 = scmp.ne.s32.totalorder %s192, %s193
      %p207 = scmp.eq.s32.totalorder %s32, 3
      %p208 = por %p206, %p207
      %p210 = scmp.ne.s32.totalorder %s193, %s209
      %p211 = scmp.eq.s32.totalorder %s32, 0
      %p212 = por %p210, %p211
      %s213 = ssub.s32 %s34, %s41
      %p214 = scmp.eq.s32.totalorder %s213, 0
      %s216 = sadd.s32 %s215, 1
      %s217 = scalar_select %p214, %s215, %s216
      %p220 = pneg %p214
      %p221 = scmp.eq.s32.totalorder %s26, 3
      %p222 = por %p220, %p221
      %p223 = scmp.ne.s32.totalorder %s215, %s218
      %p224 = scmp.eq.s32.totalorder %s26, 0
      %p225 = por %p223, %p224
      %p226 = scmp.ne.s32.totalorder %s215, %s218
      %p227 = scmp.eq.s32.totalorder %s31, 3
      %p228 = por %p226, %p227
      %p229 = scmp.ne.s32.totalorder %s218, %s219
      %p230 = scmp.eq.s32.totalorder %s31, 0
      %p231 = por %p229, %p230
      %p232 = scmp.ne.s32.totalorder %s218, %s219
      %p233 = scmp.eq.s32.totalorder %s32, 3
      %p234 = por %p232, %p233
      %p236 = scmp.ne.s32.totalorder %s219, %s235
      %p237 = scmp.eq.s32.totalorder %s32, 0
      %p238 = por %p236, %p237
      %s239 = ssub.s32 %s34, %s41
      %p240 = scmp.eq.s32.totalorder %s239, 0
      %s242 = sadd.s32 %s241, 1
      %s243 = scalar_select %p240, %s241, %s242
      %p246 = pneg %p240
      %p247 = scmp.eq.s32.totalorder %s26, 3
      %p248 = por %p246, %p247
      %p249 = scmp.ne.s32.totalorder %s241, %s244
      %p250 = scmp.eq.s32.totalorder %s26, 0
      %p251 = por %p249, %p250
      %p252 = scmp.ne.s32.totalorder %s241, %s244
      %p253 = scmp.eq.s32.totalorder %s31, 3
      %p254 = por %p252, %p253
      %p255 = scmp.ne.s32.totalorder %s244, %s245
      %p256 = scmp.eq.s32.totalorder %s31, 0
      %p257 = por %p255, %p256
      %p258 = scmp.ne.s32.totalorder %s244, %s245
      %p259 = scmp.eq.s32.totalorder %s32, 3
      %p260 = por %p258, %p259
      %p262 = scmp.ne.s32.totalorder %s245, %s261
      %p263 = scmp.eq.s32.totalorder %s32, 0
      %p264 = por %p262, %p263
      %s266 = sadd.s32 %s265, 1
      %p269 = scmp.eq.s32.totalorder %s26, 3
      %p270 = scmp.ne.s32.totalorder %s265, %s267
      %p271 = scmp.eq.s32.totalorder %s26, 0
      %p272 = por %p270, %p271
      %p273 = scmp.ne.s32.totalorder %s265, %s267
      %p274 = scmp.eq.s32.totalorder %s31, 3
      %p275 = por %p273, %p274
      %p276 = scmp.ne.s32.totalorder %s267, %s268
      %p277 = scmp.eq.s32.totalorder %s31, 0
      %p278 = por %p276, %p277
      %p279 = scmp.ne.s32.totalorder %s267, %s268
      %p280 = scmp.eq.s32.totalorder %s32, 3
      %p281 = por %p279, %p280
      %p283 = scmp.ne.s32.totalorder %s268, %s282
      %p284 = scmp.eq.s32.totalorder %s32, 0
      %p285 = por %p283, %p284
      %s287 = sadd.s32 %s286, 1
      %p290 = scmp.eq.s32.totalorder %s26, 3
      %p291 = scmp.ne.s32.totalorder %s286, %s288
      %p292 = scmp.eq.s32.totalorder %s26, 0
      %p293 = por %p291, %p292
      %p294 = scmp.ne.s32.totalorder %s286, %s288
      %p295 = scmp.eq.s32.totalorder %s31, 3
      %p296 = por %p294, %p295
      %p297 = scmp.ne.s32.totalorder %s288, %s289
      %p298 = scmp.eq.s32.totalorder %s31, 0
      %p299 = por %p297, %p298
      %p300 = scmp.ne.s32.totalorder %s288, %s289
      %p301 = scmp.eq.s32.totalorder %s32, 3
      %p302 = por %p300, %p301
      %p304 = scmp.ne.s32.totalorder %s289, %s303
      %p305 = scmp.eq.s32.totalorder %s32, 0
      %p306 = por %p304, %p305
      %s307 = ssub.s32 %s33, %s45
      %p308 = scmp.eq.s32.totalorder %s307, 0
      %s310 = sadd.s32 %s309, 1
      %s311 = scalar_select %p308, %s309, %s310
      %p314 = pneg %p308
      %p315 = scmp.eq.s32.totalorder %s26, 3
      %p316 = por %p314, %p315
      %p317 = scmp.ne.s32.totalorder %s309, %s312
      %p318 = scmp.eq.s32.totalorder %s26, 0
      %p319 = por %p317, %p318
      %p320 = scmp.ne.s32.totalorder %s309, %s312
      %p321 = scmp.eq.s32.totalorder %s31, 3
      %p322 = por %p320, %p321
      %p323 = scmp.ne.s32.totalorder %s312, %s313
      %p324 = scmp.eq.s32.totalorder %s31, 0
      %p325 = por %p323, %p324
      %p326 = scmp.ne.s32.totalorder %s312, %s313
      %p327 = scmp.eq.s32.totalorder %s32, 3
      %p328 = por %p326, %p327
      %p330 = scmp.ne.s32.totalorder %s313, %s329
      %p331 = scmp.eq.s32.totalorder %s32, 0
      %p332 = por %p330, %p331
      %p333 = scmp.le.s32.totalorder 1, %s26
      %p334 = scmp.lt.s32.totalorder %s26, 5
      %p335 = pnand %p333, %p334
      %p336 = pneg %p335
      // Predicated region
      $region9: #{tpu_custom_call.1} parent=5 // pred_check
        _
      $region10: #{tpu_custom_call.1} parent=5 // pred_check_branch
        %338 = sbr.rel (%p335) target = $region12
      $region11: #{tpu_custom_call.1} parent=5 // pred_region
        %s339 = ssub.s32 %s26, 1
        // Predicated region
        $region13: #{tpu_custom_call.1} parent=11 // pred_check
          %p340 = pneg %p85
        $region14: #{tpu_custom_call.1} parent=11 // pred_check_branch
          %342 = sbr.rel (%p340) target = $region16
        $region15: #{tpu_custom_call.1} parent=11 // pred_region
          _
        $region16: #{tpu_custom_call.1} parent=11 // pred_fallthru
          _
        // Predicated region
        $region17: #{tpu_custom_call.1} parent=11 // pred_check
          %p343 = pneg %p106
        $region18: #{tpu_custom_call.1} parent=11 // pred_check_branch
          %345 = sbr.rel (%p343) target = $region20
        $region19: #{tpu_custom_call.1} parent=11 // pred_region
          _
        $region20: #{tpu_custom_call.1} parent=11 // pred_fallthru
          _
        // Predicated region
        $region21: #{tpu_custom_call.1} parent=11 // pred_check
          %p346 = pneg %p127
        $region22: #{tpu_custom_call.1} parent=11 // pred_check_branch
          %348 = sbr.rel (%p346) target = $region24
        $region23: #{tpu_custom_call.1} parent=11 // pred_region
          _
        $region24: #{tpu_custom_call.1} parent=11 // pred_fallthru
          _
        // Predicated region
        $region25: #{tpu_custom_call.1} parent=11 // pred_check
          %p349 = pneg %p278
        $region26: #{tpu_custom_call.1} parent=11 // pred_check_branch
          %351 = sbr.rel (%p349) target = $region28
        $region27: #{tpu_custom_call.1} parent=11 // pred_region
          _
        $region28: #{tpu_custom_call.1} parent=11 // pred_fallthru
          _
        // Predicated region
        $region29: #{tpu_custom_call.1} parent=11 // pred_check
          %p352 = pneg %p299
        $region30: #{tpu_custom_call.1} parent=11 // pred_check_branch
          %354 = sbr.rel (%p352) target = $region32
        $region31: #{tpu_custom_call.1} parent=11 // pred_region
          _
        $region32: #{tpu_custom_call.1} parent=11 // pred_fallthru
          _
      $region12: #{tpu_custom_call.1} parent=5 // pred_fallthru
        _
      %p355 = scmp.lt.s32.totalorder %s26, 4
      // Predicated region
      $region33: #{tpu_custom_call.1} parent=5 // pred_check
        %p356 = pneg %p355
      $region34: #{tpu_custom_call.1} parent=5 // pred_check_branch
        %358 = sbr.rel (%p356) target = $region36
      $region35: #{tpu_custom_call.1} parent=5 // pred_region
        // Predicated region
        $region37: #{tpu_custom_call.1} parent=35 // pred_check
          %p359 = pneg %p58
        $region38: #{tpu_custom_call.1} parent=35 // pred_check_branch
          %361 = sbr.rel (%p359) target = $region40
        $region39: #{tpu_custom_call.1} parent=35 // pred_region
          %s362 = smul.u32 16, %s33
          %p363 = scmp.lt.s32.totalorder %s362, 31
          %s364 = scalar_select %p363, %s362, 31
          %s365 = smul.addr %s364, 8
          %s366 = scalar_lea.vmem %s0, %s365
          %s367 = smul.u32 16, %s33
        $region40: #{tpu_custom_call.1} parent=35 // pred_fallthru
          _
        // Predicated region
        $region41: #{tpu_custom_call.1} parent=35 // pred_check
          %p368 = pneg %p147
        $region42: #{tpu_custom_call.1} parent=35 // pred_check_branch
          %370 = sbr.rel (%p368) target = $region44
        $region43: #{tpu_custom_call.1} parent=35 // pred_region
          %p371 = scmp.lt.s32.totalorder %s34, 1
          %s372 = scalar_select %p371, %s34, 1
          %s373 = smul.addr %s372, 3
          %s374 = smul.addr %s373, 8
          %s375 = scalar_lea.vmem %s4, %s374
        $region44: #{tpu_custom_call.1} parent=35 // pred_fallthru
          _
        // Predicated region
        $region45: #{tpu_custom_call.1} parent=35 // pred_check
          %p376 = pneg %p173
        $region46: #{tpu_custom_call.1} parent=35 // pred_check_branch
          %378 = sbr.rel (%p376) target = $region48
        $region47: #{tpu_custom_call.1} parent=35 // pred_region
          %s379 = sand.u32 %s163, 1
          %s380 = scalar_lea.sflag [#allocation4], %s379
          %s381 = sand.u32 %s163, 1
          %s382 = smul.addr %s381, 192
          %s383 = scalar_lea.vmem [#allocation3], %s382
          %s385 = ssub.s32 3072, 3072
          %386 = vsyncadd %s380, %s385
          %s387 = smul.addr %s34, 48
          %s388 = smul.addr %s387, 64
          %s389 = scalar_lea.hbm %s5, %s388
          %s390 = sshll.u32 %s383, 4
          %s391 = int_to_ptr.vmem [resolvable:$true] %s390
          %396 = dma.hbm_to_vmem [thread:$0]  %s389, 3072, %s391, %s380, 192, 192, 12
        $region48: #{tpu_custom_call.1} parent=35 // pred_fallthru
          _
        // Predicated region
        $region49: #{tpu_custom_call.1} parent=35 // pred_check
          %p397 = pneg %p199
        $region50: #{tpu_custom_call.1} parent=35 // pred_check_branch
          %399 = sbr.rel (%p397) target = $region52
        $region51: #{tpu_custom_call.1} parent=35 // pred_region
          %s400 = sand.u32 %s26, 1
          %s401 = scalar_lea.sflag [#allocation7], %s400
          %s402 = sand.u32 %s189, 1
          %s403 = smul.addr %s402, 64
          %s404 = scalar_lea.vmem [#allocation6], %s403
          %s406 = ssub.s32 1024, 1024
          %407 = vsyncadd %s401, %s406
          %s408 = smul.addr %s34, 16
          %s409 = smul.addr %s408, 64
          %s410 = scalar_lea.hbm %s6, %s409
          %s411 = sshll.u32 %s404, 4
          %s412 = int_to_ptr.vmem [resolvable:$true] %s411
          %417 = dma.hbm_to_vmem [thread:$0]  %s410, 1024, %s412, %s401, 64, 64, 4
        $region52: #{tpu_custom_call.1} parent=35 // pred_fallthru
          _
        // Predicated region
        $region53: #{tpu_custom_call.1} parent=35 // pred_check
          %p418 = pneg %p225
        $region54: #{tpu_custom_call.1} parent=35 // pred_check_branch
          %420 = sbr.rel (%p418) target = $region56
        $region55: #{tpu_custom_call.1} parent=35 // pred_region
          %p421 = scmp.lt.s32.totalorder %s34, 1
          %s422 = scalar_select %p421, %s34, 1
          %s423 = smul.addr %s422, 32
          %s424 = smul.addr %s423, 4
          %s425 = scalar_lea.vmem %s7, %s424
        $region56: #{tpu_custom_call.1} parent=35 // pred_fallthru
          _
        // Predicated region
        $region57: #{tpu_custom_call.1} parent=35 // pred_check
          %p426 = pneg %p251
        $region58: #{tpu_custom_call.1} parent=35 // pred_check_branch
          %428 = sbr.rel (%p426) target = $region60
        $region59: #{tpu_custom_call.1} parent=35 // pred_region
          %s429 = sand.u32 %s26, 1
          %s430 = scalar_lea.sflag [#allocation7], %s429
          %s431 = sand.u32 %s241, 1
          %s432 = smul.addr %s431, 128
          %s433 = scalar_lea.vmem [#allocation8], %s432
          %s435 = ssub.s32 2048, 2048
          %436 = vsyncadd %s430, %s435
          %s437 = smul.addr %s34, 32
          %s438 = smul.addr %s437, 64
          %s439 = scalar_lea.hbm %s8, %s438
          %s440 = sshll.u32 %s433, 4
          %s441 = int_to_ptr.vmem [resolvable:$true] %s440
          %446 = dma.hbm_to_vmem [thread:$0]  %s439, 2048, %s441, %s430, 64, 64, 4
        $region60: #{tpu_custom_call.1} parent=35 // pred_fallthru
          _
      $region36: #{tpu_custom_call.1} parent=5 // pred_fallthru
        _
      %p447 = scmp.le.s32.totalorder 1, %s26
      %p448 = scmp.lt.s32.totalorder %s26, 5
      %p449 = pnand %p447, %p448
      %p450 = pneg %p449
      // Predicated region
      $region61: #{tpu_custom_call.1} parent=5 // pred_check
        _
      $region62: #{tpu_custom_call.1} parent=5 // pred_check_branch
        %452 = sbr.rel (%p449) target = $region64
      $region63: #{tpu_custom_call.1} parent=5 // pred_region
        %s453 = ssub.s32 %s26, 1
        %s454 = sand.u32 %s166, 1
        %s455 = scalar_lea.sflag [#allocation4], %s454
        %s456 = sand.u32 %s166, 1
        %s457 = smul.addr %s456, 192
        %s458 = scalar_lea.vmem [#allocation3], %s457
        // Predicated region
        $region65: #{tpu_custom_call.1} parent=63 // pred_check
          %p459 = pneg %p179
        $region66: #{tpu_custom_call.1} parent=63 // pred_check_branch
          %461 = sbr.rel (%p459) target = $region68
        $region67: #{tpu_custom_call.1} parent=63 // pred_region
          %462 = dma.done %s455, 3072
        $region68: #{tpu_custom_call.1} parent=63 // pred_fallthru
          _
        %s463 = sand.u32 %s31, 1
        %s464 = scalar_lea.sflag [#allocation7], %s463
        %s465 = sand.u32 %s192, 1
        %s466 = smul.addr %s465, 64
        %s467 = scalar_lea.vmem [#allocation6], %s466
        // Predicated region
        $region69: #{tpu_custom_call.1} parent=63 // pred_check
          %p468 = pneg %p205
        $region70: #{tpu_custom_call.1} parent=63 // pred_check_branch
          %470 = sbr.rel (%p468) target = $region72
        $region71: #{tpu_custom_call.1} parent=63 // pred_region
          %471 = dma.done %s464, 1024
        $region72: #{tpu_custom_call.1} parent=63 // pred_fallthru
          _
        %s472 = sand.u32 %s31, 1
        %s473 = scalar_lea.sflag [#allocation7], %s472
        %s474 = sand.u32 %s244, 1
        %s475 = smul.addr %s474, 128
        %s476 = scalar_lea.vmem [#allocation8], %s475
        // Predicated region
        $region73: #{tpu_custom_call.1} parent=63 // pred_check
          %p477 = pneg %p257
        $region74: #{tpu_custom_call.1} parent=63 // pred_check_branch
          %479 = sbr.rel (%p477) target = $region76
        $region75: #{tpu_custom_call.1} parent=63 // pred_region
          %480 = dma.done %s473, 2048
        $region76: #{tpu_custom_call.1} parent=63 // pred_fallthru
          _
        %s481 = smul.u32 16, %s35
        %p482 = scmp.lt.s32.totalorder %s481, 31
        %s483 = scalar_select %p482, %s481, 31
        %s484 = smul.addr %s483, 8
        %s485 = scalar_lea.vmem %s0, %s484
        %p486 = pneg %p64
        %p487 = pneg %p61
        %p488 = pneg %p85
        %p489 = pneg %p82
        %p490 = pneg %p106
        %p491 = pneg %p103
        %p492 = pneg %p127
        %p493 = pneg %p124
        %p494 = scmp.lt.s32.totalorder %s36, 1
        %s495 = scalar_select %p494, %s36, 1
        %s496 = smul.addr %s495, 3
        %s497 = smul.addr %s496, 8
        %s498 = scalar_lea.vmem %s4, %s497
        %p499 = pneg %p153
        %p500 = pneg %p150
        %s501 = sand.u32 %s166, 1
        %s502 = scalar_lea.sflag [#allocation4], %s501
        %s503 = sand.u32 %s166, 1
        %s504 = smul.addr %s503, 192
        %s505 = scalar_lea.vmem [#allocation3], %s504
        %p506 = pneg %p179
        %p507 = pneg %p176
        %s508 = sand.u32 %s31, 1
        %s509 = scalar_lea.sflag [#allocation7], %s508
        %s510 = sand.u32 %s192, 1
        %s511 = smul.addr %s510, 64
        %s512 = scalar_lea.vmem [#allocation6], %s511
        %p513 = pneg %p205
        %p514 = pneg %p202
        %p515 = scmp.lt.s32.totalorder %s36, 1
        %s516 = scalar_select %p515, %s36, 1
        %s517 = smul.addr %s516, 32
        %s518 = smul.addr %s517, 4
        %s519 = scalar_lea.vmem %s7, %s518
        %p520 = pneg %p231
        %p521 = pneg %p228
        %s522 = sand.u32 %s31, 1
        %s523 = scalar_lea.sflag [#allocation7], %s522
        %s524 = sand.u32 %s244, 1
        %s525 = smul.addr %s524, 128
        %s526 = scalar_lea.vmem [#allocation8], %s525
        %p527 = pneg %p257
        %p528 = pneg %p254
        %p529 = pneg %p278
        %p530 = pneg %p275
        %p531 = pneg %p299
        %p532 = pneg %p296
        %p533 = pneg %p325
        %p534 = pneg %p322
        %s535 = sand.u32 %s312, 1
        %s536 = scalar_lea.sflag [#allocation5], %s535
        %s537 = sand.u32 %s312, 1
        %s538 = smul.addr %s537, 128
        %s539 = scalar_lea.vmem [#allocation9], %s538
        %s540 = smul.u32 16, %s35
        %p541 = scmp.lt.s32.totalorder %s540, 31
        %s542 = scalar_select %p541, %s540, 31
        %s543 = smul.addr %s542, 8
        %s544 = scalar_lea.vmem %s0, %s543
        %s545 = smul.u32 16, %s35
        %p546 = scmp.lt.s32.totalorder %s36, 1
        %s547 = scalar_select %p546, %s36, 1
        %s548 = smul.addr %s547, 3
        %s549 = smul.addr %s548, 8
        %s550 = scalar_lea.vmem %s4, %s549
        %p551 = scmp.lt.s32.totalorder %s36, 1
        %s552 = scalar_select %p551, %s36, 1
        %s553 = smul.addr %s552, 32
        %s554 = smul.addr %s553, 4
        %s555 = scalar_lea.vmem %s7, %s554
        %s556 = smul.u32 16, %s35
        %p558 = scmp.eq.s32.totalorder %s36, 0
        // Predicated region
        $region77: #{tpu_custom_call.1} parent=63 // pred_check
          %p559 = pneg %p558
        $region78: #{tpu_custom_call.1} parent=63 // pred_check_branch
          %561 = sbr.rel (%p559) target = $region80
        $region79: #{tpu_custom_call.1} parent=63 // pred_region
          %v562 = vld [vmem:[%s544] sm:$0xff]
          %v563 = vld [vmem:[%s544 + $0x8] sm:$0xff]
          %v564 = vld [vmem:[%s544 + $0x10] sm:$0xff]
          %v565 = vld [vmem:[%s544 + $0x18] sm:$0xff]
          %v566 = vld [vmem:[%s544 + $0x20] sm:$0xff]
          %v567 = vld [vmem:[%s544 + $0x28] sm:$0xff]
          %v568 = vld [vmem:[%s544 + $0x30] sm:$0xff]
          %v569 = vld [vmem:[%s544 + $0x38] sm:$0xff]
          %v570 = vld [vmem:[%s544 + $0x40] sm:$0xff]
          %v571 = vld [vmem:[%s544 + $0x48] sm:$0xff]
          %v572 = vld [vmem:[%s544 + $0x50] sm:$0xff]
          %v573 = vld [vmem:[%s544 + $0x58] sm:$0xff]
          %v574 = vld [vmem:[%s544 + $0x60] sm:$0xff]
          %v575 = vld [vmem:[%s544 + $0x68] sm:$0xff]
          %v576 = vld [vmem:[%s544 + $0x70] sm:$0xff]
          %v577 = vld [vmem:[%s544 + $0x78] sm:$0xff]
          %v578 = vpack.c.bf16 %v563, %v562
          %v579 = vpack.c.bf16 %v565, %v564
          %v580 = vpack.c.bf16 %v567, %v566
          %v581 = vpack.c.bf16 %v569, %v568
          %v582 = vpack.c.bf16 %v571, %v570
          %v583 = vpack.c.bf16 %v573, %v572
          %v584 = vpack.c.bf16 %v575, %v574
          %v585 = vpack.c.bf16 %v577, %v576
          %v586 = vld [vmem:[%s1] sm:$0xf]
          %v587 = vld [vmem:[%s1 + $0x4] sm:$0xf]
          %v588 = vld [vmem:[%s1 + $0x8] sm:$0xf]
          %v589 = vld [vmem:[%s1 + $0xc] sm:$0xf]
          %v590 = vld [vmem:[%s1 + $0x10] sm:$0xf]
          %v591 = vld [vmem:[%s1 + $0x14] sm:$0xf]
          %v592 = vld [vmem:[%s2] sm:$0x1]
          %v594 = vlaneseq
          %v595 = vshrl.u32 %v594, 7
          %v596 = vsub.s32 0, %v595
          %v597 = vrot.slane %v592, %v596
          %v605 = vunpack.c.l.b16 %v586
          %v606 = vunpack.c.l.b16 %v587
          %v607 = vunpack.c.l.b16 %v588
          %v608 = vunpack.c.l.b16 %v589
          %v609 = vunpack.c.l.b16 %v590
          %v610 = vunpack.c.l.b16 %v591
          %v611 = vpack.c.b16 %v606, %v605
          %v612 = vpack.c.b16 %v608, %v607
          %v613 = vpack.c.b16 %v610, %v609
          %vm617 = vcmask 392192
          %v619 = vsel %vm617, %v578, 0
          %v622 = vsel %vm617, %v579, 0
          %v625 = vsel %vm617, %v580, 0
          %v628 = vsel %vm617, %v581, 0
          %v631 = vsel %vm617, %v582, 0
          %v634 = vsel %vm617, %v583, 0
          %v637 = vsel %vm617, %v584, 0
          %v640 = vsel %vm617, %v585, 0
          %642 = vmatprep.subr.bf16.mxu0 0
          %643 = vmatpush1.bf16.msra.mxu0 %v611
          %644 = vmatprep.subr.bf16.mxu0 0
          %645 = vmatpush1.bf16.msra.mxu0 %v612
          %646 = vmatprep.subr.bf16.mxu0 0
          %647 = vmatpush1.bf16.msra.mxu0 %v613
          %648 = vmatprep.subr.bf16.mxu0 0
          %649 = vmatpush1.bf16.msra.mxu0 0
          %650 = vmatprep.subr.bf16.mxu0 0
          %651 = vmatpush1.bf16.msra.mxu0 0
          %652 = vmatprep.subr.bf16.mxu0 0
          %653 = vmatpush1.bf16.msra.mxu0 0
          %654 = vmatprep.subr.bf16.mxu0 0
          %655 = vmatpush1.bf16.msra.mxu0 0
          %656 = vmatprep.subr.bf16.mxu0 0
          %657 = vmatpush1.bf16.msra.mxu0 0
          %658 = vmatprep.subr.bf16.mxu0 0
          %659 = vmatpush1.bf16.msra.mxu0 0
          %660 = vmatprep.subr.bf16.mxu0 0
          %661 = vmatpush1.bf16.msra.mxu0 0
          %662 = vmatprep.subr.bf16.mxu0 0
          %663 = vmatpush1.bf16.msra.mxu0 0
          %664 = vmatprep.subr.bf16.mxu0 0
          %665 = vmatpush1.bf16.msra.mxu0 0
          %666 = vmatprep.subr.bf16.mxu0 0
          %667 = vmatpush1.bf16.msra.mxu0 0
          %668 = vmatprep.subr.bf16.mxu0 0
          %669 = vmatpush1.bf16.msra.mxu0 0
          %670 = vmatprep.subr.bf16.mxu0 0
          %671 = vmatpush1.bf16.msra.mxu0 0
          %672 = vmatprep.subr.bf16.mxu0 0
          %673 = vmatpush1.bf16.msra.mxu0 0
          %674 = vmatprep.mubr.bf16.mxu0 0
          %675 = vmatmul.mubr.bf16.gmra.mrb[0].mxu0 %v619
          %v676 = vpop.f32.mrb[0].mxu0
          %v677 = vadd.f32 %v597, %v676
          %v678 = vpop.f32.mrb[0].mxu0
          %v679 = vpop.f32.mrb[0].mxu0
          %v680 = vadd.f32 %v597, %v679
          %v681 = vpop.f32.mrb[0].mxu0
          %682 = vmatprep.mubr.bf16.mxu0 0
          %683 = vmatmul.mubr.bf16.gmra.mrb[0].mxu0 %v622
          %v684 = vpop.f32.mrb[0].mxu0
          %v685 = vadd.f32 %v597, %v684
          %v686 = vpop.f32.mrb[0].mxu0
          %v687 = vpop.f32.mrb[0].mxu0
          %v688 = vadd.f32 %v597, %v687
          %v689 = vpop.f32.mrb[0].mxu0
          %690 = vmatprep.mubr.bf16.mxu0 0
          %691 = vmatmul.mubr.bf16.gmra.mrb[0].mxu0 %v625
          %v692 = vpop.f32.mrb[0].mxu0
          %v693 = vadd.f32 %v597, %v692
          %v694 = vpop.f32.mrb[0].mxu0
          %v695 = vpop.f32.mrb[0].mxu0
          %v696 = vadd.f32 %v597, %v695
          %v697 = vpop.f32.mrb[0].mxu0
          %698 = vmatprep.mubr.bf16.mxu0 0
          %699 = vmatmul.mubr.bf16.gmra.mrb[0].mxu0 %v628
          %v700 = vpop.f32.mrb[0].mxu0
          %v701 = vadd.f32 %v597, %v700
          %v702 = vpop.f32.mrb[0].mxu0
          %v703 = vpop.f32.mrb[0].mxu0
          %v704 = vadd.f32 %v597, %v703
          %v705 = vpop.f32.mrb[0].mxu0
          %706 = vmatprep.mubr.bf16.mxu0 0
          %707 = vmatmul.mubr.bf16.gmra.mrb[0].mxu0 %v631
          %v708 = vpop.f32.mrb[0].mxu0
          %v709 = vadd.f32 %v597, %v708
          %v710 = vpop.f32.mrb[0].mxu0
          %v711 = vpop.f32.mrb[0].mxu0
          %v712 = vadd.f32 %v597, %v711
          %v713 = vpop.f32.mrb[0].mxu0
          %714 = vmatprep.mubr.bf16.mxu0 0
          %715 = vmatmul.mubr.bf16.gmra.mrb[0].mxu0 %v634
          %v716 = vpop.f32.mrb[0].mxu0
          %v717 = vadd.f32 %v597, %v716
          %v718 = vpop.f32.mrb[0].mxu0
          %v719 = vpop.f32.mrb[0].mxu0
          %v720 = vadd.f32 %v597, %v719
          %v721 = vpop.f32.mrb[0].mxu0
          %722 = vmatprep.mubr.bf16.mxu0 0
          %723 = vmatmul.mubr.bf16.gmra.mrb[0].mxu0 %v637
          %v724 = vpop.f32.mrb[0].mxu0
          %v725 = vadd.f32 %v597, %v724
          %v726 = vpop.f32.mrb[0].mxu0
          %v727 = vpop.f32.mrb[0].mxu0
          %v728 = vadd.f32 %v597, %v727
          %v729 = vpop.f32.mrb[0].mxu0
          %730 = vmatprep.mubr.bf16.mxu0 0
          %731 = vmatmul.mubr.bf16.gmra.mrb[0].mxu0 %v640
          %v732 = vpop.f32.mrb[0].mxu0
          %v733 = vadd.f32 %v597, %v732
          %v734 = vpop.f32.mrb[0].mxu0
          %v735 = vpop.f32.mrb[0].mxu0
          %v736 = vadd.f32 %v597, %v735
          %v737 = vpop.f32.mrb[0].mxu0
          %738 = vdwg.mxu0
          %v739 = vld [vmem:[%s3] sm:$0xff]
          %v740 = vld [vmem:[%s3 + $0x8] sm:$0xff]
          %v741 = vadd.f32 %v677, %v739
          %v742 = vadd.f32 %v680, %v740
          %v743 = vadd.f32 %v685, %v739
          %v744 = vadd.f32 %v688, %v740
          %v745 = vadd.f32 %v693, %v739
          %v746 = vadd.f32 %v696, %v740
          %v747 = vadd.f32 %v701, %v739
          %v748 = vadd.f32 %v704, %v740
          %v749 = vadd.f32 %v709, %v739
          %v750 = vadd.f32 %v712, %v740
          %v751 = vadd.f32 %v717, %v739
          %v752 = vadd.f32 %v720, %v740
          %v753 = vadd.f32 %v725, %v739
          %v754 = vadd.f32 %v728, %v740
          %v755 = vadd.f32 %v733, %v739
          %v756 = vadd.f32 %v736, %v740
          %757 = vst [vmem:[#allocation2] sm:$0xff] %v741
          %758 = vst [vmem:[#allocation2 + $0x8] sm:$0xff] %v742
          %759 = vst [vmem:[#allocation2 + $0x10] sm:$0xff] %v743
          %760 = vst [vmem:[#allocation2 + $0x18] sm:$0xff] %v744
          %761 = vst [vmem:[#allocation2 + $0x20] sm:$0xff] %v745
          %762 = vst [vmem:[#allocation2 + $0x28] sm:$0xff] %v746
          %763 = vst [vmem:[#allocation2 + $0x30] sm:$0xff] %v747
          %764 = vst [vmem:[#allocation2 + $0x38] sm:$0xff] %v748
          %765 = vst [vmem:[#allocation2 + $0x40] sm:$0xff] %v749
          %766 = vst [vmem:[#allocation2 + $0x48] sm:$0xff] %v750
          %767 = vst [vmem:[#allocation2 + $0x50] sm:$0xff] %v751
          %768 = vst [vmem:[#allocation2 + $0x58] sm:$0xff] %v752
          %769 = vst [vmem:[#allocation2 + $0x60] sm:$0xff] %v753
          %770 = vst [vmem:[#allocation2 + $0x68] sm:$0xff] %v754
          %771 = vst [vmem:[#allocation2 + $0x70] sm:$0xff] %v755
          %772 = vst [vmem:[#allocation2 + $0x78] sm:$0xff] %v756
        $region80: #{tpu_custom_call.1} parent=63 // pred_fallthru
          _
        %v773 = vld [vmem:[#allocation2] sm:$0xff]
        %v774 = vld [vmem:[#allocation2 + $0x8] sm:$0xff]
        %v775 = vld [vmem:[#allocation2 + $0x10] sm:$0xff]
        %v776 = vld [vmem:[#allocation2 + $0x18] sm:$0xff]
        %v777 = vld [vmem:[#allocation2 + $0x20] sm:$0xff]
        %v778 = vld [vmem:[#allocation2 + $0x28] sm:$0xff]
        %v779 = vld [vmem:[#allocation2 + $0x30] sm:$0xff]
        %v780 = vld [vmem:[#allocation2 + $0x38] sm:$0xff]
        %v781 = vld [vmem:[#allocation2 + $0x40] sm:$0xff]
        %v782 = vld [vmem:[#allocation2 + $0x48] sm:$0xff]
        %v783 = vld [vmem:[#allocation2 + $0x50] sm:$0xff]
        %v784 = vld [vmem:[#allocation2 + $0x58] sm:$0xff]
        %v785 = vld [vmem:[#allocation2 + $0x60] sm:$0xff]
        %v786 = vld [vmem:[#allocation2 + $0x68] sm:$0xff]
        %v787 = vld [vmem:[#allocation2 + $0x70] sm:$0xff]
        %v788 = vld [vmem:[#allocation2 + $0x78] sm:$0xff]
        %v789 = vld [vmem:[%s550] sm:$0xff]
        %v790 = vld [vmem:[%s550 + $0x8] sm:$0xff]
        %v791 = vld [vmem:[%s550 + $0x10] sm:$0xff]
        %792 = vadd.xlane.f32.xlu0 %v773
        %v793 = vpop.xlane.xlu0 %792
        %794 = vadd.xlane.f32.xlu0 %v774
        %v795 = vpop.xlane.xlu0 %794
        %796 = vadd.xlane.f32.xlu0 %v775
        %v797 = vpop.xlane.xlu0 %796
        %798 = vadd.xlane.f32.xlu0 %v776
        %v799 = vpop.xlane.xlu0 %798
        %800 = vadd.xlane.f32.xlu0 %v777
        %v801 = vpop.xlane.xlu0 %800
        %802 = vadd.xlane.f32.xlu0 %v778
        %v803 = vpop.xlane.xlu0 %802
        %804 = vadd.xlane.f32.xlu0 %v779
        %v805 = vpop.xlane.xlu0 %804
        %806 = vadd.xlane.f32.xlu0 %v780
        %v807 = vpop.xlane.xlu0 %806
        %808 = vadd.xlane.f32.xlu0 %v781
        %v809 = vpop.xlane.xlu0 %808
        %810 = vadd.xlane.f32.xlu0 %v782
        %v811 = vpop.xlane.xlu0 %810
        %812 = vadd.xlane.f32.xlu0 %v783
        %v813 = vpop.xlane.xlu0 %812
        %814 = vadd.xlane.f32.xlu0 %v784
        %v815 = vpop.xlane.xlu0 %814
        %816 = vadd.xlane.f32.xlu0 %v785
        %v817 = vpop.xlane.xlu0 %816
        %818 = vadd.xlane.f32.xlu0 %v786
        %v819 = vpop.xlane.xlu0 %818
        %820 = vadd.xlane.f32.xlu0 %v787
        %v821 = vpop.xlane.xlu0 %820
        %822 = vadd.xlane.f32.xlu0 %v788
        %v823 = vpop.xlane.xlu0 %822
        %v824 = vrcp.pop 128.0
        %v825 = vmul.f32 %v793, %v824
        %v826 = vmul.f32 %v795, %v824
        %v827 = vmul.f32 %v797, %v824
        %v828 = vmul.f32 %v799, %v824
        %v829 = vmul.f32 %v801, %v824
        %v830 = vmul.f32 %v803, %v824
        %v831 = vmul.f32 %v805, %v824
        %v832 = vmul.f32 %v807, %v824
        %v833 = vmul.f32 %v809, %v824
        %v834 = vmul.f32 %v811, %v824
        %v835 = vmul.f32 %v813, %v824
        %v836 = vmul.f32 %v815, %v824
        %v837 = vmul.f32 %v817, %v824
        %v838 = vmul.f32 %v819, %v824
        %v839 = vmul.f32 %v821, %v824
        %v840 = vmul.f32 %v823, %v824
        %v841 = vsub.f32 %v773, %v825
        %v842 = vsub.f32 %v774, %v826
        %v843 = vsub.f32 %v775, %v827
        %v844 = vsub.f32 %v776, %v828
        %v845 = vsub.f32 %v777, %v829
        %v846 = vsub.f32 %v778, %v830
        %v847 = vsub.f32 %v779, %v831
        %v848 = vsub.f32 %v780, %v832
        %v849 = vsub.f32 %v781, %v833
        %v850 = vsub.f32 %v782, %v834
        %v851 = vsub.f32 %v783, %v835
        %v852 = vsub.f32 %v784, %v836
        %v853 = vsub.f32 %v785, %v837
        %v854 = vsub.f32 %v786, %v838
        %v855 = vsub.f32 %v787, %v839
        %v856 = vsub.f32 %v788, %v840
        %v857 = vmul.f32 %v841, %v841
        %v858 = vmul.f32 %v842, %v842
        %v859 = vmul.f32 %v843, %v843
        %v860 = vmul.f32 %v844, %v844
        %v861 = vmul.f32 %v845, %v845
        %v862 = vmul.f32 %v846, %v846
        %v863 = vmul.f32 %v847, %v847
        %v864 = vmul.f32 %v848, %v848
        %v865 = vmul.f32 %v849, %v849
        %v866 = vmul.f32 %v850, %v850
        %v867 = vmul.f32 %v851, %v851
        %v868 = vmul.f32 %v852, %v852
        %v869 = vmul.f32 %v853, %v853
        %v870 = vmul.f32 %v854, %v854
        %v871 = vmul.f32 %v855, %v855
        %v872 = vmul.f32 %v856, %v856
        %873 = vadd.xlane.f32.xlu0 %v857
        %v874 = vpop.xlane.xlu0 %873
        %875 = vadd.xlane.f32.xlu0 %v858
        %v876 = vpop.xlane.xlu0 %875
        %877 = vadd.xlane.f32.xlu0 %v859
        %v878 = vpop.xlane.xlu0 %877
        %879 = vadd.xlane.f32.xlu0 %v860
        %v880 = vpop.xlane.xlu0 %879
        %881 = vadd.xlane.f32.xlu0 %v861
        %v882 = vpop.xlane.xlu0 %881
        %883 = vadd.xlane.f32.xlu0 %v862
        %v884 = vpop.xlane.xlu0 %883
        %885 = vadd.xlane.f32.xlu0 %v863
        %v886 = vpop.xlane.xlu0 %885
        %887 = vadd.xlane.f32.xlu0 %v864
        %v888 = vpop.xlane.xlu0 %887
        %889 = vadd.xlane.f32.xlu0 %v865
        %v890 = vpop.xlane.xlu0 %889
        %891 = vadd.xlane.f32.xlu0 %v866
        %v892 = vpop.xlane.xlu0 %891
        %893 = vadd.xlane.f32.xlu0 %v867
        %v894 = vpop.xlane.xlu0 %893
        %895 = vadd.xlane.f32.xlu0 %v868
        %v896 = vpop.xlane.xlu0 %895
        %897 = vadd.xlane.f32.xlu0 %v869
        %v898 = vpop.xlane.xlu0 %897
        %899 = vadd.xlane.f32.xlu0 %v870
        %v900 = vpop.xlane.xlu0 %899
        %901 = vadd.xlane.f32.xlu0 %v871
        %v902 = vpop.xlane.xlu0 %901
        %903 = vadd.xlane.f32.xlu0 %v872
        %v904 = vpop.xlane.xlu0 %903
        %v905 = vmul.f32 %v874, %v824
        %v906 = vmul.f32 %v876, %v824
        %v907 = vmul.f32 %v878, %v824
        %v908 = vmul.f32 %v880, %v824
        %v909 = vmul.f32 %v882, %v824
        %v910 = vmul.f32 %v884, %v824
        %v911 = vmul.f32 %v886, %v824
        %v912 = vmul.f32 %v888, %v824
        %v913 = vmul.f32 %v890, %v824
        %v914 = vmul.f32 %v892, %v824
        %v915 = vmul.f32 %v894, %v824
        %v916 = vmul.f32 %v896, %v824
        %v917 = vmul.f32 %v898, %v824
        %v918 = vmul.f32 %v900, %v824
        %v919 = vmul.f32 %v902, %v824
        %v920 = vmul.f32 %v904, %v824
        %v921 = vadd.f32 %v905, 1e-06
        %v922 = vadd.f32 %v906, 1e-06
        %v923 = vadd.f32 %v907, 1e-06
        %v924 = vadd.f32 %v908, 1e-06
        %v925 = vadd.f32 %v909, 1e-06
        %v926 = vadd.f32 %v910, 1e-06
        %v927 = vadd.f32 %v911, 1e-06
        %v928 = vadd.f32 %v912, 1e-06
        %v929 = vadd.f32 %v913, 1e-06
        %v930 = vadd.f32 %v914, 1e-06
        %v931 = vadd.f32 %v915, 1e-06
        %v932 = vadd.f32 %v916, 1e-06
        %v933 = vadd.f32 %v917, 1e-06
        %v934 = vadd.f32 %v918, 1e-06
        %v935 = vadd.f32 %v919, 1e-06
        %v936 = vadd.f32 %v920, 1e-06
        %v937 = vrsqrt.pop %v921
        %v938 = vrsqrt.pop %v922
        %v939 = vrsqrt.pop %v923
        %v940 = vrsqrt.pop %v924
        %v941 = vrsqrt.pop %v925
        %v942 = vrsqrt.pop %v926
        %v943 = vrsqrt.pop %v927
        %v944 = vrsqrt.pop %v928
        %v945 = vrsqrt.pop %v929
        %v946 = vrsqrt.pop %v930
        %v947 = vrsqrt.pop %v931
        %v948 = vrsqrt.pop %v932
        %v949 = vrsqrt.pop %v933
        %v950 = vrsqrt.pop %v934
        %v951 = vrsqrt.pop %v935
        %v952 = vrsqrt.pop %v936
        %v953 = vmul.f32 %v841, %v937
        %v954 = vmul.f32 %v842, %v938
        %v955 = vmul.f32 %v843, %v939
        %v956 = vmul.f32 %v844, %v940
        %v957 = vmul.f32 %v845, %v941
        %v958 = vmul.f32 %v846, %v942
        %v959 = vmul.f32 %v847, %v943
        %v960 = vmul.f32 %v848, %v944
        %v961 = vmul.f32 %v849, %v945
        %v962 = vmul.f32 %v850, %v946
        %v963 = vmul.f32 %v851, %v947
        %v964 = vmul.f32 %v852, %v948
        %v965 = vmul.f32 %v853, %v949
        %v966 = vmul.f32 %v854, %v950
        %v967 = vmul.f32 %v855, %v951
        %v968 = vmul.f32 %v856, %v952
        %v969 = vlaneseq
        %v970 = vshrl.u32 %v969, 7
        %v971 = vsub.s32 0, %v970
        %v972 = vrot.slane %v789, %v971
        %v973 = vmul.f32 %v953, %v972
        %v974 = vmul.f32 %v954, %v972
        %v975 = vmul.f32 %v955, %v972
        %v976 = vmul.f32 %v956, %v972
        %v977 = vmul.f32 %v957, %v972
        %v978 = vmul.f32 %v958, %v972
        %v979 = vmul.f32 %v959, %v972
        %v980 = vmul.f32 %v960, %v972
        %v981 = vmul.f32 %v961, %v972
        %v982 = vmul.f32 %v962, %v972
        %v983 = vmul.f32 %v963, %v972
        %v984 = vmul.f32 %v964, %v972
        %v985 = vmul.f32 %v965, %v972
        %v986 = vmul.f32 %v966, %v972
        %v987 = vmul.f32 %v967, %v972
        %v988 = vmul.f32 %v968, %v972
        %v989 = vlaneseq
        %v990 = vshrl.u32 %v989, 7
        %v991 = vsub.s32 1, %v990
        %v992 = vrot.slane %v789, %v991
        %v993 = vadd.f32 %v973, %v992
        %v994 = vadd.f32 %v974, %v992
        %v995 = vadd.f32 %v975, %v992
        %v996 = vadd.f32 %v976, %v992
        %v997 = vadd.f32 %v977, %v992
        %v998 = vadd.f32 %v978, %v992
        %v999 = vadd.f32 %v979, %v992
        %v1000 = vadd.f32 %v980, %v992
        %v1001 = vadd.f32 %v981, %v992
        %v1002 = vadd.f32 %v982, %v992
        %v1003 = vadd.f32 %v983, %v992
        %v1004 = vadd.f32 %v984, %v992
        %v1005 = vadd.f32 %v985, %v992
        %v1006 = vadd.f32 %v986, %v992
        %v1007 = vadd.f32 %v987, %v992
        %v1008 = vadd.f32 %v988, %v992
        %v1009 = vpack.c.bf16 %v994, %v993
        %v1010 = vpack.c.bf16 %v996, %v995
        %v1011 = vpack.c.bf16 %v998, %v997
        %v1012 = vpack.c.bf16 %v1000, %v999
        %v1013 = vpack.c.bf16 %v1002, %v1001
        %v1014 = vpack.c.bf16 %v1004, %v1003
        %v1015 = vpack.c.bf16 %v1006, %v1005
        %v1016 = vpack.c.bf16 %v1008, %v1007
        %v1017 = vld [vmem:[%s458] sm:$0xff]
        %v1018 = vld [vmem:[%s458 + $0x8] sm:$0xf]
        %v1019 = vld [vmem:[%s458 + $0xc] sm:$0xff]
        %v1020 = vld [vmem:[%s458 + $0x14] sm:$0xf]
        %v1021 = vld [vmem:[%s458 + $0x18] sm:$0xff]
        %v1022 = vld [vmem:[%s458 + $0x20] sm:$0xf]
        %v1023 = vld [vmem:[%s458 + $0x24] sm:$0xff]
        %v1024 = vld [vmem:[%s458 + $0x2c] sm:$0xf]
        %v1025 = vld [vmem:[%s458 + $0x30] sm:$0xff]
        %v1026 = vld [vmem:[%s458 + $0x38] sm:$0xf]
        %v1027 = vld [vmem:[%s458 + $0x3c] sm:$0xff]
        %v1028 = vld [vmem:[%s458 + $0x44] sm:$0xf]
        %v1029 = vld [vmem:[%s458 + $0x48] sm:$0xff]
        %v1030 = vld [vmem:[%s458 + $0x50] sm:$0xf]
        %v1031 = vld [vmem:[%s458 + $0x54] sm:$0xff]
        %v1032 = vld [vmem:[%s458 + $0x5c] sm:$0xf]
        %v1033 = vld [vmem:[%s458 + $0x60] sm:$0xff]
        %v1034 = vld [vmem:[%s458 + $0x68] sm:$0xf]
        %v1035 = vld [vmem:[%s458 + $0x6c] sm:$0xff]
        %v1036 = vld [vmem:[%s458 + $0x74] sm:$0xf]
        %v1037 = vld [vmem:[%s458 + $0x78] sm:$0xff]
        %v1038 = vld [vmem:[%s458 + $0x80] sm:$0xf]
        %v1039 = vld [vmem:[%s458 + $0x84] sm:$0xff]
        %v1040 = vld [vmem:[%s458 + $0x8c] sm:$0xf]
        %v1041 = vld [vmem:[%s458 + $0x90] sm:$0xff]
        %v1042 = vld [vmem:[%s458 + $0x98] sm:$0xf]
        %v1043 = vld [vmem:[%s458 + $0x9c] sm:$0xff]
        %v1044 = vld [vmem:[%s458 + $0xa4] sm:$0xf]
        %v1045 = vld [vmem:[%s458 + $0xa8] sm:$0xff]
        %v1046 = vld [vmem:[%s458 + $0xb0] sm:$0xf]
        %v1047 = vld [vmem:[%s458 + $0xb4] sm:$0xff]
        %v1048 = vld [vmem:[%s458 + $0xbc] sm:$0xf]
        %v1049 = vlaneseq
        %v1050 = vshrl.u32 %v1049, 7
        %v1051 = vsub.s32 2, %v1050
        %v1052 = vrot.slane %v789, %v1051
        %v1053 = vlaneseq
        %v1054 = vshrl.u32 %v1053, 7
        %v1055 = vsub.s32 2, %v1054
        %v1056 = vrot.slane %v790, %v1055
        %v1057 = vlaneseq
        %v1058 = vshrl.u32 %v1057, 7
        %v1059 = vsub.s32 2, %v1058
        %v1060 = vrot.slane %v791, %v1059
        %v1093 = vunpack.c.l.b16 %v1017
        %v1094 = vunpack.c.h.b16 %v1017
        %v1095 = vunpack.c.l.b16 %v1018
        %v1096 = vunpack.c.l.b16 %v1019
        %v1097 = vunpack.c.h.b16 %v1019
        %v1098 = vunpack.c.l.b16 %v1020
        %v1099 = vunpack.c.l.b16 %v1021
        %v1100 = vunpack.c.h.b16 %v1021
        %v1101 = vunpack.c.l.b16 %v1022
        %v1102 = vunpack.c.l.b16 %v1023
        %v1103 = vunpack.c.h.b16 %v1023
        %v1104 = vunpack.c.l.b16 %v1024
        %v1105 = vunpack.c.l.b16 %v1025
        %v1106 = vunpack.c.h.b16 %v1025
        %v1107 = vunpack.c.l.b16 %v1026
        %v1108 = vunpack.c.l.b16 %v1027
        %v1109 = vunpack.c.h.b16 %v1027
        %v1110 = vunpack.c.l.b16 %v1028
        %v1111 = vunpack.c.l.b16 %v1029
        %v1112 = vunpack.c.h.b16 %v1029
        %v1113 = vunpack.c.l.b16 %v1030
        %v1114 = vunpack.c.l.b16 %v1031
        %v1115 = vunpack.c.h.b16 %v1031
        %v1116 = vunpack.c.l.b16 %v1032
        %v1117 = vunpack.c.l.b16 %v1033
        %v1118 = vunpack.c.h.b16 %v1033
        %v1119 = vunpack.c.l.b16 %v1034
        %v1120 = vunpack.c.l.b16 %v1035
        %v1121 = vunpack.c.h.b16 %v1035
        %v1122 = vunpack.c.l.b16 %v1036
        %v1123 = vunpack.c.l.b16 %v1037
        %v1124 = vunpack.c.h.b16 %v1037
        %v1125 = vunpack.c.l.b16 %v1038
        %v1126 = vunpack.c.l.b16 %v1039
        %v1127 = vunpack.c.h.b16 %v1039
        %v1128 = vunpack.c.l.b16 %v1040
        %v1129 = vunpack.c.l.b16 %v1041
        %v1130 = vunpack.c.h.b16 %v1041
        %v1131 = vunpack.c.l.b16 %v1042
        %v1132 = vunpack.c.l.b16 %v1043
        %v1133 = vunpack.c.h.b16 %v1043
        %v1134 = vunpack.c.l.b16 %v1044
        %v1135 = vunpack.c.l.b16 %v1045
        %v1136 = vunpack.c.h.b16 %v1045
        %v1137 = vunpack.c.l.b16 %v1046
        %v1138 = vunpack.c.l.b16 %v1047
        %v1139 = vunpack.c.h.b16 %v1047
        %v1140 = vunpack.c.l.b16 %v1048
        %v1141 = vpack.c.b16 %v1096, %v1093
        %v1142 = vpack.c.b16 %v1097, %v1094
        %v1143 = vpack.c.b16 %v1098, %v1095
        %v1144 = vpack.c.b16 %v1102, %v1099
        %v1145 = vpack.c.b16 %v1103, %v1100
        %v1146 = vpack.c.b16 %v1104, %v1101
        %v1147 = vpack.c.b16 %v1108, %v1105
        %v1148 = vpack.c.b16 %v1109, %v1106
        %v1149 = vpack.c.b16 %v1110, %v1107
        %v1150 = vpack.c.b16 %v1114, %v1111
        %v1151 = vpack.c.b16 %v1115, %v1112
        %v1152 = vpack.c.b16 %v1116, %v1113
        %v1153 = vpack.c.b16 %v1120, %v1117
        %v1154 = vpack.c.b16 %v1121, %v1118
        %v1155 = vpack.c.b16 %v1122, %v1119
        %v1156 = vpack.c.b16 %v1126, %v1123
        %v1157 = vpack.c.b16 %v1127, %v1124
        %v1158 = vpack.c.b16 %v1128, %v1125
        %v1159 = vpack.c.b16 %v1132, %v1129
        %v1160 = vpack.c.b16 %v1133, %v1130
        %v1161 = vpack.c.b16 %v1134, %v1131
        %v1162 = vpack.c.b16 %v1138, %v1135
        %v1163 = vpack.c.b16 %v1139, %v1136
        %v1164 = vpack.c.b16 %v1140, %v1137
        %1189 = vmatprep.subr.bf16.mxu0 %v1142
        %1190 = vmatpush1.bf16.msra.mxu0 %v1141
        %1191 = vmatprep.subr.bf16.mxu0 %v1145
        %1192 = vmatpush1.bf16.msra.mxu0 %v1144
        %1193 = vmatprep.subr.bf16.mxu0 %v1148
        %1194 = vmatpush1.bf16.msra.mxu0 %v1147
        %1195 = vmatprep.subr.bf16.mxu0 %v1151
        %1196 = vmatpush1.bf16.msra.mxu0 %v1150
        %1197 = vmatprep.subr.bf16.mxu0 %v1154
        %1198 = vmatpush1.bf16.msra.mxu0 %v1153
        %1199 = vmatprep.subr.bf16.mxu0 %v1157
        %1200 = vmatpush1.bf16.msra.mxu0 %v1156
        %1201 = vmatprep.subr.bf16.mxu0 %v1160
        %1202 = vmatpush1.bf16.msra.mxu0 %v1159
        %1203 = vmatprep.subr.bf16.mxu0 %v1163
        %1204 = vmatpush1.bf16.msra.mxu0 %v1162
        %1205 = vmatprep.subr.bf16.mxu0 0
        %1206 = vmatpush1.bf16.msra.mxu0 0
        %1207 = vmatprep.subr.bf16.mxu0 0
        %1208 = vmatpush1.bf16.msra.mxu0 0
        %1209 = vmatprep.subr.bf16.mxu0 0
        %1210 = vmatpush1.bf16.msra.mxu0 0
        %1211 = vmatprep.subr.bf16.mxu0 0
        %1212 = vmatpush1.bf16.msra.mxu0 0
        %1213 = vmatprep.subr.bf16.mxu0 0
        %1214 = vmatpush1.bf16.msra.mxu0 0
        %1215 = vmatprep.subr.bf16.mxu0 0
        %1216 = vmatpush1.bf16.msra.mxu0 0
        %1217 = vmatprep.subr.bf16.mxu0 0
        %1218 = vmatpush1.bf16.msra.mxu0 0
        %1219 = vmatprep.subr.bf16.mxu0 0
        %1220 = vmatpush1.bf16.msra.mxu0 0
        %1221 = vmatprep.mubr.bf16.mxu0 0
        %1222 = vmatmul.mubr.bf16.gmra.mrb[0].mxu0 %v1009
        %v1223 = vpop.f32.mrb[0].mxu0
        %v1224 = vadd.f32 %v1052, %v1223
        %v1225 = vpop.f32.mrb[0].mxu0
        %v1226 = vadd.f32 %v1056, %v1225
        %v1227 = vpop.f32.mrb[0].mxu0
        %v1228 = vadd.f32 %v1052, %v1227
        %v1229 = vpop.f32.mrb[0].mxu0
        %v1230 = vadd.f32 %v1056, %v1229
        %1231 = vmatprep.mubr.bf16.mxu0 0
        %1232 = vmatmul.mubr.bf16.gmra.mrb[0].mxu0 %v1010
        %v1233 = vpop.f32.mrb[0].mxu0
        %v1234 = vadd.f32 %v1052, %v1233
        %v1235 = vpop.f32.mrb[0].mxu0
        %v1236 = vadd.f32 %v1056, %v1235
        %v1237 = vpop.f32.mrb[0].mxu0
        %v1238 = vadd.f32 %v1052, %v1237
        %v1239 = vpop.f32.mrb[0].mxu0
        %v1240 = vadd.f32 %v1056, %v1239
        %1241 = vmatprep.mubr.bf16.mxu0 0
        %1242 = vmatmul.mubr.bf16.gmra.mrb[0].mxu0 %v1011
        %v1243 = vpop.f32.mrb[0].mxu0
        %v1244 = vadd.f32 %v1052, %v1243
        %v1245 = vpop.f32.mrb[0].mxu0
        %v1246 = vadd.f32 %v1056, %v1245
        %v1247 = vpop.f32.mrb[0].mxu0
        %v1248 = vadd.f32 %v1052, %v1247
        %v1249 = vpop.f32.mrb[0].mxu0
        %v1250 = vadd.f32 %v1056, %v1249
        %1251 = vmatprep.mubr.bf16.mxu0 0
        %1252 = vmatmul.mubr.bf16.gmra.mrb[0].mxu0 %v1012
        %v1253 = vpop.f32.mrb[0].mxu0
        %v1254 = vadd.f32 %v1052, %v1253
        %v1255 = vpop.f32.mrb[0].mxu0
        %v1256 = vadd.f32 %v1056, %v1255
        %v1257 = vpop.f32.mrb[0].mxu0
        %v1258 = vadd.f32 %v1052, %v1257
        %v1259 = vpop.f32.mrb[0].mxu0
        %v1260 = vadd.f32 %v1056, %v1259
        %1261 = vmatprep.mubr.bf16.mxu0 0
        %1262 = vmatmul.mubr.bf16.gmra.mrb[0].mxu0 %v1013
        %v1263 = vpop.f32.mrb[0].mxu0
        %v1264 = vadd.f32 %v1052, %v1263
        %v1265 = vpop.f32.mrb[0].mxu0
        %v1266 = vadd.f32 %v1056, %v1265
        %v1267 = vpop.f32.mrb[0].mxu0
        %v1268 = vadd.f32 %v1052, %v1267
        %v1269 = vpop.f32.mrb[0].mxu0
        %v1270 = vadd.f32 %v1056, %v1269
        %1271 = vmatprep.mubr.bf16.mxu0 0
        %1272 = vmatmul.mubr.bf16.gmra.mrb[0].mxu0 %v1014
        %v1273 = vpop.f32.mrb[0].mxu0
        %v1274 = vadd.f32 %v1052, %v1273
        %v1275 = vpop.f32.mrb[0].mxu0
        %v1276 = vadd.f32 %v1056, %v1275
        %v1277 = vpop.f32.mrb[0].mxu0
        %v1278 = vadd.f32 %v1052, %v1277
        %v1279 = vpop.f32.mrb[0].mxu0
        %v1280 = vadd.f32 %v1056, %v1279
        %1281 = vmatprep.mubr.bf16.mxu0 0
        %1282 = vmatmul.mubr.bf16.gmra.mrb[0].mxu0 %v1015
        %v1283 = vpop.f32.mrb[0].mxu0
        %v1284 = vadd.f32 %v1052, %v1283
        %v1285 = vpop.f32.mrb[0].mxu0
        %v1286 = vadd.f32 %v1056, %v1285
        %v1287 = vpop.f32.mrb[0].mxu0
        %v1288 = vadd.f32 %v1052, %v1287
        %v1289 = vpop.f32.mrb[0].mxu0
        %v1290 = vadd.f32 %v1056, %v1289
        %1291 = vmatprep.mubr.bf16.mxu0 0
        %1292 = vmatmul.mubr.bf16.gmra.mrb[0].mxu0 %v1016
        %v1293 = vpop.f32.mrb[0].mxu0
        %v1294 = vadd.f32 %v1052, %v1293
        %v1295 = vpop.f32.mrb[0].mxu0
        %v1296 = vadd.f32 %v1056, %v1295
        %v1297 = vpop.f32.mrb[0].mxu0
        %v1298 = vadd.f32 %v1052, %v1297
        %v1299 = vpop.f32.mrb[0].mxu0
        %v1300 = vadd.f32 %v1056, %v1299
        %1301 = vdwg.mxu0
        %1302 = vmatprep.subr.bf16.mxu0 0
        %1303 = vmatpush1.bf16.msra.mxu0 %v1143
        %1304 = vmatprep.subr.bf16.mxu0 0
        %1305 = vmatpush1.bf16.msra.mxu0 %v1146
        %1306 = vmatprep.subr.bf16.mxu0 0
        %1307 = vmatpush1.bf16.msra.mxu0 %v1149
        %1308 = vmatprep.subr.bf16.mxu0 0
        %1309 = vmatpush1.bf16.msra.mxu0 %v1152
        %1310 = vmatprep.subr.bf16.mxu0 0
        %1311 = vmatpush1.bf16.msra.mxu0 %v1155
        %1312 = vmatprep.subr.bf16.mxu0 0
        %1313 = vmatpush1.bf16.msra.mxu0 %v1158
        %1314 = vmatprep.subr.bf16.mxu0 0
        %1315 = vmatpush1.bf16.msra.mxu0 %v1161
        %1316 = vmatprep.subr.bf16.mxu0 0
        %1317 = vmatpush1.bf16.msra.mxu0 %v1164
        %1318 = vmatprep.subr.bf16.mxu0 0
        %1319 = vmatpush1.bf16.msra.mxu0 0
        %1320 = vmatprep.subr.bf16.mxu0 0
        %1321 = vmatpush1.bf16.msra.mxu0 0
        %1322 = vmatprep.subr.bf16.mxu0 0
        %1323 = vmatpush1.bf16.msra.mxu0 0
        %1324 = vmatprep.subr.bf16.mxu0 0
        %1325 = vmatpush1.bf16.msra.mxu0 0
        %1326 = vmatprep.subr.bf16.mxu0 0
        %1327 = vmatpush1.bf16.msra.mxu0 0
        %1328 = vmatprep.subr.bf16.mxu0 0
        %1329 = vmatpush1.bf16.msra.mxu0 0
        %1330 = vmatprep.subr.bf16.mxu0 0
        %1331 = vmatpush1.bf16.msra.mxu0 0
        %1332 = vmatprep.subr.bf16.mxu0 0
        %1333 = vmatpush1.bf16.msra.mxu0 0
        %1334 = vmatprep.mubr.bf16.mxu0 0
        %1335 = vmatmul.mubr.bf16.gmra.mrb[0].mxu0 %v1009
        %v1336 = vpop.f32.mrb[0].mxu0
        %v1337 = vadd.f32 %v1060, %v1336
        %v1338 = vpop.f32.mrb[0].mxu0
        %v1339 = vpop.f32.mrb[0].mxu0
        %v1340 = vadd.f32 %v1060, %v1339
        %v1341 = vpop.f32.mrb[0].mxu0
        %1342 = vmatprep.mubr.bf16.mxu0 0
        %1343 = vmatmul.mubr.bf16.gmra.mrb[0].mxu0 %v1010
        %v1344 = vpop.f32.mrb[0].mxu0
        %v1345 = vadd.f32 %v1060, %v1344
        %v1346 = vpop.f32.mrb[0].mxu0
        %v1347 = vpop.f32.mrb[0].mxu0
        %v1348 = vadd.f32 %v1060, %v1347
        %v1349 = vpop.f32.mrb[0].mxu0
        %1350 = vmatprep.mubr.bf16.mxu0 0
        %1351 = vmatmul.mubr.bf16.gmra.mrb[0].mxu0 %v1011
        %v1352 = vpop.f32.mrb[0].mxu0
        %v1353 = vadd.f32 %v1060, %v1352
        %v1354 = vpop.f32.mrb[0].mxu0
        %v1355 = vpop.f32.mrb[0].mxu0
        %v1356 = vadd.f32 %v1060, %v1355
        %v1357 = vpop.f32.mrb[0].mxu0
        %1358 = vmatprep.mubr.bf16.mxu0 0
        %1359 = vmatmul.mubr.bf16.gmra.mrb[0].mxu0 %v1012
        %v1360 = vpop.f32.mrb[0].mxu0
        %v1361 = vadd.f32 %v1060, %v1360
        %v1362 = vpop.f32.mrb[0].mxu0
        %v1363 = vpop.f32.mrb[0].mxu0
        %v1364 = vadd.f32 %v1060, %v1363
        %v1365 = vpop.f32.mrb[0].mxu0
        %1366 = vmatprep.mubr.bf16.mxu0 0
        %1367 = vmatmul.mubr.bf16.gmra.mrb[0].mxu0 %v1013
        %v1368 = vpop.f32.mrb[0].mxu0
        %v1369 = vadd.f32 %v1060, %v1368
        %v1370 = vpop.f32.mrb[0].mxu0
        %v1371 = vpop.f32.mrb[0].mxu0
        %v1372 = vadd.f32 %v1060, %v1371
        %v1373 = vpop.f32.mrb[0].mxu0
        %1374 = vmatprep.mubr.bf16.mxu0 0
        %1375 = vmatmul.mubr.bf16.gmra.mrb[0].mxu0 %v1014
        %v1376 = vpop.f32.mrb[0].mxu0
        %v1377 = vadd.f32 %v1060, %v1376
        %v1378 = vpop.f32.mrb[0].mxu0
        %v1379 = vpop.f32.mrb[0].mxu0
        %v1380 = vadd.f32 %v1060, %v1379
        %v1381 = vpop.f32.mrb[0].mxu0
        %1382 = vmatprep.mubr.bf16.mxu0 0
        %1383 = vmatmul.mubr.bf16.gmra.mrb[0].mxu0 %v1015
        %v1384 = vpop.f32.mrb[0].mxu0
        %v1385 = vadd.f32 %v1060, %v1384
        %v1386 = vpop.f32.mrb[0].mxu0
        %v1387 = vpop.f32.mrb[0].mxu0
        %v1388 = vadd.f32 %v1060, %v1387
        %v1389 = vpop.f32.mrb[0].mxu0
        %1390 = vmatprep.mubr.bf16.mxu0 0
        %1391 = vmatmul.mubr.bf16.gmra.mrb[0].mxu0 %v1016
        %v1392 = vpop.f32.mrb[0].mxu0
        %v1393 = vadd.f32 %v1060, %v1392
        %v1394 = vpop.f32.mrb[0].mxu0
        %v1395 = vpop.f32.mrb[0].mxu0
        %v1396 = vadd.f32 %v1060, %v1395
        %v1397 = vpop.f32.mrb[0].mxu0
        %1398 = vdwg.mxu0
        %v1399 = vmul.f32 %v1224, 0.17677669
        %v1400 = vmul.f32 %v1228, 0.17677669
        %v1401 = vmul.f32 %v1234, 0.17677669
        %v1402 = vmul.f32 %v1238, 0.17677669
        %v1403 = vmul.f32 %v1244, 0.17677669
        %v1404 = vmul.f32 %v1248, 0.17677669
        %v1405 = vmul.f32 %v1254, 0.17677669
        %v1406 = vmul.f32 %v1258, 0.17677669
        %v1407 = vmul.f32 %v1264, 0.17677669
        %v1408 = vmul.f32 %v1268, 0.17677669
        %v1409 = vmul.f32 %v1274, 0.17677669
        %v1410 = vmul.f32 %v1278, 0.17677669
        %v1411 = vmul.f32 %v1284, 0.17677669
        %v1412 = vmul.f32 %v1288, 0.17677669
        %v1413 = vmul.f32 %v1294, 0.17677669
        %v1414 = vmul.f32 %v1298, 0.17677669
        %v1415 = vld [vmem:[%s467] sm:$0xf]
        %v1416 = vld [vmem:[%s467 + $0x4] sm:$0xf]
        %v1417 = vld [vmem:[%s467 + $0x8] sm:$0xf]
        %v1418 = vld [vmem:[%s467 + $0xc] sm:$0xf]
        %v1419 = vld [vmem:[%s467 + $0x10] sm:$0xf]
        %v1420 = vld [vmem:[%s467 + $0x14] sm:$0xf]
        %v1421 = vld [vmem:[%s467 + $0x18] sm:$0xf]
        %v1422 = vld [vmem:[%s467 + $0x1c] sm:$0xf]
        %v1423 = vld [vmem:[%s467 + $0x20] sm:$0xf]
        %v1424 = vld [vmem:[%s467 + $0x24] sm:$0xf]
        %v1425 = vld [vmem:[%s467 + $0x28] sm:$0xf]
        %v1426 = vld [vmem:[%s467 + $0x2c] sm:$0xf]
        %v1427 = vld [vmem:[%s467 + $0x30] sm:$0xf]
        %v1428 = vld [vmem:[%s467 + $0x34] sm:$0xf]
        %v1429 = vld [vmem:[%s467 + $0x38] sm:$0xf]
        %v1430 = vld [vmem:[%s467 + $0x3c] sm:$0xf]
        %v1431 = vpack.c.bf16 %v1400, %v1399
        %v1432 = vpack.c.bf16 %v1402, %v1401
        %v1433 = vpack.c.bf16 %v1404, %v1403
        %v1434 = vpack.c.bf16 %v1406, %v1405
        %v1435 = vpack.c.bf16 %v1408, %v1407
        %v1436 = vpack.c.bf16 %v1410, %v1409
        %v1437 = vpack.c.bf16 %v1412, %v1411
        %v1438 = vpack.c.bf16 %v1414, %v1413
        %v1439 = vpack.c.bf16 %v1230, %v1226
        %v1440 = vpack.c.bf16 %v1240, %v1236
        %v1441 = vpack.c.bf16 %v1250, %v1246
        %v1442 = vpack.c.bf16 %v1260, %v1256
        %v1443 = vpack.c.bf16 %v1270, %v1266
        %v1444 = vpack.c.bf16 %v1280, %v1276
        %v1445 = vpack.c.bf16 %v1290, %v1286
        %v1446 = vpack.c.bf16 %v1300, %v1296
        %v1447 = vpack.c.bf16 %v1340, %v1337
        %v1448 = vpack.c.bf16 %v1348, %v1345
        %v1449 = vpack.c.bf16 %v1356, %v1353
        %v1450 = vpack.c.bf16 %v1364, %v1361
        %v1451 = vpack.c.bf16 %v1372, %v1369
        %v1452 = vpack.c.bf16 %v1380, %v1377
        %v1453 = vpack.c.bf16 %v1388, %v1385
        %v1454 = vpack.c.bf16 %v1396, %v1393
        %vm1455 = vcmask 261120
        %v1457 = vsel %vm1455, %v1431, 0
        %v1460 = vsel %vm1455, %v1439, 0
        %1462 = vmatprep.subr.bf16.mxu0 0
        %1463 = vmatpush1.bf16.xpose.msra.mxu0 %v1460
        %1464 = vmatprep.subr.bf16.mxu0 0
        %1465 = vmatpush1.bf16.xpose.msra.mxu0 0
        %1466 = vmatprep.subr.bf16.mxu0 0
        %1467 = vmatpush1.bf16.xpose.msra.mxu0 0
        %1468 = vmatprep.subr.bf16.mxu0 0
        %1469 = vmatpush1.bf16.xpose.msra.mxu0 0
        %1470 = vmatprep.subr.bf16.mxu0 0
        %1471 = vmatpush1.bf16.xpose.msra.mxu0 0
        %1472 = vmatprep.subr.bf16.mxu0 0
        %1473 = vmatpush1.bf16.xpose.msra.mxu0 0
        %1474 = vmatprep.subr.bf16.mxu0 0
        %1475 = vmatpush1.bf16.xpose.msra.mxu0 0
        %1476 = vmatprep.subr.bf16.mxu0 0
        %1477 = vmatpush1.bf16.xpose.msra.mxu0 0
        %1478 = vmatprep.subr.bf16.mxu0 0
        %1479 = vmatpush1.bf16.xpose.msra.mxu0 0
        %1480 = vmatprep.subr.bf16.mxu0 0
        %1481 = vmatpush1.bf16.xpose.msra.mxu0 0
        %1482 = vmatprep.subr.bf16.mxu0 0
        %1483 = vmatpush1.bf16.xpose.msra.mxu0 0
        %1484 = vmatprep.subr.bf16.mxu0 0
        %1485 = vmatpush1.bf16.xpose.msra.mxu0 0
        %1486 = vmatprep.subr.bf16.mxu0 0
        %1487 = vmatpush1.bf16.xpose.msra.mxu0 0
        %1488 = vmatprep.subr.bf16.mxu0 0
        %1489 = vmatpush1.bf16.xpose.msra.mxu0 0
        %1490 = vmatprep.subr.bf16.mxu0 0
        %1491 = vmatpush1.bf16.xpose.msra.mxu0 0
        %1492 = vmatprep.subr.bf16.mxu0 0
        %1493 = vmatpush1.bf16.xpose.msra.mxu0 0
        %1494 = vmatprep.mubr.bf16.mxu0 0
        %1495 = vmatmul.mubr.bf16.gmra.mrb[0].mxu0 %v1457
        %v1496 = vpop.f32.mrb[0].mxu0
        %v1497 = vadd.f32 0.0, %v1496
        %v1498 = vpop.f32.mrb[0].mxu0
        %v1499 = vpop.f32.mrb[0].mxu0
        %v1500 = vadd.f32 0.0, %v1499
        %v1501 = vpop.f32.mrb[0].mxu0
        %1502 = vdwg.mxu0
        %v1504 = vsel %vm1455, %v1432, 0
        %v1507 = vsel %vm1455, %v1440, 0
        %1509 = vmatprep.subr.bf16.mxu0 0
        %1510 = vmatpush1.bf16.xpose.msra.mxu0 %v1507
        %1511 = vmatprep.subr.bf16.mxu0 0
        %1512 = vmatpush1.bf16.xpose.msra.mxu0 0
        %1513 = vmatprep.subr.bf16.mxu0 0
        %1514 = vmatpush1.bf16.xpose.msra.mxu0 0
        %1515 = vmatprep.subr.bf16.mxu0 0
        %1516 = vmatpush1.bf16.xpose.msra.mxu0 0
        %1517 = vmatprep.subr.bf16.mxu0 0
        %1518 = vmatpush1.bf16.xpose.msra.mxu0 0
        %1519 = vmatprep.subr.bf16.mxu0 0
        %1520 = vmatpush1.bf16.xpose.msra.mxu0 0
        %1521 = vmatprep.subr.bf16.mxu0 0
        %1522 = vmatpush1.bf16.xpose.msra.mxu0 0
        %1523 = vmatprep.subr.bf16.mxu0 0
        %1524 = vmatpush1.bf16.xpose.msra.mxu0 0
        %1525 = vmatprep.subr.bf16.mxu0 0
        %1526 = vmatpush1.bf16.xpose.msra.mxu0 0
        %1527 = vmatprep.subr.bf16.mxu0 0
        %1528 = vmatpush1.bf16.xpose.msra.mxu0 0
        %1529 = vmatprep.subr.bf16.mxu0 0
        %1530 = vmatpush1.bf16.xpose.msra.mxu0 0
        %1531 = vmatprep.subr.bf16.mxu0 0
        %1532 = vmatpush1.bf16.xpose.msra.mxu0 0
        %1533 = vmatprep.subr.bf16.mxu0 0
        %1534 = vmatpush1.bf16.xpose.msra.mxu0 0
        %1535 = vmatprep.subr.bf16.mxu0 0
        %1536 = vmatpush1.bf16.xpose.msra.mxu0 0
        %1537 = vmatprep.subr.bf16.mxu0 0
        %1538 = vmatpush1.bf16.xpose.msra.mxu0 0
        %1539 = vmatprep.subr.bf16.mxu0 0
        %1540 = vmatpush1.bf16.xpose.msra.mxu0 0
        %1541 = vmatprep.mubr.bf16.mxu0 0
        %1542 = vmatmul.mubr.bf16.gmra.mrb[0].mxu0 %v1504
        %v1543 = vpop.f32.mrb[0].mxu0
        %v1544 = vadd.f32 0.0, %v1543
        %v1545 = vpop.f32.mrb[0].mxu0
        %v1546 = vpop.f32.mrb[0].mxu0
        %v1547 = vadd.f32 0.0, %v1546
        %v1548 = vpop.f32.mrb[0].mxu0
        %1549 = vdwg.mxu0
        %v1551 = vsel %vm1455, %v1433, 0
        %v1554 = vsel %vm1455, %v1441, 0
        %1556 = vmatprep.subr.bf16.mxu0 0
        %1557 = vmatpush1.bf16.xpose.msra.mxu0 %v1554
        %1558 = vmatprep.subr.bf16.mxu0 0
        %1559 = vmatpush1.bf16.xpose.msra.mxu0 0
        %1560 = vmatprep.subr.bf16.mxu0 0
        %1561 = vmatpush1.bf16.xpose.msra.mxu0 0
        %1562 = vmatprep.subr.bf16.mxu0 0
        %1563 = vmatpush1.bf16.xpose.msra.mxu0 0
        %1564 = vmatprep.subr.bf16.mxu0 0
        %1565 = vmatpush1.bf16.xpose.msra.mxu0 0
        %1566 = vmatprep.subr.bf16.mxu0 0
        %1567 = vmatpush1.bf16.xpose.msra.mxu0 0
        %1568 = vmatprep.subr.bf16.mxu0 0
        %1569 = vmatpush1.bf16.xpose.msra.mxu0 0
        %1570 = vmatprep.subr.bf16.mxu0 0
        %1571 = vmatpush1.bf16.xpose.msra.mxu0 0
        %1572 = vmatprep.subr.bf16.mxu0 0
        %1573 = vmatpush1.bf16.xpose.msra.mxu0 0
        %1574 = vmatprep.subr.bf16.mxu0 0
        %1575 = vmatpush1.bf16.xpose.msra.mxu0 0
        %1576 = vmatprep.subr.bf16.mxu0 0
        %1577 = vmatpush1.bf16.xpose.msra.mxu0 0
        %1578 = vmatprep.subr.bf16.mxu0 0
        %1579 = vmatpush1.bf16.xpose.msra.mxu0 0
        %1580 = vmatprep.subr.bf16.mxu0 0
        %1581 = vmatpush1.bf16.xpose.msra.mxu0 0
        %1582 = vmatprep.subr.bf16.mxu0 0
        %1583 = vmatpush1.bf16.xpose.msra.mxu0 0
        %1584 = vmatprep.subr.bf16.mxu0 0
        %1585 = vmatpush1.bf16.xpose.msra.mxu0 0
        %1586 = vmatprep.subr.bf16.mxu0 0
        %1587 = vmatpush1.bf16.xpose.msra.mxu0 0
        %1588 = vmatprep.mubr.bf16.mxu0 0
        %1589 = vmatmul.mubr.bf16.gmra.mrb[0].mxu0 %v1551
        %v1590 = vpop.f32.mrb[0].mxu0
        %v1591 = vadd.f32 0.0, %v1590
        %v1592 = vpop.f32.mrb[0].mxu0
        %v1593 = vpop.f32.mrb[0].mxu0
        %v1594 = vadd.f32 0.0, %v1593
        %v1595 = vpop.f32.mrb[0].mxu0
        %1596 = vdwg.mxu0
        %v1598 = vsel %vm1455, %v1434, 0
        %v1601 = vsel %vm1455, %v1442, 0
        %1603 = vmatprep.subr.bf16.mxu0 0
        %1604 = vmatpush1.bf16.xpose.msra.mxu0 %v1601
        %1605 = vmatprep.subr.bf16.mxu0 0
        %1606 = vmatpush1.bf16.xpose.msra.mxu0 0
        %1607 = vmatprep.subr.bf16.mxu0 0
        %1608 = vmatpush1.bf16.xpose.msra.mxu0 0
        %1609 = vmatprep.subr.bf16.mxu0 0
        %1610 = vmatpush1.bf16.xpose.msra.mxu0 0
        %1611 = vmatprep.subr.bf16.mxu0 0
        %1612 = vmatpush1.bf16.xpose.msra.mxu0 0
        %1613 = vmatprep.subr.bf16.mxu0 0
        %1614 = vmatpush1.bf16.xpose.msra.mxu0 0
        %1615 = vmatprep.subr.bf16.mxu0 0
        %1616 = vmatpush1.bf16.xpose.msra.mxu0 0
        %1617 = vmatprep.subr.bf16.mxu0 0
        %1618 = vmatpush1.bf16.xpose.msra.mxu0 0
        %1619 = vmatprep.subr.bf16.mxu0 0
        %1620 = vmatpush1.bf16.xpose.msra.mxu0 0
        %1621 = vmatprep.subr.bf16.mxu0 0
        %1622 = vmatpush1.bf16.xpose.msra.mxu0 0
        %1623 = vmatprep.subr.bf16.mxu0 0
        %1624 = vmatpush1.bf16.xpose.msra.mxu0 0
        %1625 = vmatprep.subr.bf16.mxu0 0
        %1626 = vmatpush1.bf16.xpose.msra.mxu0 0
        %1627 = vmatprep.subr.bf16.mxu0 0
        %1628 = vmatpush1.bf16.xpose.msra.mxu0 0
        %1629 = vmatprep.subr.bf16.mxu0 0
        %1630 = vmatpush1.bf16.xpose.msra.mxu0 0
        %1631 = vmatprep.subr.bf16.mxu0 0
        %1632 = vmatpush1.bf16.xpose.msra.mxu0 0
        %1633 = vmatprep.subr.bf16.mxu0 0
        %1634 = vmatpush1.bf16.xpose.msra.mxu0 0
        %1635 = vmatprep.mubr.bf16.mxu0 0
        %1636 = vmatmul.mubr.bf16.gmra.mrb[0].mxu0 %v1598
        %v1637 = vpop.f32.mrb[0].mxu0
        %v1638 = vadd.f32 0.0, %v1637
        %v1639 = vpop.f32.mrb[0].mxu0
        %v1640 = vpop.f32.mrb[0].mxu0
        %v1641 = vadd.f32 0.0, %v1640
        %v1642 = vpop.f32.mrb[0].mxu0
        %1643 = vdwg.mxu0
        %v1645 = vsel %vm1455, %v1435, 0
        %v1648 = vsel %vm1455, %v1443, 0
        %1650 = vmatprep.subr.bf16.mxu0 0
        %1651 = vmatpush1.bf16.xpose.msra.mxu0 %v1648
        %1652 = vmatprep.subr.bf16.mxu0 0
        %1653 = vmatpush1.bf16.xpose.msra.mxu0 0
        %1654 = vmatprep.subr.bf16.mxu0 0
        %1655 = vmatpush1.bf16.xpose.msra.mxu0 0
        %1656 = vmatprep.subr.bf16.mxu0 0
        %1657 = vmatpush1.bf16.xpose.msra.mxu0 0
        %1658 = vmatprep.subr.bf16.mxu0 0
        %1659 = vmatpush1.bf16.xpose.msra.mxu0 0
        %1660 = vmatprep.subr.bf16.mxu0 0
        %1661 = vmatpush1.bf16.xpose.msra.mxu0 0
        %1662 = vmatprep.subr.bf16.mxu0 0
        %1663 = vmatpush1.bf16.xpose.msra.mxu0 0
        %1664 = vmatprep.subr.bf16.mxu0 0
        %1665 = vmatpush1.bf16.xpose.msra.mxu0 0
        %1666 = vmatprep.subr.bf16.mxu0 0
        %1667 = vmatpush1.bf16.xpose.msra.mxu0 0
        %1668 = vmatprep.subr.bf16.mxu0 0
        %1669 = vmatpush1.bf16.xpose.msra.mxu0 0
        %1670 = vmatprep.subr.bf16.mxu0 0
        %1671 = vmatpush1.bf16.xpose.msra.mxu0 0
        %1672 = vmatprep.subr.bf16.mxu0 0
        %1673 = vmatpush1.bf16.xpose.msra.mxu0 0
        %1674 = vmatprep.subr.bf16.mxu0 0
        %1675 = vmatpush1.bf16.xpose.msra.mxu0 0
        %1676 = vmatprep.subr.bf16.mxu0 0
        %1677 = vmatpush1.bf16.xpose.msra.mxu0 0
        %1678 = vmatprep.subr.bf16.mxu0 0
        %1679 = vmatpush1.bf16.xpose.msra.mxu0 0
        %1680 = vmatprep.subr.bf16.mxu0 0
        %1681 = vmatpush1.bf16.xpose.msra.mxu0 0
        %1682 = vmatprep.mubr.bf16.mxu0 0
        %1683 = vmatmul.mubr.bf16.gmra.mrb[0].mxu0 %v1645
        %v1684 = vpop.f32.mrb[0].mxu0
        %v1685 = vadd.f32 0.0, %v1684
        %v1686 = vpop.f32.mrb[0].mxu0
        %v1687 = vpop.f32.mrb[0].mxu0
        %v1688 = vadd.f32 0.0, %v1687
        %v1689 = vpop.f32.mrb[0].mxu0
        %1690 = vdwg.mxu0
        %v1692 = vsel %vm1455, %v1436, 0
        %v1695 = vsel %vm1455, %v1444, 0
        %1697 = vmatprep.subr.bf16.mxu0 0
        %1698 = vmatpush1.bf16.xpose.msra.mxu0 %v1695
        %1699 = vmatprep.subr.bf16.mxu0 0
        %1700 = vmatpush1.bf16.xpose.msra.mxu0 0
        %1701 = vmatprep.subr.bf16.mxu0 0
        %1702 = vmatpush1.bf16.xpose.msra.mxu0 0
        %1703 = vmatprep.subr.bf16.mxu0 0
        %1704 = vmatpush1.bf16.xpose.msra.mxu0 0
        %1705 = vmatprep.subr.bf16.mxu0 0
        %1706 = vmatpush1.bf16.xpose.msra.mxu0 0
        %1707 = vmatprep.subr.bf16.mxu0 0
        %1708 = vmatpush1.bf16.xpose.msra.mxu0 0
        %1709 = vmatprep.subr.bf16.mxu0 0
        %1710 = vmatpush1.bf16.xpose.msra.mxu0 0
        %1711 = vmatprep.subr.bf16.mxu0 0
        %1712 = vmatpush1.bf16.xpose.msra.mxu0 0
        %1713 = vmatprep.subr.bf16.mxu0 0
        %1714 = vmatpush1.bf16.xpose.msra.mxu0 0
        %1715 = vmatprep.subr.bf16.mxu0 0
        %1716 = vmatpush1.bf16.xpose.msra.mxu0 0
        %1717 = vmatprep.subr.bf16.mxu0 0
        %1718 = vmatpush1.bf16.xpose.msra.mxu0 0
        %1719 = vmatprep.subr.bf16.mxu0 0
        %1720 = vmatpush1.bf16.xpose.msra.mxu0 0
        %1721 = vmatprep.subr.bf16.mxu0 0
        %1722 = vmatpush1.bf16.xpose.msra.mxu0 0
        %1723 = vmatprep.subr.bf16.mxu0 0
        %1724 = vmatpush1.bf16.xpose.msra.mxu0 0
        %1725 = vmatprep.subr.bf16.mxu0 0
        %1726 = vmatpush1.bf16.xpose.msra.mxu0 0
        %1727 = vmatprep.subr.bf16.mxu0 0
        %1728 = vmatpush1.bf16.xpose.msra.mxu0 0
        %1729 = vmatprep.mubr.bf16.mxu0 0
        %1730 = vmatmul.mubr.bf16.gmra.mrb[0].mxu0 %v1692
        %v1731 = vpop.f32.mrb[0].mxu0
        %v1732 = vadd.f32 0.0, %v1731
        %v1733 = vpop.f32.mrb[0].mxu0
        %v1734 = vpop.f32.mrb[0].mxu0
        %v1735 = vadd.f32 0.0, %v1734
        %v1736 = vpop.f32.mrb[0].mxu0
        %1737 = vdwg.mxu0
        %v1739 = vsel %vm1455, %v1437, 0
        %v1742 = vsel %vm1455, %v1445, 0
        %1744 = vmatprep.subr.bf16.mxu0 0
        %1745 = vmatpush1.bf16.xpose.msra.mxu0 %v1742
        %1746 = vmatprep.subr.bf16.mxu0 0
        %1747 = vmatpush1.bf16.xpose.msra.mxu0 0
        %1748 = vmatprep.subr.bf16.mxu0 0
        %1749 = vmatpush1.bf16.xpose.msra.mxu0 0
        %1750 = vmatprep.subr.bf16.mxu0 0
        %1751 = vmatpush1.bf16.xpose.msra.mxu0 0
        %1752 = vmatprep.subr.bf16.mxu0 0
        %1753 = vmatpush1.bf16.xpose.msra.mxu0 0
        %1754 = vmatprep.subr.bf16.mxu0 0
        %1755 = vmatpush1.bf16.xpose.msra.mxu0 0
        %1756 = vmatprep.subr.bf16.mxu0 0
        %1757 = vmatpush1.bf16.xpose.msra.mxu0 0
        %1758 = vmatprep.subr.bf16.mxu0 0
        %1759 = vmatpush1.bf16.xpose.msra.mxu0 0
        %1760 = vmatprep.subr.bf16.mxu0 0
        %1761 = vmatpush1.bf16.xpose.msra.mxu0 0
        %1762 = vmatprep.subr.bf16.mxu0 0
        %1763 = vmatpush1.bf16.xpose.msra.mxu0 0
        %1764 = vmatprep.subr.bf16.mxu0 0
        %1765 = vmatpush1.bf16.xpose.msra.mxu0 0
        %1766 = vmatprep.subr.bf16.mxu0 0
        %1767 = vmatpush1.bf16.xpose.msra.mxu0 0
        %1768 = vmatprep.subr.bf16.mxu0 0
        %1769 = vmatpush1.bf16.xpose.msra.mxu0 0
        %1770 = vmatprep.subr.bf16.mxu0 0
        %1771 = vmatpush1.bf16.xpose.msra.mxu0 0
        %1772 = vmatprep.subr.bf16.mxu0 0
        %1773 = vmatpush1.bf16.xpose.msra.mxu0 0
        %1774 = vmatprep.subr.bf16.mxu0 0
        %1775 = vmatpush1.bf16.xpose.msra.mxu0 0
        %1776 = vmatprep.mubr.bf16.mxu0 0
        %1777 = vmatmul.mubr.bf16.gmra.mrb[0].mxu0 %v1739
        %v1778 = vpop.f32.mrb[0].mxu0
        %v1779 = vadd.f32 0.0, %v1778
        %v1780 = vpop.f32.mrb[0].mxu0
        %v1781 = vpop.f32.mrb[0].mxu0
        %v1782 = vadd.f32 0.0, %v1781
        %v1783 = vpop.f32.mrb[0].mxu0
        %1784 = vdwg.mxu0
        %v1786 = vsel %vm1455, %v1438, 0
        %v1789 = vsel %vm1455, %v1446, 0
        %1791 = vmatprep.subr.bf16.mxu0 0
        %1792 = vmatpush1.bf16.xpose.msra.mxu0 %v1789
        %1793 = vmatprep.subr.bf16.mxu0 0
        %1794 = vmatpush1.bf16.xpose.msra.mxu0 0
        %1795 = vmatprep.subr.bf16.mxu0 0
        %1796 = vmatpush1.bf16.xpose.msra.mxu0 0
        %1797 = vmatprep.subr.bf16.mxu0 0
        %1798 = vmatpush1.bf16.xpose.msra.mxu0 0
        %1799 = vmatprep.subr.bf16.mxu0 0
        %1800 = vmatpush1.bf16.xpose.msra.mxu0 0
        %1801 = vmatprep.subr.bf16.mxu0 0
        %1802 = vmatpush1.bf16.xpose.msra.mxu0 0
        %1803 = vmatprep.subr.bf16.mxu0 0
        %1804 = vmatpush1.bf16.xpose.msra.mxu0 0
        %1805 = vmatprep.subr.bf16.mxu0 0
        %1806 = vmatpush1.bf16.xpose.msra.mxu0 0
        %1807 = vmatprep.subr.bf16.mxu0 0
        %1808 = vmatpush1.bf16.xpose.msra.mxu0 0
        %1809 = vmatprep.subr.bf16.mxu0 0
        %1810 = vmatpush1.bf16.xpose.msra.mxu0 0
        %1811 = vmatprep.subr.bf16.mxu0 0
        %1812 = vmatpush1.bf16.xpose.msra.mxu0 0
        %1813 = vmatprep.subr.bf16.mxu0 0
        %1814 = vmatpush1.bf16.xpose.msra.mxu0 0
        %1815 = vmatprep.subr.bf16.mxu0 0
        %1816 = vmatpush1.bf16.xpose.msra.mxu0 0
        %1817 = vmatprep.subr.bf16.mxu0 0
        %1818 = vmatpush1.bf16.xpose.msra.mxu0 0
        %1819 = vmatprep.subr.bf16.mxu0 0
        %1820 = vmatpush1.bf16.xpose.msra.mxu0 0
        %1821 = vmatprep.subr.bf16.mxu0 0
        %1822 = vmatpush1.bf16.xpose.msra.mxu0 0
        %1823 = vmatprep.mubr.bf16.mxu0 0
        %1824 = vmatmul.mubr.bf16.gmra.mrb[0].mxu0 %v1786
        %v1825 = vpop.f32.mrb[0].mxu0
        %v1826 = vadd.f32 0.0, %v1825
        %v1827 = vpop.f32.mrb[0].mxu0
        %v1828 = vpop.f32.mrb[0].mxu0
        %v1829 = vadd.f32 0.0, %v1828
        %v1830 = vpop.f32.mrb[0].mxu0
        %1831 = vdwg.mxu0
        %vm1832 = vcmask 130048
        %v1833 = vsel %vm1832, %v1497, -inf
        %1834 = vmax.xlane.f32.xlu0 %v1833
        %v1835 = vpop.xlane.xlu0 %1834
        %v1836 = vsel %vm1832, %v1500, -inf
        %1837 = vmax.xlane.f32.xlu0 %v1836
        %v1838 = vpop.xlane.xlu0 %1837
        %v1839 = vsel %vm1832, %v1544, -inf
        %1840 = vmax.xlane.f32.xlu0 %v1839
        %v1841 = vpop.xlane.xlu0 %1840
        %v1842 = vsel %vm1832, %v1547, -inf
        %1843 = vmax.xlane.f32.xlu0 %v1842
        %v1844 = vpop.xlane.xlu0 %1843
        %v1845 = vsel %vm1832, %v1591, -inf
        %1846 = vmax.xlane.f32.xlu0 %v1845
        %v1847 = vpop.xlane.xlu0 %1846
        %v1848 = vsel %vm1832, %v1594, -inf
        %1849 = vmax.xlane.f32.xlu0 %v1848
        %v1850 = vpop.xlane.xlu0 %1849
        %v1851 = vsel %vm1832, %v1638, -inf
        %1852 = vmax.xlane.f32.xlu0 %v1851
        %v1853 = vpop.xlane.xlu0 %1852
        %v1854 = vsel %vm1832, %v1641, -inf
        %1855 = vmax.xlane.f32.xlu0 %v1854
        %v1856 = vpop.xlane.xlu0 %1855
        %v1857 = vsel %vm1832, %v1685, -inf
        %1858 = vmax.xlane.f32.xlu0 %v1857
        %v1859 = vpop.xlane.xlu0 %1858
        %v1860 = vsel %vm1832, %v1688, -inf
        %1861 = vmax.xlane.f32.xlu0 %v1860
        %v1862 = vpop.xlane.xlu0 %1861
        %v1863 = vsel %vm1832, %v1732, -inf
        %1864 = vmax.xlane.f32.xlu0 %v1863
        %v1865 = vpop.xlane.xlu0 %1864
        %v1866 = vsel %vm1832, %v1735, -inf
        %1867 = vmax.xlane.f32.xlu0 %v1866
        %v1868 = vpop.xlane.xlu0 %1867
        %v1869 = vsel %vm1832, %v1779, -inf
        %1870 = vmax.xlane.f32.xlu0 %v1869
        %v1871 = vpop.xlane.xlu0 %1870
        %v1872 = vsel %vm1832, %v1782, -inf
        %1873 = vmax.xlane.f32.xlu0 %v1872
        %v1874 = vpop.xlane.xlu0 %1873
        %v1875 = vsel %vm1832, %v1826, -inf
        %1876 = vmax.xlane.f32.xlu0 %v1875
        %v1877 = vpop.xlane.xlu0 %1876
        %v1878 = vsel %vm1832, %v1829, -inf
        %1879 = vmax.xlane.f32.xlu0 %v1878
        %v1880 = vpop.xlane.xlu0 %1879
        %v1881 = vsub.f32 %v1497, %v1835
        %v1882 = vsub.f32 %v1500, %v1838
        %v1883 = vsub.f32 %v1544, %v1841
        %v1884 = vsub.f32 %v1547, %v1844
        %v1885 = vsub.f32 %v1591, %v1847
        %v1886 = vsub.f32 %v1594, %v1850
        %v1887 = vsub.f32 %v1638, %v1853
        %v1888 = vsub.f32 %v1641, %v1856
        %v1889 = vsub.f32 %v1685, %v1859
        %v1890 = vsub.f32 %v1688, %v1862
        %v1891 = vsub.f32 %v1732, %v1865
        %v1892 = vsub.f32 %v1735, %v1868
        %v1893 = vsub.f32 %v1779, %v1871
        %v1894 = vsub.f32 %v1782, %v1874
        %v1895 = vsub.f32 %v1826, %v1877
        %v1896 = vsub.f32 %v1829, %v1880
        %v1897 = vmul.f32 %v1881, 1.442695
        %v1898 = vpow.pop %v1897
        %v1899 = vmul.f32 %v1882, 1.442695
        %v1900 = vpow.pop %v1899
        %v1901 = vmul.f32 %v1883, 1.442695
        %v1902 = vpow.pop %v1901
        %v1903 = vmul.f32 %v1884, 1.442695
        %v1904 = vpow.pop %v1903
        %v1905 = vmul.f32 %v1885, 1.442695
        %v1906 = vpow.pop %v1905
        %v1907 = vmul.f32 %v1886, 1.442695
        %v1908 = vpow.pop %v1907
        %v1909 = vmul.f32 %v1887, 1.442695
        %v1910 = vpow.pop %v1909
        %v1911 = vmul.f32 %v1888, 1.442695
        %v1912 = vpow.pop %v1911
        %v1913 = vmul.f32 %v1889, 1.442695
        %v1914 = vpow.pop %v1913
        %v1915 = vmul.f32 %v1890, 1.442695
        %v1916 = vpow.pop %v1915
        %v1917 = vmul.f32 %v1891, 1.442695
        %v1918 = vpow.pop %v1917
        %v1919 = vmul.f32 %v1892, 1.442695
        %v1920 = vpow.pop %v1919
        %v1921 = vmul.f32 %v1893, 1.442695
        %v1922 = vpow.pop %v1921
        %v1923 = vmul.f32 %v1894, 1.442695
        %v1924 = vpow.pop %v1923
        %v1925 = vmul.f32 %v1895, 1.442695
        %v1926 = vpow.pop %v1925
        %v1927 = vmul.f32 %v1896, 1.442695
        %v1928 = vpow.pop %v1927
        %v1929 = vsel %vm1832, %v1898, 0.0
        %1930 = vadd.xlane.f32.xlu0 %v1929
        %v1931 = vpop.xlane.xlu0 %1930
        %v1932 = vsel %vm1832, %v1900, 0.0
        %1933 = vadd.xlane.f32.xlu0 %v1932
        %v1934 = vpop.xlane.xlu0 %1933
        %v1935 = vsel %vm1832, %v1902, 0.0
        %1936 = vadd.xlane.f32.xlu0 %v1935
        %v1937 = vpop.xlane.xlu0 %1936
        %v1938 = vsel %vm1832, %v1904, 0.0
        %1939 = vadd.xlane.f32.xlu0 %v1938
        %v1940 = vpop.xlane.xlu0 %1939
        %v1941 = vsel %vm1832, %v1906, 0.0
        %1942 = vadd.xlane.f32.xlu0 %v1941
        %v1943 = vpop.xlane.xlu0 %1942
        %v1944 = vsel %vm1832, %v1908, 0.0
        %1945 = vadd.xlane.f32.xlu0 %v1944
        %v1946 = vpop.xlane.xlu0 %1945
        %v1947 = vsel %vm1832, %v1910, 0.0
        %1948 = vadd.xlane.f32.xlu0 %v1947
        %v1949 = vpop.xlane.xlu0 %1948
        %v1950 = vsel %vm1832, %v1912, 0.0
        %1951 = vadd.xlane.f32.xlu0 %v1950
        %v1952 = vpop.xlane.xlu0 %1951
        %v1953 = vsel %vm1832, %v1914, 0.0
        %1954 = vadd.xlane.f32.xlu0 %v1953
        %v1955 = vpop.xlane.xlu0 %1954
        %v1956 = vsel %vm1832, %v1916, 0.0
        %1957 = vadd.xlane.f32.xlu0 %v1956
        %v1958 = vpop.xlane.xlu0 %1957
        %v1959 = vsel %vm1832, %v1918, 0.0
        %1960 = vadd.xlane.f32.xlu0 %v1959
        %v1961 = vpop.xlane.xlu0 %1960
        %v1962 = vsel %vm1832, %v1920, 0.0
        %1963 = vadd.xlane.f32.xlu0 %v1962
        %v1964 = vpop.xlane.xlu0 %1963
        %v1965 = vsel %vm1832, %v1922, 0.0
        %1966 = vadd.xlane.f32.xlu0 %v1965
        %v1967 = vpop.xlane.xlu0 %1966
        %v1968 = vsel %vm1832, %v1924, 0.0
        %1969 = vadd.xlane.f32.xlu0 %v1968
        %v1970 = vpop.xlane.xlu0 %1969
        %v1971 = vsel %vm1832, %v1926, 0.0
        %1972 = vadd.xlane.f32.xlu0 %v1971
        %v1973 = vpop.xlane.xlu0 %1972
        %v1974 = vsel %vm1832, %v1928, 0.0
        %1975 = vadd.xlane.f32.xlu0 %v1974
        %v1976 = vpop.xlane.xlu0 %1975
        %v1977 = vrcp.pop %v1931
        %v1978 = vrcp.pop %v1934
        %v1979 = vrcp.pop %v1937
        %v1980 = vrcp.pop %v1940
        %v1981 = vrcp.pop %v1943
        %v1982 = vrcp.pop %v1946
        %v1983 = vrcp.pop %v1949
        %v1984 = vrcp.pop %v1952
        %v1985 = vrcp.pop %v1955
        %v1986 = vrcp.pop %v1958
        %v1987 = vrcp.pop %v1961
        %v1988 = vrcp.pop %v1964
        %v1989 = vrcp.pop %v1967
        %v1990 = vrcp.pop %v1970
        %v1991 = vrcp.pop %v1973
        %v1992 = vrcp.pop %v1976
        %v1993 = vmul.f32 %v1898, %v1977
        %v1994 = vmul.f32 %v1900, %v1978
        %v1995 = vmul.f32 %v1902, %v1979
        %v1996 = vmul.f32 %v1904, %v1980
        %v1997 = vmul.f32 %v1906, %v1981
        %v1998 = vmul.f32 %v1908, %v1982
        %v1999 = vmul.f32 %v1910, %v1983
        %v2000 = vmul.f32 %v1912, %v1984
        %v2001 = vmul.f32 %v1914, %v1985
        %v2002 = vmul.f32 %v1916, %v1986
        %v2003 = vmul.f32 %v1918, %v1987
        %v2004 = vmul.f32 %v1920, %v1988
        %v2005 = vmul.f32 %v1922, %v1989
        %v2006 = vmul.f32 %v1924, %v1990
        %v2007 = vmul.f32 %v1926, %v1991
        %v2008 = vmul.f32 %v1928, %v1992
        %v2009 = vpack.c.bf16 %v1994, %v1993
        %v2010 = vpack.c.bf16 %v1996, %v1995
        %v2011 = vpack.c.bf16 %v1998, %v1997
        %v2012 = vpack.c.bf16 %v2000, %v1999
        %v2013 = vpack.c.bf16 %v2002, %v2001
        %v2014 = vpack.c.bf16 %v2004, %v2003
        %v2015 = vpack.c.bf16 %v2006, %v2005
        %v2016 = vpack.c.bf16 %v2008, %v2007
        %v2018 = vsel %vm1832, %v2009, 0
        %2020 = vmatprep.subr.bf16.mxu0 0
        %2021 = vmatpush1.bf16.msra.mxu0 %v1447
        %2022 = vmatprep.subr.bf16.mxu0 0
        %2023 = vmatpush1.bf16.msra.mxu0 0
        %2024 = vmatprep.subr.bf16.mxu0 0
        %2025 = vmatpush1.bf16.msra.mxu0 0
        %2026 = vmatprep.subr.bf16.mxu0 0
        %2027 = vmatpush1.bf16.msra.mxu0 0
        %2028 = vmatprep.subr.bf16.mxu0 0
        %2029 = vmatpush1.bf16.msra.mxu0 0
        %2030 = vmatprep.subr.bf16.mxu0 0
        %2031 = vmatpush1.bf16.msra.mxu0 0
        %2032 = vmatprep.subr.bf16.mxu0 0
        %2033 = vmatpush1.bf16.msra.mxu0 0
        %2034 = vmatprep.subr.bf16.mxu0 0
        %2035 = vmatpush1.bf16.msra.mxu0 0
        %2036 = vmatprep.subr.bf16.mxu0 0
        %2037 = vmatpush1.bf16.msra.mxu0 0
        %2038 = vmatprep.subr.bf16.mxu0 0
        %2039 = vmatpush1.bf16.msra.mxu0 0
        %2040 = vmatprep.subr.bf16.mxu0 0
        %2041 = vmatpush1.bf16.msra.mxu0 0
        %2042 = vmatprep.subr.bf16.mxu0 0
        %2043 = vmatpush1.bf16.msra.mxu0 0
        %2044 = vmatprep.subr.bf16.mxu0 0
        %2045 = vmatpush1.bf16.msra.mxu0 0
        %2046 = vmatprep.subr.bf16.mxu0 0
        %2047 = vmatpush1.bf16.msra.mxu0 0
        %2048 = vmatprep.subr.bf16.mxu0 0
        %2049 = vmatpush1.bf16.msra.mxu0 0
        %2050 = vmatprep.subr.bf16.mxu0 0
        %2051 = vmatpush1.bf16.msra.mxu0 0
        %2052 = vmatprep.mubr.bf16.mxu0 0
        %2053 = vmatmul.mubr.bf16.gmra.mrb[0].mxu0 %v2018
        %v2054 = vpop.f32.mrb[0].mxu0
        %v2055 = vadd.f32 0.0, %v2054
        %v2056 = vpop.f32.mrb[0].mxu0
        %v2057 = vpop.f32.mrb[0].mxu0
        %v2058 = vadd.f32 0.0, %v2057
        %v2059 = vpop.f32.mrb[0].mxu0
        %2060 = vdwg.mxu0
        %v2062 = vsel %vm1832, %v2010, 0
        %2064 = vmatprep.subr.bf16.mxu0 0
        %2065 = vmatpush1.bf16.msra.mxu0 %v1448
        %2066 = vmatprep.subr.bf16.mxu0 0
        %2067 = vmatpush1.bf16.msra.mxu0 0
        %2068 = vmatprep.subr.bf16.mxu0 0
        %2069 = vmatpush1.bf16.msra.mxu0 0
        %2070 = vmatprep.subr.bf16.mxu0 0
        %2071 = vmatpush1.bf16.msra.mxu0 0
        %2072 = vmatprep.subr.bf16.mxu0 0
        %2073 = vmatpush1.bf16.msra.mxu0 0
        %2074 = vmatprep.subr.bf16.mxu0 0
        %2075 = vmatpush1.bf16.msra.mxu0 0
        %2076 = vmatprep.subr.bf16.mxu0 0
        %2077 = vmatpush1.bf16.msra.mxu0 0
        %2078 = vmatprep.subr.bf16.mxu0 0
        %2079 = vmatpush1.bf16.msra.mxu0 0
        %2080 = vmatprep.subr.bf16.mxu0 0
        %2081 = vmatpush1.bf16.msra.mxu0 0
        %2082 = vmatprep.subr.bf16.mxu0 0
        %2083 = vmatpush1.bf16.msra.mxu0 0
        %2084 = vmatprep.subr.bf16.mxu0 0
        %2085 = vmatpush1.bf16.msra.mxu0 0
        %2086 = vmatprep.subr.bf16.mxu0 0
        %2087 = vmatpush1.bf16.msra.mxu0 0
        %2088 = vmatprep.subr.bf16.mxu0 0
        %2089 = vmatpush1.bf16.msra.mxu0 0
        %2090 = vmatprep.subr.bf16.mxu0 0
        %2091 = vmatpush1.bf16.msra.mxu0 0
        %2092 = vmatprep.subr.bf16.mxu0 0
        %2093 = vmatpush1.bf16.msra.mxu0 0
        %2094 = vmatprep.subr.bf16.mxu0 0
        %2095 = vmatpush1.bf16.msra.mxu0 0
        %2096 = vmatprep.mubr.bf16.mxu0 0
        %2097 = vmatmul.mubr.bf16.gmra.mrb[0].mxu0 %v2062
        %v2098 = vpop.f32.mrb[0].mxu0
        %v2099 = vadd.f32 0.0, %v2098
        %v2100 = vpop.f32.mrb[0].mxu0
        %v2101 = vpop.f32.mrb[0].mxu0
        %v2102 = vadd.f32 0.0, %v2101
        %v2103 = vpop.f32.mrb[0].mxu0
        %2104 = vdwg.mxu0
        %v2106 = vsel %vm1832, %v2011, 0
        %2108 = vmatprep.subr.bf16.mxu0 0
        %2109 = vmatpush1.bf16.msra.mxu0 %v1449
        %2110 = vmatprep.subr.bf16.mxu0 0
        %2111 = vmatpush1.bf16.msra.mxu0 0
        %2112 = vmatprep.subr.bf16.mxu0 0
        %2113 = vmatpush1.bf16.msra.mxu0 0
        %2114 = vmatprep.subr.bf16.mxu0 0
        %2115 = vmatpush1.bf16.msra.mxu0 0
        %2116 = vmatprep.subr.bf16.mxu0 0
        %2117 = vmatpush1.bf16.msra.mxu0 0
        %2118 = vmatprep.subr.bf16.mxu0 0
        %2119 = vmatpush1.bf16.msra.mxu0 0
        %2120 = vmatprep.subr.bf16.mxu0 0
        %2121 = vmatpush1.bf16.msra.mxu0 0
        %2122 = vmatprep.subr.bf16.mxu0 0
        %2123 = vmatpush1.bf16.msra.mxu0 0
        %2124 = vmatprep.subr.bf16.mxu0 0
        %2125 = vmatpush1.bf16.msra.mxu0 0
        %2126 = vmatprep.subr.bf16.mxu0 0
        %2127 = vmatpush1.bf16.msra.mxu0 0
        %2128 = vmatprep.subr.bf16.mxu0 0
        %2129 = vmatpush1.bf16.msra.mxu0 0
        %2130 = vmatprep.subr.bf16.mxu0 0
        %2131 = vmatpush1.bf16.msra.mxu0 0
        %2132 = vmatprep.subr.bf16.mxu0 0
        %2133 = vmatpush1.bf16.msra.mxu0 0
        %2134 = vmatprep.subr.bf16.mxu0 0
        %2135 = vmatpush1.bf16.msra.mxu0 0
        %2136 = vmatprep.subr.bf16.mxu0 0
        %2137 = vmatpush1.bf16.msra.mxu0 0
        %2138 = vmatprep.subr.bf16.mxu0 0
        %2139 = vmatpush1.bf16.msra.mxu0 0
        %2140 = vmatprep.mubr.bf16.mxu0 0
        %2141 = vmatmul.mubr.bf16.gmra.mrb[0].mxu0 %v2106
        %v2142 = vpop.f32.mrb[0].mxu0
        %v2143 = vadd.f32 0.0, %v2142
        %v2144 = vpop.f32.mrb[0].mxu0
        %v2145 = vpop.f32.mrb[0].mxu0
        %v2146 = vadd.f32 0.0, %v2145
        %v2147 = vpop.f32.mrb[0].mxu0
        %2148 = vdwg.mxu0
        %v2150 = vsel %vm1832, %v2012, 0
        %2152 = vmatprep.subr.bf16.mxu0 0
        %2153 = vmatpush1.bf16.msra.mxu0 %v1450
        %2154 = vmatprep.subr.bf16.mxu0 0
        %2155 = vmatpush1.bf16.msra.mxu0 0
        %2156 = vmatprep.subr.bf16.mxu0 0
        %2157 = vmatpush1.bf16.msra.mxu0 0
        %2158 = vmatprep.subr.bf16.mxu0 0
        %2159 = vmatpush1.bf16.msra.mxu0 0
        %2160 = vmatprep.subr.bf16.mxu0 0
        %2161 = vmatpush1.bf16.msra.mxu0 0
        %2162 = vmatprep.subr.bf16.mxu0 0
        %2163 = vmatpush1.bf16.msra.mxu0 0
        %2164 = vmatprep.subr.bf16.mxu0 0
        %2165 = vmatpush1.bf16.msra.mxu0 0
        %2166 = vmatprep.subr.bf16.mxu0 0
        %2167 = vmatpush1.bf16.msra.mxu0 0
        %2168 = vmatprep.subr.bf16.mxu0 0
        %2169 = vmatpush1.bf16.msra.mxu0 0
        %2170 = vmatprep.subr.bf16.mxu0 0
        %2171 = vmatpush1.bf16.msra.mxu0 0
        %2172 = vmatprep.subr.bf16.mxu0 0
        %2173 = vmatpush1.bf16.msra.mxu0 0
        %2174 = vmatprep.subr.bf16.mxu0 0
        %2175 = vmatpush1.bf16.msra.mxu0 0
        %2176 = vmatprep.subr.bf16.mxu0 0
        %2177 = vmatpush1.bf16.msra.mxu0 0
        %2178 = vmatprep.subr.bf16.mxu0 0
        %2179 = vmatpush1.bf16.msra.mxu0 0
        %2180 = vmatprep.subr.bf16.mxu0 0
        %2181 = vmatpush1.bf16.msra.mxu0 0
        %2182 = vmatprep.subr.bf16.mxu0 0
        %2183 = vmatpush1.bf16.msra.mxu0 0
        %2184 = vmatprep.mubr.bf16.mxu0 0
        %2185 = vmatmul.mubr.bf16.gmra.mrb[0].mxu0 %v2150
        %v2186 = vpop.f32.mrb[0].mxu0
        %v2187 = vadd.f32 0.0, %v2186
        %v2188 = vpop.f32.mrb[0].mxu0
        %v2189 = vpop.f32.mrb[0].mxu0
        %v2190 = vadd.f32 0.0, %v2189
        %v2191 = vpop.f32.mrb[0].mxu0
        %2192 = vdwg.mxu0
        %v2194 = vsel %vm1832, %v2013, 0
        %2196 = vmatprep.subr.bf16.mxu0 0
        %2197 = vmatpush1.bf16.msra.mxu0 %v1451
        %2198 = vmatprep.subr.bf16.mxu0 0
        %2199 = vmatpush1.bf16.msra.mxu0 0
        %2200 = vmatprep.subr.bf16.mxu0 0
        %2201 = vmatpush1.bf16.msra.mxu0 0
        %2202 = vmatprep.subr.bf16.mxu0 0
        %2203 = vmatpush1.bf16.msra.mxu0 0
        %2204 = vmatprep.subr.bf16.mxu0 0
        %2205 = vmatpush1.bf16.msra.mxu0 0
        %2206 = vmatprep.subr.bf16.mxu0 0
        %2207 = vmatpush1.bf16.msra.mxu0 0
        %2208 = vmatprep.subr.bf16.mxu0 0
        %2209 = vmatpush1.bf16.msra.mxu0 0
        %2210 = vmatprep.subr.bf16.mxu0 0
        %2211 = vmatpush1.bf16.msra.mxu0 0
        %2212 = vmatprep.subr.bf16.mxu0 0
        %2213 = vmatpush1.bf16.msra.mxu0 0
        %2214 = vmatprep.subr.bf16.mxu0 0
        %2215 = vmatpush1.bf16.msra.mxu0 0
        %2216 = vmatprep.subr.bf16.mxu0 0
        %2217 = vmatpush1.bf16.msra.mxu0 0
        %2218 = vmatprep.subr.bf16.mxu0 0
        %2219 = vmatpush1.bf16.msra.mxu0 0
        %2220 = vmatprep.subr.bf16.mxu0 0
        %2221 = vmatpush1.bf16.msra.mxu0 0
        %2222 = vmatprep.subr.bf16.mxu0 0
        %2223 = vmatpush1.bf16.msra.mxu0 0
        %2224 = vmatprep.subr.bf16.mxu0 0
        %2225 = vmatpush1.bf16.msra.mxu0 0
        %2226 = vmatprep.subr.bf16.mxu0 0
        %2227 = vmatpush1.bf16.msra.mxu0 0
        %2228 = vmatprep.mubr.bf16.mxu0 0
        %2229 = vmatmul.mubr.bf16.gmra.mrb[0].mxu0 %v2194
        %v2230 = vpop.f32.mrb[0].mxu0
        %v2231 = vadd.f32 0.0, %v2230
        %v2232 = vpop.f32.mrb[0].mxu0
        %v2233 = vpop.f32.mrb[0].mxu0
        %v2234 = vadd.f32 0.0, %v2233
        %v2235 = vpop.f32.mrb[0].mxu0
        %2236 = vdwg.mxu0
        %v2238 = vsel %vm1832, %v2014, 0
        %2240 = vmatprep.subr.bf16.mxu0 0
        %2241 = vmatpush1.bf16.msra.mxu0 %v1452
        %2242 = vmatprep.subr.bf16.mxu0 0
        %2243 = vmatpush1.bf16.msra.mxu0 0
        %2244 = vmatprep.subr.bf16.mxu0 0
        %2245 = vmatpush1.bf16.msra.mxu0 0
        %2246 = vmatprep.subr.bf16.mxu0 0
        %2247 = vmatpush1.bf16.msra.mxu0 0
        %2248 = vmatprep.subr.bf16.mxu0 0
        %2249 = vmatpush1.bf16.msra.mxu0 0
        %2250 = vmatprep.subr.bf16.mxu0 0
        %2251 = vmatpush1.bf16.msra.mxu0 0
        %2252 = vmatprep.subr.bf16.mxu0 0
        %2253 = vmatpush1.bf16.msra.mxu0 0
        %2254 = vmatprep.subr.bf16.mxu0 0
        %2255 = vmatpush1.bf16.msra.mxu0 0
        %2256 = vmatprep.subr.bf16.mxu0 0
        %2257 = vmatpush1.bf16.msra.mxu0 0
        %2258 = vmatprep.subr.bf16.mxu0 0
        %2259 = vmatpush1.bf16.msra.mxu0 0
        %2260 = vmatprep.subr.bf16.mxu0 0
        %2261 = vmatpush1.bf16.msra.mxu0 0
        %2262 = vmatprep.subr.bf16.mxu0 0
        %2263 = vmatpush1.bf16.msra.mxu0 0
        %2264 = vmatprep.subr.bf16.mxu0 0
        %2265 = vmatpush1.bf16.msra.mxu0 0
        %2266 = vmatprep.subr.bf16.mxu0 0
        %2267 = vmatpush1.bf16.msra.mxu0 0
        %2268 = vmatprep.subr.bf16.mxu0 0
        %2269 = vmatpush1.bf16.msra.mxu0 0
        %2270 = vmatprep.subr.bf16.mxu0 0
        %2271 = vmatpush1.bf16.msra.mxu0 0
        %2272 = vmatprep.mubr.bf16.mxu0 0
        %2273 = vmatmul.mubr.bf16.gmra.mrb[0].mxu0 %v2238
        %v2274 = vpop.f32.mrb[0].mxu0
        %v2275 = vadd.f32 0.0, %v2274
        %v2276 = vpop.f32.mrb[0].mxu0
        %v2277 = vpop.f32.mrb[0].mxu0
        %v2278 = vadd.f32 0.0, %v2277
        %v2279 = vpop.f32.mrb[0].mxu0
        %2280 = vdwg.mxu0
        %v2282 = vsel %vm1832, %v2015, 0
        %2284 = vmatprep.subr.bf16.mxu0 0
        %2285 = vmatpush1.bf16.msra.mxu0 %v1453
        %2286 = vmatprep.subr.bf16.mxu0 0
        %2287 = vmatpush1.bf16.msra.mxu0 0
        %2288 = vmatprep.subr.bf16.mxu0 0
        %2289 = vmatpush1.bf16.msra.mxu0 0
        %2290 = vmatprep.subr.bf16.mxu0 0
        %2291 = vmatpush1.bf16.msra.mxu0 0
        %2292 = vmatprep.subr.bf16.mxu0 0
        %2293 = vmatpush1.bf16.msra.mxu0 0
        %2294 = vmatprep.subr.bf16.mxu0 0
        %2295 = vmatpush1.bf16.msra.mxu0 0
        %2296 = vmatprep.subr.bf16.mxu0 0
        %2297 = vmatpush1.bf16.msra.mxu0 0
        %2298 = vmatprep.subr.bf16.mxu0 0
        %2299 = vmatpush1.bf16.msra.mxu0 0
        %2300 = vmatprep.subr.bf16.mxu0 0
        %2301 = vmatpush1.bf16.msra.mxu0 0
        %2302 = vmatprep.subr.bf16.mxu0 0
        %2303 = vmatpush1.bf16.msra.mxu0 0
        %2304 = vmatprep.subr.bf16.mxu0 0
        %2305 = vmatpush1.bf16.msra.mxu0 0
        %2306 = vmatprep.subr.bf16.mxu0 0
        %2307 = vmatpush1.bf16.msra.mxu0 0
        %2308 = vmatprep.subr.bf16.mxu0 0
        %2309 = vmatpush1.bf16.msra.mxu0 0
        %2310 = vmatprep.subr.bf16.mxu0 0
        %2311 = vmatpush1.bf16.msra.mxu0 0
        %2312 = vmatprep.subr.bf16.mxu0 0
        %2313 = vmatpush1.bf16.msra.mxu0 0
        %2314 = vmatprep.subr.bf16.mxu0 0
        %2315 = vmatpush1.bf16.msra.mxu0 0
        %2316 = vmatprep.mubr.bf16.mxu0 0
        %2317 = vmatmul.mubr.bf16.gmra.mrb[0].mxu0 %v2282
        %v2318 = vpop.f32.mrb[0].mxu0
        %v2319 = vadd.f32 0.0, %v2318
        %v2320 = vpop.f32.mrb[0].mxu0
        %v2321 = vpop.f32.mrb[0].mxu0
        %v2322 = vadd.f32 0.0, %v2321
        %v2323 = vpop.f32.mrb[0].mxu0
        %2324 = vdwg.mxu0
        %v2326 = vsel %vm1832, %v2016, 0
        %2328 = vmatprep.subr.bf16.mxu0 0
        %2329 = vmatpush1.bf16.msra.mxu0 %v1454
        %2330 = vmatprep.subr.bf16.mxu0 0
        %2331 = vmatpush1.bf16.msra.mxu0 0
        %2332 = vmatprep.subr.bf16.mxu0 0
        %2333 = vmatpush1.bf16.msra.mxu0 0
        %2334 = vmatprep.subr.bf16.mxu0 0
        %2335 = vmatpush1.bf16.msra.mxu0 0
        %2336 = vmatprep.subr.bf16.mxu0 0
        %2337 = vmatpush1.bf16.msra.mxu0 0
        %2338 = vmatprep.subr.bf16.mxu0 0
        %2339 = vmatpush1.bf16.msra.mxu0 0
        %2340 = vmatprep.subr.bf16.mxu0 0
        %2341 = vmatpush1.bf16.msra.mxu0 0
        %2342 = vmatprep.subr.bf16.mxu0 0
        %2343 = vmatpush1.bf16.msra.mxu0 0
        %2344 = vmatprep.subr.bf16.mxu0 0
        %2345 = vmatpush1.bf16.msra.mxu0 0
        %2346 = vmatprep.subr.bf16.mxu0 0
        %2347 = vmatpush1.bf16.msra.mxu0 0
        %2348 = vmatprep.subr.bf16.mxu0 0
        %2349 = vmatpush1.bf16.msra.mxu0 0
        %2350 = vmatprep.subr.bf16.mxu0 0
        %2351 = vmatpush1.bf16.msra.mxu0 0
        %2352 = vmatprep.subr.bf16.mxu0 0
        %2353 = vmatpush1.bf16.msra.mxu0 0
        %2354 = vmatprep.subr.bf16.mxu0 0
        %2355 = vmatpush1.bf16.msra.mxu0 0
        %2356 = vmatprep.subr.bf16.mxu0 0
        %2357 = vmatpush1.bf16.msra.mxu0 0
        %2358 = vmatprep.subr.bf16.mxu0 0
        %2359 = vmatpush1.bf16.msra.mxu0 0
        %2360 = vmatprep.mubr.bf16.mxu0 0
        %2361 = vmatmul.mubr.bf16.gmra.mrb[0].mxu0 %v2326
        %v2362 = vpop.f32.mrb[0].mxu0
        %v2363 = vadd.f32 0.0, %v2362
        %v2364 = vpop.f32.mrb[0].mxu0
        %v2365 = vpop.f32.mrb[0].mxu0
        %v2366 = vadd.f32 0.0, %v2365
        %v2367 = vpop.f32.mrb[0].mxu0
        %2368 = vdwg.mxu0
        %v2369 = vpack.c.bf16 %v2058, %v2055
        %v2370 = vpack.c.bf16 %v2102, %v2099
        %v2371 = vpack.c.bf16 %v2146, %v2143
        %v2372 = vpack.c.bf16 %v2190, %v2187
        %v2373 = vpack.c.bf16 %v2234, %v2231
        %v2374 = vpack.c.bf16 %v2278, %v2275
        %v2375 = vpack.c.bf16 %v2322, %v2319
        %v2376 = vpack.c.bf16 %v2366, %v2363
        %2378 = vrot.lane.b32.xlu0 %v1431, 96
        %v2379 = vpop.permute.xlu0 %2378
        %2381 = vrot.lane.b32.xlu0 %v1439, 96
        %v2382 = vpop.permute.xlu0 %2381
        %v2384 = vsel %vm1455, %v2379, 0
        %v2387 = vsel %vm1455, %v2382, 0
        %2389 = vmatprep.subr.bf16.mxu0 0
        %2390 = vmatpush1.bf16.xpose.msra.mxu0 %v2387
        %2391 = vmatprep.subr.bf16.mxu0 0
        %2392 = vmatpush1.bf16.xpose.msra.mxu0 0
        %2393 = vmatprep.subr.bf16.mxu0 0
        %2394 = vmatpush1.bf16.xpose.msra.mxu0 0
        %2395 = vmatprep.subr.bf16.mxu0 0
        %2396 = vmatpush1.bf16.xpose.msra.mxu0 0
        %2397 = vmatprep.subr.bf16.mxu0 0
        %2398 = vmatpush1.bf16.xpose.msra.mxu0 0
        %2399 = vmatprep.subr.bf16.mxu0 0
        %2400 = vmatpush1.bf16.xpose.msra.mxu0 0
        %2401 = vmatprep.subr.bf16.mxu0 0
        %2402 = vmatpush1.bf16.xpose.msra.mxu0 0
        %2403 = vmatprep.subr.bf16.mxu0 0
        %2404 = vmatpush1.bf16.xpose.msra.mxu0 0
        %2405 = vmatprep.subr.bf16.mxu0 0
        %2406 = vmatpush1.bf16.xpose.msra.mxu0 0
        %2407 = vmatprep.subr.bf16.mxu0 0
        %2408 = vmatpush1.bf16.xpose.msra.mxu0 0
        %2409 = vmatprep.subr.bf16.mxu0 0
        %2410 = vmatpush1.bf16.xpose.msra.mxu0 0
        %2411 = vmatprep.subr.bf16.mxu0 0
        %2412 = vmatpush1.bf16.xpose.msra.mxu0 0
        %2413 = vmatprep.subr.bf16.mxu0 0
        %2414 = vmatpush1.bf16.xpose.msra.mxu0 0
        %2415 = vmatprep.subr.bf16.mxu0 0
        %2416 = vmatpush1.bf16.xpose.msra.mxu0 0
        %2417 = vmatprep.subr.bf16.mxu0 0
        %2418 = vmatpush1.bf16.xpose.msra.mxu0 0
        %2419 = vmatprep.subr.bf16.mxu0 0
        %2420 = vmatpush1.bf16.xpose.msra.mxu0 0
        %2421 = vmatprep.mubr.bf16.mxu0 0
        %2422 = vmatmul.mubr.bf16.gmra.mrb[0].mxu0 %v2384
        %v2423 = vpop.f32.mrb[0].mxu0
        %v2424 = vadd.f32 0.0, %v2423
        %v2425 = vpop.f32.mrb[0].mxu0
        %v2426 = vpop.f32.mrb[0].mxu0
        %v2427 = vadd.f32 0.0, %v2426
        %v2428 = vpop.f32.mrb[0].mxu0
        %2429 = vdwg.mxu0
        %2431 = vrot.lane.b32.xlu0 %v1432, 96
        %v2432 = vpop.permute.xlu0 %2431
        %2434 = vrot.lane.b32.xlu0 %v1440, 96
        %v2435 = vpop.permute.xlu0 %2434
        %v2437 = vsel %vm1455, %v2432, 0
        %v2440 = vsel %vm1455, %v2435, 0
        %2442 = vmatprep.subr.bf16.mxu0 0
        %2443 = vmatpush1.bf16.xpose.msra.mxu0 %v2440
        %2444 = vmatprep.subr.bf16.mxu0 0
        %2445 = vmatpush1.bf16.xpose.msra.mxu0 0
        %2446 = vmatprep.subr.bf16.mxu0 0
        %2447 = vmatpush1.bf16.xpose.msra.mxu0 0
        %2448 = vmatprep.subr.bf16.mxu0 0
        %2449 = vmatpush1.bf16.xpose.msra.mxu0 0
        %2450 = vmatprep.subr.bf16.mxu0 0
        %2451 = vmatpush1.bf16.xpose.msra.mxu0 0
        %2452 = vmatprep.subr.bf16.mxu0 0
        %2453 = vmatpush1.bf16.xpose.msra.mxu0 0
        %2454 = vmatprep.subr.bf16.mxu0 0
        %2455 = vmatpush1.bf16.xpose.msra.mxu0 0
        %2456 = vmatprep.subr.bf16.mxu0 0
        %2457 = vmatpush1.bf16.xpose.msra.mxu0 0
        %2458 = vmatprep.subr.bf16.mxu0 0
        %2459 = vmatpush1.bf16.xpose.msra.mxu0 0
        %2460 = vmatprep.subr.bf16.mxu0 0
        %2461 = vmatpush1.bf16.xpose.msra.mxu0 0
        %2462 = vmatprep.subr.bf16.mxu0 0
        %2463 = vmatpush1.bf16.xpose.msra.mxu0 0
        %2464 = vmatprep.subr.bf16.mxu0 0
        %2465 = vmatpush1.bf16.xpose.msra.mxu0 0
        %2466 = vmatprep.subr.bf16.mxu0 0
        %2467 = vmatpush1.bf16.xpose.msra.mxu0 0
        %2468 = vmatprep.subr.bf16.mxu0 0
        %2469 = vmatpush1.bf16.xpose.msra.mxu0 0
        %2470 = vmatprep.subr.bf16.mxu0 0
        %2471 = vmatpush1.bf16.xpose.msra.mxu0 0
        %2472 = vmatprep.subr.bf16.mxu0 0
        %2473 = vmatpush1.bf16.xpose.msra.mxu0 0
        %2474 = vmatprep.mubr.bf16.mxu0 0
        %2475 = vmatmul.mubr.bf16.gmra.mrb[0].mxu0 %v2437
        %v2476 = vpop.f32.mrb[0].mxu0
        %v2477 = vadd.f32 0.0, %v2476
        %v2478 = vpop.f32.mrb[0].mxu0
        %v2479 = vpop.f32.mrb[0].mxu0
        %v2480 = vadd.f32 0.0, %v2479
        %v2481 = vpop.f32.mrb[0].mxu0
        %2482 = vdwg.mxu0
        %2484 = vrot.lane.b32.xlu0 %v1433, 96
        %v2485 = vpop.permute.xlu0 %2484
        %2487 = vrot.lane.b32.xlu0 %v1441, 96
        %v2488 = vpop.permute.xlu0 %2487
        %v2490 = vsel %vm1455, %v2485, 0
        %v2493 = vsel %vm1455, %v2488, 0
        %2495 = vmatprep.subr.bf16.mxu0 0
        %2496 = vmatpush1.bf16.xpose.msra.mxu0 %v2493
        %2497 = vmatprep.subr.bf16.mxu0 0
        %2498 = vmatpush1.bf16.xpose.msra.mxu0 0
        %2499 = vmatprep.subr.bf16.mxu0 0
        %2500 = vmatpush1.bf16.xpose.msra.mxu0 0
        %2501 = vmatprep.subr.bf16.mxu0 0
        %2502 = vmatpush1.bf16.xpose.msra.mxu0 0
        %2503 = vmatprep.subr.bf16.mxu0 0
        %2504 = vmatpush1.bf16.xpose.msra.mxu0 0
        %2505 = vmatprep.subr.bf16.mxu0 0
        %2506 = vmatpush1.bf16.xpose.msra.mxu0 0
        %2507 = vmatprep.subr.bf16.mxu0 0
        %2508 = vmatpush1.bf16.xpose.msra.mxu0 0
        %2509 = vmatprep.subr.bf16.mxu0 0
        %2510 = vmatpush1.bf16.xpose.msra.mxu0 0
        %2511 = vmatprep.subr.bf16.mxu0 0
        %2512 = vmatpush1.bf16.xpose.msra.mxu0 0
        %2513 = vmatprep.subr.bf16.mxu0 0
        %2514 = vmatpush1.bf16.xpose.msra.mxu0 0
        %2515 = vmatprep.subr.bf16.mxu0 0
        %2516 = vmatpush1.bf16.xpose.msra.mxu0 0
        %2517 = vmatprep.subr.bf16.mxu0 0
        %2518 = vmatpush1.bf16.xpose.msra.mxu0 0
        %2519 = vmatprep.subr.bf16.mxu0 0
        %2520 = vmatpush1.bf16.xpose.msra.mxu0 0
        %2521 = vmatprep.subr.bf16.mxu0 0
        %2522 = vmatpush1.bf16.xpose.msra.mxu0 0
        %2523 = vmatprep.subr.bf16.mxu0 0
        %2524 = vmatpush1.bf16.xpose.msra.mxu0 0
        %2525 = vmatprep.subr.bf16.mxu0 0
        %2526 = vmatpush1.bf16.xpose.msra.mxu0 0
        %2527 = vmatprep.mubr.bf16.mxu0 0
        %2528 = vmatmul.mubr.bf16.gmra.mrb[0].mxu0 %v2490
        %v2529 = vpop.f32.mrb[0].mxu0
        %v2530 = vadd.f32 0.0, %v2529
        %v2531 = vpop.f32.mrb[0].mxu0
        %v2532 = vpop.f32.mrb[0].mxu0
        %v2533 = vadd.f32 0.0, %v2532
        %v2534 = vpop.f32.mrb[0].mxu0
        %2535 = vdwg.mxu0
        %2537 = vrot.lane.b32.xlu0 %v1434, 96
        %v2538 = vpop.permute.xlu0 %2537
        %2540 = vrot.lane.b32.xlu0 %v1442, 96
        %v2541 = vpop.permute.xlu0 %2540
        %v2543 = vsel %vm1455, %v2538, 0
        %v2546 = vsel %vm1455, %v2541, 0
        %2548 = vmatprep.subr.bf16.mxu0 0
        %2549 = vmatpush1.bf16.xpose.msra.mxu0 %v2546
        %2550 = vmatprep.subr.bf16.mxu0 0
        %2551 = vmatpush1.bf16.xpose.msra.mxu0 0
        %2552 = vmatprep.subr.bf16.mxu0 0
        %2553 = vmatpush1.bf16.xpose.msra.mxu0 0
        %2554 = vmatprep.subr.bf16.mxu0 0
        %2555 = vmatpush1.bf16.xpose.msra.mxu0 0
        %2556 = vmatprep.subr.bf16.mxu0 0
        %2557 = vmatpush1.bf16.xpose.msra.mxu0 0
        %2558 = vmatprep.subr.bf16.mxu0 0
        %2559 = vmatpush1.bf16.xpose.msra.mxu0 0
        %2560 = vmatprep.subr.bf16.mxu0 0
        %2561 = vmatpush1.bf16.xpose.msra.mxu0 0
        %2562 = vmatprep.subr.bf16.mxu0 0
        %2563 = vmatpush1.bf16.xpose.msra.mxu0 0
        %2564 = vmatprep.subr.bf16.mxu0 0
        %2565 = vmatpush1.bf16.xpose.msra.mxu0 0
        %2566 = vmatprep.subr.bf16.mxu0 0
        %2567 = vmatpush1.bf16.xpose.msra.mxu0 0
        %2568 = vmatprep.subr.bf16.mxu0 0
        %2569 = vmatpush1.bf16.xpose.msra.mxu0 0
        %2570 = vmatprep.subr.bf16.mxu0 0
        %2571 = vmatpush1.bf16.xpose.msra.mxu0 0
        %2572 = vmatprep.subr.bf16.mxu0 0
        %2573 = vmatpush1.bf16.xpose.msra.mxu0 0
        %2574 = vmatprep.subr.bf16.mxu0 0
        %2575 = vmatpush1.bf16.xpose.msra.mxu0 0
        %2576 = vmatprep.subr.bf16.mxu0 0
        %2577 = vmatpush1.bf16.xpose.msra.mxu0 0
        %2578 = vmatprep.subr.bf16.mxu0 0
        %2579 = vmatpush1.bf16.xpose.msra.mxu0 0
        %2580 = vmatprep.mubr.bf16.mxu0 0
        %2581 = vmatmul.mubr.bf16.gmra.mrb[0].mxu0 %v2543
        %v2582 = vpop.f32.mrb[0].mxu0
        %v2583 = vadd.f32 0.0, %v2582
        %v2584 = vpop.f32.mrb[0].mxu0
        %v2585 = vpop.f32.mrb[0].mxu0
        %v2586 = vadd.f32 0.0, %v2585
        %v2587 = vpop.f32.mrb[0].mxu0
        %2588 = vdwg.mxu0
        %2590 = vrot.lane.b32.xlu0 %v1435, 96
        %v2591 = vpop.permute.xlu0 %2590
        %2593 = vrot.lane.b32.xlu0 %v1443, 96
        %v2594 = vpop.permute.xlu0 %2593
        %v2596 = vsel %vm1455, %v2591, 0
        %v2599 = vsel %vm1455, %v2594, 0
        %2601 = vmatprep.subr.bf16.mxu0 0
        %2602 = vmatpush1.bf16.xpose.msra.mxu0 %v2599
        %2603 = vmatprep.subr.bf16.mxu0 0
        %2604 = vmatpush1.bf16.xpose.msra.mxu0 0
        %2605 = vmatprep.subr.bf16.mxu0 0
        %2606 = vmatpush1.bf16.xpose.msra.mxu0 0
        %2607 = vmatprep.subr.bf16.mxu0 0
        %2608 = vmatpush1.bf16.xpose.msra.mxu0 0
        %2609 = vmatprep.subr.bf16.mxu0 0
        %2610 = vmatpush1.bf16.xpose.msra.mxu0 0
        %2611 = vmatprep.subr.bf16.mxu0 0
        %2612 = vmatpush1.bf16.xpose.msra.mxu0 0
        %2613 = vmatprep.subr.bf16.mxu0 0
        %2614 = vmatpush1.bf16.xpose.msra.mxu0 0
        %2615 = vmatprep.subr.bf16.mxu0 0
        %2616 = vmatpush1.bf16.xpose.msra.mxu0 0
        %2617 = vmatprep.subr.bf16.mxu0 0
        %2618 = vmatpush1.bf16.xpose.msra.mxu0 0
        %2619 = vmatprep.subr.bf16.mxu0 0
        %2620 = vmatpush1.bf16.xpose.msra.mxu0 0
        %2621 = vmatprep.subr.bf16.mxu0 0
        %2622 = vmatpush1.bf16.xpose.msra.mxu0 0
        %2623 = vmatprep.subr.bf16.mxu0 0
        %2624 = vmatpush1.bf16.xpose.msra.mxu0 0
        %2625 = vmatprep.subr.bf16.mxu0 0
        %2626 = vmatpush1.bf16.xpose.msra.mxu0 0
        %2627 = vmatprep.subr.bf16.mxu0 0
        %2628 = vmatpush1.bf16.xpose.msra.mxu0 0
        %2629 = vmatprep.subr.bf16.mxu0 0
        %2630 = vmatpush1.bf16.xpose.msra.mxu0 0
        %2631 = vmatprep.subr.bf16.mxu0 0
        %2632 = vmatpush1.bf16.xpose.msra.mxu0 0
        %2633 = vmatprep.mubr.bf16.mxu0 0
        %2634 = vmatmul.mubr.bf16.gmra.mrb[0].mxu0 %v2596
        %v2635 = vpop.f32.mrb[0].mxu0
        %v2636 = vadd.f32 0.0, %v2635
        %v2637 = vpop.f32.mrb[0].mxu0
        %v2638 = vpop.f32.mrb[0].mxu0
        %v2639 = vadd.f32 0.0, %v2638
        %v2640 = vpop.f32.mrb[0].mxu0
        %2641 = vdwg.mxu0
        %2643 = vrot.lane.b32.xlu0 %v1436, 96
        %v2644 = vpop.permute.xlu0 %2643
        %2646 = vrot.lane.b32.xlu0 %v1444, 96
        %v2647 = vpop.permute.xlu0 %2646
        %v2649 = vsel %vm1455, %v2644, 0
        %v2652 = vsel %vm1455, %v2647, 0
        %2654 = vmatprep.subr.bf16.mxu0 0
        %2655 = vmatpush1.bf16.xpose.msra.mxu0 %v2652
        %2656 = vmatprep.subr.bf16.mxu0 0
        %2657 = vmatpush1.bf16.xpose.msra.mxu0 0
        %2658 = vmatprep.subr.bf16.mxu0 0
        %2659 = vmatpush1.bf16.xpose.msra.mxu0 0
        %2660 = vmatprep.subr.bf16.mxu0 0
        %2661 = vmatpush1.bf16.xpose.msra.mxu0 0
        %2662 = vmatprep.subr.bf16.mxu0 0
        %2663 = vmatpush1.bf16.xpose.msra.mxu0 0
        %2664 = vmatprep.subr.bf16.mxu0 0
        %2665 = vmatpush1.bf16.xpose.msra.mxu0 0
        %2666 = vmatprep.subr.bf16.mxu0 0
        %2667 = vmatpush1.bf16.xpose.msra.mxu0 0
        %2668 = vmatprep.subr.bf16.mxu0 0
        %2669 = vmatpush1.bf16.xpose.msra.mxu0 0
        %2670 = vmatprep.subr.bf16.mxu0 0
        %2671 = vmatpush1.bf16.xpose.msra.mxu0 0
        %2672 = vmatprep.subr.bf16.mxu0 0
        %2673 = vmatpush1.bf16.xpose.msra.mxu0 0
        %2674 = vmatprep.subr.bf16.mxu0 0
        %2675 = vmatpush1.bf16.xpose.msra.mxu0 0
        %2676 = vmatprep.subr.bf16.mxu0 0
        %2677 = vmatpush1.bf16.xpose.msra.mxu0 0
        %2678 = vmatprep.subr.bf16.mxu0 0
        %2679 = vmatpush1.bf16.xpose.msra.mxu0 0
        %2680 = vmatprep.subr.bf16.mxu0 0
        %2681 = vmatpush1.bf16.xpose.msra.mxu0 0
        %2682 = vmatprep.subr.bf16.mxu0 0
        %2683 = vmatpush1.bf16.xpose.msra.mxu0 0
        %2684 = vmatprep.subr.bf16.mxu0 0
        %2685 = vmatpush1.bf16.xpose.msra.mxu0 0
        %2686 = vmatprep.mubr.bf16.mxu0 0
        %2687 = vmatmul.mubr.bf16.gmra.mrb[0].mxu0 %v2649
        %v2688 = vpop.f32.mrb[0].mxu0
        %v2689 = vadd.f32 0.0, %v2688
        %v2690 = vpop.f32.mrb[0].mxu0
        %v2691 = vpop.f32.mrb[0].mxu0
        %v2692 = vadd.f32 0.0, %v2691
        %v2693 = vpop.f32.mrb[0].mxu0
        %2694 = vdwg.mxu0
        %2696 = vrot.lane.b32.xlu0 %v1437, 96
        %v2697 = vpop.permute.xlu0 %2696
        %2699 = vrot.lane.b32.xlu0 %v1445, 96
        %v2700 = vpop.permute.xlu0 %2699
        %v2702 = vsel %vm1455, %v2697, 0
        %v2705 = vsel %vm1455, %v2700, 0
        %2707 = vmatprep.subr.bf16.mxu0 0
        %2708 = vmatpush1.bf16.xpose.msra.mxu0 %v2705
        %2709 = vmatprep.subr.bf16.mxu0 0
        %2710 = vmatpush1.bf16.xpose.msra.mxu0 0
        %2711 = vmatprep.subr.bf16.mxu0 0
        %2712 = vmatpush1.bf16.xpose.msra.mxu0 0
        %2713 = vmatprep.subr.bf16.mxu0 0
        %2714 = vmatpush1.bf16.xpose.msra.mxu0 0
        %2715 = vmatprep.subr.bf16.mxu0 0
        %2716 = vmatpush1.bf16.xpose.msra.mxu0 0
        %2717 = vmatprep.subr.bf16.mxu0 0
        %2718 = vmatpush1.bf16.xpose.msra.mxu0 0
        %2719 = vmatprep.subr.bf16.mxu0 0
        %2720 = vmatpush1.bf16.xpose.msra.mxu0 0
        %2721 = vmatprep.subr.bf16.mxu0 0
        %2722 = vmatpush1.bf16.xpose.msra.mxu0 0
        %2723 = vmatprep.subr.bf16.mxu0 0
        %2724 = vmatpush1.bf16.xpose.msra.mxu0 0
        %2725 = vmatprep.subr.bf16.mxu0 0
        %2726 = vmatpush1.bf16.xpose.msra.mxu0 0
        %2727 = vmatprep.subr.bf16.mxu0 0
        %2728 = vmatpush1.bf16.xpose.msra.mxu0 0
        %2729 = vmatprep.subr.bf16.mxu0 0
        %2730 = vmatpush1.bf16.xpose.msra.mxu0 0
        %2731 = vmatprep.subr.bf16.mxu0 0
        %2732 = vmatpush1.bf16.xpose.msra.mxu0 0
        %2733 = vmatprep.subr.bf16.mxu0 0
        %2734 = vmatpush1.bf16.xpose.msra.mxu0 0
        %2735 = vmatprep.subr.bf16.mxu0 0
        %2736 = vmatpush1.bf16.xpose.msra.mxu0 0
        %2737 = vmatprep.subr.bf16.mxu0 0
        %2738 = vmatpush1.bf16.xpose.msra.mxu0 0
        %2739 = vmatprep.mubr.bf16.mxu0 0
        %2740 = vmatmul.mubr.bf16.gmra.mrb[0].mxu0 %v2702
        %v2741 = vpop.f32.mrb[0].mxu0
        %v2742 = vadd.f32 0.0, %v2741
        %v2743 = vpop.f32.mrb[0].mxu0
        %v2744 = vpop.f32.mrb[0].mxu0
        %v2745 = vadd.f32 0.0, %v2744
        %v2746 = vpop.f32.mrb[0].mxu0
        %2747 = vdwg.mxu0
        %2749 = vrot.lane.b32.xlu0 %v1438, 96
        %v2750 = vpop.permute.xlu0 %2749
        %2752 = vrot.lane.b32.xlu0 %v1446, 96
        %v2753 = vpop.permute.xlu0 %2752
        %v2755 = vsel %vm1455, %v2750, 0
        %v2758 = vsel %vm1455, %v2753, 0
        %2760 = vmatprep.subr.bf16.mxu0 0
        %2761 = vmatpush1.bf16.xpose.msra.mxu0 %v2758
        %2762 = vmatprep.subr.bf16.mxu0 0
        %2763 = vmatpush1.bf16.xpose.msra.mxu0 0
        %2764 = vmatprep.subr.bf16.mxu0 0
        %2765 = vmatpush1.bf16.xpose.msra.mxu0 0
        %2766 = vmatprep.subr.bf16.mxu0 0
        %2767 = vmatpush1.bf16.xpose.msra.mxu0 0
        %2768 = vmatprep.subr.bf16.mxu0 0
        %2769 = vmatpush1.bf16.xpose.msra.mxu0 0
        %2770 = vmatprep.subr.bf16.mxu0 0
        %2771 = vmatpush1.bf16.xpose.msra.mxu0 0
        %2772 = vmatprep.subr.bf16.mxu0 0
        %2773 = vmatpush1.bf16.xpose.msra.mxu0 0
        %2774 = vmatprep.subr.bf16.mxu0 0
        %2775 = vmatpush1.bf16.xpose.msra.mxu0 0
        %2776 = vmatprep.subr.bf16.mxu0 0
        %2777 = vmatpush1.bf16.xpose.msra.mxu0 0
        %2778 = vmatprep.subr.bf16.mxu0 0
        %2779 = vmatpush1.bf16.xpose.msra.mxu0 0
        %2780 = vmatprep.subr.bf16.mxu0 0
        %2781 = vmatpush1.bf16.xpose.msra.mxu0 0
        %2782 = vmatprep.subr.bf16.mxu0 0
        %2783 = vmatpush1.bf16.xpose.msra.mxu0 0
        %2784 = vmatprep.subr.bf16.mxu0 0
        %2785 = vmatpush1.bf16.xpose.msra.mxu0 0
        %2786 = vmatprep.subr.bf16.mxu0 0
        %2787 = vmatpush1.bf16.xpose.msra.mxu0 0
        %2788 = vmatprep.subr.bf16.mxu0 0
        %2789 = vmatpush1.bf16.xpose.msra.mxu0 0
        %2790 = vmatprep.subr.bf16.mxu0 0
        %2791 = vmatpush1.bf16.xpose.msra.mxu0 0
        %2792 = vmatprep.mubr.bf16.mxu0 0
        %2793 = vmatmul.mubr.bf16.gmra.mrb[0].mxu0 %v2755
        %v2794 = vpop.f32.mrb[0].mxu0
        %v2795 = vadd.f32 0.0, %v2794
        %v2796 = vpop.f32.mrb[0].mxu0
        %v2797 = vpop.f32.mrb[0].mxu0
        %v2798 = vadd.f32 0.0, %v2797
        %v2799 = vpop.f32.mrb[0].mxu0
        %2800 = vdwg.mxu0
        %v2801 = vsel %vm1832, %v2424, -inf
        %2802 = vmax.xlane.f32.xlu0 %v2801
        %v2803 = vpop.xlane.xlu0 %2802
        %v2804 = vsel %vm1832, %v2427, -inf
        %2805 = vmax.xlane.f32.xlu0 %v2804
        %v2806 = vpop.xlane.xlu0 %2805
        %v2807 = vsel %vm1832, %v2477, -inf
        %2808 = vmax.xlane.f32.xlu0 %v2807
        %v2809 = vpop.xlane.xlu0 %2808
        %v2810 = vsel %vm1832, %v2480, -inf
        %2811 = vmax.xlane.f32.xlu0 %v2810
        %v2812 = vpop.xlane.xlu0 %2811
        %v2813 = vsel %vm1832, %v2530, -inf
        %2814 = vmax.xlane.f32.xlu0 %v2813
        %v2815 = vpop.xlane.xlu0 %2814
        %v2816 = vsel %vm1832, %v2533, -inf
        %2817 = vmax.xlane.f32.xlu0 %v2816
        %v2818 = vpop.xlane.xlu0 %2817
        %v2819 = vsel %vm1832, %v2583, -inf
        %2820 = vmax.xlane.f32.xlu0 %v2819
        %v2821 = vpop.xlane.xlu0 %2820
        %v2822 = vsel %vm1832, %v2586, -inf
        %2823 = vmax.xlane.f32.xlu0 %v2822
        %v2824 = vpop.xlane.xlu0 %2823
        %v2825 = vsel %vm1832, %v2636, -inf
        %2826 = vmax.xlane.f32.xlu0 %v2825
        %v2827 = vpop.xlane.xlu0 %2826
        %v2828 = vsel %vm1832, %v2639, -inf
        %2829 = vmax.xlane.f32.xlu0 %v2828
        %v2830 = vpop.xlane.xlu0 %2829
        %v2831 = vsel %vm1832, %v2689, -inf
        %2832 = vmax.xlane.f32.xlu0 %v2831
        %v2833 = vpop.xlane.xlu0 %2832
        %v2834 = vsel %vm1832, %v2692, -inf
        %2835 = vmax.xlane.f32.xlu0 %v2834
        %v2836 = vpop.xlane.xlu0 %2835
        %v2837 = vsel %vm1832, %v2742, -inf
        %2838 = vmax.xlane.f32.xlu0 %v2837
        %v2839 = vpop.xlane.xlu0 %2838
        %v2840 = vsel %vm1832, %v2745, -inf
        %2841 = vmax.xlane.f32.xlu0 %v2840
        %v2842 = vpop.xlane.xlu0 %2841
        %v2843 = vsel %vm1832, %v2795, -inf
        %2844 = vmax.xlane.f32.xlu0 %v2843
        %v2845 = vpop.xlane.xlu0 %2844
        %v2846 = vsel %vm1832, %v2798, -inf
        %2847 = vmax.xlane.f32.xlu0 %v2846
        %v2848 = vpop.xlane.xlu0 %2847
        %v2849 = vsub.f32 %v2424, %v2803
        %v2850 = vsub.f32 %v2427, %v2806
        %v2851 = vsub.f32 %v2477, %v2809
        %v2852 = vsub.f32 %v2480, %v2812
        %v2853 = vsub.f32 %v2530, %v2815
        %v2854 = vsub.f32 %v2533, %v2818
        %v2855 = vsub.f32 %v2583, %v2821
        %v2856 = vsub.f32 %v2586, %v2824
        %v2857 = vsub.f32 %v2636, %v2827
        %v2858 = vsub.f32 %v2639, %v2830
        %v2859 = vsub.f32 %v2689, %v2833
        %v2860 = vsub.f32 %v2692, %v2836
        %v2861 = vsub.f32 %v2742, %v2839
        %v2862 = vsub.f32 %v2745, %v2842
        %v2863 = vsub.f32 %v2795, %v2845
        %v2864 = vsub.f32 %v2798, %v2848
        %v2865 = vmul.f32 %v2849, 1.442695
        %v2866 = vpow.pop %v2865
        %v2867 = vmul.f32 %v2850, 1.442695
        %v2868 = vpow.pop %v2867
        %v2869 = vmul.f32 %v2851, 1.442695
        %v2870 = vpow.pop %v2869
        %v2871 = vmul.f32 %v2852, 1.442695
        %v2872 = vpow.pop %v2871
        %v2873 = vmul.f32 %v2853, 1.442695
        %v2874 = vpow.pop %v2873
        %v2875 = vmul.f32 %v2854, 1.442695
        %v2876 = vpow.pop %v2875
        %v2877 = vmul.f32 %v2855, 1.442695
        %v2878 = vpow.pop %v2877
        %v2879 = vmul.f32 %v2856, 1.442695
        %v2880 = vpow.pop %v2879
        %v2881 = vmul.f32 %v2857, 1.442695
        %v2882 = vpow.pop %v2881
        %v2883 = vmul.f32 %v2858, 1.442695
        %v2884 = vpow.pop %v2883
        %v2885 = vmul.f32 %v2859, 1.442695
        %v2886 = vpow.pop %v2885
        %v2887 = vmul.f32 %v2860, 1.442695
        %v2888 = vpow.pop %v2887
        %v2889 = vmul.f32 %v2861, 1.442695
        %v2890 = vpow.pop %v2889
        %v2891 = vmul.f32 %v2862, 1.442695
        %v2892 = vpow.pop %v2891
        %v2893 = vmul.f32 %v2863, 1.442695
        %v2894 = vpow.pop %v2893
        %v2895 = vmul.f32 %v2864, 1.442695
        %v2896 = vpow.pop %v2895
        %v2897 = vsel %vm1832, %v2866, 0.0
        %2898 = vadd.xlane.f32.xlu0 %v2897
        %v2899 = vpop.xlane.xlu0 %2898
        %v2900 = vsel %vm1832, %v2868, 0.0
        %2901 = vadd.xlane.f32.xlu0 %v2900
        %v2902 = vpop.xlane.xlu0 %2901
        %v2903 = vsel %vm1832, %v2870, 0.0
        %2904 = vadd.xlane.f32.xlu0 %v2903
        %v2905 = vpop.xlane.xlu0 %2904
        %v2906 = vsel %vm1832, %v2872, 0.0
        %2907 = vadd.xlane.f32.xlu0 %v2906
        %v2908 = vpop.xlane.xlu0 %2907
        %v2909 = vsel %vm1832, %v2874, 0.0
        %2910 = vadd.xlane.f32.xlu0 %v2909
        %v2911 = vpop.xlane.xlu0 %2910
        %v2912 = vsel %vm1832, %v2876, 0.0
        %2913 = vadd.xlane.f32.xlu0 %v2912
        %v2914 = vpop.xlane.xlu0 %2913
        %v2915 = vsel %vm1832, %v2878, 0.0
        %2916 = vadd.xlane.f32.xlu0 %v2915
        %v2917 = vpop.xlane.xlu0 %2916
        %v2918 = vsel %vm1832, %v2880, 0.0
        %2919 = vadd.xlane.f32.xlu0 %v2918
        %v2920 = vpop.xlane.xlu0 %2919
        %v2921 = vsel %vm1832, %v2882, 0.0
        %2922 = vadd.xlane.f32.xlu0 %v2921
        %v2923 = vpop.xlane.xlu0 %2922
        %v2924 = vsel %vm1832, %v2884, 0.0
        %2925 = vadd.xlane.f32.xlu0 %v2924
        %v2926 = vpop.xlane.xlu0 %2925
        %v2927 = vsel %vm1832, %v2886, 0.0
        %2928 = vadd.xlane.f32.xlu0 %v2927
        %v2929 = vpop.xlane.xlu0 %2928
        %v2930 = vsel %vm1832, %v2888, 0.0
        %2931 = vadd.xlane.f32.xlu0 %v2930
        %v2932 = vpop.xlane.xlu0 %2931
        %v2933 = vsel %vm1832, %v2890, 0.0
        %2934 = vadd.xlane.f32.xlu0 %v2933
        %v2935 = vpop.xlane.xlu0 %2934
        %v2936 = vsel %vm1832, %v2892, 0.0
        %2937 = vadd.xlane.f32.xlu0 %v2936
        %v2938 = vpop.xlane.xlu0 %2937
        %v2939 = vsel %vm1832, %v2894, 0.0
        %2940 = vadd.xlane.f32.xlu0 %v2939
        %v2941 = vpop.xlane.xlu0 %2940
        %v2942 = vsel %vm1832, %v2896, 0.0
        %2943 = vadd.xlane.f32.xlu0 %v2942
        %v2944 = vpop.xlane.xlu0 %2943
        %v2945 = vrcp.pop %v2899
        %v2946 = vrcp.pop %v2902
        %v2947 = vrcp.pop %v2905
        %v2948 = vrcp.pop %v2908
        %v2949 = vrcp.pop %v2911
        %v2950 = vrcp.pop %v2914
        %v2951 = vrcp.pop %v2917
        %v2952 = vrcp.pop %v2920
        %v2953 = vrcp.pop %v2923
        %v2954 = vrcp.pop %v2926
        %v2955 = vrcp.pop %v2929
        %v2956 = vrcp.pop %v2932
        %v2957 = vrcp.pop %v2935
        %v2958 = vrcp.pop %v2938
        %v2959 = vrcp.pop %v2941
        %v2960 = vrcp.pop %v2944
        %v2961 = vmul.f32 %v2866, %v2945
        %v2962 = vmul.f32 %v2868, %v2946
        %v2963 = vmul.f32 %v2870, %v2947
        %v2964 = vmul.f32 %v2872, %v2948
        %v2965 = vmul.f32 %v2874, %v2949
        %v2966 = vmul.f32 %v2876, %v2950
        %v2967 = vmul.f32 %v2878, %v2951
        %v2968 = vmul.f32 %v2880, %v2952
        %v2969 = vmul.f32 %v2882, %v2953
        %v2970 = vmul.f32 %v2884, %v2954
        %v2971 = vmul.f32 %v2886, %v2955
        %v2972 = vmul.f32 %v2888, %v2956
        %v2973 = vmul.f32 %v2890, %v2957
        %v2974 = vmul.f32 %v2892, %v2958
        %v2975 = vmul.f32 %v2894, %v2959
        %v2976 = vmul.f32 %v2896, %v2960
        %v2977 = vpack.c.bf16 %v2962, %v2961
        %v2978 = vpack.c.bf16 %v2964, %v2963
        %v2979 = vpack.c.bf16 %v2966, %v2965
        %v2980 = vpack.c.bf16 %v2968, %v2967
        %v2981 = vpack.c.bf16 %v2970, %v2969
        %v2982 = vpack.c.bf16 %v2972, %v2971
        %v2983 = vpack.c.bf16 %v2974, %v2973
        %v2984 = vpack.c.bf16 %v2976, %v2975
        %2986 = vrot.lane.b32.xlu0 %v1447, 96
        %v2987 = vpop.permute.xlu0 %2986
        %v2990 = vsel %vm1832, %v2977, 0
        %2992 = vmatprep.subr.bf16.mxu0 0
        %2993 = vmatpush1.bf16.msra.mxu0 %v2987
        %2994 = vmatprep.subr.bf16.mxu0 0
        %2995 = vmatpush1.bf16.msra.mxu0 0
        %2996 = vmatprep.subr.bf16.mxu0 0
        %2997 = vmatpush1.bf16.msra.mxu0 0
        %2998 = vmatprep.subr.bf16.mxu0 0
        %2999 = vmatpush1.bf16.msra.mxu0 0
        %3000 = vmatprep.subr.bf16.mxu0 0
        %3001 = vmatpush1.bf16.msra.mxu0 0
        %3002 = vmatprep.subr.bf16.mxu0 0
        %3003 = vmatpush1.bf16.msra.mxu0 0
        %3004 = vmatprep.subr.bf16.mxu0 0
        %3005 = vmatpush1.bf16.msra.mxu0 0
        %3006 = vmatprep.subr.bf16.mxu0 0
        %3007 = vmatpush1.bf16.msra.mxu0 0
        %3008 = vmatprep.subr.bf16.mxu0 0
        %3009 = vmatpush1.bf16.msra.mxu0 0
        %3010 = vmatprep.subr.bf16.mxu0 0
        %3011 = vmatpush1.bf16.msra.mxu0 0
        %3012 = vmatprep.subr.bf16.mxu0 0
        %3013 = vmatpush1.bf16.msra.mxu0 0
        %3014 = vmatprep.subr.bf16.mxu0 0
        %3015 = vmatpush1.bf16.msra.mxu0 0
        %3016 = vmatprep.subr.bf16.mxu0 0
        %3017 = vmatpush1.bf16.msra.mxu0 0
        %3018 = vmatprep.subr.bf16.mxu0 0
        %3019 = vmatpush1.bf16.msra.mxu0 0
        %3020 = vmatprep.subr.bf16.mxu0 0
        %3021 = vmatpush1.bf16.msra.mxu0 0
        %3022 = vmatprep.subr.bf16.mxu0 0
        %3023 = vmatpush1.bf16.msra.mxu0 0
        %3024 = vmatprep.mubr.bf16.mxu0 0
        %3025 = vmatmul.mubr.bf16.gmra.mrb[0].mxu0 %v2990
        %v3026 = vpop.f32.mrb[0].mxu0
        %v3027 = vadd.f32 0.0, %v3026
        %v3028 = vpop.f32.mrb[0].mxu0
        %v3029 = vpop.f32.mrb[0].mxu0
        %v3030 = vadd.f32 0.0, %v3029
        %v3031 = vpop.f32.mrb[0].mxu0
        %3032 = vdwg.mxu0
        %3034 = vrot.lane.b32.xlu0 %v1448, 96
        %v3035 = vpop.permute.xlu0 %3034
        %v3038 = vsel %vm1832, %v2978, 0
        %3040 = vmatprep.subr.bf16.mxu0 0
        %3041 = vmatpush1.bf16.msra.mxu0 %v3035
        %3042 = vmatprep.subr.bf16.mxu0 0
        %3043 = vmatpush1.bf16.msra.mxu0 0
        %3044 = vmatprep.subr.bf16.mxu0 0
        %3045 = vmatpush1.bf16.msra.mxu0 0
        %3046 = vmatprep.subr.bf16.mxu0 0
        %3047 = vmatpush1.bf16.msra.mxu0 0
        %3048 = vmatprep.subr.bf16.mxu0 0
        %3049 = vmatpush1.bf16.msra.mxu0 0
        %3050 = vmatprep.subr.bf16.mxu0 0
        %3051 = vmatpush1.bf16.msra.mxu0 0
        %3052 = vmatprep.subr.bf16.mxu0 0
        %3053 = vmatpush1.bf16.msra.mxu0 0
        %3054 = vmatprep.subr.bf16.mxu0 0
        %3055 = vmatpush1.bf16.msra.mxu0 0
        %3056 = vmatprep.subr.bf16.mxu0 0
        %3057 = vmatpush1.bf16.msra.mxu0 0
        %3058 = vmatprep.subr.bf16.mxu0 0
        %3059 = vmatpush1.bf16.msra.mxu0 0
        %3060 = vmatprep.subr.bf16.mxu0 0
        %3061 = vmatpush1.bf16.msra.mxu0 0
        %3062 = vmatprep.subr.bf16.mxu0 0
        %3063 = vmatpush1.bf16.msra.mxu0 0
        %3064 = vmatprep.subr.bf16.mxu0 0
        %3065 = vmatpush1.bf16.msra.mxu0 0
        %3066 = vmatprep.subr.bf16.mxu0 0
        %3067 = vmatpush1.bf16.msra.mxu0 0
        %3068 = vmatprep.subr.bf16.mxu0 0
        %3069 = vmatpush1.bf16.msra.mxu0 0
        %3070 = vmatprep.subr.bf16.mxu0 0
        %3071 = vmatpush1.bf16.msra.mxu0 0
        %3072 = vmatprep.mubr.bf16.mxu0 0
        %3073 = vmatmul.mubr.bf16.gmra.mrb[0].mxu0 %v3038
        %v3074 = vpop.f32.mrb[0].mxu0
        %v3075 = vadd.f32 0.0, %v3074
        %v3076 = vpop.f32.mrb[0].mxu0
        %v3077 = vpop.f32.mrb[0].mxu0
        %v3078 = vadd.f32 0.0, %v3077
        %v3079 = vpop.f32.mrb[0].mxu0
        %3080 = vdwg.mxu0
        %3082 = vrot.lane.b32.xlu0 %v1449, 96
        %v3083 = vpop.permute.xlu0 %3082
        %v3086 = vsel %vm1832, %v2979, 0
        %3088 = vmatprep.subr.bf16.mxu0 0
        %3089 = vmatpush1.bf16.msra.mxu0 %v3083
        %3090 = vmatprep.subr.bf16.mxu0 0
        %3091 = vmatpush1.bf16.msra.mxu0 0
        %3092 = vmatprep.subr.bf16.mxu0 0
        %3093 = vmatpush1.bf16.msra.mxu0 0
        %3094 = vmatprep.subr.bf16.mxu0 0
        %3095 = vmatpush1.bf16.msra.mxu0 0
        %3096 = vmatprep.subr.bf16.mxu0 0
        %3097 = vmatpush1.bf16.msra.mxu0 0
        %3098 = vmatprep.subr.bf16.mxu0 0
        %3099 = vmatpush1.bf16.msra.mxu0 0
        %3100 = vmatprep.subr.bf16.mxu0 0
        %3101 = vmatpush1.bf16.msra.mxu0 0
        %3102 = vmatprep.subr.bf16.mxu0 0
        %3103 = vmatpush1.bf16.msra.mxu0 0
        %3104 = vmatprep.subr.bf16.mxu0 0
        %3105 = vmatpush1.bf16.msra.mxu0 0
        %3106 = vmatprep.subr.bf16.mxu0 0
        %3107 = vmatpush1.bf16.msra.mxu0 0
        %3108 = vmatprep.subr.bf16.mxu0 0
        %3109 = vmatpush1.bf16.msra.mxu0 0
        %3110 = vmatprep.subr.bf16.mxu0 0
        %3111 = vmatpush1.bf16.msra.mxu0 0
        %3112 = vmatprep.subr.bf16.mxu0 0
        %3113 = vmatpush1.bf16.msra.mxu0 0
        %3114 = vmatprep.subr.bf16.mxu0 0
        %3115 = vmatpush1.bf16.msra.mxu0 0
        %3116 = vmatprep.subr.bf16.mxu0 0
        %3117 = vmatpush1.bf16.msra.mxu0 0
        %3118 = vmatprep.subr.bf16.mxu0 0
        %3119 = vmatpush1.bf16.msra.mxu0 0
        %3120 = vmatprep.mubr.bf16.mxu0 0
        %3121 = vmatmul.mubr.bf16.gmra.mrb[0].mxu0 %v3086
        %v3122 = vpop.f32.mrb[0].mxu0
        %v3123 = vadd.f32 0.0, %v3122
        %v3124 = vpop.f32.mrb[0].mxu0
        %v3125 = vpop.f32.mrb[0].mxu0
        %v3126 = vadd.f32 0.0, %v3125
        %v3127 = vpop.f32.mrb[0].mxu0
        %3128 = vdwg.mxu0
        %3130 = vrot.lane.b32.xlu0 %v1450, 96
        %v3131 = vpop.permute.xlu0 %3130
        %v3134 = vsel %vm1832, %v2980, 0
        %3136 = vmatprep.subr.bf16.mxu0 0
        %3137 = vmatpush1.bf16.msra.mxu0 %v3131
        %3138 = vmatprep.subr.bf16.mxu0 0
        %3139 = vmatpush1.bf16.msra.mxu0 0
        %3140 = vmatprep.subr.bf16.mxu0 0
        %3141 = vmatpush1.bf16.msra.mxu0 0
        %3142 = vmatprep.subr.bf16.mxu0 0
        %3143 = vmatpush1.bf16.msra.mxu0 0
        %3144 = vmatprep.subr.bf16.mxu0 0
        %3145 = vmatpush1.bf16.msra.mxu0 0
        %3146 = vmatprep.subr.bf16.mxu0 0
        %3147 = vmatpush1.bf16.msra.mxu0 0
        %3148 = vmatprep.subr.bf16.mxu0 0
        %3149 = vmatpush1.bf16.msra.mxu0 0
        %3150 = vmatprep.subr.bf16.mxu0 0
        %3151 = vmatpush1.bf16.msra.mxu0 0
        %3152 = vmatprep.subr.bf16.mxu0 0
        %3153 = vmatpush1.bf16.msra.mxu0 0
        %3154 = vmatprep.subr.bf16.mxu0 0
        %3155 = vmatpush1.bf16.msra.mxu0 0
        %3156 = vmatprep.subr.bf16.mxu0 0
        %3157 = vmatpush1.bf16.msra.mxu0 0
        %3158 = vmatprep.subr.bf16.mxu0 0
        %3159 = vmatpush1.bf16.msra.mxu0 0
        %3160 = vmatprep.subr.bf16.mxu0 0
        %3161 = vmatpush1.bf16.msra.mxu0 0
        %3162 = vmatprep.subr.bf16.mxu0 0
        %3163 = vmatpush1.bf16.msra.mxu0 0
        %3164 = vmatprep.subr.bf16.mxu0 0
        %3165 = vmatpush1.bf16.msra.mxu0 0
        %3166 = vmatprep.subr.bf16.mxu0 0
        %3167 = vmatpush1.bf16.msra.mxu0 0
        %3168 = vmatprep.mubr.bf16.mxu0 0
        %3169 = vmatmul.mubr.bf16.gmra.mrb[0].mxu0 %v3134
        %v3170 = vpop.f32.mrb[0].mxu0
        %v3171 = vadd.f32 0.0, %v3170
        %v3172 = vpop.f32.mrb[0].mxu0
        %v3173 = vpop.f32.mrb[0].mxu0
        %v3174 = vadd.f32 0.0, %v3173
        %v3175 = vpop.f32.mrb[0].mxu0
        %3176 = vdwg.mxu0
        %3178 = vrot.lane.b32.xlu0 %v1451, 96
        %v3179 = vpop.permute.xlu0 %3178
        %v3182 = vsel %vm1832, %v2981, 0
        %3184 = vmatprep.subr.bf16.mxu0 0
        %3185 = vmatpush1.bf16.msra.mxu0 %v3179
        %3186 = vmatprep.subr.bf16.mxu0 0
        %3187 = vmatpush1.bf16.msra.mxu0 0
        %3188 = vmatprep.subr.bf16.mxu0 0
        %3189 = vmatpush1.bf16.msra.mxu0 0
        %3190 = vmatprep.subr.bf16.mxu0 0
        %3191 = vmatpush1.bf16.msra.mxu0 0
        %3192 = vmatprep.subr.bf16.mxu0 0
        %3193 = vmatpush1.bf16.msra.mxu0 0
        %3194 = vmatprep.subr.bf16.mxu0 0
        %3195 = vmatpush1.bf16.msra.mxu0 0
        %3196 = vmatprep.subr.bf16.mxu0 0
        %3197 = vmatpush1.bf16.msra.mxu0 0
        %3198 = vmatprep.subr.bf16.mxu0 0
        %3199 = vmatpush1.bf16.msra.mxu0 0
        %3200 = vmatprep.subr.bf16.mxu0 0
        %3201 = vmatpush1.bf16.msra.mxu0 0
        %3202 = vmatprep.subr.bf16.mxu0 0
        %3203 = vmatpush1.bf16.msra.mxu0 0
        %3204 = vmatprep.subr.bf16.mxu0 0
        %3205 = vmatpush1.bf16.msra.mxu0 0
        %3206 = vmatprep.subr.bf16.mxu0 0
        %3207 = vmatpush1.bf16.msra.mxu0 0
        %3208 = vmatprep.subr.bf16.mxu0 0
        %3209 = vmatpush1.bf16.msra.mxu0 0
        %3210 = vmatprep.subr.bf16.mxu0 0
        %3211 = vmatpush1.bf16.msra.mxu0 0
        %3212 = vmatprep.subr.bf16.mxu0 0
        %3213 = vmatpush1.bf16.msra.mxu0 0
        %3214 = vmatprep.subr.bf16.mxu0 0
        %3215 = vmatpush1.bf16.msra.mxu0 0
        %3216 = vmatprep.mubr.bf16.mxu0 0
        %3217 = vmatmul.mubr.bf16.gmra.mrb[0].mxu0 %v3182
        %v3218 = vpop.f32.mrb[0].mxu0
        %v3219 = vadd.f32 0.0, %v3218
        %v3220 = vpop.f32.mrb[0].mxu0
        %v3221 = vpop.f32.mrb[0].mxu0
        %v3222 = vadd.f32 0.0, %v3221
        %v3223 = vpop.f32.mrb[0].mxu0
        %3224 = vdwg.mxu0
        %3226 = vrot.lane.b32.xlu0 %v1452, 96
        %v3227 = vpop.permute.xlu0 %3226
        %v3230 = vsel %vm1832, %v2982, 0
        %3232 = vmatprep.subr.bf16.mxu0 0
        %3233 = vmatpush1.bf16.msra.mxu0 %v3227
        %3234 = vmatprep.subr.bf16.mxu0 0
        %3235 = vmatpush1.bf16.msra.mxu0 0
        %3236 = vmatprep.subr.bf16.mxu0 0
        %3237 = vmatpush1.bf16.msra.mxu0 0
        %3238 = vmatprep.subr.bf16.mxu0 0
        %3239 = vmatpush1.bf16.msra.mxu0 0
        %3240 = vmatprep.subr.bf16.mxu0 0
        %3241 = vmatpush1.bf16.msra.mxu0 0
        %3242 = vmatprep.subr.bf16.mxu0 0
        %3243 = vmatpush1.bf16.msra.mxu0 0
        %3244 = vmatprep.subr.bf16.mxu0 0
        %3245 = vmatpush1.bf16.msra.mxu0 0
        %3246 = vmatprep.subr.bf16.mxu0 0
        %3247 = vmatpush1.bf16.msra.mxu0 0
        %3248 = vmatprep.subr.bf16.mxu0 0
        %3249 = vmatpush1.bf16.msra.mxu0 0
        %3250 = vmatprep.subr.bf16.mxu0 0
        %3251 = vmatpush1.bf16.msra.mxu0 0
        %3252 = vmatprep.subr.bf16.mxu0 0
        %3253 = vmatpush1.bf16.msra.mxu0 0
        %3254 = vmatprep.subr.bf16.mxu0 0
        %3255 = vmatpush1.bf16.msra.mxu0 0
        %3256 = vmatprep.subr.bf16.mxu0 0
        %3257 = vmatpush1.bf16.msra.mxu0 0
        %3258 = vmatprep.subr.bf16.mxu0 0
        %3259 = vmatpush1.bf16.msra.mxu0 0
        %3260 = vmatprep.subr.bf16.mxu0 0
        %3261 = vmatpush1.bf16.msra.mxu0 0
        %3262 = vmatprep.subr.bf16.mxu0 0
        %3263 = vmatpush1.bf16.msra.mxu0 0
        %3264 = vmatprep.mubr.bf16.mxu0 0
        %3265 = vmatmul.mubr.bf16.gmra.mrb[0].mxu0 %v3230
        %v3266 = vpop.f32.mrb[0].mxu0
        %v3267 = vadd.f32 0.0, %v3266
        %v3268 = vpop.f32.mrb[0].mxu0
        %v3269 = vpop.f32.mrb[0].mxu0
        %v3270 = vadd.f32 0.0, %v3269
        %v3271 = vpop.f32.mrb[0].mxu0
        %3272 = vdwg.mxu0
        %3274 = vrot.lane.b32.xlu0 %v1453, 96
        %v3275 = vpop.permute.xlu0 %3274
        %v3278 = vsel %vm1832, %v2983, 0
        %3280 = vmatprep.subr.bf16.mxu0 0
        %3281 = vmatpush1.bf16.msra.mxu0 %v3275
        %3282 = vmatprep.subr.bf16.mxu0 0
        %3283 = vmatpush1.bf16.msra.mxu0 0
        %3284 = vmatprep.subr.bf16.mxu0 0
        %3285 = vmatpush1.bf16.msra.mxu0 0
        %3286 = vmatprep.subr.bf16.mxu0 0
        %3287 = vmatpush1.bf16.msra.mxu0 0
        %3288 = vmatprep.subr.bf16.mxu0 0
        %3289 = vmatpush1.bf16.msra.mxu0 0
        %3290 = vmatprep.subr.bf16.mxu0 0
        %3291 = vmatpush1.bf16.msra.mxu0 0
        %3292 = vmatprep.subr.bf16.mxu0 0
        %3293 = vmatpush1.bf16.msra.mxu0 0
        %3294 = vmatprep.subr.bf16.mxu0 0
        %3295 = vmatpush1.bf16.msra.mxu0 0
        %3296 = vmatprep.subr.bf16.mxu0 0
        %3297 = vmatpush1.bf16.msra.mxu0 0
        %3298 = vmatprep.subr.bf16.mxu0 0
        %3299 = vmatpush1.bf16.msra.mxu0 0
        %3300 = vmatprep.subr.bf16.mxu0 0
        %3301 = vmatpush1.bf16.msra.mxu0 0
        %3302 = vmatprep.subr.bf16.mxu0 0
        %3303 = vmatpush1.bf16.msra.mxu0 0
        %3304 = vmatprep.subr.bf16.mxu0 0
        %3305 = vmatpush1.bf16.msra.mxu0 0
        %3306 = vmatprep.subr.bf16.mxu0 0
        %3307 = vmatpush1.bf16.msra.mxu0 0
        %3308 = vmatprep.subr.bf16.mxu0 0
        %3309 = vmatpush1.bf16.msra.mxu0 0
        %3310 = vmatprep.subr.bf16.mxu0 0
        %3311 = vmatpush1.bf16.msra.mxu0 0
        %3312 = vmatprep.mubr.bf16.mxu0 0
        %3313 = vmatmul.mubr.bf16.gmra.mrb[0].mxu0 %v3278
        %v3314 = vpop.f32.mrb[0].mxu0
        %v3315 = vadd.f32 0.0, %v3314
        %v3316 = vpop.f32.mrb[0].mxu0
        %v3317 = vpop.f32.mrb[0].mxu0
        %v3318 = vadd.f32 0.0, %v3317
        %v3319 = vpop.f32.mrb[0].mxu0
        %3320 = vdwg.mxu0
        %3322 = vrot.lane.b32.xlu0 %v1454, 96
        %v3323 = vpop.permute.xlu0 %3322
        %v3326 = vsel %vm1832, %v2984, 0
        %3328 = vmatprep.subr.bf16.mxu0 0
        %3329 = vmatpush1.bf16.msra.mxu0 %v3323
        %3330 = vmatprep.subr.bf16.mxu0 0
        %3331 = vmatpush1.bf16.msra.mxu0 0
        %3332 = vmatprep.subr.bf16.mxu0 0
        %3333 = vmatpush1.bf16.msra.mxu0 0
        %3334 = vmatprep.subr.bf16.mxu0 0
        %3335 = vmatpush1.bf16.msra.mxu0 0
        %3336 = vmatprep.subr.bf16.mxu0 0
        %3337 = vmatpush1.bf16.msra.mxu0 0
        %3338 = vmatprep.subr.bf16.mxu0 0
        %3339 = vmatpush1.bf16.msra.mxu0 0
        %3340 = vmatprep.subr.bf16.mxu0 0
        %3341 = vmatpush1.bf16.msra.mxu0 0
        %3342 = vmatprep.subr.bf16.mxu0 0
        %3343 = vmatpush1.bf16.msra.mxu0 0
        %3344 = vmatprep.subr.bf16.mxu0 0
        %3345 = vmatpush1.bf16.msra.mxu0 0
        %3346 = vmatprep.subr.bf16.mxu0 0
        %3347 = vmatpush1.bf16.msra.mxu0 0
        %3348 = vmatprep.subr.bf16.mxu0 0
        %3349 = vmatpush1.bf16.msra.mxu0 0
        %3350 = vmatprep.subr.bf16.mxu0 0
        %3351 = vmatpush1.bf16.msra.mxu0 0
        %3352 = vmatprep.subr.bf16.mxu0 0
        %3353 = vmatpush1.bf16.msra.mxu0 0
        %3354 = vmatprep.subr.bf16.mxu0 0
        %3355 = vmatpush1.bf16.msra.mxu0 0
        %3356 = vmatprep.subr.bf16.mxu0 0
        %3357 = vmatpush1.bf16.msra.mxu0 0
        %3358 = vmatprep.subr.bf16.mxu0 0
        %3359 = vmatpush1.bf16.msra.mxu0 0
        %3360 = vmatprep.mubr.bf16.mxu0 0
        %3361 = vmatmul.mubr.bf16.gmra.mrb[0].mxu0 %v3326
        %v3362 = vpop.f32.mrb[0].mxu0
        %v3363 = vadd.f32 0.0, %v3362
        %v3364 = vpop.f32.mrb[0].mxu0
        %v3365 = vpop.f32.mrb[0].mxu0
        %v3366 = vadd.f32 0.0, %v3365
        %v3367 = vpop.f32.mrb[0].mxu0
        %3368 = vdwg.mxu0
        %v3369 = vpack.c.bf16 %v3030, %v3027
        %v3370 = vpack.c.bf16 %v3078, %v3075
        %v3371 = vpack.c.bf16 %v3126, %v3123
        %v3372 = vpack.c.bf16 %v3174, %v3171
        %v3373 = vpack.c.bf16 %v3222, %v3219
        %v3374 = vpack.c.bf16 %v3270, %v3267
        %v3375 = vpack.c.bf16 %v3318, %v3315
        %v3376 = vpack.c.bf16 %v3366, %v3363
        %v3381 = vunpack.c.l.b16 %v1419
        %v3382 = vunpack.c.l.b16 %v1420
        %v3383 = vunpack.c.l.b16 %v1421
        %v3384 = vunpack.c.l.b16 %v1422
        %v3385 = vpack.c.b16 %v3382, %v3381
        %v3386 = vpack.c.b16 %v3384, %v3383
        %v3390 = vsel %vm1455, %v3369, 0
        %v3393 = vsel %vm1455, %v3370, 0
        %v3396 = vsel %vm1455, %v3371, 0
        %v3399 = vsel %vm1455, %v3372, 0
        %v3402 = vsel %vm1455, %v3373, 0
        %v3405 = vsel %vm1455, %v3374, 0
        %v3408 = vsel %vm1455, %v3375, 0
        %v3411 = vsel %vm1455, %v3376, 0
        %3413 = vmatprep.subr.bf16.mxu0 0
        %3414 = vmatpush1.bf16.msra.mxu0 %v3385
        %3415 = vmatprep.subr.bf16.mxu0 0
        %3416 = vmatpush1.bf16.msra.mxu0 %v3386
        %3417 = vmatprep.subr.bf16.mxu0 0
        %3418 = vmatpush1.bf16.msra.mxu0 0
        %3419 = vmatprep.subr.bf16.mxu0 0
        %3420 = vmatpush1.bf16.msra.mxu0 0
        %3421 = vmatprep.subr.bf16.mxu0 0
        %3422 = vmatpush1.bf16.msra.mxu0 0
        %3423 = vmatprep.subr.bf16.mxu0 0
        %3424 = vmatpush1.bf16.msra.mxu0 0
        %3425 = vmatprep.subr.bf16.mxu0 0
        %3426 = vmatpush1.bf16.msra.mxu0 0
        %3427 = vmatprep.subr.bf16.mxu0 0
        %3428 = vmatpush1.bf16.msra.mxu0 0
        %3429 = vmatprep.subr.bf16.mxu0 0
        %3430 = vmatpush1.bf16.msra.mxu0 0
        %3431 = vmatprep.subr.bf16.mxu0 0
        %3432 = vmatpush1.bf16.msra.mxu0 0
        %3433 = vmatprep.subr.bf16.mxu0 0
        %3434 = vmatpush1.bf16.msra.mxu0 0
        %3435 = vmatprep.subr.bf16.mxu0 0
        %3436 = vmatpush1.bf16.msra.mxu0 0
        %3437 = vmatprep.subr.bf16.mxu0 0
        %3438 = vmatpush1.bf16.msra.mxu0 0
        %3439 = vmatprep.subr.bf16.mxu0 0
        %3440 = vmatpush1.bf16.msra.mxu0 0
        %3441 = vmatprep.subr.bf16.mxu0 0
        %3442 = vmatpush1.bf16.msra.mxu0 0
        %3443 = vmatprep.subr.bf16.mxu0 0
        %3444 = vmatpush1.bf16.msra.mxu0 0
        %3445 = vmatprep.mubr.bf16.mxu0 0
        %3446 = vmatmul.mubr.bf16.gmra.mrb[0].mxu0 %v3390
        %v3447 = vpop.f32.mrb[0].mxu0
        %v3448 = vadd.f32 0.0, %v3447
        %v3449 = vpop.f32.mrb[0].mxu0
        %v3450 = vpop.f32.mrb[0].mxu0
        %v3451 = vadd.f32 0.0, %v3450
        %v3452 = vpop.f32.mrb[0].mxu0
        %3453 = vmatprep.mubr.bf16.mxu0 0
        %3454 = vmatmul.mubr.bf16.gmra.mrb[0].mxu0 %v3393
        %v3455 = vpop.f32.mrb[0].mxu0
        %v3456 = vadd.f32 0.0, %v3455
        %v3457 = vpop.f32.mrb[0].mxu0
        %v3458 = vpop.f32.mrb[0].mxu0
        %v3459 = vadd.f32 0.0, %v3458
        %v3460 = vpop.f32.mrb[0].mxu0
        %3461 = vmatprep.mubr.bf16.mxu0 0
        %3462 = vmatmul.mubr.bf16.gmra.mrb[0].mxu0 %v3396
        %v3463 = vpop.f32.mrb[0].mxu0
        %v3464 = vadd.f32 0.0, %v3463
        %v3465 = vpop.f32.mrb[0].mxu0
        %v3466 = vpop.f32.mrb[0].mxu0
        %v3467 = vadd.f32 0.0, %v3466
        %v3468 = vpop.f32.mrb[0].mxu0
        %3469 = vmatprep.mubr.bf16.mxu0 0
        %3470 = vmatmul.mubr.bf16.gmra.mrb[0].mxu0 %v3399
        %v3471 = vpop.f32.mrb[0].mxu0
        %v3472 = vadd.f32 0.0, %v3471
        %v3473 = vpop.f32.mrb[0].mxu0
        %v3474 = vpop.f32.mrb[0].mxu0
        %v3475 = vadd.f32 0.0, %v3474
        %v3476 = vpop.f32.mrb[0].mxu0
        %3477 = vmatprep.mubr.bf16.mxu0 0
        %3478 = vmatmul.mubr.bf16.gmra.mrb[0].mxu0 %v3402
        %v3479 = vpop.f32.mrb[0].mxu0
        %v3480 = vadd.f32 0.0, %v3479
        %v3481 = vpop.f32.mrb[0].mxu0
        %v3482 = vpop.f32.mrb[0].mxu0
        %v3483 = vadd.f32 0.0, %v3482
        %v3484 = vpop.f32.mrb[0].mxu0
        %3485 = vmatprep.mubr.bf16.mxu0 0
        %3486 = vmatmul.mubr.bf16.gmra.mrb[0].mxu0 %v3405
        %v3487 = vpop.f32.mrb[0].mxu0
        %v3488 = vadd.f32 0.0, %v3487
        %v3489 = vpop.f32.mrb[0].mxu0
        %v3490 = vpop.f32.mrb[0].mxu0
        %v3491 = vadd.f32 0.0, %v3490
        %v3492 = vpop.f32.mrb[0].mxu0
        %3493 = vmatprep.mubr.bf16.mxu0 0
        %3494 = vmatmul.mubr.bf16.gmra.mrb[0].mxu0 %v3408
        %v3495 = vpop.f32.mrb[0].mxu0
        %v3496 = vadd.f32 0.0, %v3495
        %v3497 = vpop.f32.mrb[0].mxu0
        %v3498 = vpop.f32.mrb[0].mxu0
        %v3499 = vadd.f32 0.0, %v3498
        %v3500 = vpop.f32.mrb[0].mxu0
        %3501 = vmatprep.mubr.bf16.mxu0 0
        %3502 = vmatmul.mubr.bf16.gmra.mrb[0].mxu0 %v3411
        %v3503 = vpop.f32.mrb[0].mxu0
        %v3504 = vadd.f32 0.0, %v3503
        %v3505 = vpop.f32.mrb[0].mxu0
        %v3506 = vpop.f32.mrb[0].mxu0
        %v3507 = vadd.f32 0.0, %v3506
        %v3508 = vpop.f32.mrb[0].mxu0
        %3509 = vdwg.mxu0
        %v3514 = vunpack.c.l.b16 %v1415
        %v3515 = vunpack.c.l.b16 %v1416
        %v3516 = vunpack.c.l.b16 %v1417
        %v3517 = vunpack.c.l.b16 %v1418
        %v3518 = vpack.c.b16 %v3515, %v3514
        %v3519 = vpack.c.b16 %v3517, %v3516
        %v3523 = vsel %vm1455, %v2369, 0
        %v3526 = vsel %vm1455, %v2370, 0
        %v3529 = vsel %vm1455, %v2371, 0
        %v3532 = vsel %vm1455, %v2372, 0
        %v3535 = vsel %vm1455, %v2373, 0
        %v3538 = vsel %vm1455, %v2374, 0
        %v3541 = vsel %vm1455, %v2375, 0
        %v3544 = vsel %vm1455, %v2376, 0
        %3546 = vmatprep.subr.bf16.mxu0 0
        %3547 = vmatpush1.bf16.msra.mxu0 %v3518
        %3548 = vmatprep.subr.bf16.mxu0 0
        %3549 = vmatpush1.bf16.msra.mxu0 %v3519
        %3550 = vmatprep.subr.bf16.mxu0 0
        %3551 = vmatpush1.bf16.msra.mxu0 0
        %3552 = vmatprep.subr.bf16.mxu0 0
        %3553 = vmatpush1.bf16.msra.mxu0 0
        %3554 = vmatprep.subr.bf16.mxu0 0
        %3555 = vmatpush1.bf16.msra.mxu0 0
        %3556 = vmatprep.subr.bf16.mxu0 0
        %3557 = vmatpush1.bf16.msra.mxu0 0
        %3558 = vmatprep.subr.bf16.mxu0 0
        %3559 = vmatpush1.bf16.msra.mxu0 0
        %3560 = vmatprep.subr.bf16.mxu0 0
        %3561 = vmatpush1.bf16.msra.mxu0 0
        %3562 = vmatprep.subr.bf16.mxu0 0
        %3563 = vmatpush1.bf16.msra.mxu0 0
        %3564 = vmatprep.subr.bf16.mxu0 0
        %3565 = vmatpush1.bf16.msra.mxu0 0
        %3566 = vmatprep.subr.bf16.mxu0 0
        %3567 = vmatpush1.bf16.msra.mxu0 0
        %3568 = vmatprep.subr.bf16.mxu0 0
        %3569 = vmatpush1.bf16.msra.mxu0 0
        %3570 = vmatprep.subr.bf16.mxu0 0
        %3571 = vmatpush1.bf16.msra.mxu0 0
        %3572 = vmatprep.subr.bf16.mxu0 0
        %3573 = vmatpush1.bf16.msra.mxu0 0
        %3574 = vmatprep.subr.bf16.mxu0 0
        %3575 = vmatpush1.bf16.msra.mxu0 0
        %3576 = vmatprep.subr.bf16.mxu0 0
        %3577 = vmatpush1.bf16.msra.mxu0 0
        %3578 = vmatprep.mubr.bf16.mxu0 0
        %3579 = vmatmul.mubr.bf16.gmra.mrb[0].mxu0 %v3523
        %v3580 = vpop.f32.mrb[0].mxu0
        %v3581 = vadd.f32 %v3448, %v3580
        %v3582 = vpop.f32.mrb[0].mxu0
        %v3583 = vpop.f32.mrb[0].mxu0
        %v3584 = vadd.f32 %v3451, %v3583
        %v3585 = vpop.f32.mrb[0].mxu0
        %3586 = vmatprep.mubr.bf16.mxu0 0
        %3587 = vmatmul.mubr.bf16.gmra.mrb[0].mxu0 %v3526
        %v3588 = vpop.f32.mrb[0].mxu0
        %v3589 = vadd.f32 %v3456, %v3588
        %v3590 = vpop.f32.mrb[0].mxu0
        %v3591 = vpop.f32.mrb[0].mxu0
        %v3592 = vadd.f32 %v3459, %v3591
        %v3593 = vpop.f32.mrb[0].mxu0
        %3594 = vmatprep.mubr.bf16.mxu0 0
        %3595 = vmatmul.mubr.bf16.gmra.mrb[0].mxu0 %v3529
        %v3596 = vpop.f32.mrb[0].mxu0
        %v3597 = vadd.f32 %v3464, %v3596
        %v3598 = vpop.f32.mrb[0].mxu0
        %v3599 = vpop.f32.mrb[0].mxu0
        %v3600 = vadd.f32 %v3467, %v3599
        %v3601 = vpop.f32.mrb[0].mxu0
        %3602 = vmatprep.mubr.bf16.mxu0 0
        %3603 = vmatmul.mubr.bf16.gmra.mrb[0].mxu0 %v3532
        %v3604 = vpop.f32.mrb[0].mxu0
        %v3605 = vadd.f32 %v3472, %v3604
        %v3606 = vpop.f32.mrb[0].mxu0
        %v3607 = vpop.f32.mrb[0].mxu0
        %v3608 = vadd.f32 %v3475, %v3607
        %v3609 = vpop.f32.mrb[0].mxu0
        %3610 = vmatprep.mubr.bf16.mxu0 0
        %3611 = vmatmul.mubr.bf16.gmra.mrb[0].mxu0 %v3535
        %v3612 = vpop.f32.mrb[0].mxu0
        %v3613 = vadd.f32 %v3480, %v3612
        %v3614 = vpop.f32.mrb[0].mxu0
        %v3615 = vpop.f32.mrb[0].mxu0
        %v3616 = vadd.f32 %v3483, %v3615
        %v3617 = vpop.f32.mrb[0].mxu0
        %3618 = vmatprep.mubr.bf16.mxu0 0
        %3619 = vmatmul.mubr.bf16.gmra.mrb[0].mxu0 %v3538
        %v3620 = vpop.f32.mrb[0].mxu0
        %v3621 = vadd.f32 %v3488, %v3620
        %v3622 = vpop.f32.mrb[0].mxu0
        %v3623 = vpop.f32.mrb[0].mxu0
        %v3624 = vadd.f32 %v3491, %v3623
        %v3625 = vpop.f32.mrb[0].mxu0
        %3626 = vmatprep.mubr.bf16.mxu0 0
        %3627 = vmatmul.mubr.bf16.gmra.mrb[0].mxu0 %v3541
        %v3628 = vpop.f32.mrb[0].mxu0
        %v3629 = vadd.f32 %v3496, %v3628
        %v3630 = vpop.f32.mrb[0].mxu0
        %v3631 = vpop.f32.mrb[0].mxu0
        %v3632 = vadd.f32 %v3499, %v3631
        %v3633 = vpop.f32.mrb[0].mxu0
        %3634 = vmatprep.mubr.bf16.mxu0 0
        %3635 = vmatmul.mubr.bf16.gmra.mrb[0].mxu0 %v3544
        %v3636 = vpop.f32.mrb[0].mxu0
        %v3637 = vadd.f32 %v3504, %v3636
        %v3638 = vpop.f32.mrb[0].mxu0
        %v3639 = vpop.f32.mrb[0].mxu0
        %v3640 = vadd.f32 %v3507, %v3639
        %v3641 = vpop.f32.mrb[0].mxu0
        %3642 = vdwg.mxu0
        %3643 = vrot.lane.b32.xlu0 %v1431, 64
        %v3644 = vpop.permute.xlu0 %3643
        %3645 = vrot.lane.b32.xlu0 %v1439, 64
        %v3646 = vpop.permute.xlu0 %3645
        %v3648 = vsel %vm1455, %v3644, 0
        %v3651 = vsel %vm1455, %v3646, 0
        %3653 = vmatprep.subr.bf16.mxu0 0
        %3654 = vmatpush1.bf16.xpose.msra.mxu0 %v3651
        %3655 = vmatprep.subr.bf16.mxu0 0
        %3656 = vmatpush1.bf16.xpose.msra.mxu0 0
        %3657 = vmatprep.subr.bf16.mxu0 0
        %3658 = vmatpush1.bf16.xpose.msra.mxu0 0
        %3659 = vmatprep.subr.bf16.mxu0 0
        %3660 = vmatpush1.bf16.xpose.msra.mxu0 0
        %3661 = vmatprep.subr.bf16.mxu0 0
        %3662 = vmatpush1.bf16.xpose.msra.mxu0 0
        %3663 = vmatprep.subr.bf16.mxu0 0
        %3664 = vmatpush1.bf16.xpose.msra.mxu0 0
        %3665 = vmatprep.subr.bf16.mxu0 0
        %3666 = vmatpush1.bf16.xpose.msra.mxu0 0
        %3667 = vmatprep.subr.bf16.mxu0 0
        %3668 = vmatpush1.bf16.xpose.msra.mxu0 0
        %3669 = vmatprep.subr.bf16.mxu0 0
        %3670 = vmatpush1.bf16.xpose.msra.mxu0 0
        %3671 = vmatprep.subr.bf16.mxu0 0
        %3672 = vmatpush1.bf16.xpose.msra.mxu0 0
        %3673 = vmatprep.subr.bf16.mxu0 0
        %3674 = vmatpush1.bf16.xpose.msra.mxu0 0
        %3675 = vmatprep.subr.bf16.mxu0 0
        %3676 = vmatpush1.bf16.xpose.msra.mxu0 0
        %3677 = vmatprep.subr.bf16.mxu0 0
        %3678 = vmatpush1.bf16.xpose.msra.mxu0 0
        %3679 = vmatprep.subr.bf16.mxu0 0
        %3680 = vmatpush1.bf16.xpose.msra.mxu0 0
        %3681 = vmatprep.subr.bf16.mxu0 0
        %3682 = vmatpush1.bf16.xpose.msra.mxu0 0
        %3683 = vmatprep.subr.bf16.mxu0 0
        %3684 = vmatpush1.bf16.xpose.msra.mxu0 0
        %3685 = vmatprep.mubr.bf16.mxu0 0
        %3686 = vmatmul.mubr.bf16.gmra.mrb[0].mxu0 %v3648
        %v3687 = vpop.f32.mrb[0].mxu0
        %v3688 = vadd.f32 0.0, %v3687
        %v3689 = vpop.f32.mrb[0].mxu0
        %v3690 = vpop.f32.mrb[0].mxu0
        %v3691 = vadd.f32 0.0, %v3690
        %v3692 = vpop.f32.mrb[0].mxu0
        %3693 = vdwg.mxu0
        %3694 = vrot.lane.b32.xlu0 %v1432, 64
        %v3695 = vpop.permute.xlu0 %3694
        %3696 = vrot.lane.b32.xlu0 %v1440, 64
        %v3697 = vpop.permute.xlu0 %3696
        %v3699 = vsel %vm1455, %v3695, 0
        %v3702 = vsel %vm1455, %v3697, 0
        %3704 = vmatprep.subr.bf16.mxu0 0
        %3705 = vmatpush1.bf16.xpose.msra.mxu0 %v3702
        %3706 = vmatprep.subr.bf16.mxu0 0
        %3707 = vmatpush1.bf16.xpose.msra.mxu0 0
        %3708 = vmatprep.subr.bf16.mxu0 0
        %3709 = vmatpush1.bf16.xpose.msra.mxu0 0
        %3710 = vmatprep.subr.bf16.mxu0 0
        %3711 = vmatpush1.bf16.xpose.msra.mxu0 0
        %3712 = vmatprep.subr.bf16.mxu0 0
        %3713 = vmatpush1.bf16.xpose.msra.mxu0 0
        %3714 = vmatprep.subr.bf16.mxu0 0
        %3715 = vmatpush1.bf16.xpose.msra.mxu0 0
        %3716 = vmatprep.subr.bf16.mxu0 0
        %3717 = vmatpush1.bf16.xpose.msra.mxu0 0
        %3718 = vmatprep.subr.bf16.mxu0 0
        %3719 = vmatpush1.bf16.xpose.msra.mxu0 0
        %3720 = vmatprep.subr.bf16.mxu0 0
        %3721 = vmatpush1.bf16.xpose.msra.mxu0 0
        %3722 = vmatprep.subr.bf16.mxu0 0
        %3723 = vmatpush1.bf16.xpose.msra.mxu0 0
        %3724 = vmatprep.subr.bf16.mxu0 0
        %3725 = vmatpush1.bf16.xpose.msra.mxu0 0
        %3726 = vmatprep.subr.bf16.mxu0 0
        %3727 = vmatpush1.bf16.xpose.msra.mxu0 0
        %3728 = vmatprep.subr.bf16.mxu0 0
        %3729 = vmatpush1.bf16.xpose.msra.mxu0 0
        %3730 = vmatprep.subr.bf16.mxu0 0
        %3731 = vmatpush1.bf16.xpose.msra.mxu0 0
        %3732 = vmatprep.subr.bf16.mxu0 0
        %3733 = vmatpush1.bf16.xpose.msra.mxu0 0
        %3734 = vmatprep.subr.bf16.mxu0 0
        %3735 = vmatpush1.bf16.xpose.msra.mxu0 0
        %3736 = vmatprep.mubr.bf16.mxu0 0
        %3737 = vmatmul.mubr.bf16.gmra.mrb[0].mxu0 %v3699
        %v3738 = vpop.f32.mrb[0].mxu0
        %v3739 = vadd.f32 0.0, %v3738
        %v3740 = vpop.f32.mrb[0].mxu0
        %v3741 = vpop.f32.mrb[0].mxu0
        %v3742 = vadd.f32 0.0, %v3741
        %v3743 = vpop.f32.mrb[0].mxu0
        %3744 = vdwg.mxu0
        %3745 = vrot.lane.b32.xlu0 %v1433, 64
        %v3746 = vpop.permute.xlu0 %3745
        %3747 = vrot.lane.b32.xlu0 %v1441, 64
        %v3748 = vpop.permute.xlu0 %3747
        %v3750 = vsel %vm1455, %v3746, 0
        %v3753 = vsel %vm1455, %v3748, 0
        %3755 = vmatprep.subr.bf16.mxu0 0
        %3756 = vmatpush1.bf16.xpose.msra.mxu0 %v3753
        %3757 = vmatprep.subr.bf16.mxu0 0
        %3758 = vmatpush1.bf16.xpose.msra.mxu0 0
        %3759 = vmatprep.subr.bf16.mxu0 0
        %3760 = vmatpush1.bf16.xpose.msra.mxu0 0
        %3761 = vmatprep.subr.bf16.mxu0 0
        %3762 = vmatpush1.bf16.xpose.msra.mxu0 0
        %3763 = vmatprep.subr.bf16.mxu0 0
        %3764 = vmatpush1.bf16.xpose.msra.mxu0 0
        %3765 = vmatprep.subr.bf16.mxu0 0
        %3766 = vmatpush1.bf16.xpose.msra.mxu0 0
        %3767 = vmatprep.subr.bf16.mxu0 0
        %3768 = vmatpush1.bf16.xpose.msra.mxu0 0
        %3769 = vmatprep.subr.bf16.mxu0 0
        %3770 = vmatpush1.bf16.xpose.msra.mxu0 0
        %3771 = vmatprep.subr.bf16.mxu0 0
        %3772 = vmatpush1.bf16.xpose.msra.mxu0 0
        %3773 = vmatprep.subr.bf16.mxu0 0
        %3774 = vmatpush1.bf16.xpose.msra.mxu0 0
        %3775 = vmatprep.subr.bf16.mxu0 0
        %3776 = vmatpush1.bf16.xpose.msra.mxu0 0
        %3777 = vmatprep.subr.bf16.mxu0 0
        %3778 = vmatpush1.bf16.xpose.msra.mxu0 0
        %3779 = vmatprep.subr.bf16.mxu0 0
        %3780 = vmatpush1.bf16.xpose.msra.mxu0 0
        %3781 = vmatprep.subr.bf16.mxu0 0
        %3782 = vmatpush1.bf16.xpose.msra.mxu0 0
        %3783 = vmatprep.subr.bf16.mxu0 0
        %3784 = vmatpush1.bf16.xpose.msra.mxu0 0
        %3785 = vmatprep.subr.bf16.mxu0 0
        %3786 = vmatpush1.bf16.xpose.msra.mxu0 0
        %3787 = vmatprep.mubr.bf16.mxu0 0
        %3788 = vmatmul.mubr.bf16.gmra.mrb[0].mxu0 %v3750
        %v3789 = vpop.f32.mrb[0].mxu0
        %v3790 = vadd.f32 0.0, %v3789
        %v3791 = vpop.f32.mrb[0].mxu0
        %v3792 = vpop.f32.mrb[0].mxu0
        %v3793 = vadd.f32 0.0, %v3792
        %v3794 = vpop.f32.mrb[0].mxu0
        %3795 = vdwg.mxu0
        %3796 = vrot.lane.b32.xlu0 %v1434, 64
        %v3797 = vpop.permute.xlu0 %3796
        %3798 = vrot.lane.b32.xlu0 %v1442, 64
        %v3799 = vpop.permute.xlu0 %3798
        %v3801 = vsel %vm1455, %v3797, 0
        %v3804 = vsel %vm1455, %v3799, 0
        %3806 = vmatprep.subr.bf16.mxu0 0
        %3807 = vmatpush1.bf16.xpose.msra.mxu0 %v3804
        %3808 = vmatprep.subr.bf16.mxu0 0
        %3809 = vmatpush1.bf16.xpose.msra.mxu0 0
        %3810 = vmatprep.subr.bf16.mxu0 0
        %3811 = vmatpush1.bf16.xpose.msra.mxu0 0
        %3812 = vmatprep.subr.bf16.mxu0 0
        %3813 = vmatpush1.bf16.xpose.msra.mxu0 0
        %3814 = vmatprep.subr.bf16.mxu0 0
        %3815 = vmatpush1.bf16.xpose.msra.mxu0 0
        %3816 = vmatprep.subr.bf16.mxu0 0
        %3817 = vmatpush1.bf16.xpose.msra.mxu0 0
        %3818 = vmatprep.subr.bf16.mxu0 0
        %3819 = vmatpush1.bf16.xpose.msra.mxu0 0
        %3820 = vmatprep.subr.bf16.mxu0 0
        %3821 = vmatpush1.bf16.xpose.msra.mxu0 0
        %3822 = vmatprep.subr.bf16.mxu0 0
        %3823 = vmatpush1.bf16.xpose.msra.mxu0 0
        %3824 = vmatprep.subr.bf16.mxu0 0
        %3825 = vmatpush1.bf16.xpose.msra.mxu0 0
        %3826 = vmatprep.subr.bf16.mxu0 0
        %3827 = vmatpush1.bf16.xpose.msra.mxu0 0
        %3828 = vmatprep.subr.bf16.mxu0 0
        %3829 = vmatpush1.bf16.xpose.msra.mxu0 0
        %3830 = vmatprep.subr.bf16.mxu0 0
        %3831 = vmatpush1.bf16.xpose.msra.mxu0 0
        %3832 = vmatprep.subr.bf16.mxu0 0
        %3833 = vmatpush1.bf16.xpose.msra.mxu0 0
        %3834 = vmatprep.subr.bf16.mxu0 0
        %3835 = vmatpush1.bf16.xpose.msra.mxu0 0
        %3836 = vmatprep.subr.bf16.mxu0 0
        %3837 = vmatpush1.bf16.xpose.msra.mxu0 0
        %3838 = vmatprep.mubr.bf16.mxu0 0
        %3839 = vmatmul.mubr.bf16.gmra.mrb[0].mxu0 %v3801
        %v3840 = vpop.f32.mrb[0].mxu0
        %v3841 = vadd.f32 0.0, %v3840
        %v3842 = vpop.f32.mrb[0].mxu0
        %v3843 = vpop.f32.mrb[0].mxu0
        %v3844 = vadd.f32 0.0, %v3843
        %v3845 = vpop.f32.mrb[0].mxu0
        %3846 = vdwg.mxu0
        %3847 = vrot.lane.b32.xlu0 %v1435, 64
        %v3848 = vpop.permute.xlu0 %3847
        %3849 = vrot.lane.b32.xlu0 %v1443, 64
        %v3850 = vpop.permute.xlu0 %3849
        %v3852 = vsel %vm1455, %v3848, 0
        %v3855 = vsel %vm1455, %v3850, 0
        %3857 = vmatprep.subr.bf16.mxu0 0
        %3858 = vmatpush1.bf16.xpose.msra.mxu0 %v3855
        %3859 = vmatprep.subr.bf16.mxu0 0
        %3860 = vmatpush1.bf16.xpose.msra.mxu0 0
        %3861 = vmatprep.subr.bf16.mxu0 0
        %3862 = vmatpush1.bf16.xpose.msra.mxu0 0
        %3863 = vmatprep.subr.bf16.mxu0 0
        %3864 = vmatpush1.bf16.xpose.msra.mxu0 0
        %3865 = vmatprep.subr.bf16.mxu0 0
        %3866 = vmatpush1.bf16.xpose.msra.mxu0 0
        %3867 = vmatprep.subr.bf16.mxu0 0
        %3868 = vmatpush1.bf16.xpose.msra.mxu0 0
        %3869 = vmatprep.subr.bf16.mxu0 0
        %3870 = vmatpush1.bf16.xpose.msra.mxu0 0
        %3871 = vmatprep.subr.bf16.mxu0 0
        %3872 = vmatpush1.bf16.xpose.msra.mxu0 0
        %3873 = vmatprep.subr.bf16.mxu0 0
        %3874 = vmatpush1.bf16.xpose.msra.mxu0 0
        %3875 = vmatprep.subr.bf16.mxu0 0
        %3876 = vmatpush1.bf16.xpose.msra.mxu0 0
        %3877 = vmatprep.subr.bf16.mxu0 0
        %3878 = vmatpush1.bf16.xpose.msra.mxu0 0
        %3879 = vmatprep.subr.bf16.mxu0 0
        %3880 = vmatpush1.bf16.xpose.msra.mxu0 0
        %3881 = vmatprep.subr.bf16.mxu0 0
        %3882 = vmatpush1.bf16.xpose.msra.mxu0 0
        %3883 = vmatprep.subr.bf16.mxu0 0
        %3884 = vmatpush1.bf16.xpose.msra.mxu0 0
        %3885 = vmatprep.subr.bf16.mxu0 0
        %3886 = vmatpush1.bf16.xpose.msra.mxu0 0
        %3887 = vmatprep.subr.bf16.mxu0 0
        %3888 = vmatpush1.bf16.xpose.msra.mxu0 0
        %3889 = vmatprep.mubr.bf16.mxu0 0
        %3890 = vmatmul.mubr.bf16.gmra.mrb[0].mxu0 %v3852
        %v3891 = vpop.f32.mrb[0].mxu0
        %v3892 = vadd.f32 0.0, %v3891
        %v3893 = vpop.f32.mrb[0].mxu0
        %v3894 = vpop.f32.mrb[0].mxu0
        %v3895 = vadd.f32 0.0, %v3894
        %v3896 = vpop.f32.mrb[0].mxu0
        %3897 = vdwg.mxu0
        %3898 = vrot.lane.b32.xlu0 %v1436, 64
        %v3899 = vpop.permute.xlu0 %3898
        %3900 = vrot.lane.b32.xlu0 %v1444, 64
        %v3901 = vpop.permute.xlu0 %3900
        %v3903 = vsel %vm1455, %v3899, 0
        %v3906 = vsel %vm1455, %v3901, 0
        %3908 = vmatprep.subr.bf16.mxu0 0
        %3909 = vmatpush1.bf16.xpose.msra.mxu0 %v3906
        %3910 = vmatprep.subr.bf16.mxu0 0
        %3911 = vmatpush1.bf16.xpose.msra.mxu0 0
        %3912 = vmatprep.subr.bf16.mxu0 0
        %3913 = vmatpush1.bf16.xpose.msra.mxu0 0
        %3914 = vmatprep.subr.bf16.mxu0 0
        %3915 = vmatpush1.bf16.xpose.msra.mxu0 0
        %3916 = vmatprep.subr.bf16.mxu0 0
        %3917 = vmatpush1.bf16.xpose.msra.mxu0 0
        %3918 = vmatprep.subr.bf16.mxu0 0
        %3919 = vmatpush1.bf16.xpose.msra.mxu0 0
        %3920 = vmatprep.subr.bf16.mxu0 0
        %3921 = vmatpush1.bf16.xpose.msra.mxu0 0
        %3922 = vmatprep.subr.bf16.mxu0 0
        %3923 = vmatpush1.bf16.xpose.msra.mxu0 0
        %3924 = vmatprep.subr.bf16.mxu0 0
        %3925 = vmatpush1.bf16.xpose.msra.mxu0 0
        %3926 = vmatprep.subr.bf16.mxu0 0
        %3927 = vmatpush1.bf16.xpose.msra.mxu0 0
        %3928 = vmatprep.subr.bf16.mxu0 0
        %3929 = vmatpush1.bf16.xpose.msra.mxu0 0
        %3930 = vmatprep.subr.bf16.mxu0 0
        %3931 = vmatpush1.bf16.xpose.msra.mxu0 0
        %3932 = vmatprep.subr.bf16.mxu0 0
        %3933 = vmatpush1.bf16.xpose.msra.mxu0 0
        %3934 = vmatprep.subr.bf16.mxu0 0
        %3935 = vmatpush1.bf16.xpose.msra.mxu0 0
        %3936 = vmatprep.subr.bf16.mxu0 0
        %3937 = vmatpush1.bf16.xpose.msra.mxu0 0
        %3938 = vmatprep.subr.bf16.mxu0 0
        %3939 = vmatpush1.bf16.xpose.msra.mxu0 0
        %3940 = vmatprep.mubr.bf16.mxu0 0
        %3941 = vmatmul.mubr.bf16.gmra.mrb[0].mxu0 %v3903
        %v3942 = vpop.f32.mrb[0].mxu0
        %v3943 = vadd.f32 0.0, %v3942
        %v3944 = vpop.f32.mrb[0].mxu0
        %v3945 = vpop.f32.mrb[0].mxu0
        %v3946 = vadd.f32 0.0, %v3945
        %v3947 = vpop.f32.mrb[0].mxu0
        %3948 = vdwg.mxu0
        %3949 = vrot.lane.b32.xlu0 %v1437, 64
        %v3950 = vpop.permute.xlu0 %3949
        %3951 = vrot.lane.b32.xlu0 %v1445, 64
        %v3952 = vpop.permute.xlu0 %3951
        %v3954 = vsel %vm1455, %v3950, 0
        %v3957 = vsel %vm1455, %v3952, 0
        %3959 = vmatprep.subr.bf16.mxu0 0
        %3960 = vmatpush1.bf16.xpose.msra.mxu0 %v3957
        %3961 = vmatprep.subr.bf16.mxu0 0
        %3962 = vmatpush1.bf16.xpose.msra.mxu0 0
        %3963 = vmatprep.subr.bf16.mxu0 0
        %3964 = vmatpush1.bf16.xpose.msra.mxu0 0
        %3965 = vmatprep.subr.bf16.mxu0 0
        %3966 = vmatpush1.bf16.xpose.msra.mxu0 0
        %3967 = vmatprep.subr.bf16.mxu0 0
        %3968 = vmatpush1.bf16.xpose.msra.mxu0 0
        %3969 = vmatprep.subr.bf16.mxu0 0
        %3970 = vmatpush1.bf16.xpose.msra.mxu0 0
        %3971 = vmatprep.subr.bf16.mxu0 0
        %3972 = vmatpush1.bf16.xpose.msra.mxu0 0
        %3973 = vmatprep.subr.bf16.mxu0 0
        %3974 = vmatpush1.bf16.xpose.msra.mxu0 0
        %3975 = vmatprep.subr.bf16.mxu0 0
        %3976 = vmatpush1.bf16.xpose.msra.mxu0 0
        %3977 = vmatprep.subr.bf16.mxu0 0
        %3978 = vmatpush1.bf16.xpose.msra.mxu0 0
        %3979 = vmatprep.subr.bf16.mxu0 0
        %3980 = vmatpush1.bf16.xpose.msra.mxu0 0
        %3981 = vmatprep.subr.bf16.mxu0 0
        %3982 = vmatpush1.bf16.xpose.msra.mxu0 0
        %3983 = vmatprep.subr.bf16.mxu0 0
        %3984 = vmatpush1.bf16.xpose.msra.mxu0 0
        %3985 = vmatprep.subr.bf16.mxu0 0
        %3986 = vmatpush1.bf16.xpose.msra.mxu0 0
        %3987 = vmatprep.subr.bf16.mxu0 0
        %3988 = vmatpush1.bf16.xpose.msra.mxu0 0
        %3989 = vmatprep.subr.bf16.mxu0 0
        %3990 = vmatpush1.bf16.xpose.msra.mxu0 0
        %3991 = vmatprep.mubr.bf16.mxu0 0
        %3992 = vmatmul.mubr.bf16.gmra.mrb[0].mxu0 %v3954
        %v3993 = vpop.f32.mrb[0].mxu0
        %v3994 = vadd.f32 0.0, %v3993
        %v3995 = vpop.f32.mrb[0].mxu0
        %v3996 = vpop.f32.mrb[0].mxu0
        %v3997 = vadd.f32 0.0, %v3996
        %v3998 = vpop.f32.mrb[0].mxu0
        %3999 = vdwg.mxu0
        %4000 = vrot.lane.b32.xlu0 %v1438, 64
        %v4001 = vpop.permute.xlu0 %4000
        %4002 = vrot.lane.b32.xlu0 %v1446, 64
        %v4003 = vpop.permute.xlu0 %4002
        %v4005 = vsel %vm1455, %v4001, 0
        %v4008 = vsel %vm1455, %v4003, 0
        %4010 = vmatprep.subr.bf16.mxu0 0
        %4011 = vmatpush1.bf16.xpose.msra.mxu0 %v4008
        %4012 = vmatprep.subr.bf16.mxu0 0
        %4013 = vmatpush1.bf16.xpose.msra.mxu0 0
        %4014 = vmatprep.subr.bf16.mxu0 0
        %4015 = vmatpush1.bf16.xpose.msra.mxu0 0
        %4016 = vmatprep.subr.bf16.mxu0 0
        %4017 = vmatpush1.bf16.xpose.msra.mxu0 0
        %4018 = vmatprep.subr.bf16.mxu0 0
        %4019 = vmatpush1.bf16.xpose.msra.mxu0 0
        %4020 = vmatprep.subr.bf16.mxu0 0
        %4021 = vmatpush1.bf16.xpose.msra.mxu0 0
        %4022 = vmatprep.subr.bf16.mxu0 0
        %4023 = vmatpush1.bf16.xpose.msra.mxu0 0
        %4024 = vmatprep.subr.bf16.mxu0 0
        %4025 = vmatpush1.bf16.xpose.msra.mxu0 0
        %4026 = vmatprep.subr.bf16.mxu0 0
        %4027 = vmatpush1.bf16.xpose.msra.mxu0 0
        %4028 = vmatprep.subr.bf16.mxu0 0
        %4029 = vmatpush1.bf16.xpose.msra.mxu0 0
        %4030 = vmatprep.subr.bf16.mxu0 0
        %4031 = vmatpush1.bf16.xpose.msra.mxu0 0
        %4032 = vmatprep.subr.bf16.mxu0 0
        %4033 = vmatpush1.bf16.xpose.msra.mxu0 0
        %4034 = vmatprep.subr.bf16.mxu0 0
        %4035 = vmatpush1.bf16.xpose.msra.mxu0 0
        %4036 = vmatprep.subr.bf16.mxu0 0
        %4037 = vmatpush1.bf16.xpose.msra.mxu0 0
        %4038 = vmatprep.subr.bf16.mxu0 0
        %4039 = vmatpush1.bf16.xpose.msra.mxu0 0
        %4040 = vmatprep.subr.bf16.mxu0 0
        %4041 = vmatpush1.bf16.xpose.msra.mxu0 0
        %4042 = vmatprep.mubr.bf16.mxu0 0
        %4043 = vmatmul.mubr.bf16.gmra.mrb[0].mxu0 %v4005
        %v4044 = vpop.f32.mrb[0].mxu0
        %v4045 = vadd.f32 0.0, %v4044
        %v4046 = vpop.f32.mrb[0].mxu0
        %v4047 = vpop.f32.mrb[0].mxu0
        %v4048 = vadd.f32 0.0, %v4047
        %v4049 = vpop.f32.mrb[0].mxu0
        %4050 = vdwg.mxu0
        %v4051 = vsel %vm1832, %v3688, -inf
        %4052 = vmax.xlane.f32.xlu0 %v4051
        %v4053 = vpop.xlane.xlu0 %4052
        %v4054 = vsel %vm1832, %v3691, -inf
        %4055 = vmax.xlane.f32.xlu0 %v4054
        %v4056 = vpop.xlane.xlu0 %4055
        %v4057 = vsel %vm1832, %v3739, -inf
        %4058 = vmax.xlane.f32.xlu0 %v4057
        %v4059 = vpop.xlane.xlu0 %4058
        %v4060 = vsel %vm1832, %v3742, -inf
        %4061 = vmax.xlane.f32.xlu0 %v4060
        %v4062 = vpop.xlane.xlu0 %4061
        %v4063 = vsel %vm1832, %v3790, -inf
        %4064 = vmax.xlane.f32.xlu0 %v4063
        %v4065 = vpop.xlane.xlu0 %4064
        %v4066 = vsel %vm1832, %v3793, -inf
        %4067 = vmax.xlane.f32.xlu0 %v4066
        %v4068 = vpop.xlane.xlu0 %4067
        %v4069 = vsel %vm1832, %v3841, -inf
        %4070 = vmax.xlane.f32.xlu0 %v4069
        %v4071 = vpop.xlane.xlu0 %4070
        %v4072 = vsel %vm1832, %v3844, -inf
        %4073 = vmax.xlane.f32.xlu0 %v4072
        %v4074 = vpop.xlane.xlu0 %4073
        %v4075 = vsel %vm1832, %v3892, -inf
        %4076 = vmax.xlane.f32.xlu0 %v4075
        %v4077 = vpop.xlane.xlu0 %4076
        %v4078 = vsel %vm1832, %v3895, -inf
        %4079 = vmax.xlane.f32.xlu0 %v4078
        %v4080 = vpop.xlane.xlu0 %4079
        %v4081 = vsel %vm1832, %v3943, -inf
        %4082 = vmax.xlane.f32.xlu0 %v4081
        %v4083 = vpop.xlane.xlu0 %4082
        %v4084 = vsel %vm1832, %v3946, -inf
        %4085 = vmax.xlane.f32.xlu0 %v4084
        %v4086 = vpop.xlane.xlu0 %4085
        %v4087 = vsel %vm1832, %v3994, -inf
        %4088 = vmax.xlane.f32.xlu0 %v4087
        %v4089 = vpop.xlane.xlu0 %4088
        %v4090 = vsel %vm1832, %v3997, -inf
        %4091 = vmax.xlane.f32.xlu0 %v4090
        %v4092 = vpop.xlane.xlu0 %4091
        %v4093 = vsel %vm1832, %v4045, -inf
        %4094 = vmax.xlane.f32.xlu0 %v4093
        %v4095 = vpop.xlane.xlu0 %4094
        %v4096 = vsel %vm1832, %v4048, -inf
        %4097 = vmax.xlane.f32.xlu0 %v4096
        %v4098 = vpop.xlane.xlu0 %4097
        %v4099 = vsub.f32 %v3688, %v4053
        %v4100 = vsub.f32 %v3691, %v4056
        %v4101 = vsub.f32 %v3739, %v4059
        %v4102 = vsub.f32 %v3742, %v4062
        %v4103 = vsub.f32 %v3790, %v4065
        %v4104 = vsub.f32 %v3793, %v4068
        %v4105 = vsub.f32 %v3841, %v4071
        %v4106 = vsub.f32 %v3844, %v4074
        %v4107 = vsub.f32 %v3892, %v4077
        %v4108 = vsub.f32 %v3895, %v4080
        %v4109 = vsub.f32 %v3943, %v4083
        %v4110 = vsub.f32 %v3946, %v4086
        %v4111 = vsub.f32 %v3994, %v4089
        %v4112 = vsub.f32 %v3997, %v4092
        %v4113 = vsub.f32 %v4045, %v4095
        %v4114 = vsub.f32 %v4048, %v4098
        %v4115 = vmul.f32 %v4099, 1.442695
        %v4116 = vpow.pop %v4115
        %v4117 = vmul.f32 %v4100, 1.442695
        %v4118 = vpow.pop %v4117
        %v4119 = vmul.f32 %v4101, 1.442695
        %v4120 = vpow.pop %v4119
        %v4121 = vmul.f32 %v4102, 1.442695
        %v4122 = vpow.pop %v4121
        %v4123 = vmul.f32 %v4103, 1.442695
        %v4124 = vpow.pop %v4123
        %v4125 = vmul.f32 %v4104, 1.442695
        %v4126 = vpow.pop %v4125
        %v4127 = vmul.f32 %v4105, 1.442695
        %v4128 = vpow.pop %v4127
        %v4129 = vmul.f32 %v4106, 1.442695
        %v4130 = vpow.pop %v4129
        %v4131 = vmul.f32 %v4107, 1.442695
        %v4132 = vpow.pop %v4131
        %v4133 = vmul.f32 %v4108, 1.442695
        %v4134 = vpow.pop %v4133
        %v4135 = vmul.f32 %v4109, 1.442695
        %v4136 = vpow.pop %v4135
        %v4137 = vmul.f32 %v4110, 1.442695
        %v4138 = vpow.pop %v4137
        %v4139 = vmul.f32 %v4111, 1.442695
        %v4140 = vpow.pop %v4139
        %v4141 = vmul.f32 %v4112, 1.442695
        %v4142 = vpow.pop %v4141
        %v4143 = vmul.f32 %v4113, 1.442695
        %v4144 = vpow.pop %v4143
        %v4145 = vmul.f32 %v4114, 1.442695
        %v4146 = vpow.pop %v4145
        %v4147 = vsel %vm1832, %v4116, 0.0
        %4148 = vadd.xlane.f32.xlu0 %v4147
        %v4149 = vpop.xlane.xlu0 %4148
        %v4150 = vsel %vm1832, %v4118, 0.0
        %4151 = vadd.xlane.f32.xlu0 %v4150
        %v4152 = vpop.xlane.xlu0 %4151
        %v4153 = vsel %vm1832, %v4120, 0.0
        %4154 = vadd.xlane.f32.xlu0 %v4153
        %v4155 = vpop.xlane.xlu0 %4154
        %v4156 = vsel %vm1832, %v4122, 0.0
        %4157 = vadd.xlane.f32.xlu0 %v4156
        %v4158 = vpop.xlane.xlu0 %4157
        %v4159 = vsel %vm1832, %v4124, 0.0
        %4160 = vadd.xlane.f32.xlu0 %v4159
        %v4161 = vpop.xlane.xlu0 %4160
        %v4162 = vsel %vm1832, %v4126, 0.0
        %4163 = vadd.xlane.f32.xlu0 %v4162
        %v4164 = vpop.xlane.xlu0 %4163
        %v4165 = vsel %vm1832, %v4128, 0.0
        %4166 = vadd.xlane.f32.xlu0 %v4165
        %v4167 = vpop.xlane.xlu0 %4166
        %v4168 = vsel %vm1832, %v4130, 0.0
        %4169 = vadd.xlane.f32.xlu0 %v4168
        %v4170 = vpop.xlane.xlu0 %4169
        %v4171 = vsel %vm1832, %v4132, 0.0
        %4172 = vadd.xlane.f32.xlu0 %v4171
        %v4173 = vpop.xlane.xlu0 %4172
        %v4174 = vsel %vm1832, %v4134, 0.0
        %4175 = vadd.xlane.f32.xlu0 %v4174
        %v4176 = vpop.xlane.xlu0 %4175
        %v4177 = vsel %vm1832, %v4136, 0.0
        %4178 = vadd.xlane.f32.xlu0 %v4177
        %v4179 = vpop.xlane.xlu0 %4178
        %v4180 = vsel %vm1832, %v4138, 0.0
        %4181 = vadd.xlane.f32.xlu0 %v4180
        %v4182 = vpop.xlane.xlu0 %4181
        %v4183 = vsel %vm1832, %v4140, 0.0
        %4184 = vadd.xlane.f32.xlu0 %v4183
        %v4185 = vpop.xlane.xlu0 %4184
        %v4186 = vsel %vm1832, %v4142, 0.0
        %4187 = vadd.xlane.f32.xlu0 %v4186
        %v4188 = vpop.xlane.xlu0 %4187
        %v4189 = vsel %vm1832, %v4144, 0.0
        %4190 = vadd.xlane.f32.xlu0 %v4189
        %v4191 = vpop.xlane.xlu0 %4190
        %v4192 = vsel %vm1832, %v4146, 0.0
        %4193 = vadd.xlane.f32.xlu0 %v4192
        %v4194 = vpop.xlane.xlu0 %4193
        %v4195 = vrcp.pop %v4149
        %v4196 = vrcp.pop %v4152
        %v4197 = vrcp.pop %v4155
        %v4198 = vrcp.pop %v4158
        %v4199 = vrcp.pop %v4161
        %v4200 = vrcp.pop %v4164
        %v4201 = vrcp.pop %v4167
        %v4202 = vrcp.pop %v4170
        %v4203 = vrcp.pop %v4173
        %v4204 = vrcp.pop %v4176
        %v4205 = vrcp.pop %v4179
        %v4206 = vrcp.pop %v4182
        %v4207 = vrcp.pop %v4185
        %v4208 = vrcp.pop %v4188
        %v4209 = vrcp.pop %v4191
        %v4210 = vrcp.pop %v4194
        %v4211 = vmul.f32 %v4116, %v4195
        %v4212 = vmul.f32 %v4118, %v4196
        %v4213 = vmul.f32 %v4120, %v4197
        %v4214 = vmul.f32 %v4122, %v4198
        %v4215 = vmul.f32 %v4124, %v4199
        %v4216 = vmul.f32 %v4126, %v4200
        %v4217 = vmul.f32 %v4128, %v4201
        %v4218 = vmul.f32 %v4130, %v4202
        %v4219 = vmul.f32 %v4132, %v4203
        %v4220 = vmul.f32 %v4134, %v4204
        %v4221 = vmul.f32 %v4136, %v4205
        %v4222 = vmul.f32 %v4138, %v4206
        %v4223 = vmul.f32 %v4140, %v4207
        %v4224 = vmul.f32 %v4142, %v4208
        %v4225 = vmul.f32 %v4144, %v4209
        %v4226 = vmul.f32 %v4146, %v4210
        %v4227 = vpack.c.bf16 %v4212, %v4211
        %v4228 = vpack.c.bf16 %v4214, %v4213
        %v4229 = vpack.c.bf16 %v4216, %v4215
        %v4230 = vpack.c.bf16 %v4218, %v4217
        %v4231 = vpack.c.bf16 %v4220, %v4219
        %v4232 = vpack.c.bf16 %v4222, %v4221
        %v4233 = vpack.c.bf16 %v4224, %v4223
        %v4234 = vpack.c.bf16 %v4226, %v4225
        %4235 = vrot.lane.b32.xlu0 %v1447, 64
        %v4236 = vpop.permute.xlu0 %4235
        %v4239 = vsel %vm1832, %v4227, 0
        %4241 = vmatprep.subr.bf16.mxu0 0
        %4242 = vmatpush1.bf16.msra.mxu0 %v4236
        %4243 = vmatprep.subr.bf16.mxu0 0
        %4244 = vmatpush1.bf16.msra.mxu0 0
        %4245 = vmatprep.subr.bf16.mxu0 0
        %4246 = vmatpush1.bf16.msra.mxu0 0
        %4247 = vmatprep.subr.bf16.mxu0 0
        %4248 = vmatpush1.bf16.msra.mxu0 0
        %4249 = vmatprep.subr.bf16.mxu0 0
        %4250 = vmatpush1.bf16.msra.mxu0 0
        %4251 = vmatprep.subr.bf16.mxu0 0
        %4252 = vmatpush1.bf16.msra.mxu0 0
        %4253 = vmatprep.subr.bf16.mxu0 0
        %4254 = vmatpush1.bf16.msra.mxu0 0
        %4255 = vmatprep.subr.bf16.mxu0 0
        %4256 = vmatpush1.bf16.msra.mxu0 0
        %4257 = vmatprep.subr.bf16.mxu0 0
        %4258 = vmatpush1.bf16.msra.mxu0 0
        %4259 = vmatprep.subr.bf16.mxu0 0
        %4260 = vmatpush1.bf16.msra.mxu0 0
        %4261 = vmatprep.subr.bf16.mxu0 0
        %4262 = vmatpush1.bf16.msra.mxu0 0
        %4263 = vmatprep.subr.bf16.mxu0 0
        %4264 = vmatpush1.bf16.msra.mxu0 0
        %4265 = vmatprep.subr.bf16.mxu0 0
        %4266 = vmatpush1.bf16.msra.mxu0 0
        %4267 = vmatprep.subr.bf16.mxu0 0
        %4268 = vmatpush1.bf16.msra.mxu0 0
        %4269 = vmatprep.subr.bf16.mxu0 0
        %4270 = vmatpush1.bf16.msra.mxu0 0
        %4271 = vmatprep.subr.bf16.mxu0 0
        %4272 = vmatpush1.bf16.msra.mxu0 0
        %4273 = vmatprep.mubr.bf16.mxu0 0
        %4274 = vmatmul.mubr.bf16.gmra.mrb[0].mxu0 %v4239
        %v4275 = vpop.f32.mrb[0].mxu0
        %v4276 = vadd.f32 0.0, %v4275
        %v4277 = vpop.f32.mrb[0].mxu0
        %v4278 = vpop.f32.mrb[0].mxu0
        %v4279 = vadd.f32 0.0, %v4278
        %v4280 = vpop.f32.mrb[0].mxu0
        %4281 = vdwg.mxu0
        %4282 = vrot.lane.b32.xlu0 %v1448, 64
        %v4283 = vpop.permute.xlu0 %4282
        %v4286 = vsel %vm1832, %v4228, 0
        %4288 = vmatprep.subr.bf16.mxu0 0
        %4289 = vmatpush1.bf16.msra.mxu0 %v4283
        %4290 = vmatprep.subr.bf16.mxu0 0
        %4291 = vmatpush1.bf16.msra.mxu0 0
        %4292 = vmatprep.subr.bf16.mxu0 0
        %4293 = vmatpush1.bf16.msra.mxu0 0
        %4294 = vmatprep.subr.bf16.mxu0 0
        %4295 = vmatpush1.bf16.msra.mxu0 0
        %4296 = vmatprep.subr.bf16.mxu0 0
        %4297 = vmatpush1.bf16.msra.mxu0 0
        %4298 = vmatprep.subr.bf16.mxu0 0
        %4299 = vmatpush1.bf16.msra.mxu0 0
        %4300 = vmatprep.subr.bf16.mxu0 0
        %4301 = vmatpush1.bf16.msra.mxu0 0
        %4302 = vmatprep.subr.bf16.mxu0 0
        %4303 = vmatpush1.bf16.msra.mxu0 0
        %4304 = vmatprep.subr.bf16.mxu0 0
        %4305 = vmatpush1.bf16.msra.mxu0 0
        %4306 = vmatprep.subr.bf16.mxu0 0
        %4307 = vmatpush1.bf16.msra.mxu0 0
        %4308 = vmatprep.subr.bf16.mxu0 0
        %4309 = vmatpush1.bf16.msra.mxu0 0
        %4310 = vmatprep.subr.bf16.mxu0 0
        %4311 = vmatpush1.bf16.msra.mxu0 0
        %4312 = vmatprep.subr.bf16.mxu0 0
        %4313 = vmatpush1.bf16.msra.mxu0 0
        %4314 = vmatprep.subr.bf16.mxu0 0
        %4315 = vmatpush1.bf16.msra.mxu0 0
        %4316 = vmatprep.subr.bf16.mxu0 0
        %4317 = vmatpush1.bf16.msra.mxu0 0
        %4318 = vmatprep.subr.bf16.mxu0 0
        %4319 = vmatpush1.bf16.msra.mxu0 0
        %4320 = vmatprep.mubr.bf16.mxu0 0
        %4321 = vmatmul.mubr.bf16.gmra.mrb[0].mxu0 %v4286
        %v4322 = vpop.f32.mrb[0].mxu0
        %v4323 = vadd.f32 0.0, %v4322
        %v4324 = vpop.f32.mrb[0].mxu0
        %v4325 = vpop.f32.mrb[0].mxu0
        %v4326 = vadd.f32 0.0, %v4325
        %v4327 = vpop.f32.mrb[0].mxu0
        %4328 = vdwg.mxu0
        %4329 = vrot.lane.b32.xlu0 %v1449, 64
        %v4330 = vpop.permute.xlu0 %4329
        %v4333 = vsel %vm1832, %v4229, 0
        %4335 = vmatprep.subr.bf16.mxu0 0
        %4336 = vmatpush1.bf16.msra.mxu0 %v4330
        %4337 = vmatprep.subr.bf16.mxu0 0
        %4338 = vmatpush1.bf16.msra.mxu0 0
        %4339 = vmatprep.subr.bf16.mxu0 0
        %4340 = vmatpush1.bf16.msra.mxu0 0
        %4341 = vmatprep.subr.bf16.mxu0 0
        %4342 = vmatpush1.bf16.msra.mxu0 0
        %4343 = vmatprep.subr.bf16.mxu0 0
        %4344 = vmatpush1.bf16.msra.mxu0 0
        %4345 = vmatprep.subr.bf16.mxu0 0
        %4346 = vmatpush1.bf16.msra.mxu0 0
        %4347 = vmatprep.subr.bf16.mxu0 0
        %4348 = vmatpush1.bf16.msra.mxu0 0
        %4349 = vmatprep.subr.bf16.mxu0 0
        %4350 = vmatpush1.bf16.msra.mxu0 0
        %4351 = vmatprep.subr.bf16.mxu0 0
        %4352 = vmatpush1.bf16.msra.mxu0 0
        %4353 = vmatprep.subr.bf16.mxu0 0
        %4354 = vmatpush1.bf16.msra.mxu0 0
        %4355 = vmatprep.subr.bf16.mxu0 0
        %4356 = vmatpush1.bf16.msra.mxu0 0
        %4357 = vmatprep.subr.bf16.mxu0 0
        %4358 = vmatpush1.bf16.msra.mxu0 0
        %4359 = vmatprep.subr.bf16.mxu0 0
        %4360 = vmatpush1.bf16.msra.mxu0 0
        %4361 = vmatprep.subr.bf16.mxu0 0
        %4362 = vmatpush1.bf16.msra.mxu0 0
        %4363 = vmatprep.subr.bf16.mxu0 0
        %4364 = vmatpush1.bf16.msra.mxu0 0
        %4365 = vmatprep.subr.bf16.mxu0 0
        %4366 = vmatpush1.bf16.msra.mxu0 0
        %4367 = vmatprep.mubr.bf16.mxu0 0
        %4368 = vmatmul.mubr.bf16.gmra.mrb[0].mxu0 %v4333
        %v4369 = vpop.f32.mrb[0].mxu0
        %v4370 = vadd.f32 0.0, %v4369
        %v4371 = vpop.f32.mrb[0].mxu0
        %v4372 = vpop.f32.mrb[0].mxu0
        %v4373 = vadd.f32 0.0, %v4372
        %v4374 = vpop.f32.mrb[0].mxu0
        %4375 = vdwg.mxu0
        %4376 = vrot.lane.b32.xlu0 %v1450, 64
        %v4377 = vpop.permute.xlu0 %4376
        %v4380 = vsel %vm1832, %v4230, 0
        %4382 = vmatprep.subr.bf16.mxu0 0
        %4383 = vmatpush1.bf16.msra.mxu0 %v4377
        %4384 = vmatprep.subr.bf16.mxu0 0
        %4385 = vmatpush1.bf16.msra.mxu0 0
        %4386 = vmatprep.subr.bf16.mxu0 0
        %4387 = vmatpush1.bf16.msra.mxu0 0
        %4388 = vmatprep.subr.bf16.mxu0 0
        %4389 = vmatpush1.bf16.msra.mxu0 0
        %4390 = vmatprep.subr.bf16.mxu0 0
        %4391 = vmatpush1.bf16.msra.mxu0 0
        %4392 = vmatprep.subr.bf16.mxu0 0
        %4393 = vmatpush1.bf16.msra.mxu0 0
        %4394 = vmatprep.subr.bf16.mxu0 0
        %4395 = vmatpush1.bf16.msra.mxu0 0
        %4396 = vmatprep.subr.bf16.mxu0 0
        %4397 = vmatpush1.bf16.msra.mxu0 0
        %4398 = vmatprep.subr.bf16.mxu0 0
        %4399 = vmatpush1.bf16.msra.mxu0 0
        %4400 = vmatprep.subr.bf16.mxu0 0
        %4401 = vmatpush1.bf16.msra.mxu0 0
        %4402 = vmatprep.subr.bf16.mxu0 0
        %4403 = vmatpush1.bf16.msra.mxu0 0
        %4404 = vmatprep.subr.bf16.mxu0 0
        %4405 = vmatpush1.bf16.msra.mxu0 0
        %4406 = vmatprep.subr.bf16.mxu0 0
        %4407 = vmatpush1.bf16.msra.mxu0 0
        %4408 = vmatprep.subr.bf16.mxu0 0
        %4409 = vmatpush1.bf16.msra.mxu0 0
        %4410 = vmatprep.subr.bf16.mxu0 0
        %4411 = vmatpush1.bf16.msra.mxu0 0
        %4412 = vmatprep.subr.bf16.mxu0 0
        %4413 = vmatpush1.bf16.msra.mxu0 0
        %4414 = vmatprep.mubr.bf16.mxu0 0
        %4415 = vmatmul.mubr.bf16.gmra.mrb[0].mxu0 %v4380
        %v4416 = vpop.f32.mrb[0].mxu0
        %v4417 = vadd.f32 0.0, %v4416
        %v4418 = vpop.f32.mrb[0].mxu0
        %v4419 = vpop.f32.mrb[0].mxu0
        %v4420 = vadd.f32 0.0, %v4419
        %v4421 = vpop.f32.mrb[0].mxu0
        %4422 = vdwg.mxu0
        %4423 = vrot.lane.b32.xlu0 %v1451, 64
        %v4424 = vpop.permute.xlu0 %4423
        %v4427 = vsel %vm1832, %v4231, 0
        %4429 = vmatprep.subr.bf16.mxu0 0
        %4430 = vmatpush1.bf16.msra.mxu0 %v4424
        %4431 = vmatprep.subr.bf16.mxu0 0
        %4432 = vmatpush1.bf16.msra.mxu0 0
        %4433 = vmatprep.subr.bf16.mxu0 0
        %4434 = vmatpush1.bf16.msra.mxu0 0
        %4435 = vmatprep.subr.bf16.mxu0 0
        %4436 = vmatpush1.bf16.msra.mxu0 0
        %4437 = vmatprep.subr.bf16.mxu0 0
        %4438 = vmatpush1.bf16.msra.mxu0 0
        %4439 = vmatprep.subr.bf16.mxu0 0
        %4440 = vmatpush1.bf16.msra.mxu0 0
        %4441 = vmatprep.subr.bf16.mxu0 0
        %4442 = vmatpush1.bf16.msra.mxu0 0
        %4443 = vmatprep.subr.bf16.mxu0 0
        %4444 = vmatpush1.bf16.msra.mxu0 0
        %4445 = vmatprep.subr.bf16.mxu0 0
        %4446 = vmatpush1.bf16.msra.mxu0 0
        %4447 = vmatprep.subr.bf16.mxu0 0
        %4448 = vmatpush1.bf16.msra.mxu0 0
        %4449 = vmatprep.subr.bf16.mxu0 0
        %4450 = vmatpush1.bf16.msra.mxu0 0
        %4451 = vmatprep.subr.bf16.mxu0 0
        %4452 = vmatpush1.bf16.msra.mxu0 0
        %4453 = vmatprep.subr.bf16.mxu0 0
        %4454 = vmatpush1.bf16.msra.mxu0 0
        %4455 = vmatprep.subr.bf16.mxu0 0
        %4456 = vmatpush1.bf16.msra.mxu0 0
        %4457 = vmatprep.subr.bf16.mxu0 0
        %4458 = vmatpush1.bf16.msra.mxu0 0
        %4459 = vmatprep.subr.bf16.mxu0 0
        %4460 = vmatpush1.bf16.msra.mxu0 0
        %4461 = vmatprep.mubr.bf16.mxu0 0
        %4462 = vmatmul.mubr.bf16.gmra.mrb[0].mxu0 %v4427
        %v4463 = vpop.f32.mrb[0].mxu0
        %v4464 = vadd.f32 0.0, %v4463
        %v4465 = vpop.f32.mrb[0].mxu0
        %v4466 = vpop.f32.mrb[0].mxu0
        %v4467 = vadd.f32 0.0, %v4466
        %v4468 = vpop.f32.mrb[0].mxu0
        %4469 = vdwg.mxu0
        %4470 = vrot.lane.b32.xlu0 %v1452, 64
        %v4471 = vpop.permute.xlu0 %4470
        %v4474 = vsel %vm1832, %v4232, 0
        %4476 = vmatprep.subr.bf16.mxu0 0
        %4477 = vmatpush1.bf16.msra.mxu0 %v4471
        %4478 = vmatprep.subr.bf16.mxu0 0
        %4479 = vmatpush1.bf16.msra.mxu0 0
        %4480 = vmatprep.subr.bf16.mxu0 0
        %4481 = vmatpush1.bf16.msra.mxu0 0
        %4482 = vmatprep.subr.bf16.mxu0 0
        %4483 = vmatpush1.bf16.msra.mxu0 0
        %4484 = vmatprep.subr.bf16.mxu0 0
        %4485 = vmatpush1.bf16.msra.mxu0 0
        %4486 = vmatprep.subr.bf16.mxu0 0
        %4487 = vmatpush1.bf16.msra.mxu0 0
        %4488 = vmatprep.subr.bf16.mxu0 0
        %4489 = vmatpush1.bf16.msra.mxu0 0
        %4490 = vmatprep.subr.bf16.mxu0 0
        %4491 = vmatpush1.bf16.msra.mxu0 0
        %4492 = vmatprep.subr.bf16.mxu0 0
        %4493 = vmatpush1.bf16.msra.mxu0 0
        %4494 = vmatprep.subr.bf16.mxu0 0
        %4495 = vmatpush1.bf16.msra.mxu0 0
        %4496 = vmatprep.subr.bf16.mxu0 0
        %4497 = vmatpush1.bf16.msra.mxu0 0
        %4498 = vmatprep.subr.bf16.mxu0 0
        %4499 = vmatpush1.bf16.msra.mxu0 0
        %4500 = vmatprep.subr.bf16.mxu0 0
        %4501 = vmatpush1.bf16.msra.mxu0 0
        %4502 = vmatprep.subr.bf16.mxu0 0
        %4503 = vmatpush1.bf16.msra.mxu0 0
        %4504 = vmatprep.subr.bf16.mxu0 0
        %4505 = vmatpush1.bf16.msra.mxu0 0
        %4506 = vmatprep.subr.bf16.mxu0 0
        %4507 = vmatpush1.bf16.msra.mxu0 0
        %4508 = vmatprep.mubr.bf16.mxu0 0
        %4509 = vmatmul.mubr.bf16.gmra.mrb[0].mxu0 %v4474
        %v4510 = vpop.f32.mrb[0].mxu0
        %v4511 = vadd.f32 0.0, %v4510
        %v4512 = vpop.f32.mrb[0].mxu0
        %v4513 = vpop.f32.mrb[0].mxu0
        %v4514 = vadd.f32 0.0, %v4513
        %v4515 = vpop.f32.mrb[0].mxu0
        %4516 = vdwg.mxu0
        %4517 = vrot.lane.b32.xlu0 %v1453, 64
        %v4518 = vpop.permute.xlu0 %4517
        %v4521 = vsel %vm1832, %v4233, 0
        %4523 = vmatprep.subr.bf16.mxu0 0
        %4524 = vmatpush1.bf16.msra.mxu0 %v4518
        %4525 = vmatprep.subr.bf16.mxu0 0
        %4526 = vmatpush1.bf16.msra.mxu0 0
        %4527 = vmatprep.subr.bf16.mxu0 0
        %4528 = vmatpush1.bf16.msra.mxu0 0
        %4529 = vmatprep.subr.bf16.mxu0 0
        %4530 = vmatpush1.bf16.msra.mxu0 0
        %4531 = vmatprep.subr.bf16.mxu0 0
        %4532 = vmatpush1.bf16.msra.mxu0 0
        %4533 = vmatprep.subr.bf16.mxu0 0
        %4534 = vmatpush1.bf16.msra.mxu0 0
        %4535 = vmatprep.subr.bf16.mxu0 0
        %4536 = vmatpush1.bf16.msra.mxu0 0
        %4537 = vmatprep.subr.bf16.mxu0 0
        %4538 = vmatpush1.bf16.msra.mxu0 0
        %4539 = vmatprep.subr.bf16.mxu0 0
        %4540 = vmatpush1.bf16.msra.mxu0 0
        %4541 = vmatprep.subr.bf16.mxu0 0
        %4542 = vmatpush1.bf16.msra.mxu0 0
        %4543 = vmatprep.subr.bf16.mxu0 0
        %4544 = vmatpush1.bf16.msra.mxu0 0
        %4545 = vmatprep.subr.bf16.mxu0 0
        %4546 = vmatpush1.bf16.msra.mxu0 0
        %4547 = vmatprep.subr.bf16.mxu0 0
        %4548 = vmatpush1.bf16.msra.mxu0 0
        %4549 = vmatprep.subr.bf16.mxu0 0
        %4550 = vmatpush1.bf16.msra.mxu0 0
        %4551 = vmatprep.subr.bf16.mxu0 0
        %4552 = vmatpush1.bf16.msra.mxu0 0
        %4553 = vmatprep.subr.bf16.mxu0 0
        %4554 = vmatpush1.bf16.msra.mxu0 0
        %4555 = vmatprep.mubr.bf16.mxu0 0
        %4556 = vmatmul.mubr.bf16.gmra.mrb[0].mxu0 %v4521
        %v4557 = vpop.f32.mrb[0].mxu0
        %v4558 = vadd.f32 0.0, %v4557
        %v4559 = vpop.f32.mrb[0].mxu0
        %v4560 = vpop.f32.mrb[0].mxu0
        %v4561 = vadd.f32 0.0, %v4560
        %v4562 = vpop.f32.mrb[0].mxu0
        %4563 = vdwg.mxu0
        %4564 = vrot.lane.b32.xlu0 %v1454, 64
        %v4565 = vpop.permute.xlu0 %4564
        %v4568 = vsel %vm1832, %v4234, 0
        %4570 = vmatprep.subr.bf16.mxu0 0
        %4571 = vmatpush1.bf16.msra.mxu0 %v4565
        %4572 = vmatprep.subr.bf16.mxu0 0
        %4573 = vmatpush1.bf16.msra.mxu0 0
        %4574 = vmatprep.subr.bf16.mxu0 0
        %4575 = vmatpush1.bf16.msra.mxu0 0
        %4576 = vmatprep.subr.bf16.mxu0 0
        %4577 = vmatpush1.bf16.msra.mxu0 0
        %4578 = vmatprep.subr.bf16.mxu0 0
        %4579 = vmatpush1.bf16.msra.mxu0 0
        %4580 = vmatprep.subr.bf16.mxu0 0
        %4581 = vmatpush1.bf16.msra.mxu0 0
        %4582 = vmatprep.subr.bf16.mxu0 0
        %4583 = vmatpush1.bf16.msra.mxu0 0
        %4584 = vmatprep.subr.bf16.mxu0 0
        %4585 = vmatpush1.bf16.msra.mxu0 0
        %4586 = vmatprep.subr.bf16.mxu0 0
        %4587 = vmatpush1.bf16.msra.mxu0 0
        %4588 = vmatprep.subr.bf16.mxu0 0
        %4589 = vmatpush1.bf16.msra.mxu0 0
        %4590 = vmatprep.subr.bf16.mxu0 0
        %4591 = vmatpush1.bf16.msra.mxu0 0
        %4592 = vmatprep.subr.bf16.mxu0 0
        %4593 = vmatpush1.bf16.msra.mxu0 0
        %4594 = vmatprep.subr.bf16.mxu0 0
        %4595 = vmatpush1.bf16.msra.mxu0 0
        %4596 = vmatprep.subr.bf16.mxu0 0
        %4597 = vmatpush1.bf16.msra.mxu0 0
        %4598 = vmatprep.subr.bf16.mxu0 0
        %4599 = vmatpush1.bf16.msra.mxu0 0
        %4600 = vmatprep.subr.bf16.mxu0 0
        %4601 = vmatpush1.bf16.msra.mxu0 0
        %4602 = vmatprep.mubr.bf16.mxu0 0
        %4603 = vmatmul.mubr.bf16.gmra.mrb[0].mxu0 %v4568
        %v4604 = vpop.f32.mrb[0].mxu0
        %v4605 = vadd.f32 0.0, %v4604
        %v4606 = vpop.f32.mrb[0].mxu0
        %v4607 = vpop.f32.mrb[0].mxu0
        %v4608 = vadd.f32 0.0, %v4607
        %v4609 = vpop.f32.mrb[0].mxu0
        %4610 = vdwg.mxu0
        %v4611 = vpack.c.bf16 %v4279, %v4276
        %v4612 = vpack.c.bf16 %v4326, %v4323
        %v4613 = vpack.c.bf16 %v4373, %v4370
        %v4614 = vpack.c.bf16 %v4420, %v4417
        %v4615 = vpack.c.bf16 %v4467, %v4464
        %v4616 = vpack.c.bf16 %v4514, %v4511
        %v4617 = vpack.c.bf16 %v4561, %v4558
        %v4618 = vpack.c.bf16 %v4608, %v4605
        %v4623 = vunpack.c.l.b16 %v1423
        %v4624 = vunpack.c.l.b16 %v1424
        %v4625 = vunpack.c.l.b16 %v1425
        %v4626 = vunpack.c.l.b16 %v1426
        %v4627 = vpack.c.b16 %v4624, %v4623
        %v4628 = vpack.c.b16 %v4626, %v4625
        %v4632 = vsel %vm1455, %v4611, 0
        %v4635 = vsel %vm1455, %v4612, 0
        %v4638 = vsel %vm1455, %v4613, 0
        %v4641 = vsel %vm1455, %v4614, 0
        %v4644 = vsel %vm1455, %v4615, 0
        %v4647 = vsel %vm1455, %v4616, 0
        %v4650 = vsel %vm1455, %v4617, 0
        %v4653 = vsel %vm1455, %v4618, 0
        %4655 = vmatprep.subr.bf16.mxu0 0
        %4656 = vmatpush1.bf16.msra.mxu0 %v4627
        %4657 = vmatprep.subr.bf16.mxu0 0
        %4658 = vmatpush1.bf16.msra.mxu0 %v4628
        %4659 = vmatprep.subr.bf16.mxu0 0
        %4660 = vmatpush1.bf16.msra.mxu0 0
        %4661 = vmatprep.subr.bf16.mxu0 0
        %4662 = vmatpush1.bf16.msra.mxu0 0
        %4663 = vmatprep.subr.bf16.mxu0 0
        %4664 = vmatpush1.bf16.msra.mxu0 0
        %4665 = vmatprep.subr.bf16.mxu0 0
        %4666 = vmatpush1.bf16.msra.mxu0 0
        %4667 = vmatprep.subr.bf16.mxu0 0
        %4668 = vmatpush1.bf16.msra.mxu0 0
        %4669 = vmatprep.subr.bf16.mxu0 0
        %4670 = vmatpush1.bf16.msra.mxu0 0
        %4671 = vmatprep.subr.bf16.mxu0 0
        %4672 = vmatpush1.bf16.msra.mxu0 0
        %4673 = vmatprep.subr.bf16.mxu0 0
        %4674 = vmatpush1.bf16.msra.mxu0 0
        %4675 = vmatprep.subr.bf16.mxu0 0
        %4676 = vmatpush1.bf16.msra.mxu0 0
        %4677 = vmatprep.subr.bf16.mxu0 0
        %4678 = vmatpush1.bf16.msra.mxu0 0
        %4679 = vmatprep.subr.bf16.mxu0 0
        %4680 = vmatpush1.bf16.msra.mxu0 0
        %4681 = vmatprep.subr.bf16.mxu0 0
        %4682 = vmatpush1.bf16.msra.mxu0 0
        %4683 = vmatprep.subr.bf16.mxu0 0
        %4684 = vmatpush1.bf16.msra.mxu0 0
        %4685 = vmatprep.subr.bf16.mxu0 0
        %4686 = vmatpush1.bf16.msra.mxu0 0
        %4687 = vmatprep.mubr.bf16.mxu0 0
        %4688 = vmatmul.mubr.bf16.gmra.mrb[0].mxu0 %v4632
        %v4689 = vpop.f32.mrb[0].mxu0
        %v4690 = vadd.f32 0.0, %v4689
        %v4691 = vpop.f32.mrb[0].mxu0
        %v4692 = vpop.f32.mrb[0].mxu0
        %v4693 = vadd.f32 0.0, %v4692
        %v4694 = vpop.f32.mrb[0].mxu0
        %4695 = vmatprep.mubr.bf16.mxu0 0
        %4696 = vmatmul.mubr.bf16.gmra.mrb[0].mxu0 %v4635
        %v4697 = vpop.f32.mrb[0].mxu0
        %v4698 = vadd.f32 0.0, %v4697
        %v4699 = vpop.f32.mrb[0].mxu0
        %v4700 = vpop.f32.mrb[0].mxu0
        %v4701 = vadd.f32 0.0, %v4700
        %v4702 = vpop.f32.mrb[0].mxu0
        %4703 = vmatprep.mubr.bf16.mxu0 0
        %4704 = vmatmul.mubr.bf16.gmra.mrb[0].mxu0 %v4638
        %v4705 = vpop.f32.mrb[0].mxu0
        %v4706 = vadd.f32 0.0, %v4705
        %v4707 = vpop.f32.mrb[0].mxu0
        %v4708 = vpop.f32.mrb[0].mxu0
        %v4709 = vadd.f32 0.0, %v4708
        %v4710 = vpop.f32.mrb[0].mxu0
        %4711 = vmatprep.mubr.bf16.mxu0 0
        %4712 = vmatmul.mubr.bf16.gmra.mrb[0].mxu0 %v4641
        %v4713 = vpop.f32.mrb[0].mxu0
        %v4714 = vadd.f32 0.0, %v4713
        %v4715 = vpop.f32.mrb[0].mxu0
        %v4716 = vpop.f32.mrb[0].mxu0
        %v4717 = vadd.f32 0.0, %v4716
        %v4718 = vpop.f32.mrb[0].mxu0
        %4719 = vmatprep.mubr.bf16.mxu0 0
        %4720 = vmatmul.mubr.bf16.gmra.mrb[0].mxu0 %v4644
        %v4721 = vpop.f32.mrb[0].mxu0
        %v4722 = vadd.f32 0.0, %v4721
        %v4723 = vpop.f32.mrb[0].mxu0
        %v4724 = vpop.f32.mrb[0].mxu0
        %v4725 = vadd.f32 0.0, %v4724
        %v4726 = vpop.f32.mrb[0].mxu0
        %4727 = vmatprep.mubr.bf16.mxu0 0
        %4728 = vmatmul.mubr.bf16.gmra.mrb[0].mxu0 %v4647
        %v4729 = vpop.f32.mrb[0].mxu0
        %v4730 = vadd.f32 0.0, %v4729
        %v4731 = vpop.f32.mrb[0].mxu0
        %v4732 = vpop.f32.mrb[0].mxu0
        %v4733 = vadd.f32 0.0, %v4732
        %v4734 = vpop.f32.mrb[0].mxu0
        %4735 = vmatprep.mubr.bf16.mxu0 0
        %4736 = vmatmul.mubr.bf16.gmra.mrb[0].mxu0 %v4650
        %v4737 = vpop.f32.mrb[0].mxu0
        %v4738 = vadd.f32 0.0, %v4737
        %v4739 = vpop.f32.mrb[0].mxu0
        %v4740 = vpop.f32.mrb[0].mxu0
        %v4741 = vadd.f32 0.0, %v4740
        %v4742 = vpop.f32.mrb[0].mxu0
        %4743 = vmatprep.mubr.bf16.mxu0 0
        %4744 = vmatmul.mubr.bf16.gmra.mrb[0].mxu0 %v4653
        %v4745 = vpop.f32.mrb[0].mxu0
        %v4746 = vadd.f32 0.0, %v4745
        %v4747 = vpop.f32.mrb[0].mxu0
        %v4748 = vpop.f32.mrb[0].mxu0
        %v4749 = vadd.f32 0.0, %v4748
        %v4750 = vpop.f32.mrb[0].mxu0
        %4751 = vdwg.mxu0
        %v4752 = vadd.f32 %v3581, %v4690
        %v4753 = vadd.f32 %v3584, %v4693
        %v4754 = vadd.f32 %v3589, %v4698
        %v4755 = vadd.f32 %v3592, %v4701
        %v4756 = vadd.f32 %v3597, %v4706
        %v4757 = vadd.f32 %v3600, %v4709
        %v4758 = vadd.f32 %v3605, %v4714
        %v4759 = vadd.f32 %v3608, %v4717
        %v4760 = vadd.f32 %v3613, %v4722
        %v4761 = vadd.f32 %v3616, %v4725
        %v4762 = vadd.f32 %v3621, %v4730
        %v4763 = vadd.f32 %v3624, %v4733
        %v4764 = vadd.f32 %v3629, %v4738
        %v4765 = vadd.f32 %v3632, %v4741
        %v4766 = vadd.f32 %v3637, %v4746
        %v4767 = vadd.f32 %v3640, %v4749
        %4768 = vrot.lane.b32.xlu0 %v1431, 32
        %v4769 = vpop.permute.xlu0 %4768
        %4770 = vrot.lane.b32.xlu0 %v1439, 32
        %v4771 = vpop.permute.xlu0 %4770
        %v4773 = vsel %vm1455, %v4769, 0
        %v4776 = vsel %vm1455, %v4771, 0
        %4778 = vmatprep.subr.bf16.mxu0 0
        %4779 = vmatpush1.bf16.xpose.msra.mxu0 %v4776
        %4780 = vmatprep.subr.bf16.mxu0 0
        %4781 = vmatpush1.bf16.xpose.msra.mxu0 0
        %4782 = vmatprep.subr.bf16.mxu0 0
        %4783 = vmatpush1.bf16.xpose.msra.mxu0 0
        %4784 = vmatprep.subr.bf16.mxu0 0
        %4785 = vmatpush1.bf16.xpose.msra.mxu0 0
        %4786 = vmatprep.subr.bf16.mxu0 0
        %4787 = vmatpush1.bf16.xpose.msra.mxu0 0
        %4788 = vmatprep.subr.bf16.mxu0 0
        %4789 = vmatpush1.bf16.xpose.msra.mxu0 0
        %4790 = vmatprep.subr.bf16.mxu0 0
        %4791 = vmatpush1.bf16.xpose.msra.mxu0 0
        %4792 = vmatprep.subr.bf16.mxu0 0
        %4793 = vmatpush1.bf16.xpose.msra.mxu0 0
        %4794 = vmatprep.subr.bf16.mxu0 0
        %4795 = vmatpush1.bf16.xpose.msra.mxu0 0
        %4796 = vmatprep.subr.bf16.mxu0 0
        %4797 = vmatpush1.bf16.xpose.msra.mxu0 0
        %4798 = vmatprep.subr.bf16.mxu0 0
        %4799 = vmatpush1.bf16.xpose.msra.mxu0 0
        %4800 = vmatprep.subr.bf16.mxu0 0
        %4801 = vmatpush1.bf16.xpose.msra.mxu0 0
        %4802 = vmatprep.subr.bf16.mxu0 0
        %4803 = vmatpush1.bf16.xpose.msra.mxu0 0
        %4804 = vmatprep.subr.bf16.mxu0 0
        %4805 = vmatpush1.bf16.xpose.msra.mxu0 0
        %4806 = vmatprep.subr.bf16.mxu0 0
        %4807 = vmatpush1.bf16.xpose.msra.mxu0 0
        %4808 = vmatprep.subr.bf16.mxu0 0
        %4809 = vmatpush1.bf16.xpose.msra.mxu0 0
        %4810 = vmatprep.mubr.bf16.mxu0 0
        %4811 = vmatmul.mubr.bf16.gmra.mrb[0].mxu0 %v4773
        %v4812 = vpop.f32.mrb[0].mxu0
        %v4813 = vadd.f32 0.0, %v4812
        %v4814 = vpop.f32.mrb[0].mxu0
        %v4815 = vpop.f32.mrb[0].mxu0
        %v4816 = vadd.f32 0.0, %v4815
        %v4817 = vpop.f32.mrb[0].mxu0
        %4818 = vdwg.mxu0
        %4819 = vrot.lane.b32.xlu0 %v1432, 32
        %v4820 = vpop.permute.xlu0 %4819
        %4821 = vrot.lane.b32.xlu0 %v1440, 32
        %v4822 = vpop.permute.xlu0 %4821
        %v4824 = vsel %vm1455, %v4820, 0
        %v4827 = vsel %vm1455, %v4822, 0
        %4829 = vmatprep.subr.bf16.mxu0 0
        %4830 = vmatpush1.bf16.xpose.msra.mxu0 %v4827
        %4831 = vmatprep.subr.bf16.mxu0 0
        %4832 = vmatpush1.bf16.xpose.msra.mxu0 0
        %4833 = vmatprep.subr.bf16.mxu0 0
        %4834 = vmatpush1.bf16.xpose.msra.mxu0 0
        %4835 = vmatprep.subr.bf16.mxu0 0
        %4836 = vmatpush1.bf16.xpose.msra.mxu0 0
        %4837 = vmatprep.subr.bf16.mxu0 0
        %4838 = vmatpush1.bf16.xpose.msra.mxu0 0
        %4839 = vmatprep.subr.bf16.mxu0 0
        %4840 = vmatpush1.bf16.xpose.msra.mxu0 0
        %4841 = vmatprep.subr.bf16.mxu0 0
        %4842 = vmatpush1.bf16.xpose.msra.mxu0 0
        %4843 = vmatprep.subr.bf16.mxu0 0
        %4844 = vmatpush1.bf16.xpose.msra.mxu0 0
        %4845 = vmatprep.subr.bf16.mxu0 0
        %4846 = vmatpush1.bf16.xpose.msra.mxu0 0
        %4847 = vmatprep.subr.bf16.mxu0 0
        %4848 = vmatpush1.bf16.xpose.msra.mxu0 0
        %4849 = vmatprep.subr.bf16.mxu0 0
        %4850 = vmatpush1.bf16.xpose.msra.mxu0 0
        %4851 = vmatprep.subr.bf16.mxu0 0
        %4852 = vmatpush1.bf16.xpose.msra.mxu0 0
        %4853 = vmatprep.subr.bf16.mxu0 0
        %4854 = vmatpush1.bf16.xpose.msra.mxu0 0
        %4855 = vmatprep.subr.bf16.mxu0 0
        %4856 = vmatpush1.bf16.xpose.msra.mxu0 0
        %4857 = vmatprep.subr.bf16.mxu0 0
        %4858 = vmatpush1.bf16.xpose.msra.mxu0 0
        %4859 = vmatprep.subr.bf16.mxu0 0
        %4860 = vmatpush1.bf16.xpose.msra.mxu0 0
        %4861 = vmatprep.mubr.bf16.mxu0 0
        %4862 = vmatmul.mubr.bf16.gmra.mrb[0].mxu0 %v4824
        %v4863 = vpop.f32.mrb[0].mxu0
        %v4864 = vadd.f32 0.0, %v4863
        %v4865 = vpop.f32.mrb[0].mxu0
        %v4866 = vpop.f32.mrb[0].mxu0
        %v4867 = vadd.f32 0.0, %v4866
        %v4868 = vpop.f32.mrb[0].mxu0
        %4869 = vdwg.mxu0
        %4870 = vrot.lane.b32.xlu0 %v1433, 32
        %v4871 = vpop.permute.xlu0 %4870
        %4872 = vrot.lane.b32.xlu0 %v1441, 32
        %v4873 = vpop.permute.xlu0 %4872
        %v4875 = vsel %vm1455, %v4871, 0
        %v4878 = vsel %vm1455, %v4873, 0
        %4880 = vmatprep.subr.bf16.mxu0 0
        %4881 = vmatpush1.bf16.xpose.msra.mxu0 %v4878
        %4882 = vmatprep.subr.bf16.mxu0 0
        %4883 = vmatpush1.bf16.xpose.msra.mxu0 0
        %4884 = vmatprep.subr.bf16.mxu0 0
        %4885 = vmatpush1.bf16.xpose.msra.mxu0 0
        %4886 = vmatprep.subr.bf16.mxu0 0
        %4887 = vmatpush1.bf16.xpose.msra.mxu0 0
        %4888 = vmatprep.subr.bf16.mxu0 0
        %4889 = vmatpush1.bf16.xpose.msra.mxu0 0
        %4890 = vmatprep.subr.bf16.mxu0 0
        %4891 = vmatpush1.bf16.xpose.msra.mxu0 0
        %4892 = vmatprep.subr.bf16.mxu0 0
        %4893 = vmatpush1.bf16.xpose.msra.mxu0 0
        %4894 = vmatprep.subr.bf16.mxu0 0
        %4895 = vmatpush1.bf16.xpose.msra.mxu0 0
        %4896 = vmatprep.subr.bf16.mxu0 0
        %4897 = vmatpush1.bf16.xpose.msra.mxu0 0
        %4898 = vmatprep.subr.bf16.mxu0 0
        %4899 = vmatpush1.bf16.xpose.msra.mxu0 0
        %4900 = vmatprep.subr.bf16.mxu0 0
        %4901 = vmatpush1.bf16.xpose.msra.mxu0 0
        %4902 = vmatprep.subr.bf16.mxu0 0
        %4903 = vmatpush1.bf16.xpose.msra.mxu0 0
        %4904 = vmatprep.subr.bf16.mxu0 0
        %4905 = vmatpush1.bf16.xpose.msra.mxu0 0
        %4906 = vmatprep.subr.bf16.mxu0 0
        %4907 = vmatpush1.bf16.xpose.msra.mxu0 0
        %4908 = vmatprep.subr.bf16.mxu0 0
        %4909 = vmatpush1.bf16.xpose.msra.mxu0 0
        %4910 = vmatprep.subr.bf16.mxu0 0
        %4911 = vmatpush1.bf16.xpose.msra.mxu0 0
        %4912 = vmatprep.mubr.bf16.mxu0 0
        %4913 = vmatmul.mubr.bf16.gmra.mrb[0].mxu0 %v4875
        %v4914 = vpop.f32.mrb[0].mxu0
        %v4915 = vadd.f32 0.0, %v4914
        %v4916 = vpop.f32.mrb[0].mxu0
        %v4917 = vpop.f32.mrb[0].mxu0
        %v4918 = vadd.f32 0.0, %v4917
        %v4919 = vpop.f32.mrb[0].mxu0
        %4920 = vdwg.mxu0
        %4921 = vrot.lane.b32.xlu0 %v1434, 32
        %v4922 = vpop.permute.xlu0 %4921
        %4923 = vrot.lane.b32.xlu0 %v1442, 32
        %v4924 = vpop.permute.xlu0 %4923
        %v4926 = vsel %vm1455, %v4922, 0
        %v4929 = vsel %vm1455, %v4924, 0
        %4931 = vmatprep.subr.bf16.mxu0 0
        %4932 = vmatpush1.bf16.xpose.msra.mxu0 %v4929
        %4933 = vmatprep.subr.bf16.mxu0 0
        %4934 = vmatpush1.bf16.xpose.msra.mxu0 0
        %4935 = vmatprep.subr.bf16.mxu0 0
        %4936 = vmatpush1.bf16.xpose.msra.mxu0 0
        %4937 = vmatprep.subr.bf16.mxu0 0
        %4938 = vmatpush1.bf16.xpose.msra.mxu0 0
        %4939 = vmatprep.subr.bf16.mxu0 0
        %4940 = vmatpush1.bf16.xpose.msra.mxu0 0
        %4941 = vmatprep.subr.bf16.mxu0 0
        %4942 = vmatpush1.bf16.xpose.msra.mxu0 0
        %4943 = vmatprep.subr.bf16.mxu0 0
        %4944 = vmatpush1.bf16.xpose.msra.mxu0 0
        %4945 = vmatprep.subr.bf16.mxu0 0
        %4946 = vmatpush1.bf16.xpose.msra.mxu0 0
        %4947 = vmatprep.subr.bf16.mxu0 0
        %4948 = vmatpush1.bf16.xpose.msra.mxu0 0
        %4949 = vmatprep.subr.bf16.mxu0 0
        %4950 = vmatpush1.bf16.xpose.msra.mxu0 0
        %4951 = vmatprep.subr.bf16.mxu0 0
        %4952 = vmatpush1.bf16.xpose.msra.mxu0 0
        %4953 = vmatprep.subr.bf16.mxu0 0
        %4954 = vmatpush1.bf16.xpose.msra.mxu0 0
        %4955 = vmatprep.subr.bf16.mxu0 0
        %4956 = vmatpush1.bf16.xpose.msra.mxu0 0
        %4957 = vmatprep.subr.bf16.mxu0 0
        %4958 = vmatpush1.bf16.xpose.msra.mxu0 0
        %4959 = vmatprep.subr.bf16.mxu0 0
        %4960 = vmatpush1.bf16.xpose.msra.mxu0 0
        %4961 = vmatprep.subr.bf16.mxu0 0
        %4962 = vmatpush1.bf16.xpose.msra.mxu0 0
        %4963 = vmatprep.mubr.bf16.mxu0 0
        %4964 = vmatmul.mubr.bf16.gmra.mrb[0].mxu0 %v4926
        %v4965 = vpop.f32.mrb[0].mxu0
        %v4966 = vadd.f32 0.0, %v4965
        %v4967 = vpop.f32.mrb[0].mxu0
        %v4968 = vpop.f32.mrb[0].mxu0
        %v4969 = vadd.f32 0.0, %v4968
        %v4970 = vpop.f32.mrb[0].mxu0
        %4971 = vdwg.mxu0
        %4972 = vrot.lane.b32.xlu0 %v1435, 32
        %v4973 = vpop.permute.xlu0 %4972
        %4974 = vrot.lane.b32.xlu0 %v1443, 32
        %v4975 = vpop.permute.xlu0 %4974
        %v4977 = vsel %vm1455, %v4973, 0
        %v4980 = vsel %vm1455, %v4975, 0
        %4982 = vmatprep.subr.bf16.mxu0 0
        %4983 = vmatpush1.bf16.xpose.msra.mxu0 %v4980
        %4984 = vmatprep.subr.bf16.mxu0 0
        %4985 = vmatpush1.bf16.xpose.msra.mxu0 0
        %4986 = vmatprep.subr.bf16.mxu0 0
        %4987 = vmatpush1.bf16.xpose.msra.mxu0 0
        %4988 = vmatprep.subr.bf16.mxu0 0
        %4989 = vmatpush1.bf16.xpose.msra.mxu0 0
        %4990 = vmatprep.subr.bf16.mxu0 0
        %4991 = vmatpush1.bf16.xpose.msra.mxu0 0
        %4992 = vmatprep.subr.bf16.mxu0 0
        %4993 = vmatpush1.bf16.xpose.msra.mxu0 0
        %4994 = vmatprep.subr.bf16.mxu0 0
        %4995 = vmatpush1.bf16.xpose.msra.mxu0 0
        %4996 = vmatprep.subr.bf16.mxu0 0
        %4997 = vmatpush1.bf16.xpose.msra.mxu0 0
        %4998 = vmatprep.subr.bf16.mxu0 0
        %4999 = vmatpush1.bf16.xpose.msra.mxu0 0
        %5000 = vmatprep.subr.bf16.mxu0 0
        %5001 = vmatpush1.bf16.xpose.msra.mxu0 0
        %5002 = vmatprep.subr.bf16.mxu0 0
        %5003 = vmatpush1.bf16.xpose.msra.mxu0 0
        %5004 = vmatprep.subr.bf16.mxu0 0
        %5005 = vmatpush1.bf16.xpose.msra.mxu0 0
        %5006 = vmatprep.subr.bf16.mxu0 0
        %5007 = vmatpush1.bf16.xpose.msra.mxu0 0
        %5008 = vmatprep.subr.bf16.mxu0 0
        %5009 = vmatpush1.bf16.xpose.msra.mxu0 0
        %5010 = vmatprep.subr.bf16.mxu0 0
        %5011 = vmatpush1.bf16.xpose.msra.mxu0 0
        %5012 = vmatprep.subr.bf16.mxu0 0
        %5013 = vmatpush1.bf16.xpose.msra.mxu0 0
        %5014 = vmatprep.mubr.bf16.mxu0 0
        %5015 = vmatmul.mubr.bf16.gmra.mrb[0].mxu0 %v4977
        %v5016 = vpop.f32.mrb[0].mxu0
        %v5017 = vadd.f32 0.0, %v5016
        %v5018 = vpop.f32.mrb[0].mxu0
        %v5019 = vpop.f32.mrb[0].mxu0
        %v5020 = vadd.f32 0.0, %v5019
        %v5021 = vpop.f32.mrb[0].mxu0
        %5022 = vdwg.mxu0
        %5023 = vrot.lane.b32.xlu0 %v1436, 32
        %v5024 = vpop.permute.xlu0 %5023
        %5025 = vrot.lane.b32.xlu0 %v1444, 32
        %v5026 = vpop.permute.xlu0 %5025
        %v5028 = vsel %vm1455, %v5024, 0
        %v5031 = vsel %vm1455, %v5026, 0
        %5033 = vmatprep.subr.bf16.mxu0 0
        %5034 = vmatpush1.bf16.xpose.msra.mxu0 %v5031
        %5035 = vmatprep.subr.bf16.mxu0 0
        %5036 = vmatpush1.bf16.xpose.msra.mxu0 0
        %5037 = vmatprep.subr.bf16.mxu0 0
        %5038 = vmatpush1.bf16.xpose.msra.mxu0 0
        %5039 = vmatprep.subr.bf16.mxu0 0
        %5040 = vmatpush1.bf16.xpose.msra.mxu0 0
        %5041 = vmatprep.subr.bf16.mxu0 0
        %5042 = vmatpush1.bf16.xpose.msra.mxu0 0
        %5043 = vmatprep.subr.bf16.mxu0 0
        %5044 = vmatpush1.bf16.xpose.msra.mxu0 0
        %5045 = vmatprep.subr.bf16.mxu0 0
        %5046 = vmatpush1.bf16.xpose.msra.mxu0 0
        %5047 = vmatprep.subr.bf16.mxu0 0
        %5048 = vmatpush1.bf16.xpose.msra.mxu0 0
        %5049 = vmatprep.subr.bf16.mxu0 0
        %5050 = vmatpush1.bf16.xpose.msra.mxu0 0
        %5051 = vmatprep.subr.bf16.mxu0 0
        %5052 = vmatpush1.bf16.xpose.msra.mxu0 0
        %5053 = vmatprep.subr.bf16.mxu0 0
        %5054 = vmatpush1.bf16.xpose.msra.mxu0 0
        %5055 = vmatprep.subr.bf16.mxu0 0
        %5056 = vmatpush1.bf16.xpose.msra.mxu0 0
        %5057 = vmatprep.subr.bf16.mxu0 0
        %5058 = vmatpush1.bf16.xpose.msra.mxu0 0
        %5059 = vmatprep.subr.bf16.mxu0 0
        %5060 = vmatpush1.bf16.xpose.msra.mxu0 0
        %5061 = vmatprep.subr.bf16.mxu0 0
        %5062 = vmatpush1.bf16.xpose.msra.mxu0 0
        %5063 = vmatprep.subr.bf16.mxu0 0
        %5064 = vmatpush1.bf16.xpose.msra.mxu0 0
        %5065 = vmatprep.mubr.bf16.mxu0 0
        %5066 = vmatmul.mubr.bf16.gmra.mrb[0].mxu0 %v5028
        %v5067 = vpop.f32.mrb[0].mxu0
        %v5068 = vadd.f32 0.0, %v5067
        %v5069 = vpop.f32.mrb[0].mxu0
        %v5070 = vpop.f32.mrb[0].mxu0
        %v5071 = vadd.f32 0.0, %v5070
        %v5072 = vpop.f32.mrb[0].mxu0
        %5073 = vdwg.mxu0
        %5074 = vrot.lane.b32.xlu0 %v1437, 32
        %v5075 = vpop.permute.xlu0 %5074
        %5076 = vrot.lane.b32.xlu0 %v1445, 32
        %v5077 = vpop.permute.xlu0 %5076
        %v5079 = vsel %vm1455, %v5075, 0
        %v5082 = vsel %vm1455, %v5077, 0
        %5084 = vmatprep.subr.bf16.mxu0 0
        %5085 = vmatpush1.bf16.xpose.msra.mxu0 %v5082
        %5086 = vmatprep.subr.bf16.mxu0 0
        %5087 = vmatpush1.bf16.xpose.msra.mxu0 0
        %5088 = vmatprep.subr.bf16.mxu0 0
        %5089 = vmatpush1.bf16.xpose.msra.mxu0 0
        %5090 = vmatprep.subr.bf16.mxu0 0
        %5091 = vmatpush1.bf16.xpose.msra.mxu0 0
        %5092 = vmatprep.subr.bf16.mxu0 0
        %5093 = vmatpush1.bf16.xpose.msra.mxu0 0
        %5094 = vmatprep.subr.bf16.mxu0 0
        %5095 = vmatpush1.bf16.xpose.msra.mxu0 0
        %5096 = vmatprep.subr.bf16.mxu0 0
        %5097 = vmatpush1.bf16.xpose.msra.mxu0 0
        %5098 = vmatprep.subr.bf16.mxu0 0
        %5099 = vmatpush1.bf16.xpose.msra.mxu0 0
        %5100 = vmatprep.subr.bf16.mxu0 0
        %5101 = vmatpush1.bf16.xpose.msra.mxu0 0
        %5102 = vmatprep.subr.bf16.mxu0 0
        %5103 = vmatpush1.bf16.xpose.msra.mxu0 0
        %5104 = vmatprep.subr.bf16.mxu0 0
        %5105 = vmatpush1.bf16.xpose.msra.mxu0 0
        %5106 = vmatprep.subr.bf16.mxu0 0
        %5107 = vmatpush1.bf16.xpose.msra.mxu0 0
        %5108 = vmatprep.subr.bf16.mxu0 0
        %5109 = vmatpush1.bf16.xpose.msra.mxu0 0
        %5110 = vmatprep.subr.bf16.mxu0 0
        %5111 = vmatpush1.bf16.xpose.msra.mxu0 0
        %5112 = vmatprep.subr.bf16.mxu0 0
        %5113 = vmatpush1.bf16.xpose.msra.mxu0 0
        %5114 = vmatprep.subr.bf16.mxu0 0
        %5115 = vmatpush1.bf16.xpose.msra.mxu0 0
        %5116 = vmatprep.mubr.bf16.mxu0 0
        %5117 = vmatmul.mubr.bf16.gmra.mrb[0].mxu0 %v5079
        %v5118 = vpop.f32.mrb[0].mxu0
        %v5119 = vadd.f32 0.0, %v5118
        %v5120 = vpop.f32.mrb[0].mxu0
        %v5121 = vpop.f32.mrb[0].mxu0
        %v5122 = vadd.f32 0.0, %v5121
        %v5123 = vpop.f32.mrb[0].mxu0
        %5124 = vdwg.mxu0
        %5125 = vrot.lane.b32.xlu0 %v1438, 32
        %v5126 = vpop.permute.xlu0 %5125
        %5127 = vrot.lane.b32.xlu0 %v1446, 32
        %v5128 = vpop.permute.xlu0 %5127
        %v5130 = vsel %vm1455, %v5126, 0
        %v5133 = vsel %vm1455, %v5128, 0
        %5135 = vmatprep.subr.bf16.mxu0 0
        %5136 = vmatpush1.bf16.xpose.msra.mxu0 %v5133
        %5137 = vmatprep.subr.bf16.mxu0 0
        %5138 = vmatpush1.bf16.xpose.msra.mxu0 0
        %5139 = vmatprep.subr.bf16.mxu0 0
        %5140 = vmatpush1.bf16.xpose.msra.mxu0 0
        %5141 = vmatprep.subr.bf16.mxu0 0
        %5142 = vmatpush1.bf16.xpose.msra.mxu0 0
        %5143 = vmatprep.subr.bf16.mxu0 0
        %5144 = vmatpush1.bf16.xpose.msra.mxu0 0
        %5145 = vmatprep.subr.bf16.mxu0 0
        %5146 = vmatpush1.bf16.xpose.msra.mxu0 0
        %5147 = vmatprep.subr.bf16.mxu0 0
        %5148 = vmatpush1.bf16.xpose.msra.mxu0 0
        %5149 = vmatprep.subr.bf16.mxu0 0
        %5150 = vmatpush1.bf16.xpose.msra.mxu0 0
        %5151 = vmatprep.subr.bf16.mxu0 0
        %5152 = vmatpush1.bf16.xpose.msra.mxu0 0
        %5153 = vmatprep.subr.bf16.mxu0 0
        %5154 = vmatpush1.bf16.xpose.msra.mxu0 0
        %5155 = vmatprep.subr.bf16.mxu0 0
        %5156 = vmatpush1.bf16.xpose.msra.mxu0 0
        %5157 = vmatprep.subr.bf16.mxu0 0
        %5158 = vmatpush1.bf16.xpose.msra.mxu0 0
        %5159 = vmatprep.subr.bf16.mxu0 0
        %5160 = vmatpush1.bf16.xpose.msra.mxu0 0
        %5161 = vmatprep.subr.bf16.mxu0 0
        %5162 = vmatpush1.bf16.xpose.msra.mxu0 0
        %5163 = vmatprep.subr.bf16.mxu0 0
        %5164 = vmatpush1.bf16.xpose.msra.mxu0 0
        %5165 = vmatprep.subr.bf16.mxu0 0
        %5166 = vmatpush1.bf16.xpose.msra.mxu0 0
        %5167 = vmatprep.mubr.bf16.mxu0 0
        %5168 = vmatmul.mubr.bf16.gmra.mrb[0].mxu0 %v5130
        %v5169 = vpop.f32.mrb[0].mxu0
        %v5170 = vadd.f32 0.0, %v5169
        %v5171 = vpop.f32.mrb[0].mxu0
        %v5172 = vpop.f32.mrb[0].mxu0
        %v5173 = vadd.f32 0.0, %v5172
        %v5174 = vpop.f32.mrb[0].mxu0
        %5175 = vdwg.mxu0
        %v5176 = vsel %vm1832, %v4813, -inf
        %5177 = vmax.xlane.f32.xlu0 %v5176
        %v5178 = vpop.xlane.xlu0 %5177
        %v5179 = vsel %vm1832, %v4816, -inf
        %5180 = vmax.xlane.f32.xlu0 %v5179
        %v5181 = vpop.xlane.xlu0 %5180
        %v5182 = vsel %vm1832, %v4864, -inf
        %5183 = vmax.xlane.f32.xlu0 %v5182
        %v5184 = vpop.xlane.xlu0 %5183
        %v5185 = vsel %vm1832, %v4867, -inf
        %5186 = vmax.xlane.f32.xlu0 %v5185
        %v5187 = vpop.xlane.xlu0 %5186
        %v5188 = vsel %vm1832, %v4915, -inf
        %5189 = vmax.xlane.f32.xlu0 %v5188
        %v5190 = vpop.xlane.xlu0 %5189
        %v5191 = vsel %vm1832, %v4918, -inf
        %5192 = vmax.xlane.f32.xlu0 %v5191
        %v5193 = vpop.xlane.xlu0 %5192
        %v5194 = vsel %vm1832, %v4966, -inf
        %5195 = vmax.xlane.f32.xlu0 %v5194
        %v5196 = vpop.xlane.xlu0 %5195
        %v5197 = vsel %vm1832, %v4969, -inf
        %5198 = vmax.xlane.f32.xlu0 %v5197
        %v5199 = vpop.xlane.xlu0 %5198
        %v5200 = vsel %vm1832, %v5017, -inf
        %5201 = vmax.xlane.f32.xlu0 %v5200
        %v5202 = vpop.xlane.xlu0 %5201
        %v5203 = vsel %vm1832, %v5020, -inf
        %5204 = vmax.xlane.f32.xlu0 %v5203
        %v5205 = vpop.xlane.xlu0 %5204
        %v5206 = vsel %vm1832, %v5068, -inf
        %5207 = vmax.xlane.f32.xlu0 %v5206
        %v5208 = vpop.xlane.xlu0 %5207
        %v5209 = vsel %vm1832, %v5071, -inf
        %5210 = vmax.xlane.f32.xlu0 %v5209
        %v5211 = vpop.xlane.xlu0 %5210
        %v5212 = vsel %vm1832, %v5119, -inf
        %5213 = vmax.xlane.f32.xlu0 %v5212
        %v5214 = vpop.xlane.xlu0 %5213
        %v5215 = vsel %vm1832, %v5122, -inf
        %5216 = vmax.xlane.f32.xlu0 %v5215
        %v5217 = vpop.xlane.xlu0 %5216
        %v5218 = vsel %vm1832, %v5170, -inf
        %5219 = vmax.xlane.f32.xlu0 %v5218
        %v5220 = vpop.xlane.xlu0 %5219
        %v5221 = vsel %vm1832, %v5173, -inf
        %5222 = vmax.xlane.f32.xlu0 %v5221
        %v5223 = vpop.xlane.xlu0 %5222
        %v5224 = vsub.f32 %v4813, %v5178
        %v5225 = vsub.f32 %v4816, %v5181
        %v5226 = vsub.f32 %v4864, %v5184
        %v5227 = vsub.f32 %v4867, %v5187
        %v5228 = vsub.f32 %v4915, %v5190
        %v5229 = vsub.f32 %v4918, %v5193
        %v5230 = vsub.f32 %v4966, %v5196
        %v5231 = vsub.f32 %v4969, %v5199
        %v5232 = vsub.f32 %v5017, %v5202
        %v5233 = vsub.f32 %v5020, %v5205
        %v5234 = vsub.f32 %v5068, %v5208
        %v5235 = vsub.f32 %v5071, %v5211
        %v5236 = vsub.f32 %v5119, %v5214
        %v5237 = vsub.f32 %v5122, %v5217
        %v5238 = vsub.f32 %v5170, %v5220
        %v5239 = vsub.f32 %v5173, %v5223
        %v5240 = vmul.f32 %v5224, 1.442695
        %v5241 = vpow.pop %v5240
        %v5242 = vmul.f32 %v5225, 1.442695
        %v5243 = vpow.pop %v5242
        %v5244 = vmul.f32 %v5226, 1.442695
        %v5245 = vpow.pop %v5244
        %v5246 = vmul.f32 %v5227, 1.442695
        %v5247 = vpow.pop %v5246
        %v5248 = vmul.f32 %v5228, 1.442695
        %v5249 = vpow.pop %v5248
        %v5250 = vmul.f32 %v5229, 1.442695
        %v5251 = vpow.pop %v5250
        %v5252 = vmul.f32 %v5230, 1.442695
        %v5253 = vpow.pop %v5252
        %v5254 = vmul.f32 %v5231, 1.442695
        %v5255 = vpow.pop %v5254
        %v5256 = vmul.f32 %v5232, 1.442695
        %v5257 = vpow.pop %v5256
        %v5258 = vmul.f32 %v5233, 1.442695
        %v5259 = vpow.pop %v5258
        %v5260 = vmul.f32 %v5234, 1.442695
        %v5261 = vpow.pop %v5260
        %v5262 = vmul.f32 %v5235, 1.442695
        %v5263 = vpow.pop %v5262
        %v5264 = vmul.f32 %v5236, 1.442695
        %v5265 = vpow.pop %v5264
        %v5266 = vmul.f32 %v5237, 1.442695
        %v5267 = vpow.pop %v5266
        %v5268 = vmul.f32 %v5238, 1.442695
        %v5269 = vpow.pop %v5268
        %v5270 = vmul.f32 %v5239, 1.442695
        %v5271 = vpow.pop %v5270
        %v5272 = vsel %vm1832, %v5241, 0.0
        %5273 = vadd.xlane.f32.xlu0 %v5272
        %v5274 = vpop.xlane.xlu0 %5273
        %v5275 = vsel %vm1832, %v5243, 0.0
        %5276 = vadd.xlane.f32.xlu0 %v5275
        %v5277 = vpop.xlane.xlu0 %5276
        %v5278 = vsel %vm1832, %v5245, 0.0
        %5279 = vadd.xlane.f32.xlu0 %v5278
        %v5280 = vpop.xlane.xlu0 %5279
        %v5281 = vsel %vm1832, %v5247, 0.0
        %5282 = vadd.xlane.f32.xlu0 %v5281
        %v5283 = vpop.xlane.xlu0 %5282
        %v5284 = vsel %vm1832, %v5249, 0.0
        %5285 = vadd.xlane.f32.xlu0 %v5284
        %v5286 = vpop.xlane.xlu0 %5285
        %v5287 = vsel %vm1832, %v5251, 0.0
        %5288 = vadd.xlane.f32.xlu0 %v5287
        %v5289 = vpop.xlane.xlu0 %5288
        %v5290 = vsel %vm1832, %v5253, 0.0
        %5291 = vadd.xlane.f32.xlu0 %v5290
        %v5292 = vpop.xlane.xlu0 %5291
        %v5293 = vsel %vm1832, %v5255, 0.0
        %5294 = vadd.xlane.f32.xlu0 %v5293
        %v5295 = vpop.xlane.xlu0 %5294
        %v5296 = vsel %vm1832, %v5257, 0.0
        %5297 = vadd.xlane.f32.xlu0 %v5296
        %v5298 = vpop.xlane.xlu0 %5297
        %v5299 = vsel %vm1832, %v5259, 0.0
        %5300 = vadd.xlane.f32.xlu0 %v5299
        %v5301 = vpop.xlane.xlu0 %5300
        %v5302 = vsel %vm1832, %v5261, 0.0
        %5303 = vadd.xlane.f32.xlu0 %v5302
        %v5304 = vpop.xlane.xlu0 %5303
        %v5305 = vsel %vm1832, %v5263, 0.0
        %5306 = vadd.xlane.f32.xlu0 %v5305
        %v5307 = vpop.xlane.xlu0 %5306
        %v5308 = vsel %vm1832, %v5265, 0.0
        %5309 = vadd.xlane.f32.xlu0 %v5308
        %v5310 = vpop.xlane.xlu0 %5309
        %v5311 = vsel %vm1832, %v5267, 0.0
        %5312 = vadd.xlane.f32.xlu0 %v5311
        %v5313 = vpop.xlane.xlu0 %5312
        %v5314 = vsel %vm1832, %v5269, 0.0
        %5315 = vadd.xlane.f32.xlu0 %v5314
        %v5316 = vpop.xlane.xlu0 %5315
        %v5317 = vsel %vm1832, %v5271, 0.0
        %5318 = vadd.xlane.f32.xlu0 %v5317
        %v5319 = vpop.xlane.xlu0 %5318
        %v5320 = vrcp.pop %v5274
        %v5321 = vrcp.pop %v5277
        %v5322 = vrcp.pop %v5280
        %v5323 = vrcp.pop %v5283
        %v5324 = vrcp.pop %v5286
        %v5325 = vrcp.pop %v5289
        %v5326 = vrcp.pop %v5292
        %v5327 = vrcp.pop %v5295
        %v5328 = vrcp.pop %v5298
        %v5329 = vrcp.pop %v5301
        %v5330 = vrcp.pop %v5304
        %v5331 = vrcp.pop %v5307
        %v5332 = vrcp.pop %v5310
        %v5333 = vrcp.pop %v5313
        %v5334 = vrcp.pop %v5316
        %v5335 = vrcp.pop %v5319
        %v5336 = vmul.f32 %v5241, %v5320
        %v5337 = vmul.f32 %v5243, %v5321
        %v5338 = vmul.f32 %v5245, %v5322
        %v5339 = vmul.f32 %v5247, %v5323
        %v5340 = vmul.f32 %v5249, %v5324
        %v5341 = vmul.f32 %v5251, %v5325
        %v5342 = vmul.f32 %v5253, %v5326
        %v5343 = vmul.f32 %v5255, %v5327
        %v5344 = vmul.f32 %v5257, %v5328
        %v5345 = vmul.f32 %v5259, %v5329
        %v5346 = vmul.f32 %v5261, %v5330
        %v5347 = vmul.f32 %v5263, %v5331
        %v5348 = vmul.f32 %v5265, %v5332
        %v5349 = vmul.f32 %v5267, %v5333
        %v5350 = vmul.f32 %v5269, %v5334
        %v5351 = vmul.f32 %v5271, %v5335
        %v5352 = vpack.c.bf16 %v5337, %v5336
        %v5353 = vpack.c.bf16 %v5339, %v5338
        %v5354 = vpack.c.bf16 %v5341, %v5340
        %v5355 = vpack.c.bf16 %v5343, %v5342
        %v5356 = vpack.c.bf16 %v5345, %v5344
        %v5357 = vpack.c.bf16 %v5347, %v5346
        %v5358 = vpack.c.bf16 %v5349, %v5348
        %v5359 = vpack.c.bf16 %v5351, %v5350
        %5360 = vrot.lane.b32.xlu0 %v1447, 32
        %v5361 = vpop.permute.xlu0 %5360
        %v5364 = vsel %vm1832, %v5352, 0
        %5366 = vmatprep.subr.bf16.mxu0 0
        %5367 = vmatpush1.bf16.msra.mxu0 %v5361
        %5368 = vmatprep.subr.bf16.mxu0 0
        %5369 = vmatpush1.bf16.msra.mxu0 0
        %5370 = vmatprep.subr.bf16.mxu0 0
        %5371 = vmatpush1.bf16.msra.mxu0 0
        %5372 = vmatprep.subr.bf16.mxu0 0
        %5373 = vmatpush1.bf16.msra.mxu0 0
        %5374 = vmatprep.subr.bf16.mxu0 0
        %5375 = vmatpush1.bf16.msra.mxu0 0
        %5376 = vmatprep.subr.bf16.mxu0 0
        %5377 = vmatpush1.bf16.msra.mxu0 0
        %5378 = vmatprep.subr.bf16.mxu0 0
        %5379 = vmatpush1.bf16.msra.mxu0 0
        %5380 = vmatprep.subr.bf16.mxu0 0
        %5381 = vmatpush1.bf16.msra.mxu0 0
        %5382 = vmatprep.subr.bf16.mxu0 0
        %5383 = vmatpush1.bf16.msra.mxu0 0
        %5384 = vmatprep.subr.bf16.mxu0 0
        %5385 = vmatpush1.bf16.msra.mxu0 0
        %5386 = vmatprep.subr.bf16.mxu0 0
        %5387 = vmatpush1.bf16.msra.mxu0 0
        %5388 = vmatprep.subr.bf16.mxu0 0
        %5389 = vmatpush1.bf16.msra.mxu0 0
        %5390 = vmatprep.subr.bf16.mxu0 0
        %5391 = vmatpush1.bf16.msra.mxu0 0
        %5392 = vmatprep.subr.bf16.mxu0 0
        %5393 = vmatpush1.bf16.msra.mxu0 0
        %5394 = vmatprep.subr.bf16.mxu0 0
        %5395 = vmatpush1.bf16.msra.mxu0 0
        %5396 = vmatprep.subr.bf16.mxu0 0
        %5397 = vmatpush1.bf16.msra.mxu0 0
        %5398 = vmatprep.mubr.bf16.mxu0 0
        %5399 = vmatmul.mubr.bf16.gmra.mrb[0].mxu0 %v5364
        %v5400 = vpop.f32.mrb[0].mxu0
        %v5401 = vadd.f32 0.0, %v5400
        %v5402 = vpop.f32.mrb[0].mxu0
        %v5403 = vpop.f32.mrb[0].mxu0
        %v5404 = vadd.f32 0.0, %v5403
        %v5405 = vpop.f32.mrb[0].mxu0
        %5406 = vdwg.mxu0
        %5407 = vrot.lane.b32.xlu0 %v1448, 32
        %v5408 = vpop.permute.xlu0 %5407
        %v5411 = vsel %vm1832, %v5353, 0
        %5413 = vmatprep.subr.bf16.mxu0 0
        %5414 = vmatpush1.bf16.msra.mxu0 %v5408
        %5415 = vmatprep.subr.bf16.mxu0 0
        %5416 = vmatpush1.bf16.msra.mxu0 0
        %5417 = vmatprep.subr.bf16.mxu0 0
        %5418 = vmatpush1.bf16.msra.mxu0 0
        %5419 = vmatprep.subr.bf16.mxu0 0
        %5420 = vmatpush1.bf16.msra.mxu0 0
        %5421 = vmatprep.subr.bf16.mxu0 0
        %5422 = vmatpush1.bf16.msra.mxu0 0
        %5423 = vmatprep.subr.bf16.mxu0 0
        %5424 = vmatpush1.bf16.msra.mxu0 0
        %5425 = vmatprep.subr.bf16.mxu0 0
        %5426 = vmatpush1.bf16.msra.mxu0 0
        %5427 = vmatprep.subr.bf16.mxu0 0
        %5428 = vmatpush1.bf16.msra.mxu0 0
        %5429 = vmatprep.subr.bf16.mxu0 0
        %5430 = vmatpush1.bf16.msra.mxu0 0
        %5431 = vmatprep.subr.bf16.mxu0 0
        %5432 = vmatpush1.bf16.msra.mxu0 0
        %5433 = vmatprep.subr.bf16.mxu0 0
        %5434 = vmatpush1.bf16.msra.mxu0 0
        %5435 = vmatprep.subr.bf16.mxu0 0
        %5436 = vmatpush1.bf16.msra.mxu0 0
        %5437 = vmatprep.subr.bf16.mxu0 0
        %5438 = vmatpush1.bf16.msra.mxu0 0
        %5439 = vmatprep.subr.bf16.mxu0 0
        %5440 = vmatpush1.bf16.msra.mxu0 0
        %5441 = vmatprep.subr.bf16.mxu0 0
        %5442 = vmatpush1.bf16.msra.mxu0 0
        %5443 = vmatprep.subr.bf16.mxu0 0
        %5444 = vmatpush1.bf16.msra.mxu0 0
        %5445 = vmatprep.mubr.bf16.mxu0 0
        %5446 = vmatmul.mubr.bf16.gmra.mrb[0].mxu0 %v5411
        %v5447 = vpop.f32.mrb[0].mxu0
        %v5448 = vadd.f32 0.0, %v5447
        %v5449 = vpop.f32.mrb[0].mxu0
        %v5450 = vpop.f32.mrb[0].mxu0
        %v5451 = vadd.f32 0.0, %v5450
        %v5452 = vpop.f32.mrb[0].mxu0
        %5453 = vdwg.mxu0
        %5454 = vrot.lane.b32.xlu0 %v1449, 32
        %v5455 = vpop.permute.xlu0 %5454
        %v5458 = vsel %vm1832, %v5354, 0
        %5460 = vmatprep.subr.bf16.mxu0 0
        %5461 = vmatpush1.bf16.msra.mxu0 %v5455
        %5462 = vmatprep.subr.bf16.mxu0 0
        %5463 = vmatpush1.bf16.msra.mxu0 0
        %5464 = vmatprep.subr.bf16.mxu0 0
        %5465 = vmatpush1.bf16.msra.mxu0 0
        %5466 = vmatprep.subr.bf16.mxu0 0
        %5467 = vmatpush1.bf16.msra.mxu0 0
        %5468 = vmatprep.subr.bf16.mxu0 0
        %5469 = vmatpush1.bf16.msra.mxu0 0
        %5470 = vmatprep.subr.bf16.mxu0 0
        %5471 = vmatpush1.bf16.msra.mxu0 0
        %5472 = vmatprep.subr.bf16.mxu0 0
        %5473 = vmatpush1.bf16.msra.mxu0 0
        %5474 = vmatprep.subr.bf16.mxu0 0
        %5475 = vmatpush1.bf16.msra.mxu0 0
        %5476 = vmatprep.subr.bf16.mxu0 0
        %5477 = vmatpush1.bf16.msra.mxu0 0
        %5478 = vmatprep.subr.bf16.mxu0 0
        %5479 = vmatpush1.bf16.msra.mxu0 0
        %5480 = vmatprep.subr.bf16.mxu0 0
        %5481 = vmatpush1.bf16.msra.mxu0 0
        %5482 = vmatprep.subr.bf16.mxu0 0
        %5483 = vmatpush1.bf16.msra.mxu0 0
        %5484 = vmatprep.subr.bf16.mxu0 0
        %5485 = vmatpush1.bf16.msra.mxu0 0
        %5486 = vmatprep.subr.bf16.mxu0 0
        %5487 = vmatpush1.bf16.msra.mxu0 0
        %5488 = vmatprep.subr.bf16.mxu0 0
        %5489 = vmatpush1.bf16.msra.mxu0 0
        %5490 = vmatprep.subr.bf16.mxu0 0
        %5491 = vmatpush1.bf16.msra.mxu0 0
        %5492 = vmatprep.mubr.bf16.mxu0 0
        %5493 = vmatmul.mubr.bf16.gmra.mrb[0].mxu0 %v5458
        %v5494 = vpop.f32.mrb[0].mxu0
        %v5495 = vadd.f32 0.0, %v5494
        %v5496 = vpop.f32.mrb[0].mxu0
        %v5497 = vpop.f32.mrb[0].mxu0
        %v5498 = vadd.f32 0.0, %v5497
        %v5499 = vpop.f32.mrb[0].mxu0
        %5500 = vdwg.mxu0
        %5501 = vrot.lane.b32.xlu0 %v1450, 32
        %v5502 = vpop.permute.xlu0 %5501
        %v5505 = vsel %vm1832, %v5355, 0
        %5507 = vmatprep.subr.bf16.mxu0 0
        %5508 = vmatpush1.bf16.msra.mxu0 %v5502
        %5509 = vmatprep.subr.bf16.mxu0 0
        %5510 = vmatpush1.bf16.msra.mxu0 0
        %5511 = vmatprep.subr.bf16.mxu0 0
        %5512 = vmatpush1.bf16.msra.mxu0 0
        %5513 = vmatprep.subr.bf16.mxu0 0
        %5514 = vmatpush1.bf16.msra.mxu0 0
        %5515 = vmatprep.subr.bf16.mxu0 0
        %5516 = vmatpush1.bf16.msra.mxu0 0
        %5517 = vmatprep.subr.bf16.mxu0 0
        %5518 = vmatpush1.bf16.msra.mxu0 0
        %5519 = vmatprep.subr.bf16.mxu0 0
        %5520 = vmatpush1.bf16.msra.mxu0 0
        %5521 = vmatprep.subr.bf16.mxu0 0
        %5522 = vmatpush1.bf16.msra.mxu0 0
        %5523 = vmatprep.subr.bf16.mxu0 0
        %5524 = vmatpush1.bf16.msra.mxu0 0
        %5525 = vmatprep.subr.bf16.mxu0 0
        %5526 = vmatpush1.bf16.msra.mxu0 0
        %5527 = vmatprep.subr.bf16.mxu0 0
        %5528 = vmatpush1.bf16.msra.mxu0 0
        %5529 = vmatprep.subr.bf16.mxu0 0
        %5530 = vmatpush1.bf16.msra.mxu0 0
        %5531 = vmatprep.subr.bf16.mxu0 0
        %5532 = vmatpush1.bf16.msra.mxu0 0
        %5533 = vmatprep.subr.bf16.mxu0 0
        %5534 = vmatpush1.bf16.msra.mxu0 0
        %5535 = vmatprep.subr.bf16.mxu0 0
        %5536 = vmatpush1.bf16.msra.mxu0 0
        %5537 = vmatprep.subr.bf16.mxu0 0
        %5538 = vmatpush1.bf16.msra.mxu0 0
        %5539 = vmatprep.mubr.bf16.mxu0 0
        %5540 = vmatmul.mubr.bf16.gmra.mrb[0].mxu0 %v5505
        %v5541 = vpop.f32.mrb[0].mxu0
        %v5542 = vadd.f32 0.0, %v5541
        %v5543 = vpop.f32.mrb[0].mxu0
        %v5544 = vpop.f32.mrb[0].mxu0
        %v5545 = vadd.f32 0.0, %v5544
        %v5546 = vpop.f32.mrb[0].mxu0
        %5547 = vdwg.mxu0
        %5548 = vrot.lane.b32.xlu0 %v1451, 32
        %v5549 = vpop.permute.xlu0 %5548
        %v5552 = vsel %vm1832, %v5356, 0
        %5554 = vmatprep.subr.bf16.mxu0 0
        %5555 = vmatpush1.bf16.msra.mxu0 %v5549
        %5556 = vmatprep.subr.bf16.mxu0 0
        %5557 = vmatpush1.bf16.msra.mxu0 0
        %5558 = vmatprep.subr.bf16.mxu0 0
        %5559 = vmatpush1.bf16.msra.mxu0 0
        %5560 = vmatprep.subr.bf16.mxu0 0
        %5561 = vmatpush1.bf16.msra.mxu0 0
        %5562 = vmatprep.subr.bf16.mxu0 0
        %5563 = vmatpush1.bf16.msra.mxu0 0
        %5564 = vmatprep.subr.bf16.mxu0 0
        %5565 = vmatpush1.bf16.msra.mxu0 0
        %5566 = vmatprep.subr.bf16.mxu0 0
        %5567 = vmatpush1.bf16.msra.mxu0 0
        %5568 = vmatprep.subr.bf16.mxu0 0
        %5569 = vmatpush1.bf16.msra.mxu0 0
        %5570 = vmatprep.subr.bf16.mxu0 0
        %5571 = vmatpush1.bf16.msra.mxu0 0
        %5572 = vmatprep.subr.bf16.mxu0 0
        %5573 = vmatpush1.bf16.msra.mxu0 0
        %5574 = vmatprep.subr.bf16.mxu0 0
        %5575 = vmatpush1.bf16.msra.mxu0 0
        %5576 = vmatprep.subr.bf16.mxu0 0
        %5577 = vmatpush1.bf16.msra.mxu0 0
        %5578 = vmatprep.subr.bf16.mxu0 0
        %5579 = vmatpush1.bf16.msra.mxu0 0
        %5580 = vmatprep.subr.bf16.mxu0 0
        %5581 = vmatpush1.bf16.msra.mxu0 0
        %5582 = vmatprep.subr.bf16.mxu0 0
        %5583 = vmatpush1.bf16.msra.mxu0 0
        %5584 = vmatprep.subr.bf16.mxu0 0
        %5585 = vmatpush1.bf16.msra.mxu0 0
        %5586 = vmatprep.mubr.bf16.mxu0 0
        %5587 = vmatmul.mubr.bf16.gmra.mrb[0].mxu0 %v5552
        %v5588 = vpop.f32.mrb[0].mxu0
        %v5589 = vadd.f32 0.0, %v5588
        %v5590 = vpop.f32.mrb[0].mxu0
        %v5591 = vpop.f32.mrb[0].mxu0
        %v5592 = vadd.f32 0.0, %v5591
        %v5593 = vpop.f32.mrb[0].mxu0
        %5594 = vdwg.mxu0
        %5595 = vrot.lane.b32.xlu0 %v1452, 32
        %v5596 = vpop.permute.xlu0 %5595
        %v5599 = vsel %vm1832, %v5357, 0
        %5601 = vmatprep.subr.bf16.mxu0 0
        %5602 = vmatpush1.bf16.msra.mxu0 %v5596
        %5603 = vmatprep.subr.bf16.mxu0 0
        %5604 = vmatpush1.bf16.msra.mxu0 0
        %5605 = vmatprep.subr.bf16.mxu0 0
        %5606 = vmatpush1.bf16.msra.mxu0 0
        %5607 = vmatprep.subr.bf16.mxu0 0
        %5608 = vmatpush1.bf16.msra.mxu0 0
        %5609 = vmatprep.subr.bf16.mxu0 0
        %5610 = vmatpush1.bf16.msra.mxu0 0
        %5611 = vmatprep.subr.bf16.mxu0 0
        %5612 = vmatpush1.bf16.msra.mxu0 0
        %5613 = vmatprep.subr.bf16.mxu0 0
        %5614 = vmatpush1.bf16.msra.mxu0 0
        %5615 = vmatprep.subr.bf16.mxu0 0
        %5616 = vmatpush1.bf16.msra.mxu0 0
        %5617 = vmatprep.subr.bf16.mxu0 0
        %5618 = vmatpush1.bf16.msra.mxu0 0
        %5619 = vmatprep.subr.bf16.mxu0 0
        %5620 = vmatpush1.bf16.msra.mxu0 0
        %5621 = vmatprep.subr.bf16.mxu0 0
        %5622 = vmatpush1.bf16.msra.mxu0 0
        %5623 = vmatprep.subr.bf16.mxu0 0
        %5624 = vmatpush1.bf16.msra.mxu0 0
        %5625 = vmatprep.subr.bf16.mxu0 0
        %5626 = vmatpush1.bf16.msra.mxu0 0
        %5627 = vmatprep.subr.bf16.mxu0 0
        %5628 = vmatpush1.bf16.msra.mxu0 0
        %5629 = vmatprep.subr.bf16.mxu0 0
        %5630 = vmatpush1.bf16.msra.mxu0 0
        %5631 = vmatprep.subr.bf16.mxu0 0
        %5632 = vmatpush1.bf16.msra.mxu0 0
        %5633 = vmatprep.mubr.bf16.mxu0 0
        %5634 = vmatmul.mubr.bf16.gmra.mrb[0].mxu0 %v5599
        %v5635 = vpop.f32.mrb[0].mxu0
        %v5636 = vadd.f32 0.0, %v5635
        %v5637 = vpop.f32.mrb[0].mxu0
        %v5638 = vpop.f32.mrb[0].mxu0
        %v5639 = vadd.f32 0.0, %v5638
        %v5640 = vpop.f32.mrb[0].mxu0
        %5641 = vdwg.mxu0
        %5642 = vrot.lane.b32.xlu0 %v1453, 32
        %v5643 = vpop.permute.xlu0 %5642
        %v5646 = vsel %vm1832, %v5358, 0
        %5648 = vmatprep.subr.bf16.mxu0 0
        %5649 = vmatpush1.bf16.msra.mxu0 %v5643
        %5650 = vmatprep.subr.bf16.mxu0 0
        %5651 = vmatpush1.bf16.msra.mxu0 0
        %5652 = vmatprep.subr.bf16.mxu0 0
        %5653 = vmatpush1.bf16.msra.mxu0 0
        %5654 = vmatprep.subr.bf16.mxu0 0
        %5655 = vmatpush1.bf16.msra.mxu0 0
        %5656 = vmatprep.subr.bf16.mxu0 0
        %5657 = vmatpush1.bf16.msra.mxu0 0
        %5658 = vmatprep.subr.bf16.mxu0 0
        %5659 = vmatpush1.bf16.msra.mxu0 0
        %5660 = vmatprep.subr.bf16.mxu0 0
        %5661 = vmatpush1.bf16.msra.mxu0 0
        %5662 = vmatprep.subr.bf16.mxu0 0
        %5663 = vmatpush1.bf16.msra.mxu0 0
        %5664 = vmatprep.subr.bf16.mxu0 0
        %5665 = vmatpush1.bf16.msra.mxu0 0
        %5666 = vmatprep.subr.bf16.mxu0 0
        %5667 = vmatpush1.bf16.msra.mxu0 0
        %5668 = vmatprep.subr.bf16.mxu0 0
        %5669 = vmatpush1.bf16.msra.mxu0 0
        %5670 = vmatprep.subr.bf16.mxu0 0
        %5671 = vmatpush1.bf16.msra.mxu0 0
        %5672 = vmatprep.subr.bf16.mxu0 0
        %5673 = vmatpush1.bf16.msra.mxu0 0
        %5674 = vmatprep.subr.bf16.mxu0 0
        %5675 = vmatpush1.bf16.msra.mxu0 0
        %5676 = vmatprep.subr.bf16.mxu0 0
        %5677 = vmatpush1.bf16.msra.mxu0 0
        %5678 = vmatprep.subr.bf16.mxu0 0
        %5679 = vmatpush1.bf16.msra.mxu0 0
        %5680 = vmatprep.mubr.bf16.mxu0 0
        %5681 = vmatmul.mubr.bf16.gmra.mrb[0].mxu0 %v5646
        %v5682 = vpop.f32.mrb[0].mxu0
        %v5683 = vadd.f32 0.0, %v5682
        %v5684 = vpop.f32.mrb[0].mxu0
        %v5685 = vpop.f32.mrb[0].mxu0
        %v5686 = vadd.f32 0.0, %v5685
        %v5687 = vpop.f32.mrb[0].mxu0
        %5688 = vdwg.mxu0
        %5689 = vrot.lane.b32.xlu0 %v1454, 32
        %v5690 = vpop.permute.xlu0 %5689
        %v5693 = vsel %vm1832, %v5359, 0
        %5695 = vmatprep.subr.bf16.mxu0 0
        %5696 = vmatpush1.bf16.msra.mxu0 %v5690
        %5697 = vmatprep.subr.bf16.mxu0 0
        %5698 = vmatpush1.bf16.msra.mxu0 0
        %5699 = vmatprep.subr.bf16.mxu0 0
        %5700 = vmatpush1.bf16.msra.mxu0 0
        %5701 = vmatprep.subr.bf16.mxu0 0
        %5702 = vmatpush1.bf16.msra.mxu0 0
        %5703 = vmatprep.subr.bf16.mxu0 0
        %5704 = vmatpush1.bf16.msra.mxu0 0
        %5705 = vmatprep.subr.bf16.mxu0 0
        %5706 = vmatpush1.bf16.msra.mxu0 0
        %5707 = vmatprep.subr.bf16.mxu0 0
        %5708 = vmatpush1.bf16.msra.mxu0 0
        %5709 = vmatprep.subr.bf16.mxu0 0
        %5710 = vmatpush1.bf16.msra.mxu0 0
        %5711 = vmatprep.subr.bf16.mxu0 0
        %5712 = vmatpush1.bf16.msra.mxu0 0
        %5713 = vmatprep.subr.bf16.mxu0 0
        %5714 = vmatpush1.bf16.msra.mxu0 0
        %5715 = vmatprep.subr.bf16.mxu0 0
        %5716 = vmatpush1.bf16.msra.mxu0 0
        %5717 = vmatprep.subr.bf16.mxu0 0
        %5718 = vmatpush1.bf16.msra.mxu0 0
        %5719 = vmatprep.subr.bf16.mxu0 0
        %5720 = vmatpush1.bf16.msra.mxu0 0
        %5721 = vmatprep.subr.bf16.mxu0 0
        %5722 = vmatpush1.bf16.msra.mxu0 0
        %5723 = vmatprep.subr.bf16.mxu0 0
        %5724 = vmatpush1.bf16.msra.mxu0 0
        %5725 = vmatprep.subr.bf16.mxu0 0
        %5726 = vmatpush1.bf16.msra.mxu0 0
        %5727 = vmatprep.mubr.bf16.mxu0 0
        %5728 = vmatmul.mubr.bf16.gmra.mrb[0].mxu0 %v5693
        %v5729 = vpop.f32.mrb[0].mxu0
        %v5730 = vadd.f32 0.0, %v5729
        %v5731 = vpop.f32.mrb[0].mxu0
        %v5732 = vpop.f32.mrb[0].mxu0
        %v5733 = vadd.f32 0.0, %v5732
        %v5734 = vpop.f32.mrb[0].mxu0
        %5735 = vdwg.mxu0
        %v5736 = vpack.c.bf16 %v5404, %v5401
        %v5737 = vpack.c.bf16 %v5451, %v5448
        %v5738 = vpack.c.bf16 %v5498, %v5495
        %v5739 = vpack.c.bf16 %v5545, %v5542
        %v5740 = vpack.c.bf16 %v5592, %v5589
        %v5741 = vpack.c.bf16 %v5639, %v5636
        %v5742 = vpack.c.bf16 %v5686, %v5683
        %v5743 = vpack.c.bf16 %v5733, %v5730
        %v5748 = vunpack.c.l.b16 %v1427
        %v5749 = vunpack.c.l.b16 %v1428
        %v5750 = vunpack.c.l.b16 %v1429
        %v5751 = vunpack.c.l.b16 %v1430
        %v5752 = vpack.c.b16 %v5749, %v5748
        %v5753 = vpack.c.b16 %v5751, %v5750
        %v5757 = vsel %vm1455, %v5736, 0
        %v5760 = vsel %vm1455, %v5737, 0
        %v5763 = vsel %vm1455, %v5738, 0
        %v5766 = vsel %vm1455, %v5739, 0
        %v5769 = vsel %vm1455, %v5740, 0
        %v5772 = vsel %vm1455, %v5741, 0
        %v5775 = vsel %vm1455, %v5742, 0
        %v5778 = vsel %vm1455, %v5743, 0
        %5780 = vmatprep.subr.bf16.mxu0 0
        %5781 = vmatpush1.bf16.msra.mxu0 %v5752
        %5782 = vmatprep.subr.bf16.mxu0 0
        %5783 = vmatpush1.bf16.msra.mxu0 %v5753
        %5784 = vmatprep.subr.bf16.mxu0 0
        %5785 = vmatpush1.bf16.msra.mxu0 0
        %5786 = vmatprep.subr.bf16.mxu0 0
        %5787 = vmatpush1.bf16.msra.mxu0 0
        %5788 = vmatprep.subr.bf16.mxu0 0
        %5789 = vmatpush1.bf16.msra.mxu0 0
        %5790 = vmatprep.subr.bf16.mxu0 0
        %5791 = vmatpush1.bf16.msra.mxu0 0
        %5792 = vmatprep.subr.bf16.mxu0 0
        %5793 = vmatpush1.bf16.msra.mxu0 0
        %5794 = vmatprep.subr.bf16.mxu0 0
        %5795 = vmatpush1.bf16.msra.mxu0 0
        %5796 = vmatprep.subr.bf16.mxu0 0
        %5797 = vmatpush1.bf16.msra.mxu0 0
        %5798 = vmatprep.subr.bf16.mxu0 0
        %5799 = vmatpush1.bf16.msra.mxu0 0
        %5800 = vmatprep.subr.bf16.mxu0 0
        %5801 = vmatpush1.bf16.msra.mxu0 0
        %5802 = vmatprep.subr.bf16.mxu0 0
        %5803 = vmatpush1.bf16.msra.mxu0 0
        %5804 = vmatprep.subr.bf16.mxu0 0
        %5805 = vmatpush1.bf16.msra.mxu0 0
        %5806 = vmatprep.subr.bf16.mxu0 0
        %5807 = vmatpush1.bf16.msra.mxu0 0
        %5808 = vmatprep.subr.bf16.mxu0 0
        %5809 = vmatpush1.bf16.msra.mxu0 0
        %5810 = vmatprep.subr.bf16.mxu0 0
        %5811 = vmatpush1.bf16.msra.mxu0 0
        %5812 = vmatprep.mubr.bf16.mxu0 0
        %5813 = vmatmul.mubr.bf16.gmra.mrb[0].mxu0 %v5757
        %v5814 = vpop.f32.mrb[0].mxu0
        %v5815 = vadd.f32 0.0, %v5814
        %v5816 = vpop.f32.mrb[0].mxu0
        %v5817 = vpop.f32.mrb[0].mxu0
        %v5818 = vadd.f32 0.0, %v5817
        %v5819 = vpop.f32.mrb[0].mxu0
        %5820 = vmatprep.mubr.bf16.mxu0 0
        %5821 = vmatmul.mubr.bf16.gmra.mrb[0].mxu0 %v5760
        %v5822 = vpop.f32.mrb[0].mxu0
        %v5823 = vadd.f32 0.0, %v5822
        %v5824 = vpop.f32.mrb[0].mxu0
        %v5825 = vpop.f32.mrb[0].mxu0
        %v5826 = vadd.f32 0.0, %v5825
        %v5827 = vpop.f32.mrb[0].mxu0
        %5828 = vmatprep.mubr.bf16.mxu0 0
        %5829 = vmatmul.mubr.bf16.gmra.mrb[0].mxu0 %v5763
        %v5830 = vpop.f32.mrb[0].mxu0
        %v5831 = vadd.f32 0.0, %v5830
        %v5832 = vpop.f32.mrb[0].mxu0
        %v5833 = vpop.f32.mrb[0].mxu0
        %v5834 = vadd.f32 0.0, %v5833
        %v5835 = vpop.f32.mrb[0].mxu0
        %5836 = vmatprep.mubr.bf16.mxu0 0
        %5837 = vmatmul.mubr.bf16.gmra.mrb[0].mxu0 %v5766
        %v5838 = vpop.f32.mrb[0].mxu0
        %v5839 = vadd.f32 0.0, %v5838
        %v5840 = vpop.f32.mrb[0].mxu0
        %v5841 = vpop.f32.mrb[0].mxu0
        %v5842 = vadd.f32 0.0, %v5841
        %v5843 = vpop.f32.mrb[0].mxu0
        %5844 = vmatprep.mubr.bf16.mxu0 0
        %5845 = vmatmul.mubr.bf16.gmra.mrb[0].mxu0 %v5769
        %v5846 = vpop.f32.mrb[0].mxu0
        %v5847 = vadd.f32 0.0, %v5846
        %v5848 = vpop.f32.mrb[0].mxu0
        %v5849 = vpop.f32.mrb[0].mxu0
        %v5850 = vadd.f32 0.0, %v5849
        %v5851 = vpop.f32.mrb[0].mxu0
        %5852 = vmatprep.mubr.bf16.mxu0 0
        %5853 = vmatmul.mubr.bf16.gmra.mrb[0].mxu0 %v5772
        %v5854 = vpop.f32.mrb[0].mxu0
        %v5855 = vadd.f32 0.0, %v5854
        %v5856 = vpop.f32.mrb[0].mxu0
        %v5857 = vpop.f32.mrb[0].mxu0
        %v5858 = vadd.f32 0.0, %v5857
        %v5859 = vpop.f32.mrb[0].mxu0
        %5860 = vmatprep.mubr.bf16.mxu0 0
        %5861 = vmatmul.mubr.bf16.gmra.mrb[0].mxu0 %v5775
        %v5862 = vpop.f32.mrb[0].mxu0
        %v5863 = vadd.f32 0.0, %v5862
        %v5864 = vpop.f32.mrb[0].mxu0
        %v5865 = vpop.f32.mrb[0].mxu0
        %v5866 = vadd.f32 0.0, %v5865
        %v5867 = vpop.f32.mrb[0].mxu0
        %5868 = vmatprep.mubr.bf16.mxu0 0
        %5869 = vmatmul.mubr.bf16.gmra.mrb[0].mxu0 %v5778
        %v5870 = vpop.f32.mrb[0].mxu0
        %v5871 = vadd.f32 0.0, %v5870
        %v5872 = vpop.f32.mrb[0].mxu0
        %v5873 = vpop.f32.mrb[0].mxu0
        %v5874 = vadd.f32 0.0, %v5873
        %v5875 = vpop.f32.mrb[0].mxu0
        %5876 = vdwg.mxu0
        %v5877 = vadd.f32 %v4752, %v5815
        %v5878 = vadd.f32 %v4753, %v5818
        %v5879 = vadd.f32 %v4754, %v5823
        %v5880 = vadd.f32 %v4755, %v5826
        %v5881 = vadd.f32 %v4756, %v5831
        %v5882 = vadd.f32 %v4757, %v5834
        %v5883 = vadd.f32 %v4758, %v5839
        %v5884 = vadd.f32 %v4759, %v5842
        %v5885 = vadd.f32 %v4760, %v5847
        %v5886 = vadd.f32 %v4761, %v5850
        %v5887 = vadd.f32 %v4762, %v5855
        %v5888 = vadd.f32 %v4763, %v5858
        %v5889 = vadd.f32 %v4764, %v5863
        %v5890 = vadd.f32 %v4765, %v5866
        %v5891 = vadd.f32 %v4766, %v5871
        %v5892 = vadd.f32 %v4767, %v5874
        %v5893 = vadd.f32 %v773, %v5877
        %v5894 = vadd.f32 %v774, %v5878
        %v5895 = vadd.f32 %v775, %v5879
        %v5896 = vadd.f32 %v776, %v5880
        %v5897 = vadd.f32 %v777, %v5881
        %v5898 = vadd.f32 %v778, %v5882
        %v5899 = vadd.f32 %v779, %v5883
        %v5900 = vadd.f32 %v780, %v5884
        %v5901 = vadd.f32 %v781, %v5885
        %v5902 = vadd.f32 %v782, %v5886
        %v5903 = vadd.f32 %v783, %v5887
        %v5904 = vadd.f32 %v784, %v5888
        %v5905 = vadd.f32 %v785, %v5889
        %v5906 = vadd.f32 %v786, %v5890
        %v5907 = vadd.f32 %v787, %v5891
        %v5908 = vadd.f32 %v788, %v5892
        %v5909 = vlaneseq
        %v5910 = vshrl.u32 %v5909, 7
        %v5911 = vsub.s32 3, %v5910
        %v5912 = vrot.slane %v789, %v5911
        %v5913 = vadd.f32 %v5893, %v5912
        %v5914 = vadd.f32 %v5894, %v5912
        %v5915 = vadd.f32 %v5895, %v5912
        %v5916 = vadd.f32 %v5896, %v5912
        %v5917 = vadd.f32 %v5897, %v5912
        %v5918 = vadd.f32 %v5898, %v5912
        %v5919 = vadd.f32 %v5899, %v5912
        %v5920 = vadd.f32 %v5900, %v5912
        %v5921 = vadd.f32 %v5901, %v5912
        %v5922 = vadd.f32 %v5902, %v5912
        %v5923 = vadd.f32 %v5903, %v5912
        %v5924 = vadd.f32 %v5904, %v5912
        %v5925 = vadd.f32 %v5905, %v5912
        %v5926 = vadd.f32 %v5906, %v5912
        %v5927 = vadd.f32 %v5907, %v5912
        %v5928 = vadd.f32 %v5908, %v5912
        %5929 = vadd.xlane.f32.xlu0 %v5913
        %v5930 = vpop.xlane.xlu0 %5929
        %5931 = vadd.xlane.f32.xlu0 %v5914
        %v5932 = vpop.xlane.xlu0 %5931
        %5933 = vadd.xlane.f32.xlu0 %v5915
        %v5934 = vpop.xlane.xlu0 %5933
        %5935 = vadd.xlane.f32.xlu0 %v5916
        %v5936 = vpop.xlane.xlu0 %5935
        %5937 = vadd.xlane.f32.xlu0 %v5917
        %v5938 = vpop.xlane.xlu0 %5937
        %5939 = vadd.xlane.f32.xlu0 %v5918
        %v5940 = vpop.xlane.xlu0 %5939
        %5941 = vadd.xlane.f32.xlu0 %v5919
        %v5942 = vpop.xlane.xlu0 %5941
        %5943 = vadd.xlane.f32.xlu0 %v5920
        %v5944 = vpop.xlane.xlu0 %5943
        %5945 = vadd.xlane.f32.xlu0 %v5921
        %v5946 = vpop.xlane.xlu0 %5945
        %5947 = vadd.xlane.f32.xlu0 %v5922
        %v5948 = vpop.xlane.xlu0 %5947
        %5949 = vadd.xlane.f32.xlu0 %v5923
        %v5950 = vpop.xlane.xlu0 %5949
        %5951 = vadd.xlane.f32.xlu0 %v5924
        %v5952 = vpop.xlane.xlu0 %5951
        %5953 = vadd.xlane.f32.xlu0 %v5925
        %v5954 = vpop.xlane.xlu0 %5953
        %5955 = vadd.xlane.f32.xlu0 %v5926
        %v5956 = vpop.xlane.xlu0 %5955
        %5957 = vadd.xlane.f32.xlu0 %v5927
        %v5958 = vpop.xlane.xlu0 %5957
        %5959 = vadd.xlane.f32.xlu0 %v5928
        %v5960 = vpop.xlane.xlu0 %5959
        %v5961 = vmul.f32 %v5930, %v824
        %v5962 = vmul.f32 %v5932, %v824
        %v5963 = vmul.f32 %v5934, %v824
        %v5964 = vmul.f32 %v5936, %v824
        %v5965 = vmul.f32 %v5938, %v824
        %v5966 = vmul.f32 %v5940, %v824
        %v5967 = vmul.f32 %v5942, %v824
        %v5968 = vmul.f32 %v5944, %v824
        %v5969 = vmul.f32 %v5946, %v824
        %v5970 = vmul.f32 %v5948, %v824
        %v5971 = vmul.f32 %v5950, %v824
        %v5972 = vmul.f32 %v5952, %v824
        %v5973 = vmul.f32 %v5954, %v824
        %v5974 = vmul.f32 %v5956, %v824
        %v5975 = vmul.f32 %v5958, %v824
        %v5976 = vmul.f32 %v5960, %v824
        %v5977 = vsub.f32 %v5913, %v5961
        %v5978 = vsub.f32 %v5914, %v5962
        %v5979 = vsub.f32 %v5915, %v5963
        %v5980 = vsub.f32 %v5916, %v5964
        %v5981 = vsub.f32 %v5917, %v5965
        %v5982 = vsub.f32 %v5918, %v5966
        %v5983 = vsub.f32 %v5919, %v5967
        %v5984 = vsub.f32 %v5920, %v5968
        %v5985 = vsub.f32 %v5921, %v5969
        %v5986 = vsub.f32 %v5922, %v5970
        %v5987 = vsub.f32 %v5923, %v5971
        %v5988 = vsub.f32 %v5924, %v5972
        %v5989 = vsub.f32 %v5925, %v5973
        %v5990 = vsub.f32 %v5926, %v5974
        %v5991 = vsub.f32 %v5927, %v5975
        %v5992 = vsub.f32 %v5928, %v5976
        %v5993 = vmul.f32 %v5977, %v5977
        %v5994 = vmul.f32 %v5978, %v5978
        %v5995 = vmul.f32 %v5979, %v5979
        %v5996 = vmul.f32 %v5980, %v5980
        %v5997 = vmul.f32 %v5981, %v5981
        %v5998 = vmul.f32 %v5982, %v5982
        %v5999 = vmul.f32 %v5983, %v5983
        %v6000 = vmul.f32 %v5984, %v5984
        %v6001 = vmul.f32 %v5985, %v5985
        %v6002 = vmul.f32 %v5986, %v5986
        %v6003 = vmul.f32 %v5987, %v5987
        %v6004 = vmul.f32 %v5988, %v5988
        %v6005 = vmul.f32 %v5989, %v5989
        %v6006 = vmul.f32 %v5990, %v5990
        %v6007 = vmul.f32 %v5991, %v5991
        %v6008 = vmul.f32 %v5992, %v5992
        %6009 = vadd.xlane.f32.xlu0 %v5993
        %v6010 = vpop.xlane.xlu0 %6009
        %6011 = vadd.xlane.f32.xlu0 %v5994
        %v6012 = vpop.xlane.xlu0 %6011
        %6013 = vadd.xlane.f32.xlu0 %v5995
        %v6014 = vpop.xlane.xlu0 %6013
        %6015 = vadd.xlane.f32.xlu0 %v5996
        %v6016 = vpop.xlane.xlu0 %6015
        %6017 = vadd.xlane.f32.xlu0 %v5997
        %v6018 = vpop.xlane.xlu0 %6017
        %6019 = vadd.xlane.f32.xlu0 %v5998
        %v6020 = vpop.xlane.xlu0 %6019
        %6021 = vadd.xlane.f32.xlu0 %v5999
        %v6022 = vpop.xlane.xlu0 %6021
        %6023 = vadd.xlane.f32.xlu0 %v6000
        %v6024 = vpop.xlane.xlu0 %6023
        %6025 = vadd.xlane.f32.xlu0 %v6001
        %v6026 = vpop.xlane.xlu0 %6025
        %6027 = vadd.xlane.f32.xlu0 %v6002
        %v6028 = vpop.xlane.xlu0 %6027
        %6029 = vadd.xlane.f32.xlu0 %v6003
        %v6030 = vpop.xlane.xlu0 %6029
        %6031 = vadd.xlane.f32.xlu0 %v6004
        %v6032 = vpop.xlane.xlu0 %6031
        %6033 = vadd.xlane.f32.xlu0 %v6005
        %v6034 = vpop.xlane.xlu0 %6033
        %6035 = vadd.xlane.f32.xlu0 %v6006
        %v6036 = vpop.xlane.xlu0 %6035
        %6037 = vadd.xlane.f32.xlu0 %v6007
        %v6038 = vpop.xlane.xlu0 %6037
        %6039 = vadd.xlane.f32.xlu0 %v6008
        %v6040 = vpop.xlane.xlu0 %6039
        %v6041 = vmul.f32 %v6010, %v824
        %v6042 = vmul.f32 %v6012, %v824
        %v6043 = vmul.f32 %v6014, %v824
        %v6044 = vmul.f32 %v6016, %v824
        %v6045 = vmul.f32 %v6018, %v824
        %v6046 = vmul.f32 %v6020, %v824
        %v6047 = vmul.f32 %v6022, %v824
        %v6048 = vmul.f32 %v6024, %v824
        %v6049 = vmul.f32 %v6026, %v824
        %v6050 = vmul.f32 %v6028, %v824
        %v6051 = vmul.f32 %v6030, %v824
        %v6052 = vmul.f32 %v6032, %v824
        %v6053 = vmul.f32 %v6034, %v824
        %v6054 = vmul.f32 %v6036, %v824
        %v6055 = vmul.f32 %v6038, %v824
        %v6056 = vmul.f32 %v6040, %v824
        %v6057 = vadd.f32 %v6041, 1e-06
        %v6058 = vadd.f32 %v6042, 1e-06
        %v6059 = vadd.f32 %v6043, 1e-06
        %v6060 = vadd.f32 %v6044, 1e-06
        %v6061 = vadd.f32 %v6045, 1e-06
        %v6062 = vadd.f32 %v6046, 1e-06
        %v6063 = vadd.f32 %v6047, 1e-06
        %v6064 = vadd.f32 %v6048, 1e-06
        %v6065 = vadd.f32 %v6049, 1e-06
        %v6066 = vadd.f32 %v6050, 1e-06
        %v6067 = vadd.f32 %v6051, 1e-06
        %v6068 = vadd.f32 %v6052, 1e-06
        %v6069 = vadd.f32 %v6053, 1e-06
        %v6070 = vadd.f32 %v6054, 1e-06
        %v6071 = vadd.f32 %v6055, 1e-06
        %v6072 = vadd.f32 %v6056, 1e-06
        %v6073 = vrsqrt.pop %v6057
        %v6074 = vrsqrt.pop %v6058
        %v6075 = vrsqrt.pop %v6059
        %v6076 = vrsqrt.pop %v6060
        %v6077 = vrsqrt.pop %v6061
        %v6078 = vrsqrt.pop %v6062
        %v6079 = vrsqrt.pop %v6063
        %v6080 = vrsqrt.pop %v6064
        %v6081 = vrsqrt.pop %v6065
        %v6082 = vrsqrt.pop %v6066
        %v6083 = vrsqrt.pop %v6067
        %v6084 = vrsqrt.pop %v6068
        %v6085 = vrsqrt.pop %v6069
        %v6086 = vrsqrt.pop %v6070
        %v6087 = vrsqrt.pop %v6071
        %v6088 = vrsqrt.pop %v6072
        %v6089 = vmul.f32 %v5977, %v6073
        %v6090 = vmul.f32 %v5978, %v6074
        %v6091 = vmul.f32 %v5979, %v6075
        %v6092 = vmul.f32 %v5980, %v6076
        %v6093 = vmul.f32 %v5981, %v6077
        %v6094 = vmul.f32 %v5982, %v6078
        %v6095 = vmul.f32 %v5983, %v6079
        %v6096 = vmul.f32 %v5984, %v6080
        %v6097 = vmul.f32 %v5985, %v6081
        %v6098 = vmul.f32 %v5986, %v6082
        %v6099 = vmul.f32 %v5987, %v6083
        %v6100 = vmul.f32 %v5988, %v6084
        %v6101 = vmul.f32 %v5989, %v6085
        %v6102 = vmul.f32 %v5990, %v6086
        %v6103 = vmul.f32 %v5991, %v6087
        %v6104 = vmul.f32 %v5992, %v6088
        %v6105 = vlaneseq
        %v6106 = vshrl.u32 %v6105, 7
        %v6107 = vsub.s32 4, %v6106
        %v6108 = vrot.slane %v789, %v6107
        %v6109 = vmul.f32 %v6089, %v6108
        %v6110 = vmul.f32 %v6090, %v6108
        %v6111 = vmul.f32 %v6091, %v6108
        %v6112 = vmul.f32 %v6092, %v6108
        %v6113 = vmul.f32 %v6093, %v6108
        %v6114 = vmul.f32 %v6094, %v6108
        %v6115 = vmul.f32 %v6095, %v6108
        %v6116 = vmul.f32 %v6096, %v6108
        %v6117 = vmul.f32 %v6097, %v6108
        %v6118 = vmul.f32 %v6098, %v6108
        %v6119 = vmul.f32 %v6099, %v6108
        %v6120 = vmul.f32 %v6100, %v6108
        %v6121 = vmul.f32 %v6101, %v6108
        %v6122 = vmul.f32 %v6102, %v6108
        %v6123 = vmul.f32 %v6103, %v6108
        %v6124 = vmul.f32 %v6104, %v6108
        %v6125 = vlaneseq
        %v6126 = vshrl.u32 %v6125, 7
        %v6127 = vsub.s32 5, %v6126
        %v6128 = vrot.slane %v789, %v6127
        %v6129 = vadd.f32 %v6109, %v6128
        %v6130 = vadd.f32 %v6110, %v6128
        %v6131 = vadd.f32 %v6111, %v6128
        %v6132 = vadd.f32 %v6112, %v6128
        %v6133 = vadd.f32 %v6113, %v6128
        %v6134 = vadd.f32 %v6114, %v6128
        %v6135 = vadd.f32 %v6115, %v6128
        %v6136 = vadd.f32 %v6116, %v6128
        %v6137 = vadd.f32 %v6117, %v6128
        %v6138 = vadd.f32 %v6118, %v6128
        %v6139 = vadd.f32 %v6119, %v6128
        %v6140 = vadd.f32 %v6120, %v6128
        %v6141 = vadd.f32 %v6121, %v6128
        %v6142 = vadd.f32 %v6122, %v6128
        %v6143 = vadd.f32 %v6123, %v6128
        %v6144 = vadd.f32 %v6124, %v6128
        %v6145 = vpack.c.bf16 %v6130, %v6129
        %v6146 = vpack.c.bf16 %v6132, %v6131
        %v6147 = vpack.c.bf16 %v6134, %v6133
        %v6148 = vpack.c.bf16 %v6136, %v6135
        %v6149 = vpack.c.bf16 %v6138, %v6137
        %v6150 = vpack.c.bf16 %v6140, %v6139
        %v6151 = vpack.c.bf16 %v6142, %v6141
        %v6152 = vpack.c.bf16 %v6144, %v6143
        %v6153 = vld [vmem:[%s555] sm:$0xff]
        %v6154 = vld [vmem:[%s555 + $0x8] sm:$0xff]
        %v6155 = vld [vmem:[%s555 + $0x10] sm:$0xff]
        %v6156 = vld [vmem:[%s555 + $0x18] sm:$0xff]
        %v6157 = vld [vmem:[%s555 + $0x20] sm:$0xff]
        %v6158 = vld [vmem:[%s555 + $0x28] sm:$0xff]
        %v6159 = vld [vmem:[%s555 + $0x30] sm:$0xff]
        %v6160 = vld [vmem:[%s555 + $0x38] sm:$0xff]
        %v6161 = vld [vmem:[%s555 + $0x40] sm:$0xff]
        %v6162 = vld [vmem:[%s555 + $0x48] sm:$0xff]
        %v6163 = vld [vmem:[%s555 + $0x50] sm:$0xff]
        %v6164 = vld [vmem:[%s555 + $0x58] sm:$0xff]
        %v6165 = vld [vmem:[%s555 + $0x60] sm:$0xff]
        %v6166 = vld [vmem:[%s555 + $0x68] sm:$0xff]
        %v6167 = vld [vmem:[%s555 + $0x70] sm:$0xff]
        %v6168 = vld [vmem:[%s555 + $0x78] sm:$0xff]
        %v6169 = vlaneseq
        %v6170 = vshrl.u32 %v6169, 7
        %v6171 = vsub.s32 6, %v6170
        %v6172 = vrot.slane %v789, %v6171
        %v6173 = vlaneseq
        %v6174 = vshrl.u32 %v6173, 7
        %v6175 = vsub.s32 6, %v6174
        %v6176 = vrot.slane %v790, %v6175
        %v6193 = vunpack.c.l.b16 %v6153
        %v6194 = vunpack.c.h.b16 %v6153
        %v6195 = vunpack.c.l.b16 %v6154
        %v6196 = vunpack.c.h.b16 %v6154
        %v6197 = vunpack.c.l.b16 %v6155
        %v6198 = vunpack.c.h.b16 %v6155
        %v6199 = vunpack.c.l.b16 %v6156
        %v6200 = vunpack.c.h.b16 %v6156
        %v6201 = vunpack.c.l.b16 %v6157
        %v6202 = vunpack.c.h.b16 %v6157
        %v6203 = vunpack.c.l.b16 %v6158
        %v6204 = vunpack.c.h.b16 %v6158
        %v6205 = vunpack.c.l.b16 %v6159
        %v6206 = vunpack.c.h.b16 %v6159
        %v6207 = vunpack.c.l.b16 %v6160
        %v6208 = vunpack.c.h.b16 %v6160
        %v6209 = vunpack.c.l.b16 %v6161
        %v6210 = vunpack.c.h.b16 %v6161
        %v6211 = vunpack.c.l.b16 %v6162
        %v6212 = vunpack.c.h.b16 %v6162
        %v6213 = vunpack.c.l.b16 %v6163
        %v6214 = vunpack.c.h.b16 %v6163
        %v6215 = vunpack.c.l.b16 %v6164
        %v6216 = vunpack.c.h.b16 %v6164
        %v6217 = vunpack.c.l.b16 %v6165
        %v6218 = vunpack.c.h.b16 %v6165
        %v6219 = vunpack.c.l.b16 %v6166
        %v6220 = vunpack.c.h.b16 %v6166
        %v6221 = vunpack.c.l.b16 %v6167
        %v6222 = vunpack.c.h.b16 %v6167
        %v6223 = vunpack.c.l.b16 %v6168
        %v6224 = vunpack.c.h.b16 %v6168
        %v6225 = vpack.c.b16 %v6195, %v6193
        %v6226 = vpack.c.b16 %v6196, %v6194
        %v6227 = vpack.c.b16 %v6199, %v6197
        %v6228 = vpack.c.b16 %v6200, %v6198
        %v6229 = vpack.c.b16 %v6203, %v6201
        %v6230 = vpack.c.b16 %v6204, %v6202
        %v6231 = vpack.c.b16 %v6207, %v6205
        %v6232 = vpack.c.b16 %v6208, %v6206
        %v6233 = vpack.c.b16 %v6211, %v6209
        %v6234 = vpack.c.b16 %v6212, %v6210
        %v6235 = vpack.c.b16 %v6215, %v6213
        %v6236 = vpack.c.b16 %v6216, %v6214
        %v6237 = vpack.c.b16 %v6219, %v6217
        %v6238 = vpack.c.b16 %v6220, %v6218
        %v6239 = vpack.c.b16 %v6223, %v6221
        %v6240 = vpack.c.b16 %v6224, %v6222
        %6257 = vmatprep.subr.bf16.mxu0 %v6226
        %6258 = vmatpush1.bf16.msra.mxu0 %v6225
        %6259 = vmatprep.subr.bf16.mxu0 %v6228
        %6260 = vmatpush1.bf16.msra.mxu0 %v6227
        %6261 = vmatprep.subr.bf16.mxu0 %v6230
        %6262 = vmatpush1.bf16.msra.mxu0 %v6229
        %6263 = vmatprep.subr.bf16.mxu0 %v6232
        %6264 = vmatpush1.bf16.msra.mxu0 %v6231
        %6265 = vmatprep.subr.bf16.mxu0 %v6234
        %6266 = vmatpush1.bf16.msra.mxu0 %v6233
        %6267 = vmatprep.subr.bf16.mxu0 %v6236
        %6268 = vmatpush1.bf16.msra.mxu0 %v6235
        %6269 = vmatprep.subr.bf16.mxu0 %v6238
        %6270 = vmatpush1.bf16.msra.mxu0 %v6237
        %6271 = vmatprep.subr.bf16.mxu0 %v6240
        %6272 = vmatpush1.bf16.msra.mxu0 %v6239
        %6273 = vmatprep.subr.bf16.mxu0 0
        %6274 = vmatpush1.bf16.msra.mxu0 0
        %6275 = vmatprep.subr.bf16.mxu0 0
        %6276 = vmatpush1.bf16.msra.mxu0 0
        %6277 = vmatprep.subr.bf16.mxu0 0
        %6278 = vmatpush1.bf16.msra.mxu0 0
        %6279 = vmatprep.subr.bf16.mxu0 0
        %6280 = vmatpush1.bf16.msra.mxu0 0
        %6281 = vmatprep.subr.bf16.mxu0 0
        %6282 = vmatpush1.bf16.msra.mxu0 0
        %6283 = vmatprep.subr.bf16.mxu0 0
        %6284 = vmatpush1.bf16.msra.mxu0 0
        %6285 = vmatprep.subr.bf16.mxu0 0
        %6286 = vmatpush1.bf16.msra.mxu0 0
        %6287 = vmatprep.subr.bf16.mxu0 0
        %6288 = vmatpush1.bf16.msra.mxu0 0
        %6289 = vmatprep.mubr.bf16.mxu0 0
        %6290 = vmatmul.mubr.bf16.gmra.mrb[0].mxu0 %v6145
        %v6291 = vpop.f32.mrb[0].mxu0
        %v6292 = vadd.f32 %v6172, %v6291
        %v6293 = vpop.f32.mrb[0].mxu0
        %v6294 = vadd.f32 %v6176, %v6293
        %v6295 = vpop.f32.mrb[0].mxu0
        %v6296 = vadd.f32 %v6172, %v6295
        %v6297 = vpop.f32.mrb[0].mxu0
        %v6298 = vadd.f32 %v6176, %v6297
        %6299 = vmatprep.mubr.bf16.mxu0 0
        %6300 = vmatmul.mubr.bf16.gmra.mrb[0].mxu0 %v6146
        %v6301 = vpop.f32.mrb[0].mxu0
        %v6302 = vadd.f32 %v6172, %v6301
        %v6303 = vpop.f32.mrb[0].mxu0
        %v6304 = vadd.f32 %v6176, %v6303
        %v6305 = vpop.f32.mrb[0].mxu0
        %v6306 = vadd.f32 %v6172, %v6305
        %v6307 = vpop.f32.mrb[0].mxu0
        %v6308 = vadd.f32 %v6176, %v6307
        %6309 = vmatprep.mubr.bf16.mxu0 0
        %6310 = vmatmul.mubr.bf16.gmra.mrb[0].mxu0 %v6147
        %v6311 = vpop.f32.mrb[0].mxu0
        %v6312 = vadd.f32 %v6172, %v6311
        %v6313 = vpop.f32.mrb[0].mxu0
        %v6314 = vadd.f32 %v6176, %v6313
        %v6315 = vpop.f32.mrb[0].mxu0
        %v6316 = vadd.f32 %v6172, %v6315
        %v6317 = vpop.f32.mrb[0].mxu0
        %v6318 = vadd.f32 %v6176, %v6317
        %6319 = vmatprep.mubr.bf16.mxu0 0
        %6320 = vmatmul.mubr.bf16.gmra.mrb[0].mxu0 %v6148
        %v6321 = vpop.f32.mrb[0].mxu0
        %v6322 = vadd.f32 %v6172, %v6321
        %v6323 = vpop.f32.mrb[0].mxu0
        %v6324 = vadd.f32 %v6176, %v6323
        %v6325 = vpop.f32.mrb[0].mxu0
        %v6326 = vadd.f32 %v6172, %v6325
        %v6327 = vpop.f32.mrb[0].mxu0
        %v6328 = vadd.f32 %v6176, %v6327
        %6329 = vmatprep.mubr.bf16.mxu0 0
        %6330 = vmatmul.mubr.bf16.gmra.mrb[0].mxu0 %v6149
        %v6331 = vpop.f32.mrb[0].mxu0
        %v6332 = vadd.f32 %v6172, %v6331
        %v6333 = vpop.f32.mrb[0].mxu0
        %v6334 = vadd.f32 %v6176, %v6333
        %v6335 = vpop.f32.mrb[0].mxu0
        %v6336 = vadd.f32 %v6172, %v6335
        %v6337 = vpop.f32.mrb[0].mxu0
        %v6338 = vadd.f32 %v6176, %v6337
        %6339 = vmatprep.mubr.bf16.mxu0 0
        %6340 = vmatmul.mubr.bf16.gmra.mrb[0].mxu0 %v6150
        %v6341 = vpop.f32.mrb[0].mxu0
        %v6342 = vadd.f32 %v6172, %v6341
        %v6343 = vpop.f32.mrb[0].mxu0
        %v6344 = vadd.f32 %v6176, %v6343
        %v6345 = vpop.f32.mrb[0].mxu0
        %v6346 = vadd.f32 %v6172, %v6345
        %v6347 = vpop.f32.mrb[0].mxu0
        %v6348 = vadd.f32 %v6176, %v6347
        %6349 = vmatprep.mubr.bf16.mxu0 0
        %6350 = vmatmul.mubr.bf16.gmra.mrb[0].mxu0 %v6151
        %v6351 = vpop.f32.mrb[0].mxu0
        %v6352 = vadd.f32 %v6172, %v6351
        %v6353 = vpop.f32.mrb[0].mxu0
        %v6354 = vadd.f32 %v6176, %v6353
        %v6355 = vpop.f32.mrb[0].mxu0
        %v6356 = vadd.f32 %v6172, %v6355
        %v6357 = vpop.f32.mrb[0].mxu0
        %v6358 = vadd.f32 %v6176, %v6357
        %6359 = vmatprep.mubr.bf16.mxu0 0
        %6360 = vmatmul.mubr.bf16.gmra.mrb[0].mxu0 %v6152
        %v6361 = vpop.f32.mrb[0].mxu0
        %v6362 = vadd.f32 %v6172, %v6361
        %v6363 = vpop.f32.mrb[0].mxu0
        %v6364 = vadd.f32 %v6176, %v6363
        %v6365 = vpop.f32.mrb[0].mxu0
        %v6366 = vadd.f32 %v6172, %v6365
        %v6367 = vpop.f32.mrb[0].mxu0
        %v6368 = vadd.f32 %v6176, %v6367
        %6369 = vdwg.mxu0
        %v6370 = vmul.f32 %v6292, %v6292
        %v6371 = vmul.f32 %v6294, %v6294
        %v6372 = vmul.f32 %v6296, %v6296
        %v6373 = vmul.f32 %v6298, %v6298
        %v6374 = vmul.f32 %v6302, %v6302
        %v6375 = vmul.f32 %v6304, %v6304
        %v6376 = vmul.f32 %v6306, %v6306
        %v6377 = vmul.f32 %v6308, %v6308
        %v6378 = vmul.f32 %v6312, %v6312
        %v6379 = vmul.f32 %v6314, %v6314
        %v6380 = vmul.f32 %v6316, %v6316
        %v6381 = vmul.f32 %v6318, %v6318
        %v6382 = vmul.f32 %v6322, %v6322
        %v6383 = vmul.f32 %v6324, %v6324
        %v6384 = vmul.f32 %v6326, %v6326
        %v6385 = vmul.f32 %v6328, %v6328
        %v6386 = vmul.f32 %v6332, %v6332
        %v6387 = vmul.f32 %v6334, %v6334
        %v6388 = vmul.f32 %v6336, %v6336
        %v6389 = vmul.f32 %v6338, %v6338
        %v6390 = vmul.f32 %v6342, %v6342
        %v6391 = vmul.f32 %v6344, %v6344
        %v6392 = vmul.f32 %v6346, %v6346
        %v6393 = vmul.f32 %v6348, %v6348
        %v6394 = vmul.f32 %v6352, %v6352
        %v6395 = vmul.f32 %v6354, %v6354
        %v6396 = vmul.f32 %v6356, %v6356
        %v6397 = vmul.f32 %v6358, %v6358
        %v6398 = vmul.f32 %v6362, %v6362
        %v6399 = vmul.f32 %v6364, %v6364
        %v6400 = vmul.f32 %v6366, %v6366
        %v6401 = vmul.f32 %v6368, %v6368
        %v6402 = vmul.f32 %v6292, %v6370
        %v6403 = vmul.f32 %v6294, %v6371
        %v6404 = vmul.f32 %v6296, %v6372
        %v6405 = vmul.f32 %v6298, %v6373
        %v6406 = vmul.f32 %v6302, %v6374
        %v6407 = vmul.f32 %v6304, %v6375
        %v6408 = vmul.f32 %v6306, %v6376
        %v6409 = vmul.f32 %v6308, %v6377
        %v6410 = vmul.f32 %v6312, %v6378
        %v6411 = vmul.f32 %v6314, %v6379
        %v6412 = vmul.f32 %v6316, %v6380
        %v6413 = vmul.f32 %v6318, %v6381
        %v6414 = vmul.f32 %v6322, %v6382
        %v6415 = vmul.f32 %v6324, %v6383
        %v6416 = vmul.f32 %v6326, %v6384
        %v6417 = vmul.f32 %v6328, %v6385
        %v6418 = vmul.f32 %v6332, %v6386
        %v6419 = vmul.f32 %v6334, %v6387
        %v6420 = vmul.f32 %v6336, %v6388
        %v6421 = vmul.f32 %v6338, %v6389
        %v6422 = vmul.f32 %v6342, %v6390
        %v6423 = vmul.f32 %v6344, %v6391
        %v6424 = vmul.f32 %v6346, %v6392
        %v6425 = vmul.f32 %v6348, %v6393
        %v6426 = vmul.f32 %v6352, %v6394
        %v6427 = vmul.f32 %v6354, %v6395
        %v6428 = vmul.f32 %v6356, %v6396
        %v6429 = vmul.f32 %v6358, %v6397
        %v6430 = vmul.f32 %v6362, %v6398
        %v6431 = vmul.f32 %v6364, %v6399
        %v6432 = vmul.f32 %v6366, %v6400
        %v6433 = vmul.f32 %v6368, %v6401
        %v6434 = vmul.f32 %v6402, 0.044715
        %v6435 = vmul.f32 %v6403, 0.044715
        %v6436 = vmul.f32 %v6404, 0.044715
        %v6437 = vmul.f32 %v6405, 0.044715
        %v6438 = vmul.f32 %v6406, 0.044715
        %v6439 = vmul.f32 %v6407, 0.044715
        %v6440 = vmul.f32 %v6408, 0.044715
        %v6441 = vmul.f32 %v6409, 0.044715
        %v6442 = vmul.f32 %v6410, 0.044715
        %v6443 = vmul.f32 %v6411, 0.044715
        %v6444 = vmul.f32 %v6412, 0.044715
        %v6445 = vmul.f32 %v6413, 0.044715
        %v6446 = vmul.f32 %v6414, 0.044715
        %v6447 = vmul.f32 %v6415, 0.044715
        %v6448 = vmul.f32 %v6416, 0.044715
        %v6449 = vmul.f32 %v6417, 0.044715
        %v6450 = vmul.f32 %v6418, 0.044715
        %v6451 = vmul.f32 %v6419, 0.044715
        %v6452 = vmul.f32 %v6420, 0.044715
        %v6453 = vmul.f32 %v6421, 0.044715
        %v6454 = vmul.f32 %v6422, 0.044715
        %v6455 = vmul.f32 %v6423, 0.044715
        %v6456 = vmul.f32 %v6424, 0.044715
        %v6457 = vmul.f32 %v6425, 0.044715
        %v6458 = vmul.f32 %v6426, 0.044715
        %v6459 = vmul.f32 %v6427, 0.044715
        %v6460 = vmul.f32 %v6428, 0.044715
        %v6461 = vmul.f32 %v6429, 0.044715
        %v6462 = vmul.f32 %v6430, 0.044715
        %v6463 = vmul.f32 %v6431, 0.044715
        %v6464 = vmul.f32 %v6432, 0.044715
        %v6465 = vmul.f32 %v6433, 0.044715
        %v6466 = vadd.f32 %v6292, %v6434
        %v6467 = vadd.f32 %v6294, %v6435
        %v6468 = vadd.f32 %v6296, %v6436
        %v6469 = vadd.f32 %v6298, %v6437
        %v6470 = vadd.f32 %v6302, %v6438
        %v6471 = vadd.f32 %v6304, %v6439
        %v6472 = vadd.f32 %v6306, %v6440
        %v6473 = vadd.f32 %v6308, %v6441
        %v6474 = vadd.f32 %v6312, %v6442
        %v6475 = vadd.f32 %v6314, %v6443
        %v6476 = vadd.f32 %v6316, %v6444
        %v6477 = vadd.f32 %v6318, %v6445
        %v6478 = vadd.f32 %v6322, %v6446
        %v6479 = vadd.f32 %v6324, %v6447
        %v6480 = vadd.f32 %v6326, %v6448
        %v6481 = vadd.f32 %v6328, %v6449
        %v6482 = vadd.f32 %v6332, %v6450
        %v6483 = vadd.f32 %v6334, %v6451
        %v6484 = vadd.f32 %v6336, %v6452
        %v6485 = vadd.f32 %v6338, %v6453
        %v6486 = vadd.f32 %v6342, %v6454
        %v6487 = vadd.f32 %v6344, %v6455
        %v6488 = vadd.f32 %v6346, %v6456
        %v6489 = vadd.f32 %v6348, %v6457
        %v6490 = vadd.f32 %v6352, %v6458
        %v6491 = vadd.f32 %v6354, %v6459
        %v6492 = vadd.f32 %v6356, %v6460
        %v6493 = vadd.f32 %v6358, %v6461
        %v6494 = vadd.f32 %v6362, %v6462
        %v6495 = vadd.f32 %v6364, %v6463
        %v6496 = vadd.f32 %v6366, %v6464
        %v6497 = vadd.f32 %v6368, %v6465
        %v6498 = vmul.f32 %v6466, 0.7978846
        %v6499 = vmul.f32 %v6467, 0.7978846
        %v6500 = vmul.f32 %v6468, 0.7978846
        %v6501 = vmul.f32 %v6469, 0.7978846
        %v6502 = vmul.f32 %v6470, 0.7978846
        %v6503 = vmul.f32 %v6471, 0.7978846
        %v6504 = vmul.f32 %v6472, 0.7978846
        %v6505 = vmul.f32 %v6473, 0.7978846
        %v6506 = vmul.f32 %v6474, 0.7978846
        %v6507 = vmul.f32 %v6475, 0.7978846
        %v6508 = vmul.f32 %v6476, 0.7978846
        %v6509 = vmul.f32 %v6477, 0.7978846
        %v6510 = vmul.f32 %v6478, 0.7978846
        %v6511 = vmul.f32 %v6479, 0.7978846
        %v6512 = vmul.f32 %v6480, 0.7978846
        %v6513 = vmul.f32 %v6481, 0.7978846
        %v6514 = vmul.f32 %v6482, 0.7978846
        %v6515 = vmul.f32 %v6483, 0.7978846
        %v6516 = vmul.f32 %v6484, 0.7978846
        %v6517 = vmul.f32 %v6485, 0.7978846
        %v6518 = vmul.f32 %v6486, 0.7978846
        %v6519 = vmul.f32 %v6487, 0.7978846
        %v6520 = vmul.f32 %v6488, 0.7978846
        %v6521 = vmul.f32 %v6489, 0.7978846
        %v6522 = vmul.f32 %v6490, 0.7978846
        %v6523 = vmul.f32 %v6491, 0.7978846
        %v6524 = vmul.f32 %v6492, 0.7978846
        %v6525 = vmul.f32 %v6493, 0.7978846
        %v6526 = vmul.f32 %v6494, 0.7978846
        %v6527 = vmul.f32 %v6495, 0.7978846
        %v6528 = vmul.f32 %v6496, 0.7978846
        %v6529 = vmul.f32 %v6497, 0.7978846
        %v6530 = vtanh.pop %v6498
        %v6531 = vtanh.pop %v6499
        %v6532 = vtanh.pop %v6500
        %v6533 = vtanh.pop %v6501
        %v6534 = vtanh.pop %v6502
        %v6535 = vtanh.pop %v6503
        %v6536 = vtanh.pop %v6504
        %v6537 = vtanh.pop %v6505
        %v6538 = vtanh.pop %v6506
        %v6539 = vtanh.pop %v6507
        %v6540 = vtanh.pop %v6508
        %v6541 = vtanh.pop %v6509
        %v6542 = vtanh.pop %v6510
        %v6543 = vtanh.pop %v6511
        %v6544 = vtanh.pop %v6512
        %v6545 = vtanh.pop %v6513
        %v6546 = vtanh.pop %v6514
        %v6547 = vtanh.pop %v6515
        %v6548 = vtanh.pop %v6516
        %v6549 = vtanh.pop %v6517
        %v6550 = vtanh.pop %v6518
        %v6551 = vtanh.pop %v6519
        %v6552 = vtanh.pop %v6520
        %v6553 = vtanh.pop %v6521
        %v6554 = vtanh.pop %v6522
        %v6555 = vtanh.pop %v6523
        %v6556 = vtanh.pop %v6524
        %v6557 = vtanh.pop %v6525
        %v6558 = vtanh.pop %v6526
        %v6559 = vtanh.pop %v6527
        %v6560 = vtanh.pop %v6528
        %v6561 = vtanh.pop %v6529
        %v6562 = vadd.f32 %v6530, 1.0
        %v6563 = vadd.f32 %v6531, 1.0
        %v6564 = vadd.f32 %v6532, 1.0
        %v6565 = vadd.f32 %v6533, 1.0
        %v6566 = vadd.f32 %v6534, 1.0
        %v6567 = vadd.f32 %v6535, 1.0
        %v6568 = vadd.f32 %v6536, 1.0
        %v6569 = vadd.f32 %v6537, 1.0
        %v6570 = vadd.f32 %v6538, 1.0
        %v6571 = vadd.f32 %v6539, 1.0
        %v6572 = vadd.f32 %v6540, 1.0
        %v6573 = vadd.f32 %v6541, 1.0
        %v6574 = vadd.f32 %v6542, 1.0
        %v6575 = vadd.f32 %v6543, 1.0
        %v6576 = vadd.f32 %v6544, 1.0
        %v6577 = vadd.f32 %v6545, 1.0
        %v6578 = vadd.f32 %v6546, 1.0
        %v6579 = vadd.f32 %v6547, 1.0
        %v6580 = vadd.f32 %v6548, 1.0
        %v6581 = vadd.f32 %v6549, 1.0
        %v6582 = vadd.f32 %v6550, 1.0
        %v6583 = vadd.f32 %v6551, 1.0
        %v6584 = vadd.f32 %v6552, 1.0
        %v6585 = vadd.f32 %v6553, 1.0
        %v6586 = vadd.f32 %v6554, 1.0
        %v6587 = vadd.f32 %v6555, 1.0
        %v6588 = vadd.f32 %v6556, 1.0
        %v6589 = vadd.f32 %v6557, 1.0
        %v6590 = vadd.f32 %v6558, 1.0
        %v6591 = vadd.f32 %v6559, 1.0
        %v6592 = vadd.f32 %v6560, 1.0
        %v6593 = vadd.f32 %v6561, 1.0
        %v6594 = vmul.f32 %v6562, 0.5
        %v6595 = vmul.f32 %v6563, 0.5
        %v6596 = vmul.f32 %v6564, 0.5
        %v6597 = vmul.f32 %v6565, 0.5
        %v6598 = vmul.f32 %v6566, 0.5
        %v6599 = vmul.f32 %v6567, 0.5
        %v6600 = vmul.f32 %v6568, 0.5
        %v6601 = vmul.f32 %v6569, 0.5
        %v6602 = vmul.f32 %v6570, 0.5
        %v6603 = vmul.f32 %v6571, 0.5
        %v6604 = vmul.f32 %v6572, 0.5
        %v6605 = vmul.f32 %v6573, 0.5
        %v6606 = vmul.f32 %v6574, 0.5
        %v6607 = vmul.f32 %v6575, 0.5
        %v6608 = vmul.f32 %v6576, 0.5
        %v6609 = vmul.f32 %v6577, 0.5
        %v6610 = vmul.f32 %v6578, 0.5
        %v6611 = vmul.f32 %v6579, 0.5
        %v6612 = vmul.f32 %v6580, 0.5
        %v6613 = vmul.f32 %v6581, 0.5
        %v6614 = vmul.f32 %v6582, 0.5
        %v6615 = vmul.f32 %v6583, 0.5
        %v6616 = vmul.f32 %v6584, 0.5
        %v6617 = vmul.f32 %v6585, 0.5
        %v6618 = vmul.f32 %v6586, 0.5
        %v6619 = vmul.f32 %v6587, 0.5
        %v6620 = vmul.f32 %v6588, 0.5
        %v6621 = vmul.f32 %v6589, 0.5
        %v6622 = vmul.f32 %v6590, 0.5
        %v6623 = vmul.f32 %v6591, 0.5
        %v6624 = vmul.f32 %v6592, 0.5
        %v6625 = vmul.f32 %v6593, 0.5
        %v6626 = vmul.f32 %v6292, %v6594
        %v6627 = vmul.f32 %v6294, %v6595
        %v6628 = vmul.f32 %v6296, %v6596
        %v6629 = vmul.f32 %v6298, %v6597
        %v6630 = vmul.f32 %v6302, %v6598
        %v6631 = vmul.f32 %v6304, %v6599
        %v6632 = vmul.f32 %v6306, %v6600
        %v6633 = vmul.f32 %v6308, %v6601
        %v6634 = vmul.f32 %v6312, %v6602
        %v6635 = vmul.f32 %v6314, %v6603
        %v6636 = vmul.f32 %v6316, %v6604
        %v6637 = vmul.f32 %v6318, %v6605
        %v6638 = vmul.f32 %v6322, %v6606
        %v6639 = vmul.f32 %v6324, %v6607
        %v6640 = vmul.f32 %v6326, %v6608
        %v6641 = vmul.f32 %v6328, %v6609
        %v6642 = vmul.f32 %v6332, %v6610
        %v6643 = vmul.f32 %v6334, %v6611
        %v6644 = vmul.f32 %v6336, %v6612
        %v6645 = vmul.f32 %v6338, %v6613
        %v6646 = vmul.f32 %v6342, %v6614
        %v6647 = vmul.f32 %v6344, %v6615
        %v6648 = vmul.f32 %v6346, %v6616
        %v6649 = vmul.f32 %v6348, %v6617
        %v6650 = vmul.f32 %v6352, %v6618
        %v6651 = vmul.f32 %v6354, %v6619
        %v6652 = vmul.f32 %v6356, %v6620
        %v6653 = vmul.f32 %v6358, %v6621
        %v6654 = vmul.f32 %v6362, %v6622
        %v6655 = vmul.f32 %v6364, %v6623
        %v6656 = vmul.f32 %v6366, %v6624
        %v6657 = vmul.f32 %v6368, %v6625
        %v6658 = vpack.c.bf16 %v6628, %v6626
        %v6659 = vpack.c.bf16 %v6629, %v6627
        %v6660 = vpack.c.bf16 %v6632, %v6630
        %v6661 = vpack.c.bf16 %v6633, %v6631
        %v6662 = vpack.c.bf16 %v6636, %v6634
        %v6663 = vpack.c.bf16 %v6637, %v6635
        %v6664 = vpack.c.bf16 %v6640, %v6638
        %v6665 = vpack.c.bf16 %v6641, %v6639
        %v6666 = vpack.c.bf16 %v6644, %v6642
        %v6667 = vpack.c.bf16 %v6645, %v6643
        %v6668 = vpack.c.bf16 %v6648, %v6646
        %v6669 = vpack.c.bf16 %v6649, %v6647
        %v6670 = vpack.c.bf16 %v6652, %v6650
        %v6671 = vpack.c.bf16 %v6653, %v6651
        %v6672 = vpack.c.bf16 %v6656, %v6654
        %v6673 = vpack.c.bf16 %v6657, %v6655
        %v6674 = vld [vmem:[%s476] sm:$0xf]
        %v6675 = vld [vmem:[%s476 + $0x4] sm:$0xf]
        %v6676 = vld [vmem:[%s476 + $0x8] sm:$0xf]
        %v6677 = vld [vmem:[%s476 + $0xc] sm:$0xf]
        %v6678 = vld [vmem:[%s476 + $0x10] sm:$0xf]
        %v6679 = vld [vmem:[%s476 + $0x14] sm:$0xf]
        %v6680 = vld [vmem:[%s476 + $0x18] sm:$0xf]
        %v6681 = vld [vmem:[%s476 + $0x1c] sm:$0xf]
        %v6682 = vld [vmem:[%s476 + $0x20] sm:$0xf]
        %v6683 = vld [vmem:[%s476 + $0x24] sm:$0xf]
        %v6684 = vld [vmem:[%s476 + $0x28] sm:$0xf]
        %v6685 = vld [vmem:[%s476 + $0x2c] sm:$0xf]
        %v6686 = vld [vmem:[%s476 + $0x30] sm:$0xf]
        %v6687 = vld [vmem:[%s476 + $0x34] sm:$0xf]
        %v6688 = vld [vmem:[%s476 + $0x38] sm:$0xf]
        %v6689 = vld [vmem:[%s476 + $0x3c] sm:$0xf]
        %v6690 = vld [vmem:[%s476 + $0x40] sm:$0xf]
        %v6691 = vld [vmem:[%s476 + $0x44] sm:$0xf]
        %v6692 = vld [vmem:[%s476 + $0x48] sm:$0xf]
        %v6693 = vld [vmem:[%s476 + $0x4c] sm:$0xf]
        %v6694 = vld [vmem:[%s476 + $0x50] sm:$0xf]
        %v6695 = vld [vmem:[%s476 + $0x54] sm:$0xf]
        %v6696 = vld [vmem:[%s476 + $0x58] sm:$0xf]
        %v6697 = vld [vmem:[%s476 + $0x5c] sm:$0xf]
        %v6698 = vld [vmem:[%s476 + $0x60] sm:$0xf]
        %v6699 = vld [vmem:[%s476 + $0x64] sm:$0xf]
        %v6700 = vld [vmem:[%s476 + $0x68] sm:$0xf]
        %v6701 = vld [vmem:[%s476 + $0x6c] sm:$0xf]
        %v6702 = vld [vmem:[%s476 + $0x70] sm:$0xf]
        %v6703 = vld [vmem:[%s476 + $0x74] sm:$0xf]
        %v6704 = vld [vmem:[%s476 + $0x78] sm:$0xf]
        %v6705 = vld [vmem:[%s476 + $0x7c] sm:$0xf]
        %v6738 = vunpack.c.l.b16 %v6674
        %v6739 = vunpack.c.l.b16 %v6675
        %v6740 = vunpack.c.l.b16 %v6676
        %v6741 = vunpack.c.l.b16 %v6677
        %v6742 = vunpack.c.l.b16 %v6678
        %v6743 = vunpack.c.l.b16 %v6679
        %v6744 = vunpack.c.l.b16 %v6680
        %v6745 = vunpack.c.l.b16 %v6681
        %v6746 = vunpack.c.l.b16 %v6682
        %v6747 = vunpack.c.l.b16 %v6683
        %v6748 = vunpack.c.l.b16 %v6684
        %v6749 = vunpack.c.l.b16 %v6685
        %v6750 = vunpack.c.l.b16 %v6686
        %v6751 = vunpack.c.l.b16 %v6687
        %v6752 = vunpack.c.l.b16 %v6688
        %v6753 = vunpack.c.l.b16 %v6689
        %v6754 = vunpack.c.l.b16 %v6690
        %v6755 = vunpack.c.l.b16 %v6691
        %v6756 = vunpack.c.l.b16 %v6692
        %v6757 = vunpack.c.l.b16 %v6693
        %v6758 = vunpack.c.l.b16 %v6694
        %v6759 = vunpack.c.l.b16 %v6695
        %v6760 = vunpack.c.l.b16 %v6696
        %v6761 = vunpack.c.l.b16 %v6697
        %v6762 = vunpack.c.l.b16 %v6698
        %v6763 = vunpack.c.l.b16 %v6699
        %v6764 = vunpack.c.l.b16 %v6700
        %v6765 = vunpack.c.l.b16 %v6701
        %v6766 = vunpack.c.l.b16 %v6702
        %v6767 = vunpack.c.l.b16 %v6703
        %v6768 = vunpack.c.l.b16 %v6704
        %v6769 = vunpack.c.l.b16 %v6705
        %v6770 = vpack.c.b16 %v6739, %v6738
        %v6771 = vpack.c.b16 %v6741, %v6740
        %v6772 = vpack.c.b16 %v6743, %v6742
        %v6773 = vpack.c.b16 %v6745, %v6744
        %v6774 = vpack.c.b16 %v6747, %v6746
        %v6775 = vpack.c.b16 %v6749, %v6748
        %v6776 = vpack.c.b16 %v6751, %v6750
        %v6777 = vpack.c.b16 %v6753, %v6752
        %v6778 = vpack.c.b16 %v6755, %v6754
        %v6779 = vpack.c.b16 %v6757, %v6756
        %v6780 = vpack.c.b16 %v6759, %v6758
        %v6781 = vpack.c.b16 %v6761, %v6760
        %v6782 = vpack.c.b16 %v6763, %v6762
        %v6783 = vpack.c.b16 %v6765, %v6764
        %v6784 = vpack.c.b16 %v6767, %v6766
        %v6785 = vpack.c.b16 %v6769, %v6768
        %6802 = vmatprep.subr.bf16.mxu0 0
        %6803 = vmatpush1.bf16.msra.mxu0 %v6770
        %6804 = vmatprep.subr.bf16.mxu0 0
        %6805 = vmatpush1.bf16.msra.mxu0 %v6771
        %6806 = vmatprep.subr.bf16.mxu0 0
        %6807 = vmatpush1.bf16.msra.mxu0 %v6772
        %6808 = vmatprep.subr.bf16.mxu0 0
        %6809 = vmatpush1.bf16.msra.mxu0 %v6773
        %6810 = vmatprep.subr.bf16.mxu0 0
        %6811 = vmatpush1.bf16.msra.mxu0 %v6774
        %6812 = vmatprep.subr.bf16.mxu0 0
        %6813 = vmatpush1.bf16.msra.mxu0 %v6775
        %6814 = vmatprep.subr.bf16.mxu0 0
        %6815 = vmatpush1.bf16.msra.mxu0 %v6776
        %6816 = vmatprep.subr.bf16.mxu0 0
        %6817 = vmatpush1.bf16.msra.mxu0 %v6777
        %6818 = vmatprep.subr.bf16.mxu0 0
        %6819 = vmatpush1.bf16.msra.mxu0 %v6778
        %6820 = vmatprep.subr.bf16.mxu0 0
        %6821 = vmatpush1.bf16.msra.mxu0 %v6779
        %6822 = vmatprep.subr.bf16.mxu0 0
        %6823 = vmatpush1.bf16.msra.mxu0 %v6780
        %6824 = vmatprep.subr.bf16.mxu0 0
        %6825 = vmatpush1.bf16.msra.mxu0 %v6781
        %6826 = vmatprep.subr.bf16.mxu0 0
        %6827 = vmatpush1.bf16.msra.mxu0 %v6782
        %6828 = vmatprep.subr.bf16.mxu0 0
        %6829 = vmatpush1.bf16.msra.mxu0 %v6783
        %6830 = vmatprep.subr.bf16.mxu0 0
        %6831 = vmatpush1.bf16.msra.mxu0 %v6784
        %6832 = vmatprep.subr.bf16.mxu0 0
        %6833 = vmatpush1.bf16.msra.mxu0 %v6785
        %6834 = vmatprep.mubr.bf16.mxu0 %v6659
        %6835 = vmatmul.mubr.bf16.gmra.mrb[0].mxu0 %v6658
        %v6836 = vpop.f32.mrb[0].mxu0
        %v6837 = vadd.f32 0.0, %v6836
        %v6838 = vpop.f32.mrb[0].mxu0
        %v6839 = vpop.f32.mrb[0].mxu0
        %v6840 = vadd.f32 0.0, %v6839
        %v6841 = vpop.f32.mrb[0].mxu0
        %6842 = vmatprep.mubr.bf16.mxu0 %v6661
        %6843 = vmatmul.mubr.bf16.gmra.mrb[0].mxu0 %v6660
        %v6844 = vpop.f32.mrb[0].mxu0
        %v6845 = vadd.f32 0.0, %v6844
        %v6846 = vpop.f32.mrb[0].mxu0
        %v6847 = vpop.f32.mrb[0].mxu0
        %v6848 = vadd.f32 0.0, %v6847
        %v6849 = vpop.f32.mrb[0].mxu0
        %6850 = vmatprep.mubr.bf16.mxu0 %v6663
        %6851 = vmatmul.mubr.bf16.gmra.mrb[0].mxu0 %v6662
        %v6852 = vpop.f32.mrb[0].mxu0
        %v6853 = vadd.f32 0.0, %v6852
        %v6854 = vpop.f32.mrb[0].mxu0
        %v6855 = vpop.f32.mrb[0].mxu0
        %v6856 = vadd.f32 0.0, %v6855
        %v6857 = vpop.f32.mrb[0].mxu0
        %6858 = vmatprep.mubr.bf16.mxu0 %v6665
        %6859 = vmatmul.mubr.bf16.gmra.mrb[0].mxu0 %v6664
        %v6860 = vpop.f32.mrb[0].mxu0
        %v6861 = vadd.f32 0.0, %v6860
        %v6862 = vpop.f32.mrb[0].mxu0
        %v6863 = vpop.f32.mrb[0].mxu0
        %v6864 = vadd.f32 0.0, %v6863
        %v6865 = vpop.f32.mrb[0].mxu0
        %6866 = vmatprep.mubr.bf16.mxu0 %v6667
        %6867 = vmatmul.mubr.bf16.gmra.mrb[0].mxu0 %v6666
        %v6868 = vpop.f32.mrb[0].mxu0
        %v6869 = vadd.f32 0.0, %v6868
        %v6870 = vpop.f32.mrb[0].mxu0
        %v6871 = vpop.f32.mrb[0].mxu0
        %v6872 = vadd.f32 0.0, %v6871
        %v6873 = vpop.f32.mrb[0].mxu0
        %6874 = vmatprep.mubr.bf16.mxu0 %v6669
        %6875 = vmatmul.mubr.bf16.gmra.mrb[0].mxu0 %v6668
        %v6876 = vpop.f32.mrb[0].mxu0
        %v6877 = vadd.f32 0.0, %v6876
        %v6878 = vpop.f32.mrb[0].mxu0
        %v6879 = vpop.f32.mrb[0].mxu0
        %v6880 = vadd.f32 0.0, %v6879
        %v6881 = vpop.f32.mrb[0].mxu0
        %6882 = vmatprep.mubr.bf16.mxu0 %v6671
        %6883 = vmatmul.mubr.bf16.gmra.mrb[0].mxu0 %v6670
        %v6884 = vpop.f32.mrb[0].mxu0
        %v6885 = vadd.f32 0.0, %v6884
        %v6886 = vpop.f32.mrb[0].mxu0
        %v6887 = vpop.f32.mrb[0].mxu0
        %v6888 = vadd.f32 0.0, %v6887
        %v6889 = vpop.f32.mrb[0].mxu0
        %6890 = vmatprep.mubr.bf16.mxu0 %v6673
        %6891 = vmatmul.mubr.bf16.gmra.mrb[0].mxu0 %v6672
        %v6892 = vpop.f32.mrb[0].mxu0
        %v6893 = vadd.f32 0.0, %v6892
        %v6894 = vpop.f32.mrb[0].mxu0
        %v6895 = vpop.f32.mrb[0].mxu0
        %v6896 = vadd.f32 0.0, %v6895
        %v6897 = vpop.f32.mrb[0].mxu0
        %6898 = vdwg.mxu0
        %v6899 = vadd.f32 %v5913, %v6837
        %v6900 = vadd.f32 %v5914, %v6840
        %v6901 = vadd.f32 %v5915, %v6845
        %v6902 = vadd.f32 %v5916, %v6848
        %v6903 = vadd.f32 %v5917, %v6853
        %v6904 = vadd.f32 %v5918, %v6856
        %v6905 = vadd.f32 %v5919, %v6861
        %v6906 = vadd.f32 %v5920, %v6864
        %v6907 = vadd.f32 %v5921, %v6869
        %v6908 = vadd.f32 %v5922, %v6872
        %v6909 = vadd.f32 %v5923, %v6877
        %v6910 = vadd.f32 %v5924, %v6880
        %v6911 = vadd.f32 %v5925, %v6885
        %v6912 = vadd.f32 %v5926, %v6888
        %v6913 = vadd.f32 %v5927, %v6893
        %v6914 = vadd.f32 %v5928, %v6896
        %v6915 = vlaneseq
        %v6916 = vshrl.u32 %v6915, 7
        %v6917 = vsub.s32 7, %v6916
        %v6918 = vrot.slane %v789, %v6917
        %v6919 = vadd.f32 %v6899, %v6918
        %v6920 = vadd.f32 %v6900, %v6918
        %v6921 = vadd.f32 %v6901, %v6918
        %v6922 = vadd.f32 %v6902, %v6918
        %v6923 = vadd.f32 %v6903, %v6918
        %v6924 = vadd.f32 %v6904, %v6918
        %v6925 = vadd.f32 %v6905, %v6918
        %v6926 = vadd.f32 %v6906, %v6918
        %v6927 = vadd.f32 %v6907, %v6918
        %v6928 = vadd.f32 %v6908, %v6918
        %v6929 = vadd.f32 %v6909, %v6918
        %v6930 = vadd.f32 %v6910, %v6918
        %v6931 = vadd.f32 %v6911, %v6918
        %v6932 = vadd.f32 %v6912, %v6918
        %v6933 = vadd.f32 %v6913, %v6918
        %v6934 = vadd.f32 %v6914, %v6918
        %6935 = vst [vmem:[#allocation2] sm:$0xff] %v6919
        %6936 = vst [vmem:[#allocation2 + $0x8] sm:$0xff] %v6920
        %6937 = vst [vmem:[#allocation2 + $0x10] sm:$0xff] %v6921
        %6938 = vst [vmem:[#allocation2 + $0x18] sm:$0xff] %v6922
        %6939 = vst [vmem:[#allocation2 + $0x20] sm:$0xff] %v6923
        %6940 = vst [vmem:[#allocation2 + $0x28] sm:$0xff] %v6924
        %6941 = vst [vmem:[#allocation2 + $0x30] sm:$0xff] %v6925
        %6942 = vst [vmem:[#allocation2 + $0x38] sm:$0xff] %v6926
        %6943 = vst [vmem:[#allocation2 + $0x40] sm:$0xff] %v6927
        %6944 = vst [vmem:[#allocation2 + $0x48] sm:$0xff] %v6928
        %6945 = vst [vmem:[#allocation2 + $0x50] sm:$0xff] %v6929
        %6946 = vst [vmem:[#allocation2 + $0x58] sm:$0xff] %v6930
        %6947 = vst [vmem:[#allocation2 + $0x60] sm:$0xff] %v6931
        %6948 = vst [vmem:[#allocation2 + $0x68] sm:$0xff] %v6932
        %6949 = vst [vmem:[#allocation2 + $0x70] sm:$0xff] %v6933
        %6950 = vst [vmem:[#allocation2 + $0x78] sm:$0xff] %v6934
        %p6951 = scmp.eq.s32.totalorder %s36, 1
        // Predicated region
        $region81: #{tpu_custom_call.1} parent=63 // pred_check
          %p6952 = pneg %p6951
        $region82: #{tpu_custom_call.1} parent=63 // pred_check_branch
          %6954 = sbr.rel (%p6952) target = $region84
        $region83: #{tpu_custom_call.1} parent=63 // pred_region
          %v6955 = vld [vmem:[%s9] sm:$0x1]
          %v6956 = vld [vmem:[%s10] sm:$0x1]
          %6957 = vadd.xlane.f32.xlu0 %v6919
          %v6958 = vpop.xlane.xlu0 %6957
          %6959 = vadd.xlane.f32.xlu0 %v6920
          %v6960 = vpop.xlane.xlu0 %6959
          %6961 = vadd.xlane.f32.xlu0 %v6921
          %v6962 = vpop.xlane.xlu0 %6961
          %6963 = vadd.xlane.f32.xlu0 %v6922
          %v6964 = vpop.xlane.xlu0 %6963
          %6965 = vadd.xlane.f32.xlu0 %v6923
          %v6966 = vpop.xlane.xlu0 %6965
          %6967 = vadd.xlane.f32.xlu0 %v6924
          %v6968 = vpop.xlane.xlu0 %6967
          %6969 = vadd.xlane.f32.xlu0 %v6925
          %v6970 = vpop.xlane.xlu0 %6969
          %6971 = vadd.xlane.f32.xlu0 %v6926
          %v6972 = vpop.xlane.xlu0 %6971
          %6973 = vadd.xlane.f32.xlu0 %v6927
          %v6974 = vpop.xlane.xlu0 %6973
          %6975 = vadd.xlane.f32.xlu0 %v6928
          %v6976 = vpop.xlane.xlu0 %6975
          %6977 = vadd.xlane.f32.xlu0 %v6929
          %v6978 = vpop.xlane.xlu0 %6977
          %6979 = vadd.xlane.f32.xlu0 %v6930
          %v6980 = vpop.xlane.xlu0 %6979
          %6981 = vadd.xlane.f32.xlu0 %v6931
          %v6982 = vpop.xlane.xlu0 %6981
          %6983 = vadd.xlane.f32.xlu0 %v6932
          %v6984 = vpop.xlane.xlu0 %6983
          %6985 = vadd.xlane.f32.xlu0 %v6933
          %v6986 = vpop.xlane.xlu0 %6985
          %6987 = vadd.xlane.f32.xlu0 %v6934
          %v6988 = vpop.xlane.xlu0 %6987
          %v6989 = vmul.f32 %v6958, %v824
          %v6990 = vmul.f32 %v6960, %v824
          %v6991 = vmul.f32 %v6962, %v824
          %v6992 = vmul.f32 %v6964, %v824
          %v6993 = vmul.f32 %v6966, %v824
          %v6994 = vmul.f32 %v6968, %v824
          %v6995 = vmul.f32 %v6970, %v824
          %v6996 = vmul.f32 %v6972, %v824
          %v6997 = vmul.f32 %v6974, %v824
          %v6998 = vmul.f32 %v6976, %v824
          %v6999 = vmul.f32 %v6978, %v824
          %v7000 = vmul.f32 %v6980, %v824
          %v7001 = vmul.f32 %v6982, %v824
          %v7002 = vmul.f32 %v6984, %v824
          %v7003 = vmul.f32 %v6986, %v824
          %v7004 = vmul.f32 %v6988, %v824
          %v7005 = vsub.f32 %v6919, %v6989
          %v7006 = vsub.f32 %v6920, %v6990
          %v7007 = vsub.f32 %v6921, %v6991
          %v7008 = vsub.f32 %v6922, %v6992
          %v7009 = vsub.f32 %v6923, %v6993
          %v7010 = vsub.f32 %v6924, %v6994
          %v7011 = vsub.f32 %v6925, %v6995
          %v7012 = vsub.f32 %v6926, %v6996
          %v7013 = vsub.f32 %v6927, %v6997
          %v7014 = vsub.f32 %v6928, %v6998
          %v7015 = vsub.f32 %v6929, %v6999
          %v7016 = vsub.f32 %v6930, %v7000
          %v7017 = vsub.f32 %v6931, %v7001
          %v7018 = vsub.f32 %v6932, %v7002
          %v7019 = vsub.f32 %v6933, %v7003
          %v7020 = vsub.f32 %v6934, %v7004
          %v7021 = vmul.f32 %v7005, %v7005
          %v7022 = vmul.f32 %v7006, %v7006
          %v7023 = vmul.f32 %v7007, %v7007
          %v7024 = vmul.f32 %v7008, %v7008
          %v7025 = vmul.f32 %v7009, %v7009
          %v7026 = vmul.f32 %v7010, %v7010
          %v7027 = vmul.f32 %v7011, %v7011
          %v7028 = vmul.f32 %v7012, %v7012
          %v7029 = vmul.f32 %v7013, %v7013
          %v7030 = vmul.f32 %v7014, %v7014
          %v7031 = vmul.f32 %v7015, %v7015
          %v7032 = vmul.f32 %v7016, %v7016
          %v7033 = vmul.f32 %v7017, %v7017
          %v7034 = vmul.f32 %v7018, %v7018
          %v7035 = vmul.f32 %v7019, %v7019
          %v7036 = vmul.f32 %v7020, %v7020
          %7037 = vadd.xlane.f32.xlu0 %v7021
          %v7038 = vpop.xlane.xlu0 %7037
          %7039 = vadd.xlane.f32.xlu0 %v7022
          %v7040 = vpop.xlane.xlu0 %7039
          %7041 = vadd.xlane.f32.xlu0 %v7023
          %v7042 = vpop.xlane.xlu0 %7041
          %7043 = vadd.xlane.f32.xlu0 %v7024
          %v7044 = vpop.xlane.xlu0 %7043
          %7045 = vadd.xlane.f32.xlu0 %v7025
          %v7046 = vpop.xlane.xlu0 %7045
          %7047 = vadd.xlane.f32.xlu0 %v7026
          %v7048 = vpop.xlane.xlu0 %7047
          %7049 = vadd.xlane.f32.xlu0 %v7027
          %v7050 = vpop.xlane.xlu0 %7049
          %7051 = vadd.xlane.f32.xlu0 %v7028
          %v7052 = vpop.xlane.xlu0 %7051
          %7053 = vadd.xlane.f32.xlu0 %v7029
          %v7054 = vpop.xlane.xlu0 %7053
          %7055 = vadd.xlane.f32.xlu0 %v7030
          %v7056 = vpop.xlane.xlu0 %7055
          %7057 = vadd.xlane.f32.xlu0 %v7031
          %v7058 = vpop.xlane.xlu0 %7057
          %7059 = vadd.xlane.f32.xlu0 %v7032
          %v7060 = vpop.xlane.xlu0 %7059
          %7061 = vadd.xlane.f32.xlu0 %v7033
          %v7062 = vpop.xlane.xlu0 %7061
          %7063 = vadd.xlane.f32.xlu0 %v7034
          %v7064 = vpop.xlane.xlu0 %7063
          %7065 = vadd.xlane.f32.xlu0 %v7035
          %v7066 = vpop.xlane.xlu0 %7065
          %7067 = vadd.xlane.f32.xlu0 %v7036
          %v7068 = vpop.xlane.xlu0 %7067
          %v7069 = vmul.f32 %v7038, %v824
          %v7070 = vmul.f32 %v7040, %v824
          %v7071 = vmul.f32 %v7042, %v824
          %v7072 = vmul.f32 %v7044, %v824
          %v7073 = vmul.f32 %v7046, %v824
          %v7074 = vmul.f32 %v7048, %v824
          %v7075 = vmul.f32 %v7050, %v824
          %v7076 = vmul.f32 %v7052, %v824
          %v7077 = vmul.f32 %v7054, %v824
          %v7078 = vmul.f32 %v7056, %v824
          %v7079 = vmul.f32 %v7058, %v824
          %v7080 = vmul.f32 %v7060, %v824
          %v7081 = vmul.f32 %v7062, %v824
          %v7082 = vmul.f32 %v7064, %v824
          %v7083 = vmul.f32 %v7066, %v824
          %v7084 = vmul.f32 %v7068, %v824
          %v7085 = vadd.f32 %v7069, 1e-06
          %v7086 = vadd.f32 %v7070, 1e-06
          %v7087 = vadd.f32 %v7071, 1e-06
          %v7088 = vadd.f32 %v7072, 1e-06
          %v7089 = vadd.f32 %v7073, 1e-06
          %v7090 = vadd.f32 %v7074, 1e-06
          %v7091 = vadd.f32 %v7075, 1e-06
          %v7092 = vadd.f32 %v7076, 1e-06
          %v7093 = vadd.f32 %v7077, 1e-06
          %v7094 = vadd.f32 %v7078, 1e-06
          %v7095 = vadd.f32 %v7079, 1e-06
          %v7096 = vadd.f32 %v7080, 1e-06
          %v7097 = vadd.f32 %v7081, 1e-06
          %v7098 = vadd.f32 %v7082, 1e-06
          %v7099 = vadd.f32 %v7083, 1e-06
          %v7100 = vadd.f32 %v7084, 1e-06
          %v7101 = vrsqrt.pop %v7085
          %v7102 = vrsqrt.pop %v7086
          %v7103 = vrsqrt.pop %v7087
          %v7104 = vrsqrt.pop %v7088
          %v7105 = vrsqrt.pop %v7089
          %v7106 = vrsqrt.pop %v7090
          %v7107 = vrsqrt.pop %v7091
          %v7108 = vrsqrt.pop %v7092
          %v7109 = vrsqrt.pop %v7093
          %v7110 = vrsqrt.pop %v7094
          %v7111 = vrsqrt.pop %v7095
          %v7112 = vrsqrt.pop %v7096
          %v7113 = vrsqrt.pop %v7097
          %v7114 = vrsqrt.pop %v7098
          %v7115 = vrsqrt.pop %v7099
          %v7116 = vrsqrt.pop %v7100
          %v7117 = vmul.f32 %v7005, %v7101
          %v7118 = vmul.f32 %v7006, %v7102
          %v7119 = vmul.f32 %v7007, %v7103
          %v7120 = vmul.f32 %v7008, %v7104
          %v7121 = vmul.f32 %v7009, %v7105
          %v7122 = vmul.f32 %v7010, %v7106
          %v7123 = vmul.f32 %v7011, %v7107
          %v7124 = vmul.f32 %v7012, %v7108
          %v7125 = vmul.f32 %v7013, %v7109
          %v7126 = vmul.f32 %v7014, %v7110
          %v7127 = vmul.f32 %v7015, %v7111
          %v7128 = vmul.f32 %v7016, %v7112
          %v7129 = vmul.f32 %v7017, %v7113
          %v7130 = vmul.f32 %v7018, %v7114
          %v7131 = vmul.f32 %v7019, %v7115
          %v7132 = vmul.f32 %v7020, %v7116
          %v7134 = vlaneseq
          %v7135 = vshrl.u32 %v7134, 7
          %v7136 = vsub.s32 0, %v7135
          %v7137 = vrot.slane %v6955, %v7136
          %v7139 = vmul.f32 %v7117, %v7137
          %v7140 = vmul.f32 %v7118, %v7137
          %v7141 = vmul.f32 %v7119, %v7137
          %v7142 = vmul.f32 %v7120, %v7137
          %v7143 = vmul.f32 %v7121, %v7137
          %v7144 = vmul.f32 %v7122, %v7137
          %v7145 = vmul.f32 %v7123, %v7137
          %v7146 = vmul.f32 %v7124, %v7137
          %v7147 = vmul.f32 %v7125, %v7137
          %v7148 = vmul.f32 %v7126, %v7137
          %v7149 = vmul.f32 %v7127, %v7137
          %v7150 = vmul.f32 %v7128, %v7137
          %v7151 = vmul.f32 %v7129, %v7137
          %v7152 = vmul.f32 %v7130, %v7137
          %v7153 = vmul.f32 %v7131, %v7137
          %v7154 = vmul.f32 %v7132, %v7137
          %v7156 = vlaneseq
          %v7157 = vshrl.u32 %v7156, 7
          %v7158 = vsub.s32 0, %v7157
          %v7159 = vrot.slane %v6956, %v7158
          %v7161 = vadd.f32 %v7139, %v7159
          %v7162 = vadd.f32 %v7140, %v7159
          %v7163 = vadd.f32 %v7141, %v7159
          %v7164 = vadd.f32 %v7142, %v7159
          %v7165 = vadd.f32 %v7143, %v7159
          %v7166 = vadd.f32 %v7144, %v7159
          %v7167 = vadd.f32 %v7145, %v7159
          %v7168 = vadd.f32 %v7146, %v7159
          %v7169 = vadd.f32 %v7147, %v7159
          %v7170 = vadd.f32 %v7148, %v7159
          %v7171 = vadd.f32 %v7149, %v7159
          %v7172 = vadd.f32 %v7150, %v7159
          %v7173 = vadd.f32 %v7151, %v7159
          %v7174 = vadd.f32 %v7152, %v7159
          %v7175 = vadd.f32 %v7153, %v7159
          %v7176 = vadd.f32 %v7154, %v7159
          %7177 = vst [vmem:[%s539] sm:$0xff] %v7161
          %7178 = vst [vmem:[%s539 + $0x8] sm:$0xff] %v7162
          %7179 = vst [vmem:[%s539 + $0x10] sm:$0xff] %v7163
          %7180 = vst [vmem:[%s539 + $0x18] sm:$0xff] %v7164
          %7181 = vst [vmem:[%s539 + $0x20] sm:$0xff] %v7165
          %7182 = vst [vmem:[%s539 + $0x28] sm:$0xff] %v7166
          %7183 = vst [vmem:[%s539 + $0x30] sm:$0xff] %v7167
          %7184 = vst [vmem:[%s539 + $0x38] sm:$0xff] %v7168
          %7185 = vst [vmem:[%s539 + $0x40] sm:$0xff] %v7169
          %7186 = vst [vmem:[%s539 + $0x48] sm:$0xff] %v7170
          %7187 = vst [vmem:[%s539 + $0x50] sm:$0xff] %v7171
          %7188 = vst [vmem:[%s539 + $0x58] sm:$0xff] %v7172
          %7189 = vst [vmem:[%s539 + $0x60] sm:$0xff] %v7173
          %7190 = vst [vmem:[%s539 + $0x68] sm:$0xff] %v7174
          %7191 = vst [vmem:[%s539 + $0x70] sm:$0xff] %v7175
          %7192 = vst [vmem:[%s539 + $0x78] sm:$0xff] %v7176
        $region84: #{tpu_custom_call.1} parent=63 // pred_fallthru
          _
        %s7193 = sand.u32 %s312, 1
        %s7194 = scalar_lea.sflag [#allocation5], %s7193
        %s7195 = sand.u32 %s312, 1
        %s7196 = smul.addr %s7195, 128
        %s7197 = scalar_lea.vmem [#allocation9], %s7196
        // Predicated region
        $region85: #{tpu_custom_call.1} parent=63 // pred_check
          %p7198 = pneg %p322
        $region86: #{tpu_custom_call.1} parent=63 // pred_check_branch
          %7200 = sbr.rel (%p7198) target = $region88
        $region87: #{tpu_custom_call.1} parent=63 // pred_region
          %s7201 = smul.u32 16, %s35
          %s7203 = ssub.s32 2048, 2048
          %7204 = vsyncadd %s7194, %s7203
          %s7205 = smul.addr %s7201, 128
          %s7206 = scalar_lea.hbm %s11, %s7205
          %s7207 = sshll.u32 %s7197, 4
          %s7208 = int_to_ptr.vmem [resolvable:$true] %s7207
          %7213 = dma.vmem_to_hbm [thread:$0]  %s7208, 2048, %s7206, %s7194, 128, 128, 8
        $region88: #{tpu_custom_call.1} parent=63 // pred_fallthru
          _
      $region64: #{tpu_custom_call.1} parent=5 // pred_fallthru
        _
      %p7214 = scmp.le.s32.totalorder 2, %s26
      // Predicated region
      $region89: #{tpu_custom_call.1} parent=5 // pred_check
        %p7215 = pneg %p7214
      $region90: #{tpu_custom_call.1} parent=5 // pred_check_branch
        %7217 = sbr.rel (%p7215) target = $region92
      $region91: #{tpu_custom_call.1} parent=5 // pred_region
        %s7218 = ssub.s32 %s26, 2
        // Predicated region
        $region93: #{tpu_custom_call.1} parent=91 // pred_check
          %p7219 = pneg %p328
        $region94: #{tpu_custom_call.1} parent=91 // pred_check_branch
          %7221 = sbr.rel (%p7219) target = $region96
        $region95: #{tpu_custom_call.1} parent=91 // pred_region
          %s7222 = sand.u32 %s313, 1
          %s7223 = scalar_lea.sflag [#allocation5], %s7222
          %s7224 = sand.u32 %s313, 1
          %s7225 = smul.addr %s7224, 128
          %s7226 = scalar_lea.vmem [#allocation9], %s7225
          %7227 = dma.done %s7223, 2048
        $region96: #{tpu_custom_call.1} parent=91 // pred_fallthru
          _
      $region92: #{tpu_custom_call.1} parent=5 // pred_fallthru
        _
    $region6: #{tpu_custom_call.1} parent=1 // loop_footer
      %s30 = sadd.s32 1, %s26
    $region7: #{tpu_custom_call.1} parent=1 // loop_footer_branch
      %25 = sbr.rel target = $region3
    $region8: #{tpu_custom_call.1} parent=1 // loop_exit
      _
    %7228 = vsyncpa [#allocation4], 1
    %s7229 = scalar_lea.sflag [#allocation4], 1
    %7230 = vsyncpa %s7229, 1
    %7231 = vsyncpa [#allocation7], 1
    %s7232 = scalar_lea.sflag [#allocation7], 1
    %7233 = vsyncpa %s7232, 1
    %7234 = vsyncpa [#allocation5], 1
    %s7235 = scalar_lea.sflag [#allocation5], 1
    %7236 = vsyncpa %s7235, 1

</llo_original>
